<compile_context>
chip_gen: v7x
topology: tpu7x:2x2x1
jax: 0.10.0
libtpu: 0.0.40
codegen_flags: <defaults>
</compile_context>

<pallas_src>
import functools
import numpy as np
import jax
import jax.numpy as jnp
from jax import lax
from jax.experimental import pallas as pl
from jax.experimental.pallas import tpu as pltpu

MAX_NODES = 4
OP_NAMES = ('none', 'skip_connect', 'nor_conv_1x1', 'nor_conv_3x3', 'avg_pool_3x3')
NUM_OPS = len(OP_NAMES)
BN_EPS = 1e-5


# ------------------------------ graph helpers ------------------------------
def build_graph(max_nodes):
    """edge2index (sorted, like the PyTorch module) + outgoing edges per source node."""
    keys = ['{:}<-{:}'.format(i, j) for i in range(1, max_nodes) for j in range(i)]
    edge2index = {k: idx for idx, k in enumerate(sorted(keys))}
    out_edges = {j: [] for j in range(max_nodes - 1)}
    for i in range(1, max_nodes):
        for j in range(i):
            out_edges[j].append((edge2index['{:}<-{:}'.format(i, j)], i))
    return edge2index, out_edges, len(keys)


def _round_up(x, m):
    return (x + m - 1) // m * m


def _inv_pool_count(H, W):
    ch = np.minimum(np.arange(H) + 1, H - 1) - np.maximum(np.arange(H) - 1, 0) + 1
    cw = np.minimum(np.arange(W) + 1, W - 1) - np.maximum(np.arange(W) - 1, 0) + 1
    inv = (1.0 / (ch[:, None] * cw[None, :])).astype(np.float32)
    return jnp.asarray(inv).reshape(1, H, W, 1)


def _pick_batch_tile(B, H, W, C):
    """Largest divisor of B whose f32 activation tile stays within ~4 MiB."""
    budget = 4 << 20
    bt = 1
    for cand in range(1, B + 1):
        if B % cand == 0 and cand * H * W * C * 4 <= budget:
            bt = cand
    return bt


def _vmem_limit(block_bytes, scratch_bytes):
    """Double-buffered pipeline blocks + scratch + headroom; clamped for v7x's 64 MiB."""
    need = 2 * block_bytes + scratch_bytes + (4 << 20)
    return int(min(max(need, 16 << 20), 48 << 20))


# ------------------------------ kernel bodies ------------------------------
def _zero_pad_border(pad_ref, H, W):
    # Only the 1-pixel border must be zero; done every grid step (not pl.when(t==0))
    # so the kernel stays correct when the grid axis is sharded across TensorCores.
    Bt, _, _, C = pad_ref.shape
    z_row = jnp.zeros((Bt, 1, W + 2, C), pad_ref.dtype)
    z_col = jnp.zeros((Bt, H + 2, 1, C), pad_ref.dtype)
    pad_ref[:, 0:1, :, :] = z_row
    pad_ref[:, H + 1:H + 2, :, :] = z_row
    pad_ref[:, :, 0:1, :] = z_col
    pad_ref[:, :, W + 1:W + 2, :] = z_col


def _packed_conv(pad_ref, wpack_ref, Nt, H, W, C):
    """pad_ref holds ReLU'd activations; returns the f32 (Nt, P) packed conv output
    via 9 accumulated MXU matmuls (bf16 operands, f32 accumulation)."""
    y = None
    for dy in range(3):
        for dx in range(3):
            tap = pad_ref[:, dy:dy + H, dx:dx + W, :].reshape(Nt, C).astype(jnp.bfloat16)
            d = jnp.dot(tap, wpack_ref[dy * 3 + dx], preferred_element_type=jnp.float32)
            y = d if y is None else y + d
    return y


def make_stats_kernel(Bt, H, W, C):
    """Pass 1: per-column sum / sum-of-squares of the packed conv output."""
    Nt = Bt * H * W

    def kernel(x_ref, wpack_ref, stats_ref, pad_ref):
        @pl.when(pl.program_id(0) == 0)
        def _():
            stats_ref[...] = jnp.zeros(stats_ref.shape, stats_ref.dtype)

        _zero_pad_border(pad_ref, H, W)
        # ReLU applied once per source node while filling the interior.
        pad_ref[:, 1:H + 1, 1:W + 1, :] = jnp.maximum(x_ref[...], 0.0)
        y = _packed_conv(pad_ref, wpack_ref, Nt, H, W, C)
        part = jnp.concatenate([jnp.sum(y, axis=0, keepdims=True),
                                jnp.sum(y * y, axis=0, keepdims=True)], axis=0)
        stats_ref[...] = stats_ref[...] + part

    return kernel


def make_apply_kernel(Bt, H, W, C, edges, accumulate):
    """Pass 2: BN-affine + alpha mixing for all outgoing edges of one source node,
    accumulated into the destination-node buffers."""
    Nt = Bt * H * W
    m = len(edges)

    def kernel(*refs):
        x_ref, wpack_ref, coefs_ref, inv_cnt_ref = refs[:4]
        n_acc = m if accumulate else 0
        acc_refs = refs[4:4 + n_acc]
        out_refs = refs[4 + n_acc:4 + n_acc + m]
        pad_ref = refs[4 + n_acc + m]

        _zero_pad_border(pad_ref, H, W)
        x = x_ref[...]

        # avg_pool_3x3 (count_include_pad=False) from the RAW taps, once per node.
        pad_ref[:, 1:H + 1, 1:W + 1, :] = x
        psum = None
        for dy in range(3):
            for dx in range(3):
                tp = pad_ref[:, dy:dy + H, dx:dx + W, :]
                psum = tp if psum is None else psum + tp
        pool = (psum * inv_cnt_ref[...]).reshape(Nt, C)

        # ReLU once, then the packed conv matmuls for every outgoing edge.
        pad_ref[:, 1:H + 1, 1:W + 1, :] = jnp.maximum(x, 0.0)
        y = _packed_conv(pad_ref, wpack_ref, Nt, H, W, C)

        # BN affine with exact full-batch stats (arch weight alpha pre-folded).
        yw = y * coefs_ref[0:1, :] + coefs_ref[1:2, :]
        # packing = [3x3 blocks | 1x1 blocks | zero pad] -> one wide add
        conv_all = yw[:, :m * C] + yw[:, m * C:2 * m * C]

        x_flat = x.reshape(Nt, C)
        for k in range(m):
            conv = conv_all[:, k * C:(k + 1) * C]
            contrib = (conv
                       + x_flat * coefs_ref[2:3, k * C:(k + 1) * C]   # skip_connect
                       + pool * coefs_ref[3:4, k * C:(k + 1) * C])    # avg_pool_3x3
            contrib = contrib.reshape(Bt, H, W, C)                    # 'none' adds 0
            if accumulate:
                out_refs[k][...] = acc_refs[k][...] + contrib
            else:
                out_refs[k][...] = contrib

    return kernel


# ------------------------------ parameter packing ------------------------------
def _pack_stage_params(weightss, params, edges, C):
    """Fused conv weights (bf16, 9 taps x (C, P)), BN affines with alpha folded,
    and the per-edge skip/pool alphas broadcast into lane rows."""
    m = len(edges)
    P = _round_up(2 * C * m, 128)   # lane-pad the packed width (free MXU columns)
    wpack = jnp.zeros((9, C, P), jnp.float32)
    gpack = jnp.zeros((1, P), jnp.float32)
    bpack = jnp.zeros((1, P), jnp.float32)
    mix = jnp.zeros((2, P), jnp.float32)
    for k, (e, _dst) in enumerate(edges):
        c3 = k * C                   # 3x3-conv column block
        c1 = (m + k) * C             # 1x1-conv column block
        wpack = wpack.at[:, :, c3:c3 + C].set(params['w3'][e].reshape(9, C, C))
        wpack = wpack.at[4, :, c1:c1 + C].set(params['w1'][e])       # center tap only
        a3, a2 = weightss[e, 3], weightss[e, 2]
        gpack = gpack.at[0, c3:c3 + C].set(params['g3'][e].reshape(C) * a3)
        bpack = bpack.at[0, c3:c3 + C].set(params['b3'][e].reshape(C) * a3)
        gpack = gpack.at[0, c1:c1 + C].set(params['g1'][e].reshape(C) * a2)
        bpack = bpack.at[0, c1:c1 + C].set(params['b1'][e].reshape(C) * a2)
        mix = mix.at[0, c3:c3 + C].set(weightss[e, 1])                # skip alpha
        mix = mix.at[1, c3:c3 + C].set(weightss[e, 4])                # pool alpha
    return wpack.astype(jnp.bfloat16), gpack, bpack, mix, P


# ------------------------------ per-stage pallas calls ------------------------------
def _stage_stats_call(xj, wpack, Bt, P):
    B, H, W, C = xj.shape
    ntiles = B // Bt
    tile_bytes = Bt * H * W * C * 4
    block_bytes = tile_bytes + wpack.size * 2 + 2 * P * 4
    scratch_bytes = Bt * (H + 2) * (W + 2) * C * 4
    return pl.pallas_call(
        make_stats_kernel(Bt, H, W, C),
        out_shape=jax.ShapeDtypeStruct((2, P), jnp.float32),
        grid_spec=pltpu.PrefetchScalarGridSpec(
            num_scalar_prefetch=0,
            grid=(ntiles,),
            in_specs=[pl.BlockSpec((Bt, H, W, C), lambda t: (t, 0, 0, 0)),
                      pl.BlockSpec((9, C, P), lambda t: (0, 0, 0))],
            out_specs=pl.BlockSpec((2, P), lambda t: (0, 0)),
            scratch_shapes=[pltpu.VMEM((Bt, H + 2, W + 2, C), jnp.float32)]),
        compiler_params=pltpu.CompilerParams(
            dimension_semantics=("arbitrary",),          # resident (2, P) accumulator
            vmem_limit_bytes=_vmem_limit(block_bytes, scratch_bytes)),
        cost_estimate=pl.CostEstimate(
            flops=int(2 * B * H * W * 9 * C * P),
            transcendentals=0,
            bytes_accessed=int(B * H * W * C * 4 + wpack.size * 2 + 2 * P * 4)),
    )(xj, wpack)


def _stage_apply_call(xj, wpack, coefs, inv_cnt, accs, edges, Bt):
    B, H, W, C = xj.shape
    P = coefs.shape[1]
    m = len(edges)
    accumulate = accs is not None
    ntiles = B // Bt
    tile_spec = pl.BlockSpec((Bt, H, W, C), lambda t: (t, 0, 0, 0))
    in_specs = [tile_spec,
                pl.BlockSpec((9, C, P), lambda t: (0, 0, 0)),
                pl.BlockSpec((4, P), lambda t: (0, 0)),
                pl.BlockSpec((1, H, W, 1), lambda t: (0, 0, 0, 0))]
    inputs = [xj, wpack, coefs, inv_cnt]
    if accumulate:
        in_specs += [tile_spec] * m
        inputs += list(accs)

    tile_bytes = Bt * H * W * C * 4
    n_tiled = 1 + (m if accumulate else 0) + m
    block_bytes = n_tiled * tile_bytes + wpack.size * 2 + 4 * P * 4 + H * W * 4
    scratch_bytes = Bt * (H + 2) * (W + 2) * C * 4
    n_rw = (1 + 2 * m) if accumulate else (1 + m)
    out = pl.pallas_call(
        make_apply_kernel(Bt, H, W, C, edges, accumulate),
        out_shape=tuple(jax.ShapeDtypeStruct((B, H, W, C), jnp.float32) for _ in range(m)),
        grid_spec=pltpu.PrefetchScalarGridSpec(
            num_scalar_prefetch=0,
            grid=(ntiles,),
            in_specs=in_specs,
            out_specs=[tile_spec] * m,
            scratch_shapes=[pltpu.VMEM((Bt, H + 2, W + 2, C), jnp.float32)]),
        compiler_params=pltpu.CompilerParams(
            dimension_semantics=("parallel",),   # independent batch tiles -> both v7x TCs
            vmem_limit_bytes=_vmem_limit(block_bytes, scratch_bytes)),
        cost_estimate=pl.CostEstimate(
            flops=int(2 * B * H * W * 9 * C * P + 12 * B * H * W * C * m),
            transcendentals=0,
            bytes_accessed=int(n_rw * B * H * W * C * 4 + wpack.size * 2 + 4 * P * 4)),
        input_output_aliases=({4 + k: k for k in range(m)} if accumulate else {}),
    )(*inputs)
    if not isinstance(out, (tuple, list)):
        out = (out,)
    return out


# ------------------------------ forward pass ------------------------------
def search_cell_forward_nhwc(x_nhwc, weightss, params, batch_tile=None):
    """SearchCell.forward on NHWC activations (no layout transposes)."""
    B, H, W, C = x_nhwc.shape
    _, out_edges, _ = build_graph(MAX_NODES)
    weightss = weightss.astype(jnp.float32)
    x = x_nhwc.astype(jnp.float32)
    Bt = _pick_batch_tile(B, H, W, C) if batch_tile is None else int(batch_tile)
    assert B % Bt == 0, 'batch tile must divide batch'
    inv_cnt = _inv_pool_count(H, W)
    n_full = B * H * W

    # TODO(synk): node activations are kept f32 in HBM to keep tolerances tight; at
    # HBM-BW-bound sizes they can be stored bf16 (halves the activation DMA).
    # TODO(synk): a lane-dense (B*H, W*C) store layout (+ pltpu.roll-based dx shifts)
    # would remove the masked C=16-lane stores of the elementwise/mixing path.
    nodes = [x] + [None] * (MAX_NODES - 1)
    for j in range(MAX_NODES - 1):
        edges = out_edges[j]
        wpack, gpack, bpack, mix, P = _pack_stage_params(weightss, params, edges, C)
        xj = nodes[j]

        # ---- pass 1: exact full-batch BN statistics of every packed conv column ----
        stats = _stage_stats_call(xj, wpack, Bt, P)
        mean = stats[0:1, :] / n_full
        var = jnp.maximum(stats[1:2, :] / n_full - mean * mean, 0.0)
        # TODO(synk): for training-quality BN use per-tile Welford partials (less
        # cancellation); torch BatchNorm running_mean/var side effects not produced.
        scale = gpack * lax.rsqrt(var + BN_EPS)
        shift = bpack - mean * scale
        coefs = jnp.concatenate([scale, shift, mix], axis=0)          # (4, P)

        # ---- pass 2: BN-affine + alpha mixing, accumulated into destination nodes ----
        dsts = [d for (_e, d) in edges]
        have = [nodes[d] is not None for d in dsts]
        assert all(have) or not any(have)       # node 0 feeds every later node first
        accs = [nodes[d] for d in dsts] if all(have) else None
        outs = _stage_apply_call(xj, wpack, coefs, inv_cnt, accs, edges, Bt)
        for d, o in zip(dsts, outs):
            nodes[d] = o
    return nodes[MAX_NODES - 1]


@functools.partial(jax.jit, static_argnames=('batch_tile',))
def search_cell_forward(x_nchw, weightss, params, batch_tile=None):
    """Equivalent of SearchCell.forward(inputs, weightss). NCHW in/out (PyTorch conv)."""
    x = jnp.transpose(x_nchw, (0, 2, 3, 1))                # -> NHWC
    out = search_cell_forward_nhwc(x, weightss, params, batch_tile)
    return jnp.transpose(out, (0, 3, 1, 2))                # back to NCHW


# ----------------------------- pure-JAX reference -----------------------------
def reference_cell(x_nchw, weightss, params):
    B, C, H, W = x_nchw.shape
    edge2index, _, _ = build_graph(MAX_NODES)
    x = jnp.transpose(x_nchw, (0, 2, 3, 1)).astype(jnp.float32)
    inv_cnt = _inv_pool_count(H, W)

    def bn(y, gamma, beta):
        mean = jnp.mean(y, axis=(0, 1, 2), keepdims=True)
        var = jnp.mean(jnp.square(y - mean), axis=(0, 1, 2), keepdims=True)
        return (y - mean) / jnp.sqrt(var + BN_EPS) * gamma.reshape(1, 1, 1, C) \
            + beta.reshape(1, 1, 1, C)

    def conv1(xin, e):
        xr = jnp.maximum(xin, 0.0)
        y = jnp.einsum('bhwc,cd->bhwd', xr, params['w1'][e], precision='highest')
        return bn(y, params['g1'][e], params['b1'][e])

    def conv3(xin, e):
        xr = jnp.maximum(xin, 0.0)
        xp = jnp.pad(xr, ((0, 0), (1, 1), (1, 1), (0, 0)))
        y = jnp.zeros_like(xr)
        for dy in range(3):
            for dx in range(3):
                y = y + jnp.einsum('bhwc,cd->bhwd', xp[:, dy:dy + H, dx:dx + W, :],
                                   params['w3'][e, dy, dx], precision='highest')
        return bn(y, params['g3'][e], params['b3'][e])

    def pool(xin):
        xp = jnp.pad(xin, ((0, 0), (1, 1), (1, 1), (0, 0)))
        s = jnp.zeros_like(xin)
        for dy in range(3):
            for dx in range(3):
                s = s + xp[:, dy:dy + H, dx:dx + W, :]
        return s * inv_cnt

    def mixed(xin, e):
        w = weightss[e]
        return xin * w[1] + conv1(xin, e) * w[2] + conv3(xin, e) * w[3] + pool(xin) * w[4]

    nodes = [x]
    for i in range(1, MAX_NODES):
        acc = None
        for j in range(i):
            e = edge2index['{:}<-{:}'.format(i, j)]
            m = mixed(nodes[j], e)
            acc = m if acc is None else acc + m
        nodes.append(acc)
    return jnp.transpose(nodes[-1], (0, 3, 1, 2))


if __name__ == "__main__":
    B, C, H, W = 2, 16, 8, 8                      # small NCHW input, C_in == C_out
    _, _, num_edges = build_graph(MAX_NODES)      # 6 edges for max_nodes=4

    key = jax.random.PRNGKey(0)
    k = jax.random.split(key, 8)
    x = jax.random.normal(k[0], (B, C, H, W), dtype=jnp.float32)
    alphas = jax.random.normal(k[1], (num_edges, NUM_OPS), dtype=jnp.float32)
    weightss = jax.nn.softmax(alphas, axis=1)     # architecture weights per edge

    params = {
        'w1': 0.3 * jax.random.normal(k[2], (num_edges, C, C), jnp.float32),
        'w3': 0.1 * jax.random.normal(k[3], (num_edges, 3, 3, C, C), jnp.float32),
        'g1': 1.0 + 0.1 * jax.random.normal(k[4], (num_edges, 1, C), jnp.float32),
        'b1': 0.1 * jax.random.normal(k[5], (num_edges, 1, C), jnp.float32),
        'g3': 1.0 + 0.1 * jax.random.normal(k[6], (num_edges, 1, C), jnp.float32),
        'b3': 0.1 * jax.random.normal(k[7], (num_edges, 1, C), jnp.float32),
    }

    # batch_tile=1 -> a 2-step grid, exercising tiling + cross-tile BN statistics.
    out = jax.block_until_ready(search_cell_forward(x, weightss, params, batch_tile=1))
    ref = jax.block_until_ready(reference_cell(x, weightss, params))

    assert out.shape == (B, C, H, W)
    # tolerance accounts for bf16 MXU operands (f32 accumulation, BN renormalizes)
    np.testing.assert_allclose(np.asarray(out), np.asarray(ref), rtol=5e-2, atol=5e-2)
    # TODO(synk): forward_gdas / forward_urs / forward_select / forward_dynamic use
    # host-side randomness and .item() control flow; only the weighted-sum forward
    # (and forward_joint, identical math) is kernelized.
    print("KERNEL_OK")
</pallas_src>

<mosaic_0001>
module attributes {stable_mosaic.version = 11 : i64} {
  func.func @kernel(%arg0: i32, %arg1: memref<1x8x8x16xf32, #tpu.memory_space<vmem>>, %arg2: memref<9x16x128xbf16, #tpu.memory_space<vmem>>, %arg3: memref<2x128xf32, #tpu.memory_space<vmem>>, %arg4: memref<1x10x10x16xf32, #tpu.memory_space<vmem>>) attributes {dimension_semantics = [#tpu.dimension_semantics<arbitrary>], iteration_bounds = array<i64: 2>, scalar_prefetch = 0 : i64, scratch_operands = 1 : i64, tpu.core_type = #tpu.core_type<tc>, window_params = [{transform_indices = @transform_0, window_bounds = array<i64: 1, 8, 8, 16>}, {pipeline_mode = #tpu.pipeline_mode<synchronous>, transform_indices = @transform_1, window_bounds = array<i64: 9, 16, 128>}, {pipeline_mode = #tpu.pipeline_mode<synchronous>, transform_indices = @transform_2, window_bounds = array<i64: 2, 128>}]} {
    %c0_i32 = arith.constant 0 : i32
    %0 = arith.cmpi eq, %arg0, %c0_i32 : i32
    %1 = arith.extui %0 : i1 to i32
    %c0_i32_0 = arith.constant 0 : i32
    %2 = arith.cmpi ne, %1, %c0_i32_0 : i32
    scf.if %2 {
      %cst_95 = arith.constant 0.000000e+00 : f32
      %84 = vector.broadcast %cst_95 : f32 to vector<2x128xf32>
      %c0_96 = arith.constant 0 : index
      %c0_97 = arith.constant 0 : index
      %85 = vector.load %arg3[%c0_96, %c0_97] : memref<2x128xf32, #tpu.memory_space<vmem>>, vector<2x128xf32>
      tpu.vector_store %arg3[%c0_96, %c0_97], %84 {strides = array<i32>} : memref<2x128xf32, #tpu.memory_space<vmem>>, vector<2x128xf32>,
    } else {
    }
    %cst = arith.constant 0.000000e+00 : f32
    %3 = vector.broadcast %cst : f32 to vector<1x1x10x16xf32>
    %cst_1 = arith.constant 0.000000e+00 : f32
    %4 = vector.broadcast %cst_1 : f32 to vector<1x10x1x16xf32>
    %c0 = arith.constant 0 : index
    %c0_2 = arith.constant 0 : index
    %c0_3 = arith.constant 0 : index
    %c0_4 = arith.constant 0 : index
    %5 = vector.load %arg4[%c0, %c0_2, %c0_3, %c0_4] : memref<1x10x10x16xf32, #tpu.memory_space<vmem>>, vector<1x1x10x16xf32>
    tpu.vector_store %arg4[%c0, %c0_2, %c0_3, %c0_4], %3 {strides = array<i32>} : memref<1x10x10x16xf32, #tpu.memory_space<vmem>>, vector<1x1x10x16xf32>,
    %c0_5 = arith.constant 0 : index
    %c9 = arith.constant 9 : index
    %c0_6 = arith.constant 0 : index
    %c0_7 = arith.constant 0 : index
    %6 = vector.load %arg4[%c0_5, %c9, %c0_6, %c0_7] : memref<1x10x10x16xf32, #tpu.memory_space<vmem>>, vector<1x1x10x16xf32>
    tpu.vector_store %arg4[%c0_5, %c9, %c0_6, %c0_7], %3 {strides = array<i32>} : memref<1x10x10x16xf32, #tpu.memory_space<vmem>>, vector<1x1x10x16xf32>,
    %c0_8 = arith.constant 0 : index
    %c0_9 = arith.constant 0 : index
    %c0_10 = arith.constant 0 : index
    %c0_11 = arith.constant 0 : index
    %7 = vector.load %arg4[%c0_8, %c0_9, %c0_10, %c0_11] : memref<1x10x10x16xf32, #tpu.memory_space<vmem>>, vector<1x10x1x16xf32>
    tpu.vector_store %arg4[%c0_8, %c0_9, %c0_10, %c0_11], %4 {strides = array<i32>} : memref<1x10x10x16xf32, #tpu.memory_space<vmem>>, vector<1x10x1x16xf32>,
    %c0_12 = arith.constant 0 : index
    %c0_13 = arith.constant 0 : index
    %c9_14 = arith.constant 9 : index
    %c0_15 = arith.constant 0 : index
    %8 = vector.load %arg4[%c0_12, %c0_13, %c9_14, %c0_15] : memref<1x10x10x16xf32, #tpu.memory_space<vmem>>, vector<1x10x1x16xf32>
    tpu.vector_store %arg4[%c0_12, %c0_13, %c9_14, %c0_15], %4 {strides = array<i32>} : memref<1x10x10x16xf32, #tpu.memory_space<vmem>>, vector<1x10x1x16xf32>,
    %c0_16 = arith.constant 0 : index
    %c0_17 = arith.constant 0 : index
    %c0_18 = arith.constant 0 : index
    %c0_19 = arith.constant 0 : index
    %9 = vector.load %arg1[%c0_16, %c0_17, %c0_18, %c0_19] : memref<1x8x8x16xf32, #tpu.memory_space<vmem>>, vector<1x8x8x16xf32>
    %cst_20 = arith.constant 0.000000e+00 : f32
    %10 = vector.broadcast %cst_20 : f32 to vector<1x8x8x16xf32>
    %11 = arith.maximumf %9, %10 : vector<1x8x8x16xf32>
    %c0_21 = arith.constant 0 : index
    %c1 = arith.constant 1 : index
    %c1_22 = arith.constant 1 : index
    %c0_23 = arith.constant 0 : index
    %12 = vector.load %arg4[%c0_21, %c1, %c1_22, %c0_23] : memref<1x10x10x16xf32, #tpu.memory_space<vmem>>, vector<1x8x8x16xf32>
    tpu.vector_store %arg4[%c0_21, %c1, %c1_22, %c0_23], %11 {strides = array<i32>} : memref<1x10x10x16xf32, #tpu.memory_space<vmem>>, vector<1x8x8x16xf32>,
    %c0_24 = arith.constant 0 : index
    %c0_25 = arith.constant 0 : index
    %c0_26 = arith.constant 0 : index
    %c0_27 = arith.constant 0 : index
    %13 = vector.load %arg4[%c0_24, %c0_25, %c0_26, %c0_27] : memref<1x10x10x16xf32, #tpu.memory_space<vmem>>, vector<1x8x8x16xf32>
    %14 = vector.shape_cast %13 : vector<1x8x8x16xf32> to vector<64x16xf32>
    %15 = arith.truncf %14 : vector<64x16xf32> to vector<64x16xbf16>
    %c0_28 = arith.constant 0 : index
    %c0_29 = arith.constant 0 : index
    %c0_30 = arith.constant 0 : index
    %16 = vector.load %arg2[%c0_28, %c0_29, %c0_30] : memref<9x16x128xbf16, #tpu.memory_space<vmem>>, vector<1x16x128xbf16>
    %17 = vector.shape_cast %16 : vector<1x16x128xbf16> to vector<16x128xbf16>
    %cst_31 = arith.constant dense<0.000000e+00> : vector<64x128xf32>
    %18 = tpu.matmul %15, %17, %cst_31 {dimension_numbers = #tpu.dot_dimension_numbers<[1], [0], [0], [1], [0, 0, 1, 1], [], []>} : vector<64x16xbf16>, vector<16x128xbf16>, vector<64x128xf32> -> vector<64x128xf32>
    %c0_32 = arith.constant 0 : index
    %c0_33 = arith.constant 0 : index
    %c1_34 = arith.constant 1 : index
    %c0_35 = arith.constant 0 : index
    %19 = vector.load %arg4[%c0_32, %c0_33, %c1_34, %c0_35] : memref<1x10x10x16xf32, #tpu.memory_space<vmem>>, vector<1x8x8x16xf32>
    %20 = vector.shape_cast %19 : vector<1x8x8x16xf32> to vector<64x16xf32>
    %21 = arith.truncf %20 : vector<64x16xf32> to vector<64x16xbf16>
    %c1_36 = arith.constant 1 : index
    %c0_37 = arith.constant 0 : index
    %c0_38 = arith.constant 0 : index
    %22 = vector.load %arg2[%c1_36, %c0_37, %c0_38] : memref<9x16x128xbf16, #tpu.memory_space<vmem>>, vector<1x16x128xbf16>
    %23 = vector.shape_cast %22 : vector<1x16x128xbf16> to vector<16x128xbf16>
    %cst_39 = arith.constant dense<0.000000e+00> : vector<64x128xf32>
    %24 = tpu.matmul %21, %23, %cst_39 {dimension_numbers = #tpu.dot_dimension_numbers<[1], [0], [0], [1], [0, 0, 1, 1], [], []>} : vector<64x16xbf16>, vector<16x128xbf16>, vector<64x128xf32> -> vector<64x128xf32>
    %25 = arith.addf %18, %24 : vector<64x128xf32>
    %c0_40 = arith.constant 0 : index
    %c0_41 = arith.constant 0 : index
    %c2 = arith.constant 2 : index
    %c0_42 = arith.constant 0 : index
    %26 = vector.load %arg4[%c0_40, %c0_41, %c2, %c0_42] : memref<1x10x10x16xf32, #tpu.memory_space<vmem>>, vector<1x8x8x16xf32>
    %27 = vector.shape_cast %26 : vector<1x8x8x16xf32> to vector<64x16xf32>
    %28 = arith.truncf %27 : vector<64x16xf32> to vector<64x16xbf16>
    %c2_43 = arith.constant 2 : index
    %c0_44 = arith.constant 0 : index
    %c0_45 = arith.constant 0 : index
    %29 = vector.load %arg2[%c2_43, %c0_44, %c0_45] : memref<9x16x128xbf16, #tpu.memory_space<vmem>>, vector<1x16x128xbf16>
    %30 = vector.shape_cast %29 : vector<1x16x128xbf16> to vector<16x128xbf16>
    %cst_46 = arith.constant dense<0.000000e+00> : vector<64x128xf32>
    %31 = tpu.matmul %28, %30, %cst_46 {dimension_numbers = #tpu.dot_dimension_numbers<[1], [0], [0], [1], [0, 0, 1, 1], [], []>} : vector<64x16xbf16>, vector<16x128xbf16>, vector<64x128xf32> -> vector<64x128xf32>
    %32 = arith.addf %25, %31 : vector<64x128xf32>
    %c0_47 = arith.constant 0 : index
    %c1_48 = arith.constant 1 : index
    %c0_49 = arith.constant 0 : index
    %c0_50 = arith.constant 0 : index
    %33 = vector.load %arg4[%c0_47, %c1_48, %c0_49, %c0_50] : memref<1x10x10x16xf32, #tpu.memory_space<vmem>>, vector<1x8x8x16xf32>
    %34 = vector.shape_cast %33 : vector<1x8x8x16xf32> to vector<64x16xf32>
    %35 = arith.truncf %34 : vector<64x16xf32> to vector<64x16xbf16>
    %c3 = arith.constant 3 : index
    %c0_51 = arith.constant 0 : index
    %c0_52 = arith.constant 0 : index
    %36 = vector.load %arg2[%c3, %c0_51, %c0_52] : memref<9x16x128xbf16, #tpu.memory_space<vmem>>, vector<1x16x128xbf16>
    %37 = vector.shape_cast %36 : vector<1x16x128xbf16> to vector<16x128xbf16>
    %cst_53 = arith.constant dense<0.000000e+00> : vector<64x128xf32>
    %38 = tpu.matmul %35, %37, %cst_53 {dimension_numbers = #tpu.dot_dimension_numbers<[1], [0], [0], [1], [0, 0, 1, 1], [], []>} : vector<64x16xbf16>, vector<16x128xbf16>, vector<64x128xf32> -> vector<64x128xf32>
    %39 = arith.addf %32, %38 : vector<64x128xf32>
    %c0_54 = arith.constant 0 : index
    %c1_55 = arith.constant 1 : index
    %c1_56 = arith.constant 1 : index
    %c0_57 = arith.constant 0 : index
    %40 = vector.load %arg4[%c0_54, %c1_55, %c1_56, %c0_57] : memref<1x10x10x16xf32, #tpu.memory_space<vmem>>, vector<1x8x8x16xf32>
    %41 = vector.shape_cast %40 : vector<1x8x8x16xf32> to vector<64x16xf32>
    %42 = arith.truncf %41 : vector<64x16xf32> to vector<64x16xbf16>
    %c4 = arith.constant 4 : index
    %c0_58 = arith.constant 0 : index
    %c0_59 = arith.constant 0 : index
    %43 = vector.load %arg2[%c4, %c0_58, %c0_59] : memref<9x16x128xbf16, #tpu.memory_space<vmem>>, vector<1x16x128xbf16>
    %44 = vector.shape_cast %43 : vector<1x16x128xbf16> to vector<16x128xbf16>
    %cst_60 = arith.constant dense<0.000000e+00> : vector<64x128xf32>
    %45 = tpu.matmul %42, %44, %cst_60 {dimension_numbers = #tpu.dot_dimension_numbers<[1], [0], [0], [1], [0, 0, 1, 1], [], []>} : vector<64x16xbf16>, vector<16x128xbf16>, vector<64x128xf32> -> vector<64x128xf32>
    %46 = arith.addf %39, %45 : vector<64x128xf32>
    %c0_61 = arith.constant 0 : index
    %c1_62 = arith.constant 1 : index
    %c2_63 = arith.constant 2 : index
    %c0_64 = arith.constant 0 : index
    %47 = vector.load %arg4[%c0_61, %c1_62, %c2_63, %c0_64] : memref<1x10x10x16xf32, #tpu.memory_space<vmem>>, vector<1x8x8x16xf32>
    %48 = vector.shape_cast %47 : vector<1x8x8x16xf32> to vector<64x16xf32>
    %49 = arith.truncf %48 : vector<64x16xf32> to vector<64x16xbf16>
    %c5 = arith.constant 5 : index
    %c0_65 = arith.constant 0 : index
    %c0_66 = arith.constant 0 : index
    %50 = vector.load %arg2[%c5, %c0_65, %c0_66] : memref<9x16x128xbf16, #tpu.memory_space<vmem>>, vector<1x16x128xbf16>
    %51 = vector.shape_cast %50 : vector<1x16x128xbf16> to vector<16x128xbf16>
    %cst_67 = arith.constant dense<0.000000e+00> : vector<64x128xf32>
    %52 = tpu.matmul %49, %51, %cst_67 {dimension_numbers = #tpu.dot_dimension_numbers<[1], [0], [0], [1], [0, 0, 1, 1], [], []>} : vector<64x16xbf16>, vector<16x128xbf16>, vector<64x128xf32> -> vector<64x128xf32>
    %53 = arith.addf %46, %52 : vector<64x128xf32>
    %c0_68 = arith.constant 0 : index
    %c2_69 = arith.constant 2 : index
    %c0_70 = arith.constant 0 : index
    %c0_71 = arith.constant 0 : index
    %54 = vector.load %arg4[%c0_68, %c2_69, %c0_70, %c0_71] : memref<1x10x10x16xf32, #tpu.memory_space<vmem>>, vector<1x8x8x16xf32>
    %55 = vector.shape_cast %54 : vector<1x8x8x16xf32> to vector<64x16xf32>
    %56 = arith.truncf %55 : vector<64x16xf32> to vector<64x16xbf16>
    %c6 = arith.constant 6 : index
    %c0_72 = arith.constant 0 : index
    %c0_73 = arith.constant 0 : index
    %57 = vector.load %arg2[%c6, %c0_72, %c0_73] : memref<9x16x128xbf16, #tpu.memory_space<vmem>>, vector<1x16x128xbf16>
    %58 = vector.shape_cast %57 : vector<1x16x128xbf16> to vector<16x128xbf16>
    %cst_74 = arith.constant dense<0.000000e+00> : vector<64x128xf32>
    %59 = tpu.matmul %56, %58, %cst_74 {dimension_numbers = #tpu.dot_dimension_numbers<[1], [0], [0], [1], [0, 0, 1, 1], [], []>} : vector<64x16xbf16>, vector<16x128xbf16>, vector<64x128xf32> -> vector<64x128xf32>
    %60 = arith.addf %53, %59 : vector<64x128xf32>
    %c0_75 = arith.constant 0 : index
    %c2_76 = arith.constant 2 : index
    %c1_77 = arith.constant 1 : index
    %c0_78 = arith.constant 0 : index
    %61 = vector.load %arg4[%c0_75, %c2_76, %c1_77, %c0_78] : memref<1x10x10x16xf32, #tpu.memory_space<vmem>>, vector<1x8x8x16xf32>
    %62 = vector.shape_cast %61 : vector<1x8x8x16xf32> to vector<64x16xf32>
    %63 = arith.truncf %62 : vector<64x16xf32> to vector<64x16xbf16>
    %c7 = arith.constant 7 : index
    %c0_79 = arith.constant 0 : index
    %c0_80 = arith.constant 0 : index
    %64 = vector.load %arg2[%c7, %c0_79, %c0_80] : memref<9x16x128xbf16, #tpu.memory_space<vmem>>, vector<1x16x128xbf16>
    %65 = vector.shape_cast %64 : vector<1x16x128xbf16> to vector<16x128xbf16>
    %cst_81 = arith.constant dense<0.000000e+00> : vector<64x128xf32>
    %66 = tpu.matmul %63, %65, %cst_81 {dimension_numbers = #tpu.dot_dimension_numbers<[1], [0], [0], [1], [0, 0, 1, 1], [], []>} : vector<64x16xbf16>, vector<16x128xbf16>, vector<64x128xf32> -> vector<64x128xf32>
    %67 = arith.addf %60, %66 : vector<64x128xf32>
    %c0_82 = arith.constant 0 : index
    %c2_83 = arith.constant 2 : index
    %c2_84 = arith.constant 2 : index
    %c0_85 = arith.constant 0 : index
    %68 = vector.load %arg4[%c0_82, %c2_83, %c2_84, %c0_85] : memref<1x10x10x16xf32, #tpu.memory_space<vmem>>, vector<1x8x8x16xf32>
    %69 = vector.shape_cast %68 : vector<1x8x8x16xf32> to vector<64x16xf32>
    %70 = arith.truncf %69 : vector<64x16xf32> to vector<64x16xbf16>
    %c8 = arith.constant 8 : index
    %c0_86 = arith.constant 0 : index
    %c0_87 = arith.constant 0 : index
    %71 = vector.load %arg2[%c8, %c0_86, %c0_87] : memref<9x16x128xbf16, #tpu.memory_space<vmem>>, vector<1x16x128xbf16>
    %72 = vector.shape_cast %71 : vector<1x16x128xbf16> to vector<16x128xbf16>
    %cst_88 = arith.constant dense<0.000000e+00> : vector<64x128xf32>
    %73 = tpu.matmul %70, %72, %cst_88 {dimension_numbers = #tpu.dot_dimension_numbers<[1], [0], [0], [1], [0, 0, 1, 1], [], []>} : vector<64x16xbf16>, vector<16x128xbf16>, vector<64x128xf32> -> vector<64x128xf32>
    %74 = arith.addf %67, %73 : vector<64x128xf32>
    %cst_89 = arith.constant dense<0.000000e+00> : vector<128xf32>
    %75 = vector.multi_reduction <add>, %74, %cst_89 [0] : vector<64x128xf32> to vector<128xf32>
    %76 = vector.shape_cast %75 : vector<128xf32> to vector<1x128xf32>
    %77 = arith.mulf %74, %74 : vector<64x128xf32>
    %cst_90 = arith.constant dense<0.000000e+00> : vector<128xf32>
    %78 = vector.multi_reduction <add>, %77, %cst_90 [0] : vector<64x128xf32> to vector<128xf32>
    %79 = vector.shape_cast %78 : vector<128xf32> to vector<1x128xf32>
    %80 = tpu.concatenate %76, %79 in 0 : vector<1x128xf32>, vector<1x128xf32> -> vector<2x128xf32>
    %c0_91 = arith.constant 0 : index
    %c0_92 = arith.constant 0 : index
    %81 = vector.load %arg3[%c0_91, %c0_92] : memref<2x128xf32, #tpu.memory_space<vmem>>, vector<2x128xf32>
    %82 = arith.addf %81, %80 : vector<2x128xf32>
    %c0_93 = arith.constant 0 : index
    %c0_94 = arith.constant 0 : index
    %83 = vector.load %arg3[%c0_93, %c0_94] : memref<2x128xf32, #tpu.memory_space<vmem>>, vector<2x128xf32>
    tpu.vector_store %arg3[%c0_93, %c0_94], %82 {strides = array<i32>} : memref<2x128xf32, #tpu.memory_space<vmem>>, vector<2x128xf32>,
    return
  }
  func.func @transform_0(%arg0: i32) -> (i32, i32, i32, i32) {
    %c0_i32 = arith.constant 0 : i32
    %c0_i32_0 = arith.constant 0 : i32
    %c0_i32_1 = arith.constant 0 : i32
    %c0_i32_2 = arith.constant 0 : i32
    return %arg0, %c0_i32, %c0_i32_0, %c0_i32_1 : i32, i32, i32, i32
  }
  func.func @transform_1(%arg0: i32) -> (i32, i32, i32) {
    %c0_i32 = arith.constant 0 : i32
    %c0_i32_0 = arith.constant 0 : i32
    %c0_i32_1 = arith.constant 0 : i32
    %c0_i32_2 = arith.constant 0 : i32
    return %c0_i32, %c0_i32_0, %c0_i32_1 : i32, i32, i32
  }
  func.func @transform_2(%arg0: i32) -> (i32, i32) {
    %c0_i32 = arith.constant 0 : i32
    %c0_i32_0 = arith.constant 0 : i32
    %c0_i32_1 = arith.constant 0 : i32
    return %c0_i32, %c0_i32_0 : i32, i32
  }
}

module attributes {stable_mosaic.version = 11 : i64} {
  func.func @kernel(%arg0: i32, %arg1: memref<1x8x8x16xf32, #tpu.memory_space<vmem>>, %arg2: memref<9x16x128xbf16, #tpu.memory_space<vmem>>, %arg3: memref<4x128xf32, #tpu.memory_space<vmem>>, %arg4: memref<1x8x8x1xf32, #tpu.memory_space<vmem>>, %arg5: memref<1x8x8x16xf32, #tpu.memory_space<vmem>>, %arg6: memref<1x8x8x16xf32, #tpu.memory_space<vmem>>, %arg7: memref<1x8x8x16xf32, #tpu.memory_space<vmem>>, %arg8: memref<1x10x10x16xf32, #tpu.memory_space<vmem>>) attributes {dimension_semantics = [#tpu.dimension_semantics<parallel>], iteration_bounds = array<i64: 2>, scalar_prefetch = 0 : i64, scratch_operands = 1 : i64, tpu.core_type = #tpu.core_type<tc>, window_params = [{transform_indices = @transform_0, window_bounds = array<i64: 1, 8, 8, 16>}, {pipeline_mode = #tpu.pipeline_mode<synchronous>, transform_indices = @transform_1, window_bounds = array<i64: 9, 16, 128>}, {pipeline_mode = #tpu.pipeline_mode<synchronous>, transform_indices = @transform_2, window_bounds = array<i64: 4, 128>}, {pipeline_mode = #tpu.pipeline_mode<synchronous>, transform_indices = @transform_3, window_bounds = array<i64: 1, 8, 8, 1>}, {transform_indices = @transform_4, window_bounds = array<i64: 1, 8, 8, 16>}, {transform_indices = @transform_5, window_bounds = array<i64: 1, 8, 8, 16>}, {transform_indices = @transform_6, window_bounds = array<i64: 1, 8, 8, 16>}]} {
    %cst = arith.constant 0.000000e+00 : f32
    %0 = vector.broadcast %cst : f32 to vector<1x1x10x16xf32>
    %cst_0 = arith.constant 0.000000e+00 : f32
    %1 = vector.broadcast %cst_0 : f32 to vector<1x10x1x16xf32>
    %c0 = arith.constant 0 : index
    %c0_1 = arith.constant 0 : index
    %c0_2 = arith.constant 0 : index
    %c0_3 = arith.constant 0 : index
    %2 = vector.load %arg8[%c0, %c0_1, %c0_2, %c0_3] : memref<1x10x10x16xf32, #tpu.memory_space<vmem>>, vector<1x1x10x16xf32>
    tpu.vector_store %arg8[%c0, %c0_1, %c0_2, %c0_3], %0 {strides = array<i32>} : memref<1x10x10x16xf32, #tpu.memory_space<vmem>>, vector<1x1x10x16xf32>,
    %c0_4 = arith.constant 0 : index
    %c9 = arith.constant 9 : index
    %c0_5 = arith.constant 0 : index
    %c0_6 = arith.constant 0 : index
    %3 = vector.load %arg8[%c0_4, %c9, %c0_5, %c0_6] : memref<1x10x10x16xf32, #tpu.memory_space<vmem>>, vector<1x1x10x16xf32>
    tpu.vector_store %arg8[%c0_4, %c9, %c0_5, %c0_6], %0 {strides = array<i32>} : memref<1x10x10x16xf32, #tpu.memory_space<vmem>>, vector<1x1x10x16xf32>,
    %c0_7 = arith.constant 0 : index
    %c0_8 = arith.constant 0 : index
    %c0_9 = arith.constant 0 : index
    %c0_10 = arith.constant 0 : index
    %4 = vector.load %arg8[%c0_7, %c0_8, %c0_9, %c0_10] : memref<1x10x10x16xf32, #tpu.memory_space<vmem>>, vector<1x10x1x16xf32>
    tpu.vector_store %arg8[%c0_7, %c0_8, %c0_9, %c0_10], %1 {strides = array<i32>} : memref<1x10x10x16xf32, #tpu.memory_space<vmem>>, vector<1x10x1x16xf32>,
    %c0_11 = arith.constant 0 : index
    %c0_12 = arith.constant 0 : index
    %c9_13 = arith.constant 9 : index
    %c0_14 = arith.constant 0 : index
    %5 = vector.load %arg8[%c0_11, %c0_12, %c9_13, %c0_14] : memref<1x10x10x16xf32, #tpu.memory_space<vmem>>, vector<1x10x1x16xf32>
    tpu.vector_store %arg8[%c0_11, %c0_12, %c9_13, %c0_14], %1 {strides = array<i32>} : memref<1x10x10x16xf32, #tpu.memory_space<vmem>>, vector<1x10x1x16xf32>,
    %c0_15 = arith.constant 0 : index
    %c0_16 = arith.constant 0 : index
    %c0_17 = arith.constant 0 : index
    %c0_18 = arith.constant 0 : index
    %6 = vector.load %arg1[%c0_15, %c0_16, %c0_17, %c0_18] : memref<1x8x8x16xf32, #tpu.memory_space<vmem>>, vector<1x8x8x16xf32>
    %c0_19 = arith.constant 0 : index
    %c1 = arith.constant 1 : index
    %c1_20 = arith.constant 1 : index
    %c0_21 = arith.constant 0 : index
    %7 = vector.load %arg8[%c0_19, %c1, %c1_20, %c0_21] : memref<1x10x10x16xf32, #tpu.memory_space<vmem>>, vector<1x8x8x16xf32>
    tpu.vector_store %arg8[%c0_19, %c1, %c1_20, %c0_21], %6 {strides = array<i32>} : memref<1x10x10x16xf32, #tpu.memory_space<vmem>>, vector<1x8x8x16xf32>,
    %c0_22 = arith.constant 0 : index
    %c0_23 = arith.constant 0 : index
    %c0_24 = arith.constant 0 : index
    %c0_25 = arith.constant 0 : index
    %8 = vector.load %arg8[%c0_22, %c0_23, %c0_24, %c0_25] : memref<1x10x10x16xf32, #tpu.memory_space<vmem>>, vector<1x8x8x16xf32>
    %c0_26 = arith.constant 0 : index
    %c0_27 = arith.constant 0 : index
    %c1_28 = arith.constant 1 : index
    %c0_29 = arith.constant 0 : index
    %9 = vector.load %arg8[%c0_26, %c0_27, %c1_28, %c0_29] : memref<1x10x10x16xf32, #tpu.memory_space<vmem>>, vector<1x8x8x16xf32>
    %10 = arith.addf %8, %9 : vector<1x8x8x16xf32>
    %c0_30 = arith.constant 0 : index
    %c0_31 = arith.constant 0 : index
    %c2 = arith.constant 2 : index
    %c0_32 = arith.constant 0 : index
    %11 = vector.load %arg8[%c0_30, %c0_31, %c2, %c0_32] : memref<1x10x10x16xf32, #tpu.memory_space<vmem>>, vector<1x8x8x16xf32>
    %12 = arith.addf %10, %11 : vector<1x8x8x16xf32>
    %c0_33 = arith.constant 0 : index
    %c1_34 = arith.constant 1 : index
    %c0_35 = arith.constant 0 : index
    %c0_36 = arith.constant 0 : index
    %13 = vector.load %arg8[%c0_33, %c1_34, %c0_35, %c0_36] : memref<1x10x10x16xf32, #tpu.memory_space<vmem>>, vector<1x8x8x16xf32>
    %14 = arith.addf %12, %13 : vector<1x8x8x16xf32>
    %c0_37 = arith.constant 0 : index
    %c1_38 = arith.constant 1 : index
    %c1_39 = arith.constant 1 : index
    %c0_40 = arith.constant 0 : index
    %15 = vector.load %arg8[%c0_37, %c1_38, %c1_39, %c0_40] : memref<1x10x10x16xf32, #tpu.memory_space<vmem>>, vector<1x8x8x16xf32>
    %16 = arith.addf %14, %15 : vector<1x8x8x16xf32>
    %c0_41 = arith.constant 0 : index
    %c1_42 = arith.constant 1 : index
    %c2_43 = arith.constant 2 : index
    %c0_44 = arith.constant 0 : index
    %17 = vector.load %arg8[%c0_41, %c1_42, %c2_43, %c0_44] : memref<1x10x10x16xf32, #tpu.memory_space<vmem>>, vector<1x8x8x16xf32>
    %18 = arith.addf %16, %17 : vector<1x8x8x16xf32>
    %c0_45 = arith.constant 0 : index
    %c2_46 = arith.constant 2 : index
    %c0_47 = arith.constant 0 : index
    %c0_48 = arith.constant 0 : index
    %19 = vector.load %arg8[%c0_45, %c2_46, %c0_47, %c0_48] : memref<1x10x10x16xf32, #tpu.memory_space<vmem>>, vector<1x8x8x16xf32>
    %20 = arith.addf %18, %19 : vector<1x8x8x16xf32>
    %c0_49 = arith.constant 0 : index
    %c2_50 = arith.constant 2 : index
    %c1_51 = arith.constant 1 : index
    %c0_52 = arith.constant 0 : index
    %21 = vector.load %arg8[%c0_49, %c2_50, %c1_51, %c0_52] : memref<1x10x10x16xf32, #tpu.memory_space<vmem>>, vector<1x8x8x16xf32>
    %22 = arith.addf %20, %21 : vector<1x8x8x16xf32>
    %c0_53 = arith.constant 0 : index
    %c2_54 = arith.constant 2 : index
    %c2_55 = arith.constant 2 : index
    %c0_56 = arith.constant 0 : index
    %23 = vector.load %arg8[%c0_53, %c2_54, %c2_55, %c0_56] : memref<1x10x10x16xf32, #tpu.memory_space<vmem>>, vector<1x8x8x16xf32>
    %24 = arith.addf %22, %23 : vector<1x8x8x16xf32>
    %c0_57 = arith.constant 0 : index
    %c0_58 = arith.constant 0 : index
    %c0_59 = arith.constant 0 : index
    %c0_60 = arith.constant 0 : index
    %25 = vector.load %arg4[%c0_57, %c0_58, %c0_59, %c0_60] : memref<1x8x8x1xf32, #tpu.memory_space<vmem>>, vector<1x8x8x1xf32>
    %26 = vector.broadcast %25 : vector<1x8x8x1xf32> to vector<1x8x8x16xf32>
    %27 = arith.mulf %24, %26 : vector<1x8x8x16xf32>
    %28 = vector.shape_cast %27 : vector<1x8x8x16xf32> to vector<64x16xf32>
    %cst_61 = arith.constant 0.000000e+00 : f32
    %29 = vector.broadcast %cst_61 : f32 to vector<1x8x8x16xf32>
    %30 = arith.maximumf %6, %29 : vector<1x8x8x16xf32>
    %c0_62 = arith.constant 0 : index
    %c1_63 = arith.constant 1 : index
    %c1_64 = arith.constant 1 : index
    %c0_65 = arith.constant 0 : index
    %31 = vector.load %arg8[%c0_62, %c1_63, %c1_64, %c0_65] : memref<1x10x10x16xf32, #tpu.memory_space<vmem>>, vector<1x8x8x16xf32>
    tpu.vector_store %arg8[%c0_62, %c1_63, %c1_64, %c0_65], %30 {strides = array<i32>} : memref<1x10x10x16xf32, #tpu.memory_space<vmem>>, vector<1x8x8x16xf32>,
    %c0_66 = arith.constant 0 : index
    %c0_67 = arith.constant 0 : index
    %c0_68 = arith.constant 0 : index
    %c0_69 = arith.constant 0 : index
    %32 = vector.load %arg8[%c0_66, %c0_67, %c0_68, %c0_69] : memref<1x10x10x16xf32, #tpu.memory_space<vmem>>, vector<1x8x8x16xf32>
    %33 = vector.shape_cast %32 : vector<1x8x8x16xf32> to vector<64x16xf32>
    %34 = arith.truncf %33 : vector<64x16xf32> to vector<64x16xbf16>
    %c0_70 = arith.constant 0 : index
    %c0_71 = arith.constant 0 : index
    %c0_72 = arith.constant 0 : index
    %35 = vector.load %arg2[%c0_70, %c0_71, %c0_72] : memref<9x16x128xbf16, #tpu.memory_space<vmem>>, vector<1x16x128xbf16>
    %36 = vector.shape_cast %35 : vector<1x16x128xbf16> to vector<16x128xbf16>
    %cst_73 = arith.constant dense<0.000000e+00> : vector<64x128xf32>
    %37 = tpu.matmul %34, %36, %cst_73 {dimension_numbers = #tpu.dot_dimension_numbers<[1], [0], [0], [1], [0, 0, 1, 1], [], []>} : vector<64x16xbf16>, vector<16x128xbf16>, vector<64x128xf32> -> vector<64x128xf32>
    %c0_74 = arith.constant 0 : index
    %c0_75 = arith.constant 0 : index
    %c1_76 = arith.constant 1 : index
    %c0_77 = arith.constant 0 : index
    %38 = vector.load %arg8[%c0_74, %c0_75, %c1_76, %c0_77] : memref<1x10x10x16xf32, #tpu.memory_space<vmem>>, vector<1x8x8x16xf32>
    %39 = vector.shape_cast %38 : vector<1x8x8x16xf32> to vector<64x16xf32>
    %40 = arith.truncf %39 : vector<64x16xf32> to vector<64x16xbf16>
    %c1_78 = arith.constant 1 : index
    %c0_79 = arith.constant 0 : index
    %c0_80 = arith.constant 0 : index
    %41 = vector.load %arg2[%c1_78, %c0_79, %c0_80] : memref<9x16x128xbf16, #tpu.memory_space<vmem>>, vector<1x16x128xbf16>
    %42 = vector.shape_cast %41 : vector<1x16x128xbf16> to vector<16x128xbf16>
    %cst_81 = arith.constant dense<0.000000e+00> : vector<64x128xf32>
    %43 = tpu.matmul %40, %42, %cst_81 {dimension_numbers = #tpu.dot_dimension_numbers<[1], [0], [0], [1], [0, 0, 1, 1], [], []>} : vector<64x16xbf16>, vector<16x128xbf16>, vector<64x128xf32> -> vector<64x128xf32>
    %44 = arith.addf %37, %43 : vector<64x128xf32>
    %c0_82 = arith.constant 0 : index
    %c0_83 = arith.constant 0 : index
    %c2_84 = arith.constant 2 : index
    %c0_85 = arith.constant 0 : index
    %45 = vector.load %arg8[%c0_82, %c0_83, %c2_84, %c0_85] : memref<1x10x10x16xf32, #tpu.memory_space<vmem>>, vector<1x8x8x16xf32>
    %46 = vector.shape_cast %45 : vector<1x8x8x16xf32> to vector<64x16xf32>
    %47 = arith.truncf %46 : vector<64x16xf32> to vector<64x16xbf16>
    %c2_86 = arith.constant 2 : index
    %c0_87 = arith.constant 0 : index
    %c0_88 = arith.constant 0 : index
    %48 = vector.load %arg2[%c2_86, %c0_87, %c0_88] : memref<9x16x128xbf16, #tpu.memory_space<vmem>>, vector<1x16x128xbf16>
    %49 = vector.shape_cast %48 : vector<1x16x128xbf16> to vector<16x128xbf16>
    %cst_89 = arith.constant dense<0.000000e+00> : vector<64x128xf32>
    %50 = tpu.matmul %47, %49, %cst_89 {dimension_numbers = #tpu.dot_dimension_numbers<[1], [0], [0], [1], [0, 0, 1, 1], [], []>} : vector<64x16xbf16>, vector<16x128xbf16>, vector<64x128xf32> -> vector<64x128xf32>
    %51 = arith.addf %44, %50 : vector<64x128xf32>
    %c0_90 = arith.constant 0 : index
    %c1_91 = arith.constant 1 : index
    %c0_92 = arith.constant 0 : index
    %c0_93 = arith.constant 0 : index
    %52 = vector.load %arg8[%c0_90, %c1_91, %c0_92, %c0_93] : memref<1x10x10x16xf32, #tpu.memory_space<vmem>>, vector<1x8x8x16xf32>
    %53 = vector.shape_cast %52 : vector<1x8x8x16xf32> to vector<64x16xf32>
    %54 = arith.truncf %53 : vector<64x16xf32> to vector<64x16xbf16>
    %c3 = arith.constant 3 : index
    %c0_94 = arith.constant 0 : index
    %c0_95 = arith.constant 0 : index
    %55 = vector.load %arg2[%c3, %c0_94, %c0_95] : memref<9x16x128xbf16, #tpu.memory_space<vmem>>, vector<1x16x128xbf16>
    %56 = vector.shape_cast %55 : vector<1x16x128xbf16> to vector<16x128xbf16>
    %cst_96 = arith.constant dense<0.000000e+00> : vector<64x128xf32>
    %57 = tpu.matmul %54, %56, %cst_96 {dimension_numbers = #tpu.dot_dimension_numbers<[1], [0], [0], [1], [0, 0, 1, 1], [], []>} : vector<64x16xbf16>, vector<16x128xbf16>, vector<64x128xf32> -> vector<64x128xf32>
    %58 = arith.addf %51, %57 : vector<64x128xf32>
    %c0_97 = arith.constant 0 : index
    %c1_98 = arith.constant 1 : index
    %c1_99 = arith.constant 1 : index
    %c0_100 = arith.constant 0 : index
    %59 = vector.load %arg8[%c0_97, %c1_98, %c1_99, %c0_100] : memref<1x10x10x16xf32, #tpu.memory_space<vmem>>, vector<1x8x8x16xf32>
    %60 = vector.shape_cast %59 : vector<1x8x8x16xf32> to vector<64x16xf32>
    %61 = arith.truncf %60 : vector<64x16xf32> to vector<64x16xbf16>
    %c4 = arith.constant 4 : index
    %c0_101 = arith.constant 0 : index
    %c0_102 = arith.constant 0 : index
    %62 = vector.load %arg2[%c4, %c0_101, %c0_102] : memref<9x16x128xbf16, #tpu.memory_space<vmem>>, vector<1x16x128xbf16>
    %63 = vector.shape_cast %62 : vector<1x16x128xbf16> to vector<16x128xbf16>
    %cst_103 = arith.constant dense<0.000000e+00> : vector<64x128xf32>
    %64 = tpu.matmul %61, %63, %cst_103 {dimension_numbers = #tpu.dot_dimension_numbers<[1], [0], [0], [1], [0, 0, 1, 1], [], []>} : vector<64x16xbf16>, vector<16x128xbf16>, vector<64x128xf32> -> vector<64x128xf32>
    %65 = arith.addf %58, %64 : vector<64x128xf32>
    %c0_104 = arith.constant 0 : index
    %c1_105 = arith.constant 1 : index
    %c2_106 = arith.constant 2 : index
    %c0_107 = arith.constant 0 : index
    %66 = vector.load %arg8[%c0_104, %c1_105, %c2_106, %c0_107] : memref<1x10x10x16xf32, #tpu.memory_space<vmem>>, vector<1x8x8x16xf32>
    %67 = vector.shape_cast %66 : vector<1x8x8x16xf32> to vector<64x16xf32>
    %68 = arith.truncf %67 : vector<64x16xf32> to vector<64x16xbf16>
    %c5 = arith.constant 5 : index
    %c0_108 = arith.constant 0 : index
    %c0_109 = arith.constant 0 : index
    %69 = vector.load %arg2[%c5, %c0_108, %c0_109] : memref<9x16x128xbf16, #tpu.memory_space<vmem>>, vector<1x16x128xbf16>
    %70 = vector.shape_cast %69 : vector<1x16x128xbf16> to vector<16x128xbf16>
    %cst_110 = arith.constant dense<0.000000e+00> : vector<64x128xf32>
    %71 = tpu.matmul %68, %70, %cst_110 {dimension_numbers = #tpu.dot_dimension_numbers<[1], [0], [0], [1], [0, 0, 1, 1], [], []>} : vector<64x16xbf16>, vector<16x128xbf16>, vector<64x128xf32> -> vector<64x128xf32>
    %72 = arith.addf %65, %71 : vector<64x128xf32>
    %c0_111 = arith.constant 0 : index
    %c2_112 = arith.constant 2 : index
    %c0_113 = arith.constant 0 : index
    %c0_114 = arith.constant 0 : index
    %73 = vector.load %arg8[%c0_111, %c2_112, %c0_113, %c0_114] : memref<1x10x10x16xf32, #tpu.memory_space<vmem>>, vector<1x8x8x16xf32>
    %74 = vector.shape_cast %73 : vector<1x8x8x16xf32> to vector<64x16xf32>
    %75 = arith.truncf %74 : vector<64x16xf32> to vector<64x16xbf16>
    %c6 = arith.constant 6 : index
    %c0_115 = arith.constant 0 : index
    %c0_116 = arith.constant 0 : index
    %76 = vector.load %arg2[%c6, %c0_115, %c0_116] : memref<9x16x128xbf16, #tpu.memory_space<vmem>>, vector<1x16x128xbf16>
    %77 = vector.shape_cast %76 : vector<1x16x128xbf16> to vector<16x128xbf16>
    %cst_117 = arith.constant dense<0.000000e+00> : vector<64x128xf32>
    %78 = tpu.matmul %75, %77, %cst_117 {dimension_numbers = #tpu.dot_dimension_numbers<[1], [0], [0], [1], [0, 0, 1, 1], [], []>} : vector<64x16xbf16>, vector<16x128xbf16>, vector<64x128xf32> -> vector<64x128xf32>
    %79 = arith.addf %72, %78 : vector<64x128xf32>
    %c0_118 = arith.constant 0 : index
    %c2_119 = arith.constant 2 : index
    %c1_120 = arith.constant 1 : index
    %c0_121 = arith.constant 0 : index
    %80 = vector.load %arg8[%c0_118, %c2_119, %c1_120, %c0_121] : memref<1x10x10x16xf32, #tpu.memory_space<vmem>>, vector<1x8x8x16xf32>
    %81 = vector.shape_cast %80 : vector<1x8x8x16xf32> to vector<64x16xf32>
    %82 = arith.truncf %81 : vector<64x16xf32> to vector<64x16xbf16>
    %c7 = arith.constant 7 : index
    %c0_122 = arith.constant 0 : index
    %c0_123 = arith.constant 0 : index
    %83 = vector.load %arg2[%c7, %c0_122, %c0_123] : memref<9x16x128xbf16, #tpu.memory_space<vmem>>, vector<1x16x128xbf16>
    %84 = vector.shape_cast %83 : vector<1x16x128xbf16> to vector<16x128xbf16>
    %cst_124 = arith.constant dense<0.000000e+00> : vector<64x128xf32>
    %85 = tpu.matmul %82, %84, %cst_124 {dimension_numbers = #tpu.dot_dimension_numbers<[1], [0], [0], [1], [0, 0, 1, 1], [], []>} : vector<64x16xbf16>, vector<16x128xbf16>, vector<64x128xf32> -> vector<64x128xf32>
    %86 = arith.addf %79, %85 : vector<64x128xf32>
    %c0_125 = arith.constant 0 : index
    %c2_126 = arith.constant 2 : index
    %c2_127 = arith.constant 2 : index
    %c0_128 = arith.constant 0 : index
    %87 = vector.load %arg8[%c0_125, %c2_126, %c2_127, %c0_128] : memref<1x10x10x16xf32, #tpu.memory_space<vmem>>, vector<1x8x8x16xf32>
    %88 = vector.shape_cast %87 : vector<1x8x8x16xf32> to vector<64x16xf32>
    %89 = arith.truncf %88 : vector<64x16xf32> to vector<64x16xbf16>
    %c8 = arith.constant 8 : index
    %c0_129 = arith.constant 0 : index
    %c0_130 = arith.constant 0 : index
    %90 = vector.load %arg2[%c8, %c0_129, %c0_130] : memref<9x16x128xbf16, #tpu.memory_space<vmem>>, vector<1x16x128xbf16>
    %91 = vector.shape_cast %90 : vector<1x16x128xbf16> to vector<16x128xbf16>
    %cst_131 = arith.constant dense<0.000000e+00> : vector<64x128xf32>
    %92 = tpu.matmul %89, %91, %cst_131 {dimension_numbers = #tpu.dot_dimension_numbers<[1], [0], [0], [1], [0, 0, 1, 1], [], []>} : vector<64x16xbf16>, vector<16x128xbf16>, vector<64x128xf32> -> vector<64x128xf32>
    %93 = arith.addf %86, %92 : vector<64x128xf32>
    %c0_132 = arith.constant 0 : index
    %c0_133 = arith.constant 0 : index
    %94 = vector.load %arg3[%c0_132, %c0_133] : memref<4x128xf32, #tpu.memory_space<vmem>>, vector<1x128xf32>
    %95 = vector.broadcast %94 : vector<1x128xf32> to vector<64x128xf32>
    %96 = arith.mulf %93, %95 : vector<64x128xf32>
    %c1_134 = arith.constant 1 : index
    %c0_135 = arith.constant 0 : index
    %97 = vector.load %arg3[%c1_134, %c0_135] : memref<4x128xf32, #tpu.memory_space<vmem>>, vector<1x128xf32>
    %98 = vector.broadcast %97 : vector<1x128xf32> to vector<64x128xf32>
    %99 = arith.addf %96, %98 : vector<64x128xf32>
    %100 = vector.extract_strided_slice %99 {offsets = [0, 0], sizes = [64, 48], strides = [1, 1]} : vector<64x128xf32> to vector<64x48xf32>
    %101 = vector.extract_strided_slice %99 {offsets = [0, 48], sizes = [64, 48], strides = [1, 1]} : vector<64x128xf32> to vector<64x48xf32>
    %102 = arith.addf %100, %101 : vector<64x48xf32>
    %103 = vector.shape_cast %6 : vector<1x8x8x16xf32> to vector<64x16xf32>
    %104 = vector.extract_strided_slice %102 {offsets = [0, 0], sizes = [64, 16], strides = [1, 1]} : vector<64x48xf32> to vector<64x16xf32>
    %c2_136 = arith.constant 2 : index
    %c0_137 = arith.constant 0 : index
    %105 = vector.load %arg3[%c2_136, %c0_137] : memref<4x128xf32, #tpu.memory_space<vmem>>, vector<1x16xf32>
    %106 = vector.broadcast %105 : vector<1x16xf32> to vector<64x16xf32>
    %107 = arith.mulf %103, %106 : vector<64x16xf32>
    %108 = arith.addf %104, %107 : vector<64x16xf32>
    %c3_138 = arith.constant 3 : index
    %c0_139 = arith.constant 0 : index
    %109 = vector.load %arg3[%c3_138, %c0_139] : memref<4x128xf32, #tpu.memory_space<vmem>>, vector<1x16xf32>
    %110 = vector.broadcast %109 : vector<1x16xf32> to vector<64x16xf32>
    %111 = arith.mulf %28, %110 : vector<64x16xf32>
    %112 = arith.addf %108, %111 : vector<64x16xf32>
    %113 = vector.shape_cast %112 : vector<64x16xf32> to vector<1x8x8x16xf32>
    %c0_140 = arith.constant 0 : index
    %c0_141 = arith.constant 0 : index
    %c0_142 = arith.constant 0 : index
    %c0_143 = arith.constant 0 : index
    %114 = vector.load %arg5[%c0_140, %c0_141, %c0_142, %c0_143] : memref<1x8x8x16xf32, #tpu.memory_space<vmem>>, vector<1x8x8x16xf32>
    tpu.vector_store %arg5[%c0_140, %c0_141, %c0_142, %c0_143], %113 {strides = array<i32>} : memref<1x8x8x16xf32, #tpu.memory_space<vmem>>, vector<1x8x8x16xf32>,
    %115 = vector.extract_strided_slice %102 {offsets = [0, 16], sizes = [64, 16], strides = [1, 1]} : vector<64x48xf32> to vector<64x16xf32>
    %c2_144 = arith.constant 2 : index
    %c16 = arith.constant 16 : index
    %116 = vector.load %arg3[%c2_144, %c16] : memref<4x128xf32, #tpu.memory_space<vmem>>, vector<1x16xf32>
    %117 = vector.broadcast %116 : vector<1x16xf32> to vector<64x16xf32>
    %118 = arith.mulf %103, %117 : vector<64x16xf32>
    %119 = arith.addf %115, %118 : vector<64x16xf32>
    %c3_145 = arith.constant 3 : index
    %c16_146 = arith.constant 16 : index
    %120 = vector.load %arg3[%c3_145, %c16_146] : memref<4x128xf32, #tpu.memory_space<vmem>>, vector<1x16xf32>
    %121 = vector.broadcast %120 : vector<1x16xf32> to vector<64x16xf32>
    %122 = arith.mulf %28, %121 : vector<64x16xf32>
    %123 = arith.addf %119, %122 : vector<64x16xf32>
    %124 = vector.shape_cast %123 : vector<64x16xf32> to vector<1x8x8x16xf32>
    %c0_147 = arith.constant 0 : index
    %c0_148 = arith.constant 0 : index
    %c0_149 = arith.constant 0 : index
    %c0_150 = arith.constant 0 : index
    %125 = vector.load %arg6[%c0_147, %c0_148, %c0_149, %c0_150] : memref<1x8x8x16xf32, #tpu.memory_space<vmem>>, vector<1x8x8x16xf32>
    tpu.vector_store %arg6[%c0_147, %c0_148, %c0_149, %c0_150], %124 {strides = array<i32>} : memref<1x8x8x16xf32, #tpu.memory_space<vmem>>, vector<1x8x8x16xf32>,
    %126 = vector.extract_strided_slice %102 {offsets = [0, 32], sizes = [64, 16], strides = [1, 1]} : vector<64x48xf32> to vector<64x16xf32>
    %c2_151 = arith.constant 2 : index
    %c32 = arith.constant 32 : index
    %127 = vector.load %arg3[%c2_151, %c32] : memref<4x128xf32, #tpu.memory_space<vmem>>, vector<1x16xf32>
    %128 = vector.broadcast %127 : vector<1x16xf32> to vector<64x16xf32>
    %129 = arith.mulf %103, %128 : vector<64x16xf32>
    %130 = arith.addf %126, %129 : vector<64x16xf32>
    %c3_152 = arith.constant 3 : index
    %c32_153 = arith.constant 32 : index
    %131 = vector.load %arg3[%c3_152, %c32_153] : memref<4x128xf32, #tpu.memory_space<vmem>>, vector<1x16xf32>
    %132 = vector.broadcast %131 : vector<1x16xf32> to vector<64x16xf32>
    %133 = arith.mulf %28, %132 : vector<64x16xf32>
    %134 = arith.addf %130, %133 : vector<64x16xf32>
    %135 = vector.shape_cast %134 : vector<64x16xf32> to vector<1x8x8x16xf32>
    %c0_154 = arith.constant 0 : index
    %c0_155 = arith.constant 0 : index
    %c0_156 = arith.constant 0 : index
    %c0_157 = arith.constant 0 : index
    %136 = vector.load %arg7[%c0_154, %c0_155, %c0_156, %c0_157] : memref<1x8x8x16xf32, #tpu.memory_space<vmem>>, vector<1x8x8x16xf32>
    tpu.vector_store %arg7[%c0_154, %c0_155, %c0_156, %c0_157], %135 {strides = array<i32>} : memref<1x8x8x16xf32, #tpu.memory_space<vmem>>, vector<1x8x8x16xf32>,
    return
  }
  func.func @transform_0(%arg0: i32) -> (i32, i32, i32, i32) {
    %c0_i32 = arith.constant 0 : i32
    %c0_i32_0 = arith.constant 0 : i32
    %c0_i32_1 = arith.constant 0 : i32
    %c0_i32_2 = arith.constant 0 : i32
    return %arg0, %c0_i32, %c0_i32_0, %c0_i32_1 : i32, i32, i32, i32
  }
  func.func @transform_1(%arg0: i32) -> (i32, i32, i32) {
    %c0_i32 = arith.constant 0 : i32
    %c0_i32_0 = arith.constant 0 : i32
    %c0_i32_1 = arith.constant 0 : i32
    %c0_i32_2 = arith.constant 0 : i32
    return %c0_i32, %c0_i32_0, %c0_i32_1 : i32, i32, i32
  }
  func.func @transform_2(%arg0: i32) -> (i32, i32) {
    %c0_i32 = arith.constant 0 : i32
    %c0_i32_0 = arith.constant 0 : i32
    %c0_i32_1 = arith.constant 0 : i32
    return %c0_i32, %c0_i32_0 : i32, i32
  }
  func.func @transform_3(%arg0: i32) -> (i32, i32, i32, i32) {
    %c0_i32 = arith.constant 0 : i32
    %c0_i32_0 = arith.constant 0 : i32
    %c0_i32_1 = arith.constant 0 : i32
    %c0_i32_2 = arith.constant 0 : i32
    %c0_i32_3 = arith.constant 0 : i32
    return %c0_i32, %c0_i32_0, %c0_i32_1, %c0_i32_2 : i32, i32, i32, i32
  }
  func.func @transform_4(%arg0: i32) -> (i32, i32, i32, i32) {
    %c0_i32 = arith.constant 0 : i32
    %c0_i32_0 = arith.constant 0 : i32
    %c0_i32_1 = arith.constant 0 : i32
    %c0_i32_2 = arith.constant 0 : i32
    return %arg0, %c0_i32, %c0_i32_0, %c0_i32_1 : i32, i32, i32, i32
  }
  func.func @transform_5(%arg0: i32) -> (i32, i32, i32, i32) {
    %c0_i32 = arith.constant 0 : i32
    %c0_i32_0 = arith.constant 0 : i32
    %c0_i32_1 = arith.constant 0 : i32
    %c0_i32_2 = arith.constant 0 : i32
    return %arg0, %c0_i32, %c0_i32_0, %c0_i32_1 : i32, i32, i32, i32
  }
  func.func @transform_6(%arg0: i32) -> (i32, i32, i32, i32) {
    %c0_i32 = arith.constant 0 : i32
    %c0_i32_0 = arith.constant 0 : i32
    %c0_i32_1 = arith.constant 0 : i32
    %c0_i32_2 = arith.constant 0 : i32
    return %arg0, %c0_i32, %c0_i32_0, %c0_i32_1 : i32, i32, i32, i32
  }
}

module attributes {stable_mosaic.version = 11 : i64} {
  func.func @kernel(%arg0: i32, %arg1: memref<1x8x8x16xf32, #tpu.memory_space<vmem>>, %arg2: memref<9x16x128xbf16, #tpu.memory_space<vmem>>, %arg3: memref<4x128xf32, #tpu.memory_space<vmem>>, %arg4: memref<1x8x8x1xf32, #tpu.memory_space<vmem>>, %arg5: memref<1x8x8x16xf32, #tpu.memory_space<vmem>>, %arg6: memref<1x8x8x16xf32, #tpu.memory_space<vmem>>, %arg7: memref<1x10x10x16xf32, #tpu.memory_space<vmem>>) attributes {dimension_semantics = [#tpu.dimension_semantics<parallel>], iteration_bounds = array<i64: 2>, scalar_prefetch = 0 : i64, scratch_operands = 1 : i64, tpu.core_type = #tpu.core_type<tc>, window_params = [{transform_indices = @transform_0, window_bounds = array<i64: 1, 8, 8, 16>}, {pipeline_mode = #tpu.pipeline_mode<synchronous>, transform_indices = @transform_1, window_bounds = array<i64: 9, 16, 128>}, {pipeline_mode = #tpu.pipeline_mode<synchronous>, transform_indices = @transform_2, window_bounds = array<i64: 4, 128>}, {pipeline_mode = #tpu.pipeline_mode<synchronous>, transform_indices = @transform_3, window_bounds = array<i64: 1, 8, 8, 1>}, {transform_indices = @transform_4, window_bounds = array<i64: 1, 8, 8, 16>}, {transform_indices = @transform_5, window_bounds = array<i64: 1, 8, 8, 16>}]} {
    %cst = arith.constant 0.000000e+00 : f32
    %0 = vector.broadcast %cst : f32 to vector<1x1x10x16xf32>
    %cst_0 = arith.constant 0.000000e+00 : f32
    %1 = vector.broadcast %cst_0 : f32 to vector<1x10x1x16xf32>
    %c0 = arith.constant 0 : index
    %c0_1 = arith.constant 0 : index
    %c0_2 = arith.constant 0 : index
    %c0_3 = arith.constant 0 : index
    %2 = vector.load %arg7[%c0, %c0_1, %c0_2, %c0_3] : memref<1x10x10x16xf32, #tpu.memory_space<vmem>>, vector<1x1x10x16xf32>
    tpu.vector_store %arg7[%c0, %c0_1, %c0_2, %c0_3], %0 {strides = array<i32>} : memref<1x10x10x16xf32, #tpu.memory_space<vmem>>, vector<1x1x10x16xf32>,
    %c0_4 = arith.constant 0 : index
    %c9 = arith.constant 9 : index
    %c0_5 = arith.constant 0 : index
    %c0_6 = arith.constant 0 : index
    %3 = vector.load %arg7[%c0_4, %c9, %c0_5, %c0_6] : memref<1x10x10x16xf32, #tpu.memory_space<vmem>>, vector<1x1x10x16xf32>
    tpu.vector_store %arg7[%c0_4, %c9, %c0_5, %c0_6], %0 {strides = array<i32>} : memref<1x10x10x16xf32, #tpu.memory_space<vmem>>, vector<1x1x10x16xf32>,
    %c0_7 = arith.constant 0 : index
    %c0_8 = arith.constant 0 : index
    %c0_9 = arith.constant 0 : index
    %c0_10 = arith.constant 0 : index
    %4 = vector.load %arg7[%c0_7, %c0_8, %c0_9, %c0_10] : memref<1x10x10x16xf32, #tpu.memory_space<vmem>>, vector<1x10x1x16xf32>
    tpu.vector_store %arg7[%c0_7, %c0_8, %c0_9, %c0_10], %1 {strides = array<i32>} : memref<1x10x10x16xf32, #tpu.memory_space<vmem>>, vector<1x10x1x16xf32>,
    %c0_11 = arith.constant 0 : index
    %c0_12 = arith.constant 0 : index
    %c9_13 = arith.constant 9 : index
    %c0_14 = arith.constant 0 : index
    %5 = vector.load %arg7[%c0_11, %c0_12, %c9_13, %c0_14] : memref<1x10x10x16xf32, #tpu.memory_space<vmem>>, vector<1x10x1x16xf32>
    tpu.vector_store %arg7[%c0_11, %c0_12, %c9_13, %c0_14], %1 {strides = array<i32>} : memref<1x10x10x16xf32, #tpu.memory_space<vmem>>, vector<1x10x1x16xf32>,
    %c0_15 = arith.constant 0 : index
    %c0_16 = arith.constant 0 : index
    %c0_17 = arith.constant 0 : index
    %c0_18 = arith.constant 0 : index
    %6 = vector.load %arg1[%c0_15, %c0_16, %c0_17, %c0_18] : memref<1x8x8x16xf32, #tpu.memory_space<vmem>>, vector<1x8x8x16xf32>
    %c0_19 = arith.constant 0 : index
    %c1 = arith.constant 1 : index
    %c1_20 = arith.constant 1 : index
    %c0_21 = arith.constant 0 : index
    %7 = vector.load %arg7[%c0_19, %c1, %c1_20, %c0_21] : memref<1x10x10x16xf32, #tpu.memory_space<vmem>>, vector<1x8x8x16xf32>
    tpu.vector_store %arg7[%c0_19, %c1, %c1_20, %c0_21], %6 {strides = array<i32>} : memref<1x10x10x16xf32, #tpu.memory_space<vmem>>, vector<1x8x8x16xf32>,
    %c0_22 = arith.constant 0 : index
    %c0_23 = arith.constant 0 : index
    %c0_24 = arith.constant 0 : index
    %c0_25 = arith.constant 0 : index
    %8 = vector.load %arg7[%c0_22, %c0_23, %c0_24, %c0_25] : memref<1x10x10x16xf32, #tpu.memory_space<vmem>>, vector<1x8x8x16xf32>
    %c0_26 = arith.constant 0 : index
    %c0_27 = arith.constant 0 : index
    %c1_28 = arith.constant 1 : index
    %c0_29 = arith.constant 0 : index
    %9 = vector.load %arg7[%c0_26, %c0_27, %c1_28, %c0_29] : memref<1x10x10x16xf32, #tpu.memory_space<vmem>>, vector<1x8x8x16xf32>
    %10 = arith.addf %8, %9 : vector<1x8x8x16xf32>
    %c0_30 = arith.constant 0 : index
    %c0_31 = arith.constant 0 : index
    %c2 = arith.constant 2 : index
    %c0_32 = arith.constant 0 : index
    %11 = vector.load %arg7[%c0_30, %c0_31, %c2, %c0_32] : memref<1x10x10x16xf32, #tpu.memory_space<vmem>>, vector<1x8x8x16xf32>
    %12 = arith.addf %10, %11 : vector<1x8x8x16xf32>
    %c0_33 = arith.constant 0 : index
    %c1_34 = arith.constant 1 : index
    %c0_35 = arith.constant 0 : index
    %c0_36 = arith.constant 0 : index
    %13 = vector.load %arg7[%c0_33, %c1_34, %c0_35, %c0_36] : memref<1x10x10x16xf32, #tpu.memory_space<vmem>>, vector<1x8x8x16xf32>
    %14 = arith.addf %12, %13 : vector<1x8x8x16xf32>
    %c0_37 = arith.constant 0 : index
    %c1_38 = arith.constant 1 : index
    %c1_39 = arith.constant 1 : index
    %c0_40 = arith.constant 0 : index
    %15 = vector.load %arg7[%c0_37, %c1_38, %c1_39, %c0_40] : memref<1x10x10x16xf32, #tpu.memory_space<vmem>>, vector<1x8x8x16xf32>
    %16 = arith.addf %14, %15 : vector<1x8x8x16xf32>
    %c0_41 = arith.constant 0 : index
    %c1_42 = arith.constant 1 : index
    %c2_43 = arith.constant 2 : index
    %c0_44 = arith.constant 0 : index
    %17 = vector.load %arg7[%c0_41, %c1_42, %c2_43, %c0_44] : memref<1x10x10x16xf32, #tpu.memory_space<vmem>>, vector<1x8x8x16xf32>
    %18 = arith.addf %16, %17 : vector<1x8x8x16xf32>
    %c0_45 = arith.constant 0 : index
    %c2_46 = arith.constant 2 : index
    %c0_47 = arith.constant 0 : index
    %c0_48 = arith.constant 0 : index
    %19 = vector.load %arg7[%c0_45, %c2_46, %c0_47, %c0_48] : memref<1x10x10x16xf32, #tpu.memory_space<vmem>>, vector<1x8x8x16xf32>
    %20 = arith.addf %18, %19 : vector<1x8x8x16xf32>
    %c0_49 = arith.constant 0 : index
    %c2_50 = arith.constant 2 : index
    %c1_51 = arith.constant 1 : index
    %c0_52 = arith.constant 0 : index
    %21 = vector.load %arg7[%c0_49, %c2_50, %c1_51, %c0_52] : memref<1x10x10x16xf32, #tpu.memory_space<vmem>>, vector<1x8x8x16xf32>
    %22 = arith.addf %20, %21 : vector<1x8x8x16xf32>
    %c0_53 = arith.constant 0 : index
    %c2_54 = arith.constant 2 : index
    %c2_55 = arith.constant 2 : index
    %c0_56 = arith.constant 0 : index
    %23 = vector.load %arg7[%c0_53, %c2_54, %c2_55, %c0_56] : memref<1x10x10x16xf32, #tpu.memory_space<vmem>>, vector<1x8x8x16xf32>
    %24 = arith.addf %22, %23 : vector<1x8x8x16xf32>
    %c0_57 = arith.constant 0 : index
    %c0_58 = arith.constant 0 : index
    %c0_59 = arith.constant 0 : index
    %c0_60 = arith.constant 0 : index
    %25 = vector.load %arg4[%c0_57, %c0_58, %c0_59, %c0_60] : memref<1x8x8x1xf32, #tpu.memory_space<vmem>>, vector<1x8x8x1xf32>
    %26 = vector.broadcast %25 : vector<1x8x8x1xf32> to vector<1x8x8x16xf32>
    %27 = arith.mulf %24, %26 : vector<1x8x8x16xf32>
    %28 = vector.shape_cast %27 : vector<1x8x8x16xf32> to vector<64x16xf32>
    %cst_61 = arith.constant 0.000000e+00 : f32
    %29 = vector.broadcast %cst_61 : f32 to vector<1x8x8x16xf32>
    %30 = arith.maximumf %6, %29 : vector<1x8x8x16xf32>
    %c0_62 = arith.constant 0 : index
    %c1_63 = arith.constant 1 : index
    %c1_64 = arith.constant 1 : index
    %c0_65 = arith.constant 0 : index
    %31 = vector.load %arg7[%c0_62, %c1_63, %c1_64, %c0_65] : memref<1x10x10x16xf32, #tpu.memory_space<vmem>>, vector<1x8x8x16xf32>
    tpu.vector_store %arg7[%c0_62, %c1_63, %c1_64, %c0_65], %30 {strides = array<i32>} : memref<1x10x10x16xf32, #tpu.memory_space<vmem>>, vector<1x8x8x16xf32>,
    %c0_66 = arith.constant 0 : index
    %c0_67 = arith.constant 0 : index
    %c0_68 = arith.constant 0 : index
    %c0_69 = arith.constant 0 : index
    %32 = vector.load %arg7[%c0_66, %c0_67, %c0_68, %c0_69] : memref<1x10x10x16xf32, #tpu.memory_space<vmem>>, vector<1x8x8x16xf32>
    %33 = vector.shape_cast %32 : vector<1x8x8x16xf32> to vector<64x16xf32>
    %34 = arith.truncf %33 : vector<64x16xf32> to vector<64x16xbf16>
    %c0_70 = arith.constant 0 : index
    %c0_71 = arith.constant 0 : index
    %c0_72 = arith.constant 0 : index
    %35 = vector.load %arg2[%c0_70, %c0_71, %c0_72] : memref<9x16x128xbf16, #tpu.memory_space<vmem>>, vector<1x16x128xbf16>
    %36 = vector.shape_cast %35 : vector<1x16x128xbf16> to vector<16x128xbf16>
    %cst_73 = arith.constant dense<0.000000e+00> : vector<64x128xf32>
    %37 = tpu.matmul %34, %36, %cst_73 {dimension_numbers = #tpu.dot_dimension_numbers<[1], [0], [0], [1], [0, 0, 1, 1], [], []>} : vector<64x16xbf16>, vector<16x128xbf16>, vector<64x128xf32> -> vector<64x128xf32>
    %c0_74 = arith.constant 0 : index
    %c0_75 = arith.constant 0 : index
    %c1_76 = arith.constant 1 : index
    %c0_77 = arith.constant 0 : index
    %38 = vector.load %arg7[%c0_74, %c0_75, %c1_76, %c0_77] : memref<1x10x10x16xf32, #tpu.memory_space<vmem>>, vector<1x8x8x16xf32>
    %39 = vector.shape_cast %38 : vector<1x8x8x16xf32> to vector<64x16xf32>
    %40 = arith.truncf %39 : vector<64x16xf32> to vector<64x16xbf16>
    %c1_78 = arith.constant 1 : index
    %c0_79 = arith.constant 0 : index
    %c0_80 = arith.constant 0 : index
    %41 = vector.load %arg2[%c1_78, %c0_79, %c0_80] : memref<9x16x128xbf16, #tpu.memory_space<vmem>>, vector<1x16x128xbf16>
    %42 = vector.shape_cast %41 : vector<1x16x128xbf16> to vector<16x128xbf16>
    %cst_81 = arith.constant dense<0.000000e+00> : vector<64x128xf32>
    %43 = tpu.matmul %40, %42, %cst_81 {dimension_numbers = #tpu.dot_dimension_numbers<[1], [0], [0], [1], [0, 0, 1, 1], [], []>} : vector<64x16xbf16>, vector<16x128xbf16>, vector<64x128xf32> -> vector<64x128xf32>
    %44 = arith.addf %37, %43 : vector<64x128xf32>
    %c0_82 = arith.constant 0 : index
    %c0_83 = arith.constant 0 : index
    %c2_84 = arith.constant 2 : index
    %c0_85 = arith.constant 0 : index
    %45 = vector.load %arg7[%c0_82, %c0_83, %c2_84, %c0_85] : memref<1x10x10x16xf32, #tpu.memory_space<vmem>>, vector<1x8x8x16xf32>
    %46 = vector.shape_cast %45 : vector<1x8x8x16xf32> to vector<64x16xf32>
    %47 = arith.truncf %46 : vector<64x16xf32> to vector<64x16xbf16>
    %c2_86 = arith.constant 2 : index
    %c0_87 = arith.constant 0 : index
    %c0_88 = arith.constant 0 : index
    %48 = vector.load %arg2[%c2_86, %c0_87, %c0_88] : memref<9x16x128xbf16, #tpu.memory_space<vmem>>, vector<1x16x128xbf16>
    %49 = vector.shape_cast %48 : vector<1x16x128xbf16> to vector<16x128xbf16>
    %cst_89 = arith.constant dense<0.000000e+00> : vector<64x128xf32>
    %50 = tpu.matmul %47, %49, %cst_89 {dimension_numbers = #tpu.dot_dimension_numbers<[1], [0], [0], [1], [0, 0, 1, 1], [], []>} : vector<64x16xbf16>, vector<16x128xbf16>, vector<64x128xf32> -> vector<64x128xf32>
    %51 = arith.addf %44, %50 : vector<64x128xf32>
    %c0_90 = arith.constant 0 : index
    %c1_91 = arith.constant 1 : index
    %c0_92 = arith.constant 0 : index
    %c0_93 = arith.constant 0 : index
    %52 = vector.load %arg7[%c0_90, %c1_91, %c0_92, %c0_93] : memref<1x10x10x16xf32, #tpu.memory_space<vmem>>, vector<1x8x8x16xf32>
    %53 = vector.shape_cast %52 : vector<1x8x8x16xf32> to vector<64x16xf32>
    %54 = arith.truncf %53 : vector<64x16xf32> to vector<64x16xbf16>
    %c3 = arith.constant 3 : index
    %c0_94 = arith.constant 0 : index
    %c0_95 = arith.constant 0 : index
    %55 = vector.load %arg2[%c3, %c0_94, %c0_95] : memref<9x16x128xbf16, #tpu.memory_space<vmem>>, vector<1x16x128xbf16>
    %56 = vector.shape_cast %55 : vector<1x16x128xbf16> to vector<16x128xbf16>
    %cst_96 = arith.constant dense<0.000000e+00> : vector<64x128xf32>
    %57 = tpu.matmul %54, %56, %cst_96 {dimension_numbers = #tpu.dot_dimension_numbers<[1], [0], [0], [1], [0, 0, 1, 1], [], []>} : vector<64x16xbf16>, vector<16x128xbf16>, vector<64x128xf32> -> vector<64x128xf32>
    %58 = arith.addf %51, %57 : vector<64x128xf32>
    %c0_97 = arith.constant 0 : index
    %c1_98 = arith.constant 1 : index
    %c1_99 = arith.constant 1 : index
    %c0_100 = arith.constant 0 : index
    %59 = vector.load %arg7[%c0_97, %c1_98, %c1_99, %c0_100] : memref<1x10x10x16xf32, #tpu.memory_space<vmem>>, vector<1x8x8x16xf32>
    %60 = vector.shape_cast %59 : vector<1x8x8x16xf32> to vector<64x16xf32>
    %61 = arith.truncf %60 : vector<64x16xf32> to vector<64x16xbf16>
    %c4 = arith.constant 4 : index
    %c0_101 = arith.constant 0 : index
    %c0_102 = arith.constant 0 : index
    %62 = vector.load %arg2[%c4, %c0_101, %c0_102] : memref<9x16x128xbf16, #tpu.memory_space<vmem>>, vector<1x16x128xbf16>
    %63 = vector.shape_cast %62 : vector<1x16x128xbf16> to vector<16x128xbf16>
    %cst_103 = arith.constant dense<0.000000e+00> : vector<64x128xf32>
    %64 = tpu.matmul %61, %63, %cst_103 {dimension_numbers = #tpu.dot_dimension_numbers<[1], [0], [0], [1], [0, 0, 1, 1], [], []>} : vector<64x16xbf16>, vector<16x128xbf16>, vector<64x128xf32> -> vector<64x128xf32>
    %65 = arith.addf %58, %64 : vector<64x128xf32>
    %c0_104 = arith.constant 0 : index
    %c1_105 = arith.constant 1 : index
    %c2_106 = arith.constant 2 : index
    %c0_107 = arith.constant 0 : index
    %66 = vector.load %arg7[%c0_104, %c1_105, %c2_106, %c0_107] : memref<1x10x10x16xf32, #tpu.memory_space<vmem>>, vector<1x8x8x16xf32>
    %67 = vector.shape_cast %66 : vector<1x8x8x16xf32> to vector<64x16xf32>
    %68 = arith.truncf %67 : vector<64x16xf32> to vector<64x16xbf16>
    %c5 = arith.constant 5 : index
    %c0_108 = arith.constant 0 : index
    %c0_109 = arith.constant 0 : index
    %69 = vector.load %arg2[%c5, %c0_108, %c0_109] : memref<9x16x128xbf16, #tpu.memory_space<vmem>>, vector<1x16x128xbf16>
    %70 = vector.shape_cast %69 : vector<1x16x128xbf16> to vector<16x128xbf16>
    %cst_110 = arith.constant dense<0.000000e+00> : vector<64x128xf32>
    %71 = tpu.matmul %68, %70, %cst_110 {dimension_numbers = #tpu.dot_dimension_numbers<[1], [0], [0], [1], [0, 0, 1, 1], [], []>} : vector<64x16xbf16>, vector<16x128xbf16>, vector<64x128xf32> -> vector<64x128xf32>
    %72 = arith.addf %65, %71 : vector<64x128xf32>
    %c0_111 = arith.constant 0 : index
    %c2_112 = arith.constant 2 : index
    %c0_113 = arith.constant 0 : index
    %c0_114 = arith.constant 0 : index
    %73 = vector.load %arg7[%c0_111, %c2_112, %c0_113, %c0_114] : memref<1x10x10x16xf32, #tpu.memory_space<vmem>>, vector<1x8x8x16xf32>
    %74 = vector.shape_cast %73 : vector<1x8x8x16xf32> to vector<64x16xf32>
    %75 = arith.truncf %74 : vector<64x16xf32> to vector<64x16xbf16>
    %c6 = arith.constant 6 : index
    %c0_115 = arith.constant 0 : index
    %c0_116 = arith.constant 0 : index
    %76 = vector.load %arg2[%c6, %c0_115, %c0_116] : memref<9x16x128xbf16, #tpu.memory_space<vmem>>, vector<1x16x128xbf16>
    %77 = vector.shape_cast %76 : vector<1x16x128xbf16> to vector<16x128xbf16>
    %cst_117 = arith.constant dense<0.000000e+00> : vector<64x128xf32>
    %78 = tpu.matmul %75, %77, %cst_117 {dimension_numbers = #tpu.dot_dimension_numbers<[1], [0], [0], [1], [0, 0, 1, 1], [], []>} : vector<64x16xbf16>, vector<16x128xbf16>, vector<64x128xf32> -> vector<64x128xf32>
    %79 = arith.addf %72, %78 : vector<64x128xf32>
    %c0_118 = arith.constant 0 : index
    %c2_119 = arith.constant 2 : index
    %c1_120 = arith.constant 1 : index
    %c0_121 = arith.constant 0 : index
    %80 = vector.load %arg7[%c0_118, %c2_119, %c1_120, %c0_121] : memref<1x10x10x16xf32, #tpu.memory_space<vmem>>, vector<1x8x8x16xf32>
    %81 = vector.shape_cast %80 : vector<1x8x8x16xf32> to vector<64x16xf32>
    %82 = arith.truncf %81 : vector<64x16xf32> to vector<64x16xbf16>
    %c7 = arith.constant 7 : index
    %c0_122 = arith.constant 0 : index
    %c0_123 = arith.constant 0 : index
    %83 = vector.load %arg2[%c7, %c0_122, %c0_123] : memref<9x16x128xbf16, #tpu.memory_space<vmem>>, vector<1x16x128xbf16>
    %84 = vector.shape_cast %83 : vector<1x16x128xbf16> to vector<16x128xbf16>
    %cst_124 = arith.constant dense<0.000000e+00> : vector<64x128xf32>
    %85 = tpu.matmul %82, %84, %cst_124 {dimension_numbers = #tpu.dot_dimension_numbers<[1], [0], [0], [1], [0, 0, 1, 1], [], []>} : vector<64x16xbf16>, vector<16x128xbf16>, vector<64x128xf32> -> vector<64x128xf32>
    %86 = arith.addf %79, %85 : vector<64x128xf32>
    %c0_125 = arith.constant 0 : index
    %c2_126 = arith.constant 2 : index
    %c2_127 = arith.constant 2 : index
    %c0_128 = arith.constant 0 : index
    %87 = vector.load %arg7[%c0_125, %c2_126, %c2_127, %c0_128] : memref<1x10x10x16xf32, #tpu.memory_space<vmem>>, vector<1x8x8x16xf32>
    %88 = vector.shape_cast %87 : vector<1x8x8x16xf32> to vector<64x16xf32>
    %89 = arith.truncf %88 : vector<64x16xf32> to vector<64x16xbf16>
    %c8 = arith.constant 8 : index
    %c0_129 = arith.constant 0 : index
    %c0_130 = arith.constant 0 : index
    %90 = vector.load %arg2[%c8, %c0_129, %c0_130] : memref<9x16x128xbf16, #tpu.memory_space<vmem>>, vector<1x16x128xbf16>
    %91 = vector.shape_cast %90 : vector<1x16x128xbf16> to vector<16x128xbf16>
    %cst_131 = arith.constant dense<0.000000e+00> : vector<64x128xf32>
    %92 = tpu.matmul %89, %91, %cst_131 {dimension_numbers = #tpu.dot_dimension_numbers<[1], [0], [0], [1], [0, 0, 1, 1], [], []>} : vector<64x16xbf16>, vector<16x128xbf16>, vector<64x128xf32> -> vector<64x128xf32>
    %93 = arith.addf %86, %92 : vector<64x128xf32>
    %c0_132 = arith.constant 0 : index
    %c0_133 = arith.constant 0 : index
    %94 = vector.load %arg3[%c0_132, %c0_133] : memref<4x128xf32, #tpu.memory_space<vmem>>, vector<1x128xf32>
    %95 = vector.broadcast %94 : vector<1x128xf32> to vector<64x128xf32>
    %96 = arith.mulf %93, %95 : vector<64x128xf32>
    %c1_134 = arith.constant 1 : index
    %c0_135 = arith.constant 0 : index
    %97 = vector.load %arg3[%c1_134, %c0_135] : memref<4x128xf32, #tpu.memory_space<vmem>>, vector<1x128xf32>
    %98 = vector.broadcast %97 : vector<1x128xf32> to vector<64x128xf32>
    %99 = arith.addf %96, %98 : vector<64x128xf32>
    %100 = vector.extract_strided_slice %99 {offsets = [0, 0], sizes = [64, 16], strides = [1, 1]} : vector<64x128xf32> to vector<64x16xf32>
    %101 = vector.extract_strided_slice %99 {offsets = [0, 16], sizes = [64, 16], strides = [1, 1]} : vector<64x128xf32> to vector<64x16xf32>
    %102 = arith.addf %100, %101 : vector<64x16xf32>
    %103 = vector.shape_cast %6 : vector<1x8x8x16xf32> to vector<64x16xf32>
    %c2_136 = arith.constant 2 : index
    %c0_137 = arith.constant 0 : index
    %104 = vector.load %arg3[%c2_136, %c0_137] : memref<4x128xf32, #tpu.memory_space<vmem>>, vector<1x16xf32>
    %105 = vector.broadcast %104 : vector<1x16xf32> to vector<64x16xf32>
    %106 = arith.mulf %103, %105 : vector<64x16xf32>
    %107 = arith.addf %102, %106 : vector<64x16xf32>
    %c3_138 = arith.constant 3 : index
    %c0_139 = arith.constant 0 : index
    %108 = vector.load %arg3[%c3_138, %c0_139] : memref<4x128xf32, #tpu.memory_space<vmem>>, vector<1x16xf32>
    %109 = vector.broadcast %108 : vector<1x16xf32> to vector<64x16xf32>
    %110 = arith.mulf %28, %109 : vector<64x16xf32>
    %111 = arith.addf %107, %110 : vector<64x16xf32>
    %112 = vector.shape_cast %111 : vector<64x16xf32> to vector<1x8x8x16xf32>
    %c0_140 = arith.constant 0 : index
    %c0_141 = arith.constant 0 : index
    %c0_142 = arith.constant 0 : index
    %c0_143 = arith.constant 0 : index
    %113 = vector.load %arg5[%c0_140, %c0_141, %c0_142, %c0_143] : memref<1x8x8x16xf32, #tpu.memory_space<vmem>>, vector<1x8x8x16xf32>
    %114 = arith.addf %113, %112 : vector<1x8x8x16xf32>
    %c0_144 = arith.constant 0 : index
    %c0_145 = arith.constant 0 : index
    %c0_146 = arith.constant 0 : index
    %c0_147 = arith.constant 0 : index
    %115 = vector.load %arg6[%c0_144, %c0_145, %c0_146, %c0_147] : memref<1x8x8x16xf32, #tpu.memory_space<vmem>>, vector<1x8x8x16xf32>
    tpu.vector_store %arg6[%c0_144, %c0_145, %c0_146, %c0_147], %114 {strides = array<i32>} : memref<1x8x8x16xf32, #tpu.memory_space<vmem>>, vector<1x8x8x16xf32>,
    return
  }
  func.func @transform_0(%arg0: i32) -> (i32, i32, i32, i32) {
    %c0_i32 = arith.constant 0 : i32
    %c0_i32_0 = arith.constant 0 : i32
    %c0_i32_1 = arith.constant 0 : i32
    %c0_i32_2 = arith.constant 0 : i32
    return %arg0, %c0_i32, %c0_i32_0, %c0_i32_1 : i32, i32, i32, i32
  }
  func.func @transform_1(%arg0: i32) -> (i32, i32, i32) {
    %c0_i32 = arith.constant 0 : i32
    %c0_i32_0 = arith.constant 0 : i32
    %c0_i32_1 = arith.constant 0 : i32
    %c0_i32_2 = arith.constant 0 : i32
    return %c0_i32, %c0_i32_0, %c0_i32_1 : i32, i32, i32
  }
  func.func @transform_2(%arg0: i32) -> (i32, i32) {
    %c0_i32 = arith.constant 0 : i32
    %c0_i32_0 = arith.constant 0 : i32
    %c0_i32_1 = arith.constant 0 : i32
    return %c0_i32, %c0_i32_0 : i32, i32
  }
  func.func @transform_3(%arg0: i32) -> (i32, i32, i32, i32) {
    %c0_i32 = arith.constant 0 : i32
    %c0_i32_0 = arith.constant 0 : i32
    %c0_i32_1 = arith.constant 0 : i32
    %c0_i32_2 = arith.constant 0 : i32
    %c0_i32_3 = arith.constant 0 : i32
    return %c0_i32, %c0_i32_0, %c0_i32_1, %c0_i32_2 : i32, i32, i32, i32
  }
  func.func @transform_4(%arg0: i32) -> (i32, i32, i32, i32) {
    %c0_i32 = arith.constant 0 : i32
    %c0_i32_0 = arith.constant 0 : i32
    %c0_i32_1 = arith.constant 0 : i32
    %c0_i32_2 = arith.constant 0 : i32
    return %arg0, %c0_i32, %c0_i32_0, %c0_i32_1 : i32, i32, i32, i32
  }
  func.func @transform_5(%arg0: i32) -> (i32, i32, i32, i32) {
    %c0_i32 = arith.constant 0 : i32
    %c0_i32_0 = arith.constant 0 : i32
    %c0_i32_1 = arith.constant 0 : i32
    %c0_i32_2 = arith.constant 0 : i32
    return %arg0, %c0_i32, %c0_i32_0, %c0_i32_1 : i32, i32, i32, i32
  }
}

module attributes {stable_mosaic.version = 11 : i64} {
  func.func @kernel(%arg0: i32, %arg1: memref<1x8x8x16xf32, #tpu.memory_space<vmem>>, %arg2: memref<9x16x128xbf16, #tpu.memory_space<vmem>>, %arg3: memref<4x128xf32, #tpu.memory_space<vmem>>, %arg4: memref<1x8x8x1xf32, #tpu.memory_space<vmem>>, %arg5: memref<1x8x8x16xf32, #tpu.memory_space<vmem>>, %arg6: memref<1x8x8x16xf32, #tpu.memory_space<vmem>>, %arg7: memref<1x8x8x16xf32, #tpu.memory_space<vmem>>, %arg8: memref<1x8x8x16xf32, #tpu.memory_space<vmem>>, %arg9: memref<1x10x10x16xf32, #tpu.memory_space<vmem>>) attributes {dimension_semantics = [#tpu.dimension_semantics<parallel>], iteration_bounds = array<i64: 2>, scalar_prefetch = 0 : i64, scratch_operands = 1 : i64, tpu.core_type = #tpu.core_type<tc>, window_params = [{transform_indices = @transform_0, window_bounds = array<i64: 1, 8, 8, 16>}, {pipeline_mode = #tpu.pipeline_mode<synchronous>, transform_indices = @transform_1, window_bounds = array<i64: 9, 16, 128>}, {pipeline_mode = #tpu.pipeline_mode<synchronous>, transform_indices = @transform_2, window_bounds = array<i64: 4, 128>}, {pipeline_mode = #tpu.pipeline_mode<synchronous>, transform_indices = @transform_3, window_bounds = array<i64: 1, 8, 8, 1>}, {transform_indices = @transform_4, window_bounds = array<i64: 1, 8, 8, 16>}, {transform_indices = @transform_5, window_bounds = array<i64: 1, 8, 8, 16>}, {transform_indices = @transform_6, window_bounds = array<i64: 1, 8, 8, 16>}, {transform_indices = @transform_7, window_bounds = array<i64: 1, 8, 8, 16>}]} {
    %cst = arith.constant 0.000000e+00 : f32
    %0 = vector.broadcast %cst : f32 to vector<1x1x10x16xf32>
    %cst_0 = arith.constant 0.000000e+00 : f32
    %1 = vector.broadcast %cst_0 : f32 to vector<1x10x1x16xf32>
    %c0 = arith.constant 0 : index
    %c0_1 = arith.constant 0 : index
    %c0_2 = arith.constant 0 : index
    %c0_3 = arith.constant 0 : index
    %2 = vector.load %arg9[%c0, %c0_1, %c0_2, %c0_3] : memref<1x10x10x16xf32, #tpu.memory_space<vmem>>, vector<1x1x10x16xf32>
    tpu.vector_store %arg9[%c0, %c0_1, %c0_2, %c0_3], %0 {strides = array<i32>} : memref<1x10x10x16xf32, #tpu.memory_space<vmem>>, vector<1x1x10x16xf32>,
    %c0_4 = arith.constant 0 : index
    %c9 = arith.constant 9 : index
    %c0_5 = arith.constant 0 : index
    %c0_6 = arith.constant 0 : index
    %3 = vector.load %arg9[%c0_4, %c9, %c0_5, %c0_6] : memref<1x10x10x16xf32, #tpu.memory_space<vmem>>, vector<1x1x10x16xf32>
    tpu.vector_store %arg9[%c0_4, %c9, %c0_5, %c0_6], %0 {strides = array<i32>} : memref<1x10x10x16xf32, #tpu.memory_space<vmem>>, vector<1x1x10x16xf32>,
    %c0_7 = arith.constant 0 : index
    %c0_8 = arith.constant 0 : index
    %c0_9 = arith.constant 0 : index
    %c0_10 = arith.constant 0 : index
    %4 = vector.load %arg9[%c0_7, %c0_8, %c0_9, %c0_10] : memref<1x10x10x16xf32, #tpu.memory_space<vmem>>, vector<1x10x1x16xf32>
    tpu.vector_store %arg9[%c0_7, %c0_8, %c0_9, %c0_10], %1 {strides = array<i32>} : memref<1x10x10x16xf32, #tpu.memory_space<vmem>>, vector<1x10x1x16xf32>,
    %c0_11 = arith.constant 0 : index
    %c0_12 = arith.constant 0 : index
    %c9_13 = arith.constant 9 : index
    %c0_14 = arith.constant 0 : index
    %5 = vector.load %arg9[%c0_11, %c0_12, %c9_13, %c0_14] : memref<1x10x10x16xf32, #tpu.memory_space<vmem>>, vector<1x10x1x16xf32>
    tpu.vector_store %arg9[%c0_11, %c0_12, %c9_13, %c0_14], %1 {strides = array<i32>} : memref<1x10x10x16xf32, #tpu.memory_space<vmem>>, vector<1x10x1x16xf32>,
    %c0_15 = arith.constant 0 : index
    %c0_16 = arith.constant 0 : index
    %c0_17 = arith.constant 0 : index
    %c0_18 = arith.constant 0 : index
    %6 = vector.load %arg1[%c0_15, %c0_16, %c0_17, %c0_18] : memref<1x8x8x16xf32, #tpu.memory_space<vmem>>, vector<1x8x8x16xf32>
    %c0_19 = arith.constant 0 : index
    %c1 = arith.constant 1 : index
    %c1_20 = arith.constant 1 : index
    %c0_21 = arith.constant 0 : index
    %7 = vector.load %arg9[%c0_19, %c1, %c1_20, %c0_21] : memref<1x10x10x16xf32, #tpu.memory_space<vmem>>, vector<1x8x8x16xf32>
    tpu.vector_store %arg9[%c0_19, %c1, %c1_20, %c0_21], %6 {strides = array<i32>} : memref<1x10x10x16xf32, #tpu.memory_space<vmem>>, vector<1x8x8x16xf32>,
    %c0_22 = arith.constant 0 : index
    %c0_23 = arith.constant 0 : index
    %c0_24 = arith.constant 0 : index
    %c0_25 = arith.constant 0 : index
    %8 = vector.load %arg9[%c0_22, %c0_23, %c0_24, %c0_25] : memref<1x10x10x16xf32, #tpu.memory_space<vmem>>, vector<1x8x8x16xf32>
    %c0_26 = arith.constant 0 : index
    %c0_27 = arith.constant 0 : index
    %c1_28 = arith.constant 1 : index
    %c0_29 = arith.constant 0 : index
    %9 = vector.load %arg9[%c0_26, %c0_27, %c1_28, %c0_29] : memref<1x10x10x16xf32, #tpu.memory_space<vmem>>, vector<1x8x8x16xf32>
    %10 = arith.addf %8, %9 : vector<1x8x8x16xf32>
    %c0_30 = arith.constant 0 : index
    %c0_31 = arith.constant 0 : index
    %c2 = arith.constant 2 : index
    %c0_32 = arith.constant 0 : index
    %11 = vector.load %arg9[%c0_30, %c0_31, %c2, %c0_32] : memref<1x10x10x16xf32, #tpu.memory_space<vmem>>, vector<1x8x8x16xf32>
    %12 = arith.addf %10, %11 : vector<1x8x8x16xf32>
    %c0_33 = arith.constant 0 : index
    %c1_34 = arith.constant 1 : index
    %c0_35 = arith.constant 0 : index
    %c0_36 = arith.constant 0 : index
    %13 = vector.load %arg9[%c0_33, %c1_34, %c0_35, %c0_36] : memref<1x10x10x16xf32, #tpu.memory_space<vmem>>, vector<1x8x8x16xf32>
    %14 = arith.addf %12, %13 : vector<1x8x8x16xf32>
    %c0_37 = arith.constant 0 : index
    %c1_38 = arith.constant 1 : index
    %c1_39 = arith.constant 1 : index
    %c0_40 = arith.constant 0 : index
    %15 = vector.load %arg9[%c0_37, %c1_38, %c1_39, %c0_40] : memref<1x10x10x16xf32, #tpu.memory_space<vmem>>, vector<1x8x8x16xf32>
    %16 = arith.addf %14, %15 : vector<1x8x8x16xf32>
    %c0_41 = arith.constant 0 : index
    %c1_42 = arith.constant 1 : index
    %c2_43 = arith.constant 2 : index
    %c0_44 = arith.constant 0 : index
    %17 = vector.load %arg9[%c0_41, %c1_42, %c2_43, %c0_44] : memref<1x10x10x16xf32, #tpu.memory_space<vmem>>, vector<1x8x8x16xf32>
    %18 = arith.addf %16, %17 : vector<1x8x8x16xf32>
    %c0_45 = arith.constant 0 : index
    %c2_46 = arith.constant 2 : index
    %c0_47 = arith.constant 0 : index
    %c0_48 = arith.constant 0 : index
    %19 = vector.load %arg9[%c0_45, %c2_46, %c0_47, %c0_48] : memref<1x10x10x16xf32, #tpu.memory_space<vmem>>, vector<1x8x8x16xf32>
    %20 = arith.addf %18, %19 : vector<1x8x8x16xf32>
    %c0_49 = arith.constant 0 : index
    %c2_50 = arith.constant 2 : index
    %c1_51 = arith.constant 1 : index
    %c0_52 = arith.constant 0 : index
    %21 = vector.load %arg9[%c0_49, %c2_50, %c1_51, %c0_52] : memref<1x10x10x16xf32, #tpu.memory_space<vmem>>, vector<1x8x8x16xf32>
    %22 = arith.addf %20, %21 : vector<1x8x8x16xf32>
    %c0_53 = arith.constant 0 : index
    %c2_54 = arith.constant 2 : index
    %c2_55 = arith.constant 2 : index
    %c0_56 = arith.constant 0 : index
    %23 = vector.load %arg9[%c0_53, %c2_54, %c2_55, %c0_56] : memref<1x10x10x16xf32, #tpu.memory_space<vmem>>, vector<1x8x8x16xf32>
    %24 = arith.addf %22, %23 : vector<1x8x8x16xf32>
    %c0_57 = arith.constant 0 : index
    %c0_58 = arith.constant 0 : index
    %c0_59 = arith.constant 0 : index
    %c0_60 = arith.constant 0 : index
    %25 = vector.load %arg4[%c0_57, %c0_58, %c0_59, %c0_60] : memref<1x8x8x1xf32, #tpu.memory_space<vmem>>, vector<1x8x8x1xf32>
    %26 = vector.broadcast %25 : vector<1x8x8x1xf32> to vector<1x8x8x16xf32>
    %27 = arith.mulf %24, %26 : vector<1x8x8x16xf32>
    %28 = vector.shape_cast %27 : vector<1x8x8x16xf32> to vector<64x16xf32>
    %cst_61 = arith.constant 0.000000e+00 : f32
    %29 = vector.broadcast %cst_61 : f32 to vector<1x8x8x16xf32>
    %30 = arith.maximumf %6, %29 : vector<1x8x8x16xf32>
    %c0_62 = arith.constant 0 : index
    %c1_63 = arith.constant 1 : index
    %c1_64 = arith.constant 1 : index
    %c0_65 = arith.constant 0 : index
    %31 = vector.load %arg9[%c0_62, %c1_63, %c1_64, %c0_65] : memref<1x10x10x16xf32, #tpu.memory_space<vmem>>, vector<1x8x8x16xf32>
    tpu.vector_store %arg9[%c0_62, %c1_63, %c1_64, %c0_65], %30 {strides = array<i32>} : memref<1x10x10x16xf32, #tpu.memory_space<vmem>>, vector<1x8x8x16xf32>,
    %c0_66 = arith.constant 0 : index
    %c0_67 = arith.constant 0 : index
    %c0_68 = arith.constant 0 : index
    %c0_69 = arith.constant 0 : index
    %32 = vector.load %arg9[%c0_66, %c0_67, %c0_68, %c0_69] : memref<1x10x10x16xf32, #tpu.memory_space<vmem>>, vector<1x8x8x16xf32>
    %33 = vector.shape_cast %32 : vector<1x8x8x16xf32> to vector<64x16xf32>
    %34 = arith.truncf %33 : vector<64x16xf32> to vector<64x16xbf16>
    %c0_70 = arith.constant 0 : index
    %c0_71 = arith.constant 0 : index
    %c0_72 = arith.constant 0 : index
    %35 = vector.load %arg2[%c0_70, %c0_71, %c0_72] : memref<9x16x128xbf16, #tpu.memory_space<vmem>>, vector<1x16x128xbf16>
    %36 = vector.shape_cast %35 : vector<1x16x128xbf16> to vector<16x128xbf16>
    %cst_73 = arith.constant dense<0.000000e+00> : vector<64x128xf32>
    %37 = tpu.matmul %34, %36, %cst_73 {dimension_numbers = #tpu.dot_dimension_numbers<[1], [0], [0], [1], [0, 0, 1, 1], [], []>} : vector<64x16xbf16>, vector<16x128xbf16>, vector<64x128xf32> -> vector<64x128xf32>
    %c0_74 = arith.constant 0 : index
    %c0_75 = arith.constant 0 : index
    %c1_76 = arith.constant 1 : index
    %c0_77 = arith.constant 0 : index
    %38 = vector.load %arg9[%c0_74, %c0_75, %c1_76, %c0_77] : memref<1x10x10x16xf32, #tpu.memory_space<vmem>>, vector<1x8x8x16xf32>
    %39 = vector.shape_cast %38 : vector<1x8x8x16xf32> to vector<64x16xf32>
    %40 = arith.truncf %39 : vector<64x16xf32> to vector<64x16xbf16>
    %c1_78 = arith.constant 1 : index
    %c0_79 = arith.constant 0 : index
    %c0_80 = arith.constant 0 : index
    %41 = vector.load %arg2[%c1_78, %c0_79, %c0_80] : memref<9x16x128xbf16, #tpu.memory_space<vmem>>, vector<1x16x128xbf16>
    %42 = vector.shape_cast %41 : vector<1x16x128xbf16> to vector<16x128xbf16>
    %cst_81 = arith.constant dense<0.000000e+00> : vector<64x128xf32>
    %43 = tpu.matmul %40, %42, %cst_81 {dimension_numbers = #tpu.dot_dimension_numbers<[1], [0], [0], [1], [0, 0, 1, 1], [], []>} : vector<64x16xbf16>, vector<16x128xbf16>, vector<64x128xf32> -> vector<64x128xf32>
    %44 = arith.addf %37, %43 : vector<64x128xf32>
    %c0_82 = arith.constant 0 : index
    %c0_83 = arith.constant 0 : index
    %c2_84 = arith.constant 2 : index
    %c0_85 = arith.constant 0 : index
    %45 = vector.load %arg9[%c0_82, %c0_83, %c2_84, %c0_85] : memref<1x10x10x16xf32, #tpu.memory_space<vmem>>, vector<1x8x8x16xf32>
    %46 = vector.shape_cast %45 : vector<1x8x8x16xf32> to vector<64x16xf32>
    %47 = arith.truncf %46 : vector<64x16xf32> to vector<64x16xbf16>
    %c2_86 = arith.constant 2 : index
    %c0_87 = arith.constant 0 : index
    %c0_88 = arith.constant 0 : index
    %48 = vector.load %arg2[%c2_86, %c0_87, %c0_88] : memref<9x16x128xbf16, #tpu.memory_space<vmem>>, vector<1x16x128xbf16>
    %49 = vector.shape_cast %48 : vector<1x16x128xbf16> to vector<16x128xbf16>
    %cst_89 = arith.constant dense<0.000000e+00> : vector<64x128xf32>
    %50 = tpu.matmul %47, %49, %cst_89 {dimension_numbers = #tpu.dot_dimension_numbers<[1], [0], [0], [1], [0, 0, 1, 1], [], []>} : vector<64x16xbf16>, vector<16x128xbf16>, vector<64x128xf32> -> vector<64x128xf32>
    %51 = arith.addf %44, %50 : vector<64x128xf32>
    %c0_90 = arith.constant 0 : index
    %c1_91 = arith.constant 1 : index
    %c0_92 = arith.constant 0 : index
    %c0_93 = arith.constant 0 : index
    %52 = vector.load %arg9[%c0_90, %c1_91, %c0_92, %c0_93] : memref<1x10x10x16xf32, #tpu.memory_space<vmem>>, vector<1x8x8x16xf32>
    %53 = vector.shape_cast %52 : vector<1x8x8x16xf32> to vector<64x16xf32>
    %54 = arith.truncf %53 : vector<64x16xf32> to vector<64x16xbf16>
    %c3 = arith.constant 3 : index
    %c0_94 = arith.constant 0 : index
    %c0_95 = arith.constant 0 : index
    %55 = vector.load %arg2[%c3, %c0_94, %c0_95] : memref<9x16x128xbf16, #tpu.memory_space<vmem>>, vector<1x16x128xbf16>
    %56 = vector.shape_cast %55 : vector<1x16x128xbf16> to vector<16x128xbf16>
    %cst_96 = arith.constant dense<0.000000e+00> : vector<64x128xf32>
    %57 = tpu.matmul %54, %56, %cst_96 {dimension_numbers = #tpu.dot_dimension_numbers<[1], [0], [0], [1], [0, 0, 1, 1], [], []>} : vector<64x16xbf16>, vector<16x128xbf16>, vector<64x128xf32> -> vector<64x128xf32>
    %58 = arith.addf %51, %57 : vector<64x128xf32>
    %c0_97 = arith.constant 0 : index
    %c1_98 = arith.constant 1 : index
    %c1_99 = arith.constant 1 : index
    %c0_100 = arith.constant 0 : index
    %59 = vector.load %arg9[%c0_97, %c1_98, %c1_99, %c0_100] : memref<1x10x10x16xf32, #tpu.memory_space<vmem>>, vector<1x8x8x16xf32>
    %60 = vector.shape_cast %59 : vector<1x8x8x16xf32> to vector<64x16xf32>
    %61 = arith.truncf %60 : vector<64x16xf32> to vector<64x16xbf16>
    %c4 = arith.constant 4 : index
    %c0_101 = arith.constant 0 : index
    %c0_102 = arith.constant 0 : index
    %62 = vector.load %arg2[%c4, %c0_101, %c0_102] : memref<9x16x128xbf16, #tpu.memory_space<vmem>>, vector<1x16x128xbf16>
    %63 = vector.shape_cast %62 : vector<1x16x128xbf16> to vector<16x128xbf16>
    %cst_103 = arith.constant dense<0.000000e+00> : vector<64x128xf32>
    %64 = tpu.matmul %61, %63, %cst_103 {dimension_numbers = #tpu.dot_dimension_numbers<[1], [0], [0], [1], [0, 0, 1, 1], [], []>} : vector<64x16xbf16>, vector<16x128xbf16>, vector<64x128xf32> -> vector<64x128xf32>
    %65 = arith.addf %58, %64 : vector<64x128xf32>
    %c0_104 = arith.constant 0 : index
    %c1_105 = arith.constant 1 : index
    %c2_106 = arith.constant 2 : index
    %c0_107 = arith.constant 0 : index
    %66 = vector.load %arg9[%c0_104, %c1_105, %c2_106, %c0_107] : memref<1x10x10x16xf32, #tpu.memory_space<vmem>>, vector<1x8x8x16xf32>
    %67 = vector.shape_cast %66 : vector<1x8x8x16xf32> to vector<64x16xf32>
    %68 = arith.truncf %67 : vector<64x16xf32> to vector<64x16xbf16>
    %c5 = arith.constant 5 : index
    %c0_108 = arith.constant 0 : index
    %c0_109 = arith.constant 0 : index
    %69 = vector.load %arg2[%c5, %c0_108, %c0_109] : memref<9x16x128xbf16, #tpu.memory_space<vmem>>, vector<1x16x128xbf16>
    %70 = vector.shape_cast %69 : vector<1x16x128xbf16> to vector<16x128xbf16>
    %cst_110 = arith.constant dense<0.000000e+00> : vector<64x128xf32>
    %71 = tpu.matmul %68, %70, %cst_110 {dimension_numbers = #tpu.dot_dimension_numbers<[1], [0], [0], [1], [0, 0, 1, 1], [], []>} : vector<64x16xbf16>, vector<16x128xbf16>, vector<64x128xf32> -> vector<64x128xf32>
    %72 = arith.addf %65, %71 : vector<64x128xf32>
    %c0_111 = arith.constant 0 : index
    %c2_112 = arith.constant 2 : index
    %c0_113 = arith.constant 0 : index
    %c0_114 = arith.constant 0 : index
    %73 = vector.load %arg9[%c0_111, %c2_112, %c0_113, %c0_114] : memref<1x10x10x16xf32, #tpu.memory_space<vmem>>, vector<1x8x8x16xf32>
    %74 = vector.shape_cast %73 : vector<1x8x8x16xf32> to vector<64x16xf32>
    %75 = arith.truncf %74 : vector<64x16xf32> to vector<64x16xbf16>
    %c6 = arith.constant 6 : index
    %c0_115 = arith.constant 0 : index
    %c0_116 = arith.constant 0 : index
    %76 = vector.load %arg2[%c6, %c0_115, %c0_116] : memref<9x16x128xbf16, #tpu.memory_space<vmem>>, vector<1x16x128xbf16>
    %77 = vector.shape_cast %76 : vector<1x16x128xbf16> to vector<16x128xbf16>
    %cst_117 = arith.constant dense<0.000000e+00> : vector<64x128xf32>
    %78 = tpu.matmul %75, %77, %cst_117 {dimension_numbers = #tpu.dot_dimension_numbers<[1], [0], [0], [1], [0, 0, 1, 1], [], []>} : vector<64x16xbf16>, vector<16x128xbf16>, vector<64x128xf32> -> vector<64x128xf32>
    %79 = arith.addf %72, %78 : vector<64x128xf32>
    %c0_118 = arith.constant 0 : index
    %c2_119 = arith.constant 2 : index
    %c1_120 = arith.constant 1 : index
    %c0_121 = arith.constant 0 : index
    %80 = vector.load %arg9[%c0_118, %c2_119, %c1_120, %c0_121] : memref<1x10x10x16xf32, #tpu.memory_space<vmem>>, vector<1x8x8x16xf32>
    %81 = vector.shape_cast %80 : vector<1x8x8x16xf32> to vector<64x16xf32>
    %82 = arith.truncf %81 : vector<64x16xf32> to vector<64x16xbf16>
    %c7 = arith.constant 7 : index
    %c0_122 = arith.constant 0 : index
    %c0_123 = arith.constant 0 : index
    %83 = vector.load %arg2[%c7, %c0_122, %c0_123] : memref<9x16x128xbf16, #tpu.memory_space<vmem>>, vector<1x16x128xbf16>
    %84 = vector.shape_cast %83 : vector<1x16x128xbf16> to vector<16x128xbf16>
    %cst_124 = arith.constant dense<0.000000e+00> : vector<64x128xf32>
    %85 = tpu.matmul %82, %84, %cst_124 {dimension_numbers = #tpu.dot_dimension_numbers<[1], [0], [0], [1], [0, 0, 1, 1], [], []>} : vector<64x16xbf16>, vector<16x128xbf16>, vector<64x128xf32> -> vector<64x128xf32>
    %86 = arith.addf %79, %85 : vector<64x128xf32>
    %c0_125 = arith.constant 0 : index
    %c2_126 = arith.constant 2 : index
    %c2_127 = arith.constant 2 : index
    %c0_128 = arith.constant 0 : index
    %87 = vector.load %arg9[%c0_125, %c2_126, %c2_127, %c0_128] : memref<1x10x10x16xf32, #tpu.memory_space<vmem>>, vector<1x8x8x16xf32>
    %88 = vector.shape_cast %87 : vector<1x8x8x16xf32> to vector<64x16xf32>
    %89 = arith.truncf %88 : vector<64x16xf32> to vector<64x16xbf16>
    %c8 = arith.constant 8 : index
    %c0_129 = arith.constant 0 : index
    %c0_130 = arith.constant 0 : index
    %90 = vector.load %arg2[%c8, %c0_129, %c0_130] : memref<9x16x128xbf16, #tpu.memory_space<vmem>>, vector<1x16x128xbf16>
    %91 = vector.shape_cast %90 : vector<1x16x128xbf16> to vector<16x128xbf16>
    %cst_131 = arith.constant dense<0.000000e+00> : vector<64x128xf32>
    %92 = tpu.matmul %89, %91, %cst_131 {dimension_numbers = #tpu.dot_dimension_numbers<[1], [0], [0], [1], [0, 0, 1, 1], [], []>} : vector<64x16xbf16>, vector<16x128xbf16>, vector<64x128xf32> -> vector<64x128xf32>
    %93 = arith.addf %86, %92 : vector<64x128xf32>
    %c0_132 = arith.constant 0 : index
    %c0_133 = arith.constant 0 : index
    %94 = vector.load %arg3[%c0_132, %c0_133] : memref<4x128xf32, #tpu.memory_space<vmem>>, vector<1x128xf32>
    %95 = vector.broadcast %94 : vector<1x128xf32> to vector<64x128xf32>
    %96 = arith.mulf %93, %95 : vector<64x128xf32>
    %c1_134 = arith.constant 1 : index
    %c0_135 = arith.constant 0 : index
    %97 = vector.load %arg3[%c1_134, %c0_135] : memref<4x128xf32, #tpu.memory_space<vmem>>, vector<1x128xf32>
    %98 = vector.broadcast %97 : vector<1x128xf32> to vector<64x128xf32>
    %99 = arith.addf %96, %98 : vector<64x128xf32>
    %100 = vector.extract_strided_slice %99 {offsets = [0, 0], sizes = [64, 32], strides = [1, 1]} : vector<64x128xf32> to vector<64x32xf32>
    %101 = vector.extract_strided_slice %99 {offsets = [0, 32], sizes = [64, 32], strides = [1, 1]} : vector<64x128xf32> to vector<64x32xf32>
    %102 = arith.addf %100, %101 : vector<64x32xf32>
    %103 = vector.shape_cast %6 : vector<1x8x8x16xf32> to vector<64x16xf32>
    %104 = vector.extract_strided_slice %102 {offsets = [0, 0], sizes = [64, 16], strides = [1, 1]} : vector<64x32xf32> to vector<64x16xf32>
    %c2_136 = arith.constant 2 : index
    %c0_137 = arith.constant 0 : index
    %105 = vector.load %arg3[%c2_136, %c0_137] : memref<4x128xf32, #tpu.memory_space<vmem>>, vector<1x16xf32>
    %106 = vector.broadcast %105 : vector<1x16xf32> to vector<64x16xf32>
    %107 = arith.mulf %103, %106 : vector<64x16xf32>
    %108 = arith.addf %104, %107 : vector<64x16xf32>
    %c3_138 = arith.constant 3 : index
    %c0_139 = arith.constant 0 : index
    %109 = vector.load %arg3[%c3_138, %c0_139] : memref<4x128xf32, #tpu.memory_space<vmem>>, vector<1x16xf32>
    %110 = vector.broadcast %109 : vector<1x16xf32> to vector<64x16xf32>
    %111 = arith.mulf %28, %110 : vector<64x16xf32>
    %112 = arith.addf %108, %111 : vector<64x16xf32>
    %113 = vector.shape_cast %112 : vector<64x16xf32> to vector<1x8x8x16xf32>
    %c0_140 = arith.constant 0 : index
    %c0_141 = arith.constant 0 : index
    %c0_142 = arith.constant 0 : index
    %c0_143 = arith.constant 0 : index
    %114 = vector.load %arg5[%c0_140, %c0_141, %c0_142, %c0_143] : memref<1x8x8x16xf32, #tpu.memory_space<vmem>>, vector<1x8x8x16xf32>
    %115 = arith.addf %114, %113 : vector<1x8x8x16xf32>
    %c0_144 = arith.constant 0 : index
    %c0_145 = arith.constant 0 : index
    %c0_146 = arith.constant 0 : index
    %c0_147 = arith.constant 0 : index
    %116 = vector.load %arg7[%c0_144, %c0_145, %c0_146, %c0_147] : memref<1x8x8x16xf32, #tpu.memory_space<vmem>>, vector<1x8x8x16xf32>
    tpu.vector_store %arg7[%c0_144, %c0_145, %c0_146, %c0_147], %115 {strides = array<i32>} : memref<1x8x8x16xf32, #tpu.memory_space<vmem>>, vector<1x8x8x16xf32>,
    %117 = vector.extract_strided_slice %102 {offsets = [0, 16], sizes = [64, 16], strides = [1, 1]} : vector<64x32xf32> to vector<64x16xf32>
    %c2_148 = arith.constant 2 : index
    %c16 = arith.constant 16 : index
    %118 = vector.load %arg3[%c2_148, %c16] : memref<4x128xf32, #tpu.memory_space<vmem>>, vector<1x16xf32>
    %119 = vector.broadcast %118 : vector<1x16xf32> to vector<64x16xf32>
    %120 = arith.mulf %103, %119 : vector<64x16xf32>
    %121 = arith.addf %117, %120 : vector<64x16xf32>
    %c3_149 = arith.constant 3 : index
    %c16_150 = arith.constant 16 : index
    %122 = vector.load %arg3[%c3_149, %c16_150] : memref<4x128xf32, #tpu.memory_space<vmem>>, vector<1x16xf32>
    %123 = vector.broadcast %122 : vector<1x16xf32> to vector<64x16xf32>
    %124 = arith.mulf %28, %123 : vector<64x16xf32>
    %125 = arith.addf %121, %124 : vector<64x16xf32>
    %126 = vector.shape_cast %125 : vector<64x16xf32> to vector<1x8x8x16xf32>
    %c0_151 = arith.constant 0 : index
    %c0_152 = arith.constant 0 : index
    %c0_153 = arith.constant 0 : index
    %c0_154 = arith.constant 0 : index
    %127 = vector.load %arg6[%c0_151, %c0_152, %c0_153, %c0_154] : memref<1x8x8x16xf32, #tpu.memory_space<vmem>>, vector<1x8x8x16xf32>
    %128 = arith.addf %127, %126 : vector<1x8x8x16xf32>
    %c0_155 = arith.constant 0 : index
    %c0_156 = arith.constant 0 : index
    %c0_157 = arith.constant 0 : index
    %c0_158 = arith.constant 0 : index
    %129 = vector.load %arg8[%c0_155, %c0_156, %c0_157, %c0_158] : memref<1x8x8x16xf32, #tpu.memory_space<vmem>>, vector<1x8x8x16xf32>
    tpu.vector_store %arg8[%c0_155, %c0_156, %c0_157, %c0_158], %128 {strides = array<i32>} : memref<1x8x8x16xf32, #tpu.memory_space<vmem>>, vector<1x8x8x16xf32>,
    return
  }
  func.func @transform_0(%arg0: i32) -> (i32, i32, i32, i32) {
    %c0_i32 = arith.constant 0 : i32
    %c0_i32_0 = arith.constant 0 : i32
    %c0_i32_1 = arith.constant 0 : i32
    %c0_i32_2 = arith.constant 0 : i32
    return %arg0, %c0_i32, %c0_i32_0, %c0_i32_1 : i32, i32, i32, i32
  }
  func.func @transform_1(%arg0: i32) -> (i32, i32, i32) {
    %c0_i32 = arith.constant 0 : i32
    %c0_i32_0 = arith.constant 0 : i32
    %c0_i32_1 = arith.constant 0 : i32
    %c0_i32_2 = arith.constant 0 : i32
    return %c0_i32, %c0_i32_0, %c0_i32_1 : i32, i32, i32
  }
  func.func @transform_2(%arg0: i32) -> (i32, i32) {
    %c0_i32 = arith.constant 0 : i32
    %c0_i32_0 = arith.constant 0 : i32
    %c0_i32_1 = arith.constant 0 : i32
    return %c0_i32, %c0_i32_0 : i32, i32
  }
  func.func @transform_3(%arg0: i32) -> (i32, i32, i32, i32) {
    %c0_i32 = arith.constant 0 : i32
    %c0_i32_0 = arith.constant 0 : i32
    %c0_i32_1 = arith.constant 0 : i32
    %c0_i32_2 = arith.constant 0 : i32
    %c0_i32_3 = arith.constant 0 : i32
    return %c0_i32, %c0_i32_0, %c0_i32_1, %c0_i32_2 : i32, i32, i32, i32
  }
  func.func @transform_4(%arg0: i32) -> (i32, i32, i32, i32) {
    %c0_i32 = arith.constant 0 : i32
    %c0_i32_0 = arith.constant 0 : i32
    %c0_i32_1 = arith.constant 0 : i32
    %c0_i32_2 = arith.constant 0 : i32
    return %arg0, %c0_i32, %c0_i32_0, %c0_i32_1 : i32, i32, i32, i32
  }
  func.func @transform_5(%arg0: i32) -> (i32, i32, i32, i32) {
    %c0_i32 = arith.constant 0 : i32
    %c0_i32_0 = arith.constant 0 : i32
    %c0_i32_1 = arith.constant 0 : i32
    %c0_i32_2 = arith.constant 0 : i32
    return %arg0, %c0_i32, %c0_i32_0, %c0_i32_1 : i32, i32, i32, i32
  }
  func.func @transform_6(%arg0: i32) -> (i32, i32, i32, i32) {
    %c0_i32 = arith.constant 0 : i32
    %c0_i32_0 = arith.constant 0 : i32
    %c0_i32_1 = arith.constant 0 : i32
    %c0_i32_2 = arith.constant 0 : i32
    return %arg0, %c0_i32, %c0_i32_0, %c0_i32_1 : i32, i32, i32, i32
  }
  func.func @transform_7(%arg0: i32) -> (i32, i32, i32, i32) {
    %c0_i32 = arith.constant 0 : i32
    %c0_i32_0 = arith.constant 0 : i32
    %c0_i32_1 = arith.constant 0 : i32
    %c0_i32_2 = arith.constant 0 : i32
    return %arg0, %c0_i32, %c0_i32_0, %c0_i32_1 : i32, i32, i32, i32
  }
}

</mosaic_0001>

<llo_original>
// kernel: search_cell_forward.6
$region0: #{search_cell_forward.6}
  #allocation0 [shape = 'u32[]', space=smem, size = 0x4, offset = 0x4, fixed_abs, tag = 'smem constant byte address 0x4 - core index']
  #allocation1 [shape = 'u32[144,128]{1,0:T(1,128)}', space=vmem, size = 0x12000, scoped, tag = 'internal scratch']
  #allocation2 [shape = 'f32[1,10,10,16]{3,2,1,0:T(8,128)}', space=vmem, size = 0x14000, scoped, tag = 'scratch operand']
  %s0 = inlined_call_operand.vmem [shape: f32[2,8,8,16], index: 0, kind: input, shape index: {}]
  %s1 = inlined_call_operand.vmem [shape: bf16[9,16,128], index: 1, kind: input, shape index: {}]
  %s2 = inlined_call_operand.vmem [shape: f32[2,128], index: 2, kind: output, shape index: {}]
  %s3 = sld [smem:[#allocation0]]
  $region45: #{search_cell_forward.6} parent=0
    _
  %s5 = ssub.s32 1, %s3
  %s6 = scalar_select 0, %s5, %s3
  loop: start=0, step=1, limit=4
  $region2: #{search_cell_forward.6} parent=0 // loop_pre_header
    _
  $region3: #{search_cell_forward.6} parent=0 // loop_header
    %s8 = sphi 0, %s12
    %p9 = scmp.ge.s32.totalorder %s8, 4
    %s18 = sphi 0, %s20
    %s21 = sphi 0, %s18
    %s22 = sphi 0, %s21
    %s38 = sphi 0, %s22
    %s42 = sphi 0, %s42
    %s44 = sphi 0, %s42
    %s45 = sphi 0, %s44
    %s59 = sphi 0, %s45
    %s63 = sphi 0, %s63
    %s65 = sphi 0, %s63
    %s66 = sphi 0, %s65
    %s80 = sphi 0, %s66
  $region4: #{search_cell_forward.6} parent=0 // loop_header_branch
    %11 = sbr.rel (%p9) target = $region8
  $region5: #{search_cell_forward.6} parent=0 // loop_body
    %s13 = ssub.s32 %s8, 1
    %s14 = ssub.s32 %s8, 2
    %s15 = sadd.s32 %s8, 1
    %s16 = ssub.s32 %s8, %s15
    %p17 = scmp.eq.s32.totalorder %s16, 0
    %s19 = sadd.s32 %s18, 1
    %s20 = scalar_select %p17, %s18, %s19
    %p23 = pneg %p17
    %p24 = scmp.eq.s32.totalorder %s8, 1
    %p25 = por %p23, %p24
    %p26 = scmp.ne.s32.totalorder %s18, %s21
    %p27 = scmp.eq.s32.totalorder %s8, 0
    %p28 = por %p26, %p27
    %p29 = scmp.ne.s32.totalorder %s18, %s21
    %p30 = scmp.eq.s32.totalorder %s13, 1
    %p31 = por %p29, %p30
    %p32 = scmp.ne.s32.totalorder %s21, %s22
    %p33 = scmp.eq.s32.totalorder %s13, 0
    %p34 = por %p32, %p33
    %p35 = scmp.ne.s32.totalorder %s21, %s22
    %p36 = scmp.eq.s32.totalorder %s14, 1
    %p37 = por %p35, %p36
    %p39 = scmp.ne.s32.totalorder %s22, %s38
    %p40 = scmp.eq.s32.totalorder %s14, 0
    %p41 = por %p39, %p40
    %s43 = sadd.s32 %s42, 1
    %p46 = scmp.eq.s32.totalorder %s8, 1
    %p47 = scmp.ne.s32.totalorder %s42, %s44
    %p48 = scmp.eq.s32.totalorder %s8, 0
    %p49 = por %p47, %p48
    %p50 = scmp.ne.s32.totalorder %s42, %s44
    %p51 = scmp.eq.s32.totalorder %s13, 1
    %p52 = por %p50, %p51
    %p53 = scmp.ne.s32.totalorder %s44, %s45
    %p54 = scmp.eq.s32.totalorder %s13, 0
    %p55 = por %p53, %p54
    %p56 = scmp.ne.s32.totalorder %s44, %s45
    %p57 = scmp.eq.s32.totalorder %s14, 1
    %p58 = por %p56, %p57
    %p60 = scmp.ne.s32.totalorder %s45, %s59
    %p61 = scmp.eq.s32.totalorder %s14, 0
    %p62 = por %p60, %p61
    %s64 = sadd.s32 %s63, 1
    %p67 = scmp.eq.s32.totalorder %s8, 1
    %p68 = scmp.ne.s32.totalorder %s63, %s65
    %p69 = scmp.eq.s32.totalorder %s8, 0
    %p70 = por %p68, %p69
    %p71 = scmp.ne.s32.totalorder %s63, %s65
    %p72 = scmp.eq.s32.totalorder %s13, 1
    %p73 = por %p71, %p72
    %p74 = scmp.ne.s32.totalorder %s65, %s66
    %p75 = scmp.eq.s32.totalorder %s13, 0
    %p76 = por %p74, %p75
    %p77 = scmp.ne.s32.totalorder %s65, %s66
    %p78 = scmp.eq.s32.totalorder %s14, 1
    %p79 = por %p77, %p78
    %p81 = scmp.ne.s32.totalorder %s66, %s80
    %p82 = scmp.eq.s32.totalorder %s14, 0
    %p83 = por %p81, %p82
    %p84 = scmp.le.s32.totalorder 1, %s8
    %p85 = scmp.lt.s32.totalorder %s8, 3
    %p86 = pnand %p84, %p85
    %p87 = pneg %p86
    // Predicated region
    $region9: #{search_cell_forward.6} parent=5 // pred_check
      _
    $region10: #{search_cell_forward.6} parent=5 // pred_check_branch
      %89 = sbr.rel (%p86) target = $region12
    $region11: #{search_cell_forward.6} parent=5 // pred_region
      %s90 = ssub.s32 %s8, 1
      // Predicated region
      $region13: #{search_cell_forward.6} parent=11 // pred_check
        %p91 = pneg %p55
      $region14: #{search_cell_forward.6} parent=11 // pred_check_branch
        %93 = sbr.rel (%p91) target = $region16
      $region15: #{search_cell_forward.6} parent=11 // pred_region
        _
      $region16: #{search_cell_forward.6} parent=11 // pred_fallthru
        _
    $region12: #{search_cell_forward.6} parent=5 // pred_fallthru
      _
    %p94 = scmp.lt.s32.totalorder %s8, 2
    // Predicated region
    $region17: #{search_cell_forward.6} parent=5 // pred_check
      %p95 = pneg %p94
    $region18: #{search_cell_forward.6} parent=5 // pred_check_branch
      %97 = sbr.rel (%p95) target = $region20
    $region19: #{search_cell_forward.6} parent=5 // pred_region
      // Predicated region
      $region21: #{search_cell_forward.6} parent=19 // pred_check
        %p98 = pneg %p28
      $region22: #{search_cell_forward.6} parent=19 // pred_check_branch
        %100 = sbr.rel (%p98) target = $region24
      $region23: #{search_cell_forward.6} parent=19 // pred_region
        %p101 = scmp.lt.s32.totalorder %s8, 1
        %s102 = scalar_select %p101, %s8, 1
        %s103 = smul.addr %s102, 8
        %s104 = smul.addr %s103, 8
        %s105 = scalar_lea.vmem %s0, %s104
      $region24: #{search_cell_forward.6} parent=19 // pred_fallthru
        _
    $region20: #{search_cell_forward.6} parent=5 // pred_fallthru
      _
    %p106 = scmp.le.s32.totalorder 1, %s8
    %p107 = scmp.lt.s32.totalorder %s8, 3
    %p108 = pnand %p106, %p107
    %p109 = pneg %p108
    // Predicated region
    $region25: #{search_cell_forward.6} parent=5 // pred_check
      _
    $region26: #{search_cell_forward.6} parent=5 // pred_check_branch
      %111 = sbr.rel (%p108) target = $region28
    $region27: #{search_cell_forward.6} parent=5 // pred_region
      %s112 = ssub.s32 %s8, 1
      %p113 = scmp.lt.s32.totalorder %s13, 1
      %s114 = scalar_select %p113, %s13, 1
      %s115 = smul.addr %s114, 8
      %s116 = smul.addr %s115, 8
      %s117 = scalar_lea.vmem %s0, %s116
      %p118 = pneg %p34
      %p119 = pneg %p31
      %p120 = pneg %p55
      %p121 = pneg %p52
      %p122 = pneg %p76
      %p123 = pneg %p73
      %p124 = scmp.lt.s32.totalorder %s13, 1
      %s125 = scalar_select %p124, %s13, 1
      %s126 = smul.addr %s125, 8
      %s127 = smul.addr %s126, 8
      %s128 = scalar_lea.vmem %s0, %s127
      %p130 = scmp.eq.s32.totalorder %s13, 0
      // Predicated region
      $region29: #{search_cell_forward.6} parent=27 // pred_check
        %p131 = pneg %p130
      $region30: #{search_cell_forward.6} parent=27 // pred_check_branch
        %133 = sbr.rel (%p131) target = $region32
      $region31: #{search_cell_forward.6} parent=27 // pred_region
        %134 = vst [vmem:[%s2] sm:$0x3] 0.0
      $region32: #{search_cell_forward.6} parent=27 // pred_fallthru
        _
      %vm135 = vcmask 130048
      %136 = vst.msk [vmem:[#allocation2] sm:$0xff] %vm135, 0.0
      %vm137 = vcmask 123904
      %138 = vst.msk [vmem:[#allocation2 + $0x8] sm:$0x3] %vm137, 0.0
      %s139 = scalar_lea.vmem [#allocation2], 144
      %140 = vst.msk [vmem:[%s139] sm:$0xff] %vm135, 0.0
      %141 = vst.msk [vmem:[%s139 + $0x8] sm:$0x3] %vm137, 0.0
      %vm142 = vcmask 122880
      %143 = vst.msk [vmem:[#allocation2] sm:$0x1] %vm142, 0.0
      %144 = vst.msk [vmem:[#allocation2 + $0x10] sm:$0x1] %vm142, 0.0
      %145 = vst.msk [vmem:[#allocation2 + $0x20] sm:$0x1] %vm142, 0.0
      %146 = vst.msk [vmem:[#allocation2 + $0x30] sm:$0x1] %vm142, 0.0
      %147 = vst.msk [vmem:[#allocation2 + $0x40] sm:$0x1] %vm142, 0.0
      %148 = vst.msk [vmem:[#allocation2 + $0x50] sm:$0x1] %vm142, 0.0
      %149 = vst.msk [vmem:[#allocation2 + $0x60] sm:$0x1] %vm142, 0.0
      %150 = vst.msk [vmem:[#allocation2 + $0x70] sm:$0x1] %vm142, 0.0
      %151 = vst.msk [vmem:[#allocation2 + $0x80] sm:$0x1] %vm142, 0.0
      %152 = vst.msk [vmem:[#allocation2 + $0x90] sm:$0x1] %vm142, 0.0
      %153 = vst.msk [vmem:[#allocation2 + $0x9] sm:$0x1] %vm142, 0.0
      %154 = vst.msk [vmem:[#allocation2 + $0x19] sm:$0x1] %vm142, 0.0
      %155 = vst.msk [vmem:[#allocation2 + $0x29] sm:$0x1] %vm142, 0.0
      %156 = vst.msk [vmem:[#allocation2 + $0x39] sm:$0x1] %vm142, 0.0
      %157 = vst.msk [vmem:[#allocation2 + $0x49] sm:$0x1] %vm142, 0.0
      %158 = vst.msk [vmem:[#allocation2 + $0x59] sm:$0x1] %vm142, 0.0
      %159 = vst.msk [vmem:[#allocation2 + $0x69] sm:$0x1] %vm142, 0.0
      %160 = vst.msk [vmem:[#allocation2 + $0x79] sm:$0x1] %vm142, 0.0
      %161 = vst.msk [vmem:[#allocation2 + $0x89] sm:$0x1] %vm142, 0.0
      %162 = vst.msk [vmem:[#allocation2 + $0x99] sm:$0x1] %vm142, 0.0
      %v163 = vld [vmem:[%s128] sm:$0xff]
      %v164 = vld [vmem:[%s128 + $0x8] sm:$0xff]
      %v165 = vld [vmem:[%s128 + $0x10] sm:$0xff]
      %v166 = vld [vmem:[%s128 + $0x18] sm:$0xff]
      %v167 = vld [vmem:[%s128 + $0x20] sm:$0xff]
      %v168 = vld [vmem:[%s128 + $0x28] sm:$0xff]
      %v169 = vld [vmem:[%s128 + $0x30] sm:$0xff]
      %v170 = vld [vmem:[%s128 + $0x38] sm:$0xff]
      %v171 = vmax.f32 %v163, 0.0
      %v172 = vmax.f32 %v164, 0.0
      %v173 = vmax.f32 %v165, 0.0
      %v174 = vmax.f32 %v166, 0.0
      %v175 = vmax.f32 %v167, 0.0
      %v176 = vmax.f32 %v168, 0.0
      %v177 = vmax.f32 %v169, 0.0
      %v178 = vmax.f32 %v170, 0.0
      %s179 = scalar_lea.vmem [#allocation2], 16
      %180 = vst.msk [vmem:[%s179 + $0x1] sm:$0xff] %vm135, %v171
      %181 = vst.msk [vmem:[%s179 + $0x11] sm:$0xff] %vm135, %v172
      %182 = vst.msk [vmem:[%s179 + $0x21] sm:$0xff] %vm135, %v173
      %183 = vst.msk [vmem:[%s179 + $0x31] sm:$0xff] %vm135, %v174
      %184 = vst.msk [vmem:[%s179 + $0x41] sm:$0xff] %vm135, %v175
      %185 = vst.msk [vmem:[%s179 + $0x51] sm:$0xff] %vm135, %v176
      %186 = vst.msk [vmem:[%s179 + $0x61] sm:$0xff] %vm135, %v177
      %187 = vst.msk [vmem:[%s179 + $0x71] sm:$0xff] %vm135, %v178
      %v188 = vld [vmem:[#allocation2] sm:$0xff]
      %v189 = vld [vmem:[#allocation2 + $0x10] sm:$0xff]
      %v190 = vld [vmem:[#allocation2 + $0x20] sm:$0xff]
      %v191 = vld [vmem:[#allocation2 + $0x30] sm:$0xff]
      %v192 = vld [vmem:[#allocation2 + $0x40] sm:$0xff]
      %v193 = vld [vmem:[#allocation2 + $0x50] sm:$0xff]
      %v194 = vld [vmem:[#allocation2 + $0x60] sm:$0xff]
      %v195 = vld [vmem:[#allocation2 + $0x70] sm:$0xff]
      %v196 = vpack.c.bf16 %v189, %v188
      %v197 = vpack.c.bf16 %v191, %v190
      %v198 = vpack.c.bf16 %v193, %v192
      %v199 = vpack.c.bf16 %v195, %v194
      %v200 = vld [vmem:[%s1] sm:$0xf]
      %v201 = vld [vmem:[%s1 + $0x4] sm:$0xf]
      %v202 = vld [vmem:[#allocation2 + $0x1] sm:$0xff]
      %v203 = vld [vmem:[#allocation2 + $0x11] sm:$0xff]
      %v204 = vld [vmem:[#allocation2 + $0x21] sm:$0xff]
      %v205 = vld [vmem:[#allocation2 + $0x31] sm:$0xff]
      %v206 = vld [vmem:[#allocation2 + $0x41] sm:$0xff]
      %v207 = vld [vmem:[#allocation2 + $0x51] sm:$0xff]
      %v208 = vld [vmem:[#allocation2 + $0x61] sm:$0xff]
      %v209 = vld [vmem:[#allocation2 + $0x71] sm:$0xff]
      %v210 = vpack.c.bf16 %v203, %v202
      %v211 = vpack.c.bf16 %v205, %v204
      %v212 = vpack.c.bf16 %v207, %v206
      %v213 = vpack.c.bf16 %v209, %v208
      %s214 = scalar_lea.vmem %s1, 8
      %v215 = vld [vmem:[%s214] sm:$0xf]
      %v216 = vld [vmem:[%s214 + $0x4] sm:$0xf]
      %v219 = vunpack.c.l.b16 %v215
      %v220 = vunpack.c.l.b16 %v216
      %v221 = vpack.c.b16 %v220, %v219
      %v224 = vsel %vm135, %v210, 0
      %v227 = vsel %vm135, %v211, 0
      %v230 = vsel %vm135, %v212, 0
      %v233 = vsel %vm135, %v213, 0
      %235 = vmatprep.subr.bf16.mxu0 0
      %236 = vmatpush1.bf16.msra.mxu0 %v221
      %237 = vmatprep.subr.bf16.mxu0 0
      %238 = vmatpush1.bf16.msra.mxu0 0
      %239 = vmatprep.subr.bf16.mxu0 0
      %240 = vmatpush1.bf16.msra.mxu0 0
      %241 = vmatprep.subr.bf16.mxu0 0
      %242 = vmatpush1.bf16.msra.mxu0 0
      %243 = vmatprep.subr.bf16.mxu0 0
      %244 = vmatpush1.bf16.msra.mxu0 0
      %245 = vmatprep.subr.bf16.mxu0 0
      %246 = vmatpush1.bf16.msra.mxu0 0
      %247 = vmatprep.subr.bf16.mxu0 0
      %248 = vmatpush1.bf16.msra.mxu0 0
      %249 = vmatprep.subr.bf16.mxu0 0
      %250 = vmatpush1.bf16.msra.mxu0 0
      %251 = vmatprep.subr.bf16.mxu0 0
      %252 = vmatpush1.bf16.msra.mxu0 0
      %253 = vmatprep.subr.bf16.mxu0 0
      %254 = vmatpush1.bf16.msra.mxu0 0
      %255 = vmatprep.subr.bf16.mxu0 0
      %256 = vmatpush1.bf16.msra.mxu0 0
      %257 = vmatprep.subr.bf16.mxu0 0
      %258 = vmatpush1.bf16.msra.mxu0 0
      %259 = vmatprep.subr.bf16.mxu0 0
      %260 = vmatpush1.bf16.msra.mxu0 0
      %261 = vmatprep.subr.bf16.mxu0 0
      %262 = vmatpush1.bf16.msra.mxu0 0
      %263 = vmatprep.subr.bf16.mxu0 0
      %264 = vmatpush1.bf16.msra.mxu0 0
      %265 = vmatprep.subr.bf16.mxu0 0
      %266 = vmatpush1.bf16.msra.mxu0 0
      %267 = vmatprep.mubr.bf16.mxu0 0
      %268 = vmatmul.mubr.bf16.gmra.mrb[0].mxu0 %v224
      %v269 = vpop.f32.mrb[0].mxu0
      %v270 = vadd.f32 0.0, %v269
      %v271 = vpop.f32.mrb[0].mxu0
      %v272 = vpop.f32.mrb[0].mxu0
      %v273 = vadd.f32 0.0, %v272
      %v274 = vpop.f32.mrb[0].mxu0
      %275 = vmatprep.mubr.bf16.mxu0 0
      %276 = vmatmul.mubr.bf16.gmra.mrb[0].mxu0 %v227
      %v277 = vpop.f32.mrb[0].mxu0
      %v278 = vadd.f32 0.0, %v277
      %v279 = vpop.f32.mrb[0].mxu0
      %v280 = vpop.f32.mrb[0].mxu0
      %v281 = vadd.f32 0.0, %v280
      %v282 = vpop.f32.mrb[0].mxu0
      %283 = vmatprep.mubr.bf16.mxu0 0
      %284 = vmatmul.mubr.bf16.gmra.mrb[0].mxu0 %v230
      %v285 = vpop.f32.mrb[0].mxu0
      %v286 = vadd.f32 0.0, %v285
      %v287 = vpop.f32.mrb[0].mxu0
      %v288 = vpop.f32.mrb[0].mxu0
      %v289 = vadd.f32 0.0, %v288
      %v290 = vpop.f32.mrb[0].mxu0
      %291 = vmatprep.mubr.bf16.mxu0 0
      %292 = vmatmul.mubr.bf16.gmra.mrb[0].mxu0 %v233
      %v293 = vpop.f32.mrb[0].mxu0
      %v294 = vadd.f32 0.0, %v293
      %v295 = vpop.f32.mrb[0].mxu0
      %v296 = vpop.f32.mrb[0].mxu0
      %v297 = vadd.f32 0.0, %v296
      %v298 = vpop.f32.mrb[0].mxu0
      %299 = vdwg.mxu0
      %v302 = vunpack.c.l.b16 %v200
      %v303 = vunpack.c.l.b16 %v201
      %v304 = vpack.c.b16 %v303, %v302
      %v307 = vsel %vm135, %v196, 0
      %v310 = vsel %vm135, %v197, 0
      %v313 = vsel %vm135, %v198, 0
      %v316 = vsel %vm135, %v199, 0
      %318 = vmatprep.subr.bf16.mxu0 0
      %319 = vmatpush1.bf16.msra.mxu0 %v304
      %320 = vmatprep.subr.bf16.mxu0 0
      %321 = vmatpush1.bf16.msra.mxu0 0
      %322 = vmatprep.subr.bf16.mxu0 0
      %323 = vmatpush1.bf16.msra.mxu0 0
      %324 = vmatprep.subr.bf16.mxu0 0
      %325 = vmatpush1.bf16.msra.mxu0 0
      %326 = vmatprep.subr.bf16.mxu0 0
      %327 = vmatpush1.bf16.msra.mxu0 0
      %328 = vmatprep.subr.bf16.mxu0 0
      %329 = vmatpush1.bf16.msra.mxu0 0
      %330 = vmatprep.subr.bf16.mxu0 0
      %331 = vmatpush1.bf16.msra.mxu0 0
      %332 = vmatprep.subr.bf16.mxu0 0
      %333 = vmatpush1.bf16.msra.mxu0 0
      %334 = vmatprep.subr.bf16.mxu0 0
      %335 = vmatpush1.bf16.msra.mxu0 0
      %336 = vmatprep.subr.bf16.mxu0 0
      %337 = vmatpush1.bf16.msra.mxu0 0
      %338 = vmatprep.subr.bf16.mxu0 0
      %339 = vmatpush1.bf16.msra.mxu0 0
      %340 = vmatprep.subr.bf16.mxu0 0
      %341 = vmatpush1.bf16.msra.mxu0 0
      %342 = vmatprep.subr.bf16.mxu0 0
      %343 = vmatpush1.bf16.msra.mxu0 0
      %344 = vmatprep.subr.bf16.mxu0 0
      %345 = vmatpush1.bf16.msra.mxu0 0
      %346 = vmatprep.subr.bf16.mxu0 0
      %347 = vmatpush1.bf16.msra.mxu0 0
      %348 = vmatprep.subr.bf16.mxu0 0
      %349 = vmatpush1.bf16.msra.mxu0 0
      %350 = vmatprep.mubr.bf16.mxu0 0
      %351 = vmatmul.mubr.bf16.gmra.mrb[0].mxu0 %v307
      %v352 = vpop.f32.mrb[0].mxu0
      %v353 = vadd.f32 %v270, %v352
      %v354 = vpop.f32.mrb[0].mxu0
      %v355 = vpop.f32.mrb[0].mxu0
      %v356 = vadd.f32 %v273, %v355
      %v357 = vpop.f32.mrb[0].mxu0
      %358 = vmatprep.mubr.bf16.mxu0 0
      %359 = vmatmul.mubr.bf16.gmra.mrb[0].mxu0 %v310
      %v360 = vpop.f32.mrb[0].mxu0
      %v361 = vadd.f32 %v278, %v360
      %v362 = vpop.f32.mrb[0].mxu0
      %v363 = vpop.f32.mrb[0].mxu0
      %v364 = vadd.f32 %v281, %v363
      %v365 = vpop.f32.mrb[0].mxu0
      %366 = vmatprep.mubr.bf16.mxu0 0
      %367 = vmatmul.mubr.bf16.gmra.mrb[0].mxu0 %v313
      %v368 = vpop.f32.mrb[0].mxu0
      %v369 = vadd.f32 %v286, %v368
      %v370 = vpop.f32.mrb[0].mxu0
      %v371 = vpop.f32.mrb[0].mxu0
      %v372 = vadd.f32 %v289, %v371
      %v373 = vpop.f32.mrb[0].mxu0
      %374 = vmatprep.mubr.bf16.mxu0 0
      %375 = vmatmul.mubr.bf16.gmra.mrb[0].mxu0 %v316
      %v376 = vpop.f32.mrb[0].mxu0
      %v377 = vadd.f32 %v294, %v376
      %v378 = vpop.f32.mrb[0].mxu0
      %v379 = vpop.f32.mrb[0].mxu0
      %v380 = vadd.f32 %v297, %v379
      %v381 = vpop.f32.mrb[0].mxu0
      %382 = vdwg.mxu0
      %v383 = vld [vmem:[#allocation2 + $0x2] sm:$0xff]
      %v384 = vld [vmem:[#allocation2 + $0x12] sm:$0xff]
      %v385 = vld [vmem:[#allocation2 + $0x22] sm:$0xff]
      %v386 = vld [vmem:[#allocation2 + $0x32] sm:$0xff]
      %v387 = vld [vmem:[#allocation2 + $0x42] sm:$0xff]
      %v388 = vld [vmem:[#allocation2 + $0x52] sm:$0xff]
      %v389 = vld [vmem:[#allocation2 + $0x62] sm:$0xff]
      %v390 = vld [vmem:[#allocation2 + $0x72] sm:$0xff]
      %v391 = vpack.c.bf16 %v384, %v383
      %v392 = vpack.c.bf16 %v386, %v385
      %v393 = vpack.c.bf16 %v388, %v387
      %v394 = vpack.c.bf16 %v390, %v389
      %s395 = scalar_lea.vmem %s1, 16
      %v396 = vld [vmem:[%s395] sm:$0xf]
      %v397 = vld [vmem:[%s395 + $0x4] sm:$0xf]
      %v400 = vunpack.c.l.b16 %v396
      %v401 = vunpack.c.l.b16 %v397
      %v402 = vpack.c.b16 %v401, %v400
      %v405 = vsel %vm135, %v391, 0
      %v408 = vsel %vm135, %v392, 0
      %v411 = vsel %vm135, %v393, 0
      %v414 = vsel %vm135, %v394, 0
      %416 = vmatprep.subr.bf16.mxu0 0
      %417 = vmatpush1.bf16.msra.mxu0 %v402
      %418 = vmatprep.subr.bf16.mxu0 0
      %419 = vmatpush1.bf16.msra.mxu0 0
      %420 = vmatprep.subr.bf16.mxu0 0
      %421 = vmatpush1.bf16.msra.mxu0 0
      %422 = vmatprep.subr.bf16.mxu0 0
      %423 = vmatpush1.bf16.msra.mxu0 0
      %424 = vmatprep.subr.bf16.mxu0 0
      %425 = vmatpush1.bf16.msra.mxu0 0
      %426 = vmatprep.subr.bf16.mxu0 0
      %427 = vmatpush1.bf16.msra.mxu0 0
      %428 = vmatprep.subr.bf16.mxu0 0
      %429 = vmatpush1.bf16.msra.mxu0 0
      %430 = vmatprep.subr.bf16.mxu0 0
      %431 = vmatpush1.bf16.msra.mxu0 0
      %432 = vmatprep.subr.bf16.mxu0 0
      %433 = vmatpush1.bf16.msra.mxu0 0
      %434 = vmatprep.subr.bf16.mxu0 0
      %435 = vmatpush1.bf16.msra.mxu0 0
      %436 = vmatprep.subr.bf16.mxu0 0
      %437 = vmatpush1.bf16.msra.mxu0 0
      %438 = vmatprep.subr.bf16.mxu0 0
      %439 = vmatpush1.bf16.msra.mxu0 0
      %440 = vmatprep.subr.bf16.mxu0 0
      %441 = vmatpush1.bf16.msra.mxu0 0
      %442 = vmatprep.subr.bf16.mxu0 0
      %443 = vmatpush1.bf16.msra.mxu0 0
      %444 = vmatprep.subr.bf16.mxu0 0
      %445 = vmatpush1.bf16.msra.mxu0 0
      %446 = vmatprep.subr.bf16.mxu0 0
      %447 = vmatpush1.bf16.msra.mxu0 0
      %448 = vmatprep.mubr.bf16.mxu0 0
      %449 = vmatmul.mubr.bf16.gmra.mrb[0].mxu0 %v405
      %v450 = vpop.f32.mrb[0].mxu0
      %v451 = vadd.f32 0.0, %v450
      %v452 = vpop.f32.mrb[0].mxu0
      %v453 = vpop.f32.mrb[0].mxu0
      %v454 = vadd.f32 0.0, %v453
      %v455 = vpop.f32.mrb[0].mxu0
      %456 = vmatprep.mubr.bf16.mxu0 0
      %457 = vmatmul.mubr.bf16.gmra.mrb[0].mxu0 %v408
      %v458 = vpop.f32.mrb[0].mxu0
      %v459 = vadd.f32 0.0, %v458
      %v460 = vpop.f32.mrb[0].mxu0
      %v461 = vpop.f32.mrb[0].mxu0
      %v462 = vadd.f32 0.0, %v461
      %v463 = vpop.f32.mrb[0].mxu0
      %464 = vmatprep.mubr.bf16.mxu0 0
      %465 = vmatmul.mubr.bf16.gmra.mrb[0].mxu0 %v411
      %v466 = vpop.f32.mrb[0].mxu0
      %v467 = vadd.f32 0.0, %v466
      %v468 = vpop.f32.mrb[0].mxu0
      %v469 = vpop.f32.mrb[0].mxu0
      %v470 = vadd.f32 0.0, %v469
      %v471 = vpop.f32.mrb[0].mxu0
      %472 = vmatprep.mubr.bf16.mxu0 0
      %473 = vmatmul.mubr.bf16.gmra.mrb[0].mxu0 %v414
      %v474 = vpop.f32.mrb[0].mxu0
      %v475 = vadd.f32 0.0, %v474
      %v476 = vpop.f32.mrb[0].mxu0
      %v477 = vpop.f32.mrb[0].mxu0
      %v478 = vadd.f32 0.0, %v477
      %v479 = vpop.f32.mrb[0].mxu0
      %480 = vdwg.mxu0
      %v481 = vadd.f32 %v353, %v451
      %v482 = vadd.f32 %v356, %v454
      %v483 = vadd.f32 %v361, %v459
      %v484 = vadd.f32 %v364, %v462
      %v485 = vadd.f32 %v369, %v467
      %v486 = vadd.f32 %v372, %v470
      %v487 = vadd.f32 %v377, %v475
      %v488 = vadd.f32 %v380, %v478
      %v489 = vld [vmem:[%s179] sm:$0xff]
      %v490 = vld [vmem:[%s179 + $0x10] sm:$0xff]
      %v491 = vld [vmem:[%s179 + $0x20] sm:$0xff]
      %v492 = vld [vmem:[%s179 + $0x30] sm:$0xff]
      %v493 = vld [vmem:[%s179 + $0x40] sm:$0xff]
      %v494 = vld [vmem:[%s179 + $0x50] sm:$0xff]
      %v495 = vld [vmem:[%s179 + $0x60] sm:$0xff]
      %v496 = vld [vmem:[%s179 + $0x70] sm:$0xff]
      %v497 = vpack.c.bf16 %v490, %v489
      %v498 = vpack.c.bf16 %v492, %v491
      %v499 = vpack.c.bf16 %v494, %v493
      %v500 = vpack.c.bf16 %v496, %v495
      %s501 = scalar_lea.vmem %s1, 24
      %v502 = vld [vmem:[%s501] sm:$0xf]
      %v503 = vld [vmem:[%s501 + $0x4] sm:$0xf]
      %v506 = vunpack.c.l.b16 %v502
      %v507 = vunpack.c.l.b16 %v503
      %v508 = vpack.c.b16 %v507, %v506
      %v511 = vsel %vm135, %v497, 0
      %v514 = vsel %vm135, %v498, 0
      %v517 = vsel %vm135, %v499, 0
      %v520 = vsel %vm135, %v500, 0
      %522 = vmatprep.subr.bf16.mxu0 0
      %523 = vmatpush1.bf16.msra.mxu0 %v508
      %524 = vmatprep.subr.bf16.mxu0 0
      %525 = vmatpush1.bf16.msra.mxu0 0
      %526 = vmatprep.subr.bf16.mxu0 0
      %527 = vmatpush1.bf16.msra.mxu0 0
      %528 = vmatprep.subr.bf16.mxu0 0
      %529 = vmatpush1.bf16.msra.mxu0 0
      %530 = vmatprep.subr.bf16.mxu0 0
      %531 = vmatpush1.bf16.msra.mxu0 0
      %532 = vmatprep.subr.bf16.mxu0 0
      %533 = vmatpush1.bf16.msra.mxu0 0
      %534 = vmatprep.subr.bf16.mxu0 0
      %535 = vmatpush1.bf16.msra.mxu0 0
      %536 = vmatprep.subr.bf16.mxu0 0
      %537 = vmatpush1.bf16.msra.mxu0 0
      %538 = vmatprep.subr.bf16.mxu0 0
      %539 = vmatpush1.bf16.msra.mxu0 0
      %540 = vmatprep.subr.bf16.mxu0 0
      %541 = vmatpush1.bf16.msra.mxu0 0
      %542 = vmatprep.subr.bf16.mxu0 0
      %543 = vmatpush1.bf16.msra.mxu0 0
      %544 = vmatprep.subr.bf16.mxu0 0
      %545 = vmatpush1.bf16.msra.mxu0 0
      %546 = vmatprep.subr.bf16.mxu0 0
      %547 = vmatpush1.bf16.msra.mxu0 0
      %548 = vmatprep.subr.bf16.mxu0 0
      %549 = vmatpush1.bf16.msra.mxu0 0
      %550 = vmatprep.subr.bf16.mxu0 0
      %551 = vmatpush1.bf16.msra.mxu0 0
      %552 = vmatprep.subr.bf16.mxu0 0
      %553 = vmatpush1.bf16.msra.mxu0 0
      %554 = vmatprep.mubr.bf16.mxu0 0
      %555 = vmatmul.mubr.bf16.gmra.mrb[0].mxu0 %v511
      %v556 = vpop.f32.mrb[0].mxu0
      %v557 = vadd.f32 0.0, %v556
      %v558 = vpop.f32.mrb[0].mxu0
      %v559 = vpop.f32.mrb[0].mxu0
      %v560 = vadd.f32 0.0, %v559
      %v561 = vpop.f32.mrb[0].mxu0
      %562 = vmatprep.mubr.bf16.mxu0 0
      %563 = vmatmul.mubr.bf16.gmra.mrb[0].mxu0 %v514
      %v564 = vpop.f32.mrb[0].mxu0
      %v565 = vadd.f32 0.0, %v564
      %v566 = vpop.f32.mrb[0].mxu0
      %v567 = vpop.f32.mrb[0].mxu0
      %v568 = vadd.f32 0.0, %v567
      %v569 = vpop.f32.mrb[0].mxu0
      %570 = vmatprep.mubr.bf16.mxu0 0
      %571 = vmatmul.mubr.bf16.gmra.mrb[0].mxu0 %v517
      %v572 = vpop.f32.mrb[0].mxu0
      %v573 = vadd.f32 0.0, %v572
      %v574 = vpop.f32.mrb[0].mxu0
      %v575 = vpop.f32.mrb[0].mxu0
      %v576 = vadd.f32 0.0, %v575
      %v577 = vpop.f32.mrb[0].mxu0
      %578 = vmatprep.mubr.bf16.mxu0 0
      %579 = vmatmul.mubr.bf16.gmra.mrb[0].mxu0 %v520
      %v580 = vpop.f32.mrb[0].mxu0
      %v581 = vadd.f32 0.0, %v580
      %v582 = vpop.f32.mrb[0].mxu0
      %v583 = vpop.f32.mrb[0].mxu0
      %v584 = vadd.f32 0.0, %v583
      %v585 = vpop.f32.mrb[0].mxu0
      %586 = vdwg.mxu0
      %v587 = vadd.f32 %v481, %v557
      %v588 = vadd.f32 %v482, %v560
      %v589 = vadd.f32 %v483, %v565
      %v590 = vadd.f32 %v484, %v568
      %v591 = vadd.f32 %v485, %v573
      %v592 = vadd.f32 %v486, %v576
      %v593 = vadd.f32 %v487, %v581
      %v594 = vadd.f32 %v488, %v584
      %v595 = vld [vmem:[%s179 + $0x1] sm:$0xff]
      %v596 = vld [vmem:[%s179 + $0x11] sm:$0xff]
      %v597 = vld [vmem:[%s179 + $0x21] sm:$0xff]
      %v598 = vld [vmem:[%s179 + $0x31] sm:$0xff]
      %v599 = vld [vmem:[%s179 + $0x41] sm:$0xff]
      %v600 = vld [vmem:[%s179 + $0x51] sm:$0xff]
      %v601 = vld [vmem:[%s179 + $0x61] sm:$0xff]
      %v602 = vld [vmem:[%s179 + $0x71] sm:$0xff]
      %v603 = vpack.c.bf16 %v596, %v595
      %v604 = vpack.c.bf16 %v598, %v597
      %v605 = vpack.c.bf16 %v600, %v599
      %v606 = vpack.c.bf16 %v602, %v601
      %s607 = scalar_lea.vmem %s1, 32
      %v608 = vld [vmem:[%s607] sm:$0xf]
      %v609 = vld [vmem:[%s607 + $0x4] sm:$0xf]
      %v612 = vunpack.c.l.b16 %v608
      %v613 = vunpack.c.l.b16 %v609
      %v614 = vpack.c.b16 %v613, %v612
      %v617 = vsel %vm135, %v603, 0
      %v620 = vsel %vm135, %v604, 0
      %v623 = vsel %vm135, %v605, 0
      %v626 = vsel %vm135, %v606, 0
      %628 = vmatprep.subr.bf16.mxu0 0
      %629 = vmatpush1.bf16.msra.mxu0 %v614
      %630 = vmatprep.subr.bf16.mxu0 0
      %631 = vmatpush1.bf16.msra.mxu0 0
      %632 = vmatprep.subr.bf16.mxu0 0
      %633 = vmatpush1.bf16.msra.mxu0 0
      %634 = vmatprep.subr.bf16.mxu0 0
      %635 = vmatpush1.bf16.msra.mxu0 0
      %636 = vmatprep.subr.bf16.mxu0 0
      %637 = vmatpush1.bf16.msra.mxu0 0
      %638 = vmatprep.subr.bf16.mxu0 0
      %639 = vmatpush1.bf16.msra.mxu0 0
      %640 = vmatprep.subr.bf16.mxu0 0
      %641 = vmatpush1.bf16.msra.mxu0 0
      %642 = vmatprep.subr.bf16.mxu0 0
      %643 = vmatpush1.bf16.msra.mxu0 0
      %644 = vmatprep.subr.bf16.mxu0 0
      %645 = vmatpush1.bf16.msra.mxu0 0
      %646 = vmatprep.subr.bf16.mxu0 0
      %647 = vmatpush1.bf16.msra.mxu0 0
      %648 = vmatprep.subr.bf16.mxu0 0
      %649 = vmatpush1.bf16.msra.mxu0 0
      %650 = vmatprep.subr.bf16.mxu0 0
      %651 = vmatpush1.bf16.msra.mxu0 0
      %652 = vmatprep.subr.bf16.mxu0 0
      %653 = vmatpush1.bf16.msra.mxu0 0
      %654 = vmatprep.subr.bf16.mxu0 0
      %655 = vmatpush1.bf16.msra.mxu0 0
      %656 = vmatprep.subr.bf16.mxu0 0
      %657 = vmatpush1.bf16.msra.mxu0 0
      %658 = vmatprep.subr.bf16.mxu0 0
      %659 = vmatpush1.bf16.msra.mxu0 0
      %660 = vmatprep.mubr.bf16.mxu0 0
      %661 = vmatmul.mubr.bf16.gmra.mrb[0].mxu0 %v617
      %v662 = vpop.f32.mrb[0].mxu0
      %v663 = vadd.f32 0.0, %v662
      %v664 = vpop.f32.mrb[0].mxu0
      %v665 = vpop.f32.mrb[0].mxu0
      %v666 = vadd.f32 0.0, %v665
      %v667 = vpop.f32.mrb[0].mxu0
      %668 = vmatprep.mubr.bf16.mxu0 0
      %669 = vmatmul.mubr.bf16.gmra.mrb[0].mxu0 %v620
      %v670 = vpop.f32.mrb[0].mxu0
      %v671 = vadd.f32 0.0, %v670
      %v672 = vpop.f32.mrb[0].mxu0
      %v673 = vpop.f32.mrb[0].mxu0
      %v674 = vadd.f32 0.0, %v673
      %v675 = vpop.f32.mrb[0].mxu0
      %676 = vmatprep.mubr.bf16.mxu0 0
      %677 = vmatmul.mubr.bf16.gmra.mrb[0].mxu0 %v623
      %v678 = vpop.f32.mrb[0].mxu0
      %v679 = vadd.f32 0.0, %v678
      %v680 = vpop.f32.mrb[0].mxu0
      %v681 = vpop.f32.mrb[0].mxu0
      %v682 = vadd.f32 0.0, %v681
      %v683 = vpop.f32.mrb[0].mxu0
      %684 = vmatprep.mubr.bf16.mxu0 0
      %685 = vmatmul.mubr.bf16.gmra.mrb[0].mxu0 %v626
      %v686 = vpop.f32.mrb[0].mxu0
      %v687 = vadd.f32 0.0, %v686
      %v688 = vpop.f32.mrb[0].mxu0
      %v689 = vpop.f32.mrb[0].mxu0
      %v690 = vadd.f32 0.0, %v689
      %v691 = vpop.f32.mrb[0].mxu0
      %692 = vdwg.mxu0
      %v693 = vadd.f32 %v587, %v663
      %v694 = vadd.f32 %v588, %v666
      %v695 = vadd.f32 %v589, %v671
      %v696 = vadd.f32 %v590, %v674
      %v697 = vadd.f32 %v591, %v679
      %v698 = vadd.f32 %v592, %v682
      %v699 = vadd.f32 %v593, %v687
      %v700 = vadd.f32 %v594, %v690
      %v701 = vld [vmem:[%s179 + $0x2] sm:$0xff]
      %v702 = vld [vmem:[%s179 + $0x12] sm:$0xff]
      %v703 = vld [vmem:[%s179 + $0x22] sm:$0xff]
      %v704 = vld [vmem:[%s179 + $0x32] sm:$0xff]
      %v705 = vld [vmem:[%s179 + $0x42] sm:$0xff]
      %v706 = vld [vmem:[%s179 + $0x52] sm:$0xff]
      %v707 = vld [vmem:[%s179 + $0x62] sm:$0xff]
      %v708 = vld [vmem:[%s179 + $0x72] sm:$0xff]
      %v709 = vpack.c.bf16 %v702, %v701
      %v710 = vpack.c.bf16 %v704, %v703
      %v711 = vpack.c.bf16 %v706, %v705
      %v712 = vpack.c.bf16 %v708, %v707
      %s713 = scalar_lea.vmem %s1, 40
      %v714 = vld [vmem:[%s713] sm:$0xf]
      %v715 = vld [vmem:[%s713 + $0x4] sm:$0xf]
      %v718 = vunpack.c.l.b16 %v714
      %v719 = vunpack.c.l.b16 %v715
      %v720 = vpack.c.b16 %v719, %v718
      %v723 = vsel %vm135, %v709, 0
      %v726 = vsel %vm135, %v710, 0
      %v729 = vsel %vm135, %v711, 0
      %v732 = vsel %vm135, %v712, 0
      %734 = vmatprep.subr.bf16.mxu0 0
      %735 = vmatpush1.bf16.msra.mxu0 %v720
      %736 = vmatprep.subr.bf16.mxu0 0
      %737 = vmatpush1.bf16.msra.mxu0 0
      %738 = vmatprep.subr.bf16.mxu0 0
      %739 = vmatpush1.bf16.msra.mxu0 0
      %740 = vmatprep.subr.bf16.mxu0 0
      %741 = vmatpush1.bf16.msra.mxu0 0
      %742 = vmatprep.subr.bf16.mxu0 0
      %743 = vmatpush1.bf16.msra.mxu0 0
      %744 = vmatprep.subr.bf16.mxu0 0
      %745 = vmatpush1.bf16.msra.mxu0 0
      %746 = vmatprep.subr.bf16.mxu0 0
      %747 = vmatpush1.bf16.msra.mxu0 0
      %748 = vmatprep.subr.bf16.mxu0 0
      %749 = vmatpush1.bf16.msra.mxu0 0
      %750 = vmatprep.subr.bf16.mxu0 0
      %751 = vmatpush1.bf16.msra.mxu0 0
      %752 = vmatprep.subr.bf16.mxu0 0
      %753 = vmatpush1.bf16.msra.mxu0 0
      %754 = vmatprep.subr.bf16.mxu0 0
      %755 = vmatpush1.bf16.msra.mxu0 0
      %756 = vmatprep.subr.bf16.mxu0 0
      %757 = vmatpush1.bf16.msra.mxu0 0
      %758 = vmatprep.subr.bf16.mxu0 0
      %759 = vmatpush1.bf16.msra.mxu0 0
      %760 = vmatprep.subr.bf16.mxu0 0
      %761 = vmatpush1.bf16.msra.mxu0 0
      %762 = vmatprep.subr.bf16.mxu0 0
      %763 = vmatpush1.bf16.msra.mxu0 0
      %764 = vmatprep.subr.bf16.mxu0 0
      %765 = vmatpush1.bf16.msra.mxu0 0
      %766 = vmatprep.mubr.bf16.mxu0 0
      %767 = vmatmul.mubr.bf16.gmra.mrb[0].mxu0 %v723
      %v768 = vpop.f32.mrb[0].mxu0
      %v769 = vadd.f32 0.0, %v768
      %v770 = vpop.f32.mrb[0].mxu0
      %v771 = vpop.f32.mrb[0].mxu0
      %v772 = vadd.f32 0.0, %v771
      %v773 = vpop.f32.mrb[0].mxu0
      %774 = vmatprep.mubr.bf16.mxu0 0
      %775 = vmatmul.mubr.bf16.gmra.mrb[0].mxu0 %v726
      %v776 = vpop.f32.mrb[0].mxu0
      %v777 = vadd.f32 0.0, %v776
      %v778 = vpop.f32.mrb[0].mxu0
      %v779 = vpop.f32.mrb[0].mxu0
      %v780 = vadd.f32 0.0, %v779
      %v781 = vpop.f32.mrb[0].mxu0
      %782 = vmatprep.mubr.bf16.mxu0 0
      %783 = vmatmul.mubr.bf16.gmra.mrb[0].mxu0 %v729
      %v784 = vpop.f32.mrb[0].mxu0
      %v785 = vadd.f32 0.0, %v784
      %v786 = vpop.f32.mrb[0].mxu0
      %v787 = vpop.f32.mrb[0].mxu0
      %v788 = vadd.f32 0.0, %v787
      %v789 = vpop.f32.mrb[0].mxu0
      %790 = vmatprep.mubr.bf16.mxu0 0
      %791 = vmatmul.mubr.bf16.gmra.mrb[0].mxu0 %v732
      %v792 = vpop.f32.mrb[0].mxu0
      %v793 = vadd.f32 0.0, %v792
      %v794 = vpop.f32.mrb[0].mxu0
      %v795 = vpop.f32.mrb[0].mxu0
      %v796 = vadd.f32 0.0, %v795
      %v797 = vpop.f32.mrb[0].mxu0
      %798 = vdwg.mxu0
      %v799 = vadd.f32 %v693, %v769
      %v800 = vadd.f32 %v694, %v772
      %v801 = vadd.f32 %v695, %v777
      %v802 = vadd.f32 %v696, %v780
      %v803 = vadd.f32 %v697, %v785
      %v804 = vadd.f32 %v698, %v788
      %v805 = vadd.f32 %v699, %v793
      %v806 = vadd.f32 %v700, %v796
      %s807 = scalar_lea.vmem [#allocation2], 32
      %v808 = vld [vmem:[%s807] sm:$0xff]
      %v809 = vld [vmem:[%s807 + $0x10] sm:$0xff]
      %v810 = vld [vmem:[%s807 + $0x20] sm:$0xff]
      %v811 = vld [vmem:[%s807 + $0x30] sm:$0xff]
      %v812 = vld [vmem:[%s807 + $0x40] sm:$0xff]
      %v813 = vld [vmem:[%s807 + $0x50] sm:$0xff]
      %v814 = vld [vmem:[%s807 + $0x60] sm:$0xff]
      %v815 = vld [vmem:[%s807 + $0x70] sm:$0xff]
      %v816 = vpack.c.bf16 %v809, %v808
      %v817 = vpack.c.bf16 %v811, %v810
      %v818 = vpack.c.bf16 %v813, %v812
      %v819 = vpack.c.bf16 %v815, %v814
      %s820 = scalar_lea.vmem %s1, 48
      %v821 = vld [vmem:[%s820] sm:$0xf]
      %v822 = vld [vmem:[%s820 + $0x4] sm:$0xf]
      %v825 = vunpack.c.l.b16 %v821
      %v826 = vunpack.c.l.b16 %v822
      %v827 = vpack.c.b16 %v826, %v825
      %v830 = vsel %vm135, %v816, 0
      %v833 = vsel %vm135, %v817, 0
      %v836 = vsel %vm135, %v818, 0
      %v839 = vsel %vm135, %v819, 0
      %841 = vmatprep.subr.bf16.mxu0 0
      %842 = vmatpush1.bf16.msra.mxu0 %v827
      %843 = vmatprep.subr.bf16.mxu0 0
      %844 = vmatpush1.bf16.msra.mxu0 0
      %845 = vmatprep.subr.bf16.mxu0 0
      %846 = vmatpush1.bf16.msra.mxu0 0
      %847 = vmatprep.subr.bf16.mxu0 0
      %848 = vmatpush1.bf16.msra.mxu0 0
      %849 = vmatprep.subr.bf16.mxu0 0
      %850 = vmatpush1.bf16.msra.mxu0 0
      %851 = vmatprep.subr.bf16.mxu0 0
      %852 = vmatpush1.bf16.msra.mxu0 0
      %853 = vmatprep.subr.bf16.mxu0 0
      %854 = vmatpush1.bf16.msra.mxu0 0
      %855 = vmatprep.subr.bf16.mxu0 0
      %856 = vmatpush1.bf16.msra.mxu0 0
      %857 = vmatprep.subr.bf16.mxu0 0
      %858 = vmatpush1.bf16.msra.mxu0 0
      %859 = vmatprep.subr.bf16.mxu0 0
      %860 = vmatpush1.bf16.msra.mxu0 0
      %861 = vmatprep.subr.bf16.mxu0 0
      %862 = vmatpush1.bf16.msra.mxu0 0
      %863 = vmatprep.subr.bf16.mxu0 0
      %864 = vmatpush1.bf16.msra.mxu0 0
      %865 = vmatprep.subr.bf16.mxu0 0
      %866 = vmatpush1.bf16.msra.mxu0 0
      %867 = vmatprep.subr.bf16.mxu0 0
      %868 = vmatpush1.bf16.msra.mxu0 0
      %869 = vmatprep.subr.bf16.mxu0 0
      %870 = vmatpush1.bf16.msra.mxu0 0
      %871 = vmatprep.subr.bf16.mxu0 0
      %872 = vmatpush1.bf16.msra.mxu0 0
      %873 = vmatprep.mubr.bf16.mxu0 0
      %874 = vmatmul.mubr.bf16.gmra.mrb[0].mxu0 %v830
      %v875 = vpop.f32.mrb[0].mxu0
      %v876 = vadd.f32 0.0, %v875
      %v877 = vpop.f32.mrb[0].mxu0
      %v878 = vpop.f32.mrb[0].mxu0
      %v879 = vadd.f32 0.0, %v878
      %v880 = vpop.f32.mrb[0].mxu0
      %881 = vmatprep.mubr.bf16.mxu0 0
      %882 = vmatmul.mubr.bf16.gmra.mrb[0].mxu0 %v833
      %v883 = vpop.f32.mrb[0].mxu0
      %v884 = vadd.f32 0.0, %v883
      %v885 = vpop.f32.mrb[0].mxu0
      %v886 = vpop.f32.mrb[0].mxu0
      %v887 = vadd.f32 0.0, %v886
      %v888 = vpop.f32.mrb[0].mxu0
      %889 = vmatprep.mubr.bf16.mxu0 0
      %890 = vmatmul.mubr.bf16.gmra.mrb[0].mxu0 %v836
      %v891 = vpop.f32.mrb[0].mxu0
      %v892 = vadd.f32 0.0, %v891
      %v893 = vpop.f32.mrb[0].mxu0
      %v894 = vpop.f32.mrb[0].mxu0
      %v895 = vadd.f32 0.0, %v894
      %v896 = vpop.f32.mrb[0].mxu0
      %897 = vmatprep.mubr.bf16.mxu0 0
      %898 = vmatmul.mubr.bf16.gmra.mrb[0].mxu0 %v839
      %v899 = vpop.f32.mrb[0].mxu0
      %v900 = vadd.f32 0.0, %v899
      %v901 = vpop.f32.mrb[0].mxu0
      %v902 = vpop.f32.mrb[0].mxu0
      %v903 = vadd.f32 0.0, %v902
      %v904 = vpop.f32.mrb[0].mxu0
      %905 = vdwg.mxu0
      %v906 = vadd.f32 %v799, %v876
      %v907 = vadd.f32 %v800, %v879
      %v908 = vadd.f32 %v801, %v884
      %v909 = vadd.f32 %v802, %v887
      %v910 = vadd.f32 %v803, %v892
      %v911 = vadd.f32 %v804, %v895
      %v912 = vadd.f32 %v805, %v900
      %v913 = vadd.f32 %v806, %v903
      %v914 = vld [vmem:[%s807 + $0x1] sm:$0xff]
      %v915 = vld [vmem:[%s807 + $0x11] sm:$0xff]
      %v916 = vld [vmem:[%s807 + $0x21] sm:$0xff]
      %v917 = vld [vmem:[%s807 + $0x31] sm:$0xff]
      %v918 = vld [vmem:[%s807 + $0x41] sm:$0xff]
      %v919 = vld [vmem:[%s807 + $0x51] sm:$0xff]
      %v920 = vld [vmem:[%s807 + $0x61] sm:$0xff]
      %v921 = vld [vmem:[%s807 + $0x71] sm:$0xff]
      %v922 = vpack.c.bf16 %v915, %v914
      %v923 = vpack.c.bf16 %v917, %v916
      %v924 = vpack.c.bf16 %v919, %v918
      %v925 = vpack.c.bf16 %v921, %v920
      %s926 = scalar_lea.vmem %s1, 56
      %v927 = vld [vmem:[%s926] sm:$0xf]
      %v928 = vld [vmem:[%s926 + $0x4] sm:$0xf]
      %v931 = vunpack.c.l.b16 %v927
      %v932 = vunpack.c.l.b16 %v928
      %v933 = vpack.c.b16 %v932, %v931
      %v936 = vsel %vm135, %v922, 0
      %v939 = vsel %vm135, %v923, 0
      %v942 = vsel %vm135, %v924, 0
      %v945 = vsel %vm135, %v925, 0
      %947 = vmatprep.subr.bf16.mxu0 0
      %948 = vmatpush1.bf16.msra.mxu0 %v933
      %949 = vmatprep.subr.bf16.mxu0 0
      %950 = vmatpush1.bf16.msra.mxu0 0
      %951 = vmatprep.subr.bf16.mxu0 0
      %952 = vmatpush1.bf16.msra.mxu0 0
      %953 = vmatprep.subr.bf16.mxu0 0
      %954 = vmatpush1.bf16.msra.mxu0 0
      %955 = vmatprep.subr.bf16.mxu0 0
      %956 = vmatpush1.bf16.msra.mxu0 0
      %957 = vmatprep.subr.bf16.mxu0 0
      %958 = vmatpush1.bf16.msra.mxu0 0
      %959 = vmatprep.subr.bf16.mxu0 0
      %960 = vmatpush1.bf16.msra.mxu0 0
      %961 = vmatprep.subr.bf16.mxu0 0
      %962 = vmatpush1.bf16.msra.mxu0 0
      %963 = vmatprep.subr.bf16.mxu0 0
      %964 = vmatpush1.bf16.msra.mxu0 0
      %965 = vmatprep.subr.bf16.mxu0 0
      %966 = vmatpush1.bf16.msra.mxu0 0
      %967 = vmatprep.subr.bf16.mxu0 0
      %968 = vmatpush1.bf16.msra.mxu0 0
      %969 = vmatprep.subr.bf16.mxu0 0
      %970 = vmatpush1.bf16.msra.mxu0 0
      %971 = vmatprep.subr.bf16.mxu0 0
      %972 = vmatpush1.bf16.msra.mxu0 0
      %973 = vmatprep.subr.bf16.mxu0 0
      %974 = vmatpush1.bf16.msra.mxu0 0
      %975 = vmatprep.subr.bf16.mxu0 0
      %976 = vmatpush1.bf16.msra.mxu0 0
      %977 = vmatprep.subr.bf16.mxu0 0
      %978 = vmatpush1.bf16.msra.mxu0 0
      %979 = vmatprep.mubr.bf16.mxu0 0
      %980 = vmatmul.mubr.bf16.gmra.mrb[0].mxu0 %v936
      %v981 = vpop.f32.mrb[0].mxu0
      %v982 = vadd.f32 0.0, %v981
      %v983 = vpop.f32.mrb[0].mxu0
      %v984 = vpop.f32.mrb[0].mxu0
      %v985 = vadd.f32 0.0, %v984
      %v986 = vpop.f32.mrb[0].mxu0
      %987 = vmatprep.mubr.bf16.mxu0 0
      %988 = vmatmul.mubr.bf16.gmra.mrb[0].mxu0 %v939
      %v989 = vpop.f32.mrb[0].mxu0
      %v990 = vadd.f32 0.0, %v989
      %v991 = vpop.f32.mrb[0].mxu0
      %v992 = vpop.f32.mrb[0].mxu0
      %v993 = vadd.f32 0.0, %v992
      %v994 = vpop.f32.mrb[0].mxu0
      %995 = vmatprep.mubr.bf16.mxu0 0
      %996 = vmatmul.mubr.bf16.gmra.mrb[0].mxu0 %v942
      %v997 = vpop.f32.mrb[0].mxu0
      %v998 = vadd.f32 0.0, %v997
      %v999 = vpop.f32.mrb[0].mxu0
      %v1000 = vpop.f32.mrb[0].mxu0
      %v1001 = vadd.f32 0.0, %v1000
      %v1002 = vpop.f32.mrb[0].mxu0
      %1003 = vmatprep.mubr.bf16.mxu0 0
      %1004 = vmatmul.mubr.bf16.gmra.mrb[0].mxu0 %v945
      %v1005 = vpop.f32.mrb[0].mxu0
      %v1006 = vadd.f32 0.0, %v1005
      %v1007 = vpop.f32.mrb[0].mxu0
      %v1008 = vpop.f32.mrb[0].mxu0
      %v1009 = vadd.f32 0.0, %v1008
      %v1010 = vpop.f32.mrb[0].mxu0
      %1011 = vdwg.mxu0
      %v1012 = vadd.f32 %v906, %v982
      %v1013 = vadd.f32 %v907, %v985
      %v1014 = vadd.f32 %v908, %v990
      %v1015 = vadd.f32 %v909, %v993
      %v1016 = vadd.f32 %v910, %v998
      %v1017 = vadd.f32 %v911, %v1001
      %v1018 = vadd.f32 %v912, %v1006
      %v1019 = vadd.f32 %v913, %v1009
      %v1020 = vld [vmem:[%s807 + $0x2] sm:$0xff]
      %v1021 = vld [vmem:[%s807 + $0x12] sm:$0xff]
      %v1022 = vld [vmem:[%s807 + $0x22] sm:$0xff]
      %v1023 = vld [vmem:[%s807 + $0x32] sm:$0xff]
      %v1024 = vld [vmem:[%s807 + $0x42] sm:$0xff]
      %v1025 = vld [vmem:[%s807 + $0x52] sm:$0xff]
      %v1026 = vld [vmem:[%s807 + $0x62] sm:$0xff]
      %v1027 = vld [vmem:[%s807 + $0x72] sm:$0xff]
      %v1028 = vpack.c.bf16 %v1021, %v1020
      %v1029 = vpack.c.bf16 %v1023, %v1022
      %v1030 = vpack.c.bf16 %v1025, %v1024
      %v1031 = vpack.c.bf16 %v1027, %v1026
      %s1032 = scalar_lea.vmem %s1, 64
      %v1033 = vld [vmem:[%s1032] sm:$0xf]
      %v1034 = vld [vmem:[%s1032 + $0x4] sm:$0xf]
      %v1037 = vunpack.c.l.b16 %v1033
      %v1038 = vunpack.c.l.b16 %v1034
      %v1039 = vpack.c.b16 %v1038, %v1037
      %v1042 = vsel %vm135, %v1028, 0
      %v1045 = vsel %vm135, %v1029, 0
      %v1048 = vsel %vm135, %v1030, 0
      %v1051 = vsel %vm135, %v1031, 0
      %1053 = vmatprep.subr.bf16.mxu0 0
      %1054 = vmatpush1.bf16.msra.mxu0 %v1039
      %1055 = vmatprep.subr.bf16.mxu0 0
      %1056 = vmatpush1.bf16.msra.mxu0 0
      %1057 = vmatprep.subr.bf16.mxu0 0
      %1058 = vmatpush1.bf16.msra.mxu0 0
      %1059 = vmatprep.subr.bf16.mxu0 0
      %1060 = vmatpush1.bf16.msra.mxu0 0
      %1061 = vmatprep.subr.bf16.mxu0 0
      %1062 = vmatpush1.bf16.msra.mxu0 0
      %1063 = vmatprep.subr.bf16.mxu0 0
      %1064 = vmatpush1.bf16.msra.mxu0 0
      %1065 = vmatprep.subr.bf16.mxu0 0
      %1066 = vmatpush1.bf16.msra.mxu0 0
      %1067 = vmatprep.subr.bf16.mxu0 0
      %1068 = vmatpush1.bf16.msra.mxu0 0
      %1069 = vmatprep.subr.bf16.mxu0 0
      %1070 = vmatpush1.bf16.msra.mxu0 0
      %1071 = vmatprep.subr.bf16.mxu0 0
      %1072 = vmatpush1.bf16.msra.mxu0 0
      %1073 = vmatprep.subr.bf16.mxu0 0
      %1074 = vmatpush1.bf16.msra.mxu0 0
      %1075 = vmatprep.subr.bf16.mxu0 0
      %1076 = vmatpush1.bf16.msra.mxu0 0
      %1077 = vmatprep.subr.bf16.mxu0 0
      %1078 = vmatpush1.bf16.msra.mxu0 0
      %1079 = vmatprep.subr.bf16.mxu0 0
      %1080 = vmatpush1.bf16.msra.mxu0 0
      %1081 = vmatprep.subr.bf16.mxu0 0
      %1082 = vmatpush1.bf16.msra.mxu0 0
      %1083 = vmatprep.subr.bf16.mxu0 0
      %1084 = vmatpush1.bf16.msra.mxu0 0
      %1085 = vmatprep.mubr.bf16.mxu0 0
      %1086 = vmatmul.mubr.bf16.gmra.mrb[0].mxu0 %v1042
      %v1087 = vpop.f32.mrb[0].mxu0
      %v1088 = vadd.f32 0.0, %v1087
      %v1089 = vpop.f32.mrb[0].mxu0
      %v1090 = vpop.f32.mrb[0].mxu0
      %v1091 = vadd.f32 0.0, %v1090
      %v1092 = vpop.f32.mrb[0].mxu0
      %1093 = vmatprep.mubr.bf16.mxu0 0
      %1094 = vmatmul.mubr.bf16.gmra.mrb[0].mxu0 %v1045
      %v1095 = vpop.f32.mrb[0].mxu0
      %v1096 = vadd.f32 0.0, %v1095
      %v1097 = vpop.f32.mrb[0].mxu0
      %v1098 = vpop.f32.mrb[0].mxu0
      %v1099 = vadd.f32 0.0, %v1098
      %v1100 = vpop.f32.mrb[0].mxu0
      %1101 = vmatprep.mubr.bf16.mxu0 0
      %1102 = vmatmul.mubr.bf16.gmra.mrb[0].mxu0 %v1048
      %v1103 = vpop.f32.mrb[0].mxu0
      %v1104 = vadd.f32 0.0, %v1103
      %v1105 = vpop.f32.mrb[0].mxu0
      %v1106 = vpop.f32.mrb[0].mxu0
      %v1107 = vadd.f32 0.0, %v1106
      %v1108 = vpop.f32.mrb[0].mxu0
      %1109 = vmatprep.mubr.bf16.mxu0 0
      %1110 = vmatmul.mubr.bf16.gmra.mrb[0].mxu0 %v1051
      %v1111 = vpop.f32.mrb[0].mxu0
      %v1112 = vadd.f32 0.0, %v1111
      %v1113 = vpop.f32.mrb[0].mxu0
      %v1114 = vpop.f32.mrb[0].mxu0
      %v1115 = vadd.f32 0.0, %v1114
      %v1116 = vpop.f32.mrb[0].mxu0
      %1117 = vdwg.mxu0
      %v1118 = vadd.f32 %v1012, %v1088
      %v1119 = vadd.f32 %v1013, %v1091
      %v1120 = vadd.f32 %v1014, %v1096
      %v1121 = vadd.f32 %v1015, %v1099
      %v1122 = vadd.f32 %v1016, %v1104
      %v1123 = vadd.f32 %v1017, %v1107
      %v1124 = vadd.f32 %v1018, %v1112
      %v1125 = vadd.f32 %v1019, %v1115
      %v1126 = vadd.f32 %v1118, %v1119
      %v1127 = vadd.f32 %v1126, %v1120
      %v1128 = vadd.f32 %v1127, %v1121
      %v1129 = vadd.f32 %v1128, %v1122
      %v1130 = vadd.f32 %v1129, %v1123
      %v1131 = vadd.f32 %v1130, %v1124
      %v1132 = vadd.f32 %v1131, %v1125
      %v1133 = vrot.slane %v1132, 4
      %v1134 = vadd.f32 %v1132, %v1133
      %v1135 = vrot.slane %v1134, 2
      %v1136 = vadd.f32 %v1134, %v1135
      %v1137 = vrot.slane %v1136, 1
      %v1138 = vadd.f32 %v1136, %v1137
      %v1139 = vmul.f32 %v1118, %v1118
      %v1140 = vmul.f32 %v1119, %v1119
      %v1141 = vmul.f32 %v1120, %v1120
      %v1142 = vmul.f32 %v1121, %v1121
      %v1143 = vmul.f32 %v1122, %v1122
      %v1144 = vmul.f32 %v1123, %v1123
      %v1145 = vmul.f32 %v1124, %v1124
      %v1146 = vmul.f32 %v1125, %v1125
      %v1147 = vadd.f32 %v1139, %v1140
      %v1148 = vadd.f32 %v1147, %v1141
      %v1149 = vadd.f32 %v1148, %v1142
      %v1150 = vadd.f32 %v1149, %v1143
      %v1151 = vadd.f32 %v1150, %v1144
      %v1152 = vadd.f32 %v1151, %v1145
      %v1153 = vadd.f32 %v1152, %v1146
      %v1154 = vrot.slane %v1153, 4
      %v1155 = vadd.f32 %v1153, %v1154
      %v1156 = vrot.slane %v1155, 2
      %v1157 = vadd.f32 %v1155, %v1156
      %v1158 = vrot.slane %v1157, 1
      %v1159 = vadd.f32 %v1157, %v1158
      %vm1160 = vcmask 1040384
      %v1161 = vsel %vm1160, %v1138, %v1159
      %v1162 = vld [vmem:[%s2] sm:$0x3]
      %v1163 = vadd.f32 %v1162, %v1161
      %1164 = vst [vmem:[%s2] sm:$0x3] %v1163
      // Predicated region
      $region33: #{search_cell_forward.6} parent=27 // pred_check
        %p1165 = pneg %p73
      $region34: #{search_cell_forward.6} parent=27 // pred_check_branch
        %1167 = sbr.rel (%p1165) target = $region36
      $region35: #{search_cell_forward.6} parent=27 // pred_region
        _
      $region36: #{search_cell_forward.6} parent=27 // pred_fallthru
        _
      // Predicated region
      $region37: #{search_cell_forward.6} parent=27 // pred_check
        %p1168 = pneg %p73
      $region38: #{search_cell_forward.6} parent=27 // pred_check_branch
        %1170 = sbr.rel (%p1168) target = $region40
      $region39: #{search_cell_forward.6} parent=27 // pred_region
        _
      $region40: #{search_cell_forward.6} parent=27 // pred_fallthru
        _
    $region28: #{search_cell_forward.6} parent=5 // pred_fallthru
      _
    %p1171 = scmp.le.s32.totalorder 2, %s8
    // Predicated region
    $region41: #{search_cell_forward.6} parent=5 // pred_check
      %p1172 = pneg %p1171
    $region42: #{search_cell_forward.6} parent=5 // pred_check_branch
      %1174 = sbr.rel (%p1172) target = $region44
    $region43: #{search_cell_forward.6} parent=5 // pred_region
      %s1175 = ssub.s32 %s8, 2
    $region44: #{search_cell_forward.6} parent=5 // pred_fallthru
      _
  $region6: #{search_cell_forward.6} parent=0 // loop_footer
    %s12 = sadd.s32 1, %s8
  $region7: #{search_cell_forward.6} parent=0 // loop_footer_branch
    %7 = sbr.rel target = $region3
  $region8: #{search_cell_forward.6} parent=0 // loop_exit
    _

// kernel: search_cell_forward.11
$region0: #{search_cell_forward.11}
  #allocation0 [shape = 'u32[]', space=smem, size = 0x4, offset = 0x4, fixed_abs, tag = 'smem constant byte address 0x4 - core index']
  #allocation1 [shape = 'u32[144,128]{1,0:T(1,128)}', space=vmem, size = 0x12000, scoped, tag = 'internal scratch']
  #allocation2 [shape = 'f32[1,10,10,16]{3,2,1,0:T(8,128)}', space=vmem, size = 0x14000, scoped, tag = 'scratch operand']
  %s0 = inlined_call_operand.vmem [shape: f32[2,8,8,16], index: 0, kind: input, shape index: {}]
  %s1 = inlined_call_operand.vmem [shape: bf16[9,16,128], index: 1, kind: input, shape index: {}]
  %s2 = inlined_call_operand.vmem [shape: f32[4,128], index: 2, kind: input, shape index: {}]
  %s3 = inlined_call_operand.vmem [shape: f32[1,8,8,1], index: 3, kind: input, shape index: {}]
  %s4 = inlined_call_operand.vmem [shape: f32[2,8,8,16], index: 4, kind: input, shape index: {}, may-alias: {4,5}]
  %s5 = inlined_call_operand.vmem [shape: f32[2,8,8,16], index: 5, kind: output, shape index: {}, may-alias: {4,5}]
  %s6 = sld [smem:[#allocation0]]
  $region53: #{search_cell_forward.11} parent=0
    _
  %s8 = ssub.s32 1, %s6
  %s9 = scalar_select 0, %s8, %s6
  loop: start=0, step=1, limit=4
  $region2: #{search_cell_forward.11} parent=0 // loop_pre_header
    _
  $region3: #{search_cell_forward.11} parent=0 // loop_header
    %s11 = sphi 0, %s15
    %p12 = scmp.ge.s32.totalorder %s11, 4
    %s21 = sphi 0, %s23
    %s24 = sphi 0, %s21
    %s25 = sphi 0, %s24
    %s41 = sphi 0, %s25
    %s45 = sphi 0, %s45
    %s47 = sphi 0, %s45
    %s48 = sphi 0, %s47
    %s62 = sphi 0, %s48
    %s66 = sphi 0, %s66
    %s68 = sphi 0, %s66
    %s69 = sphi 0, %s68
    %s83 = sphi 0, %s69
    %s87 = sphi 0, %s87
    %s89 = sphi 0, %s87
    %s90 = sphi 0, %s89
    %s104 = sphi 0, %s90
    %s110 = sphi 0, %s112
    %s113 = sphi 0, %s110
    %s114 = sphi 0, %s113
    %s130 = sphi 0, %s114
    %s136 = sphi 0, %s138
    %s139 = sphi 0, %s136
    %s140 = sphi 0, %s139
    %s156 = sphi 0, %s140
  $region4: #{search_cell_forward.11} parent=0 // loop_header_branch
    %14 = sbr.rel (%p12) target = $region8
  $region5: #{search_cell_forward.11} parent=0 // loop_body
    %s16 = ssub.s32 %s11, 1
    %s17 = ssub.s32 %s11, 2
    %s18 = sadd.s32 %s11, 1
    %s19 = ssub.s32 %s11, %s18
    %p20 = scmp.eq.s32.totalorder %s19, 0
    %s22 = sadd.s32 %s21, 1
    %s23 = scalar_select %p20, %s21, %s22
    %p26 = pneg %p20
    %p27 = scmp.eq.s32.totalorder %s11, 1
    %p28 = por %p26, %p27
    %p29 = scmp.ne.s32.totalorder %s21, %s24
    %p30 = scmp.eq.s32.totalorder %s11, 0
    %p31 = por %p29, %p30
    %p32 = scmp.ne.s32.totalorder %s21, %s24
    %p33 = scmp.eq.s32.totalorder %s16, 1
    %p34 = por %p32, %p33
    %p35 = scmp.ne.s32.totalorder %s24, %s25
    %p36 = scmp.eq.s32.totalorder %s16, 0
    %p37 = por %p35, %p36
    %p38 = scmp.ne.s32.totalorder %s24, %s25
    %p39 = scmp.eq.s32.totalorder %s17, 1
    %p40 = por %p38, %p39
    %p42 = scmp.ne.s32.totalorder %s25, %s41
    %p43 = scmp.eq.s32.totalorder %s17, 0
    %p44 = por %p42, %p43
    %s46 = sadd.s32 %s45, 1
    %p49 = scmp.eq.s32.totalorder %s11, 1
    %p50 = scmp.ne.s32.totalorder %s45, %s47
    %p51 = scmp.eq.s32.totalorder %s11, 0
    %p52 = por %p50, %p51
    %p53 = scmp.ne.s32.totalorder %s45, %s47
    %p54 = scmp.eq.s32.totalorder %s16, 1
    %p55 = por %p53, %p54
    %p56 = scmp.ne.s32.totalorder %s47, %s48
    %p57 = scmp.eq.s32.totalorder %s16, 0
    %p58 = por %p56, %p57
    %p59 = scmp.ne.s32.totalorder %s47, %s48
    %p60 = scmp.eq.s32.totalorder %s17, 1
    %p61 = por %p59, %p60
    %p63 = scmp.ne.s32.totalorder %s48, %s62
    %p64 = scmp.eq.s32.totalorder %s17, 0
    %p65 = por %p63, %p64
    %s67 = sadd.s32 %s66, 1
    %p70 = scmp.eq.s32.totalorder %s11, 1
    %p71 = scmp.ne.s32.totalorder %s66, %s68
    %p72 = scmp.eq.s32.totalorder %s11, 0
    %p73 = por %p71, %p72
    %p74 = scmp.ne.s32.totalorder %s66, %s68
    %p75 = scmp.eq.s32.totalorder %s16, 1
    %p76 = por %p74, %p75
    %p77 = scmp.ne.s32.totalorder %s68, %s69
    %p78 = scmp.eq.s32.totalorder %s16, 0
    %p79 = por %p77, %p78
    %p80 = scmp.ne.s32.totalorder %s68, %s69
    %p81 = scmp.eq.s32.totalorder %s17, 1
    %p82 = por %p80, %p81
    %p84 = scmp.ne.s32.totalorder %s69, %s83
    %p85 = scmp.eq.s32.totalorder %s17, 0
    %p86 = por %p84, %p85
    %s88 = sadd.s32 %s87, 1
    %p91 = scmp.eq.s32.totalorder %s11, 1
    %p92 = scmp.ne.s32.totalorder %s87, %s89
    %p93 = scmp.eq.s32.totalorder %s11, 0
    %p94 = por %p92, %p93
    %p95 = scmp.ne.s32.totalorder %s87, %s89
    %p96 = scmp.eq.s32.totalorder %s16, 1
    %p97 = por %p95, %p96
    %p98 = scmp.ne.s32.totalorder %s89, %s90
    %p99 = scmp.eq.s32.totalorder %s16, 0
    %p100 = por %p98, %p99
    %p101 = scmp.ne.s32.totalorder %s89, %s90
    %p102 = scmp.eq.s32.totalorder %s17, 1
    %p103 = por %p101, %p102
    %p105 = scmp.ne.s32.totalorder %s90, %s104
    %p106 = scmp.eq.s32.totalorder %s17, 0
    %p107 = por %p105, %p106
    %s108 = ssub.s32 %s11, %s18
    %p109 = scmp.eq.s32.totalorder %s108, 0
    %s111 = sadd.s32 %s110, 1
    %s112 = scalar_select %p109, %s110, %s111
    %p115 = pneg %p109
    %p116 = scmp.eq.s32.totalorder %s11, 1
    %p117 = por %p115, %p116
    %p118 = scmp.ne.s32.totalorder %s110, %s113
    %p119 = scmp.eq.s32.totalorder %s11, 0
    %p120 = por %p118, %p119
    %p121 = scmp.ne.s32.totalorder %s110, %s113
    %p122 = scmp.eq.s32.totalorder %s16, 1
    %p123 = por %p121, %p122
    %p124 = scmp.ne.s32.totalorder %s113, %s114
    %p125 = scmp.eq.s32.totalorder %s16, 0
    %p126 = por %p124, %p125
    %p127 = scmp.ne.s32.totalorder %s113, %s114
    %p128 = scmp.eq.s32.totalorder %s17, 1
    %p129 = por %p127, %p128
    %p131 = scmp.ne.s32.totalorder %s114, %s130
    %p132 = scmp.eq.s32.totalorder %s17, 0
    %p133 = por %p131, %p132
    %s134 = ssub.s32 %s11, %s18
    %p135 = scmp.eq.s32.totalorder %s134, 0
    %s137 = sadd.s32 %s136, 1
    %s138 = scalar_select %p135, %s136, %s137
    %p141 = pneg %p135
    %p142 = scmp.eq.s32.totalorder %s11, 1
    %p143 = por %p141, %p142
    %p144 = scmp.ne.s32.totalorder %s136, %s139
    %p145 = scmp.eq.s32.totalorder %s11, 0
    %p146 = por %p144, %p145
    %p147 = scmp.ne.s32.totalorder %s136, %s139
    %p148 = scmp.eq.s32.totalorder %s16, 1
    %p149 = por %p147, %p148
    %p150 = scmp.ne.s32.totalorder %s139, %s140
    %p151 = scmp.eq.s32.totalorder %s16, 0
    %p152 = por %p150, %p151
    %p153 = scmp.ne.s32.totalorder %s139, %s140
    %p154 = scmp.eq.s32.totalorder %s17, 1
    %p155 = por %p153, %p154
    %p157 = scmp.ne.s32.totalorder %s140, %s156
    %p158 = scmp.eq.s32.totalorder %s17, 0
    %p159 = por %p157, %p158
    %p160 = scmp.le.s32.totalorder 1, %s11
    %p161 = scmp.lt.s32.totalorder %s11, 3
    %p162 = pnand %p160, %p161
    %p163 = pneg %p162
    // Predicated region
    $region9: #{search_cell_forward.11} parent=5 // pred_check
      _
    $region10: #{search_cell_forward.11} parent=5 // pred_check_branch
      %165 = sbr.rel (%p162) target = $region12
    $region11: #{search_cell_forward.11} parent=5 // pred_region
      %s166 = ssub.s32 %s11, 1
      // Predicated region
      $region13: #{search_cell_forward.11} parent=11 // pred_check
        %p167 = pneg %p58
      $region14: #{search_cell_forward.11} parent=11 // pred_check_branch
        %169 = sbr.rel (%p167) target = $region16
      $region15: #{search_cell_forward.11} parent=11 // pred_region
        _
      $region16: #{search_cell_forward.11} parent=11 // pred_fallthru
        _
      // Predicated region
      $region17: #{search_cell_forward.11} parent=11 // pred_check
        %p170 = pneg %p79
      $region18: #{search_cell_forward.11} parent=11 // pred_check_branch
        %172 = sbr.rel (%p170) target = $region20
      $region19: #{search_cell_forward.11} parent=11 // pred_region
        _
      $region20: #{search_cell_forward.11} parent=11 // pred_fallthru
        _
      // Predicated region
      $region21: #{search_cell_forward.11} parent=11 // pred_check
        %p173 = pneg %p100
      $region22: #{search_cell_forward.11} parent=11 // pred_check_branch
        %175 = sbr.rel (%p173) target = $region24
      $region23: #{search_cell_forward.11} parent=11 // pred_region
        _
      $region24: #{search_cell_forward.11} parent=11 // pred_fallthru
        _
    $region12: #{search_cell_forward.11} parent=5 // pred_fallthru
      _
    %p176 = scmp.lt.s32.totalorder %s11, 2
    // Predicated region
    $region25: #{search_cell_forward.11} parent=5 // pred_check
      %p177 = pneg %p176
    $region26: #{search_cell_forward.11} parent=5 // pred_check_branch
      %179 = sbr.rel (%p177) target = $region28
    $region27: #{search_cell_forward.11} parent=5 // pred_region
      // Predicated region
      $region29: #{search_cell_forward.11} parent=27 // pred_check
        %p180 = pneg %p31
      $region30: #{search_cell_forward.11} parent=27 // pred_check_branch
        %182 = sbr.rel (%p180) target = $region32
      $region31: #{search_cell_forward.11} parent=27 // pred_region
        %p183 = scmp.lt.s32.totalorder %s11, 1
        %s184 = scalar_select %p183, %s11, 1
        %s185 = smul.addr %s184, 8
        %s186 = smul.addr %s185, 8
        %s187 = scalar_lea.vmem %s0, %s186
      $region32: #{search_cell_forward.11} parent=27 // pred_fallthru
        _
      // Predicated region
      $region33: #{search_cell_forward.11} parent=27 // pred_check
        %p188 = pneg %p120
      $region34: #{search_cell_forward.11} parent=27 // pred_check_branch
        %190 = sbr.rel (%p188) target = $region36
      $region35: #{search_cell_forward.11} parent=27 // pred_region
        %p191 = scmp.lt.s32.totalorder %s11, 1
        %s192 = scalar_select %p191, %s11, 1
        %s193 = smul.addr %s192, 8
        %s194 = smul.addr %s193, 8
        %s195 = scalar_lea.vmem %s4, %s194
      $region36: #{search_cell_forward.11} parent=27 // pred_fallthru
        _
    $region28: #{search_cell_forward.11} parent=5 // pred_fallthru
      _
    %p196 = scmp.le.s32.totalorder 1, %s11
    %p197 = scmp.lt.s32.totalorder %s11, 3
    %p198 = pnand %p196, %p197
    %p199 = pneg %p198
    // Predicated region
    $region37: #{search_cell_forward.11} parent=5 // pred_check
      _
    $region38: #{search_cell_forward.11} parent=5 // pred_check_branch
      %201 = sbr.rel (%p198) target = $region40
    $region39: #{search_cell_forward.11} parent=5 // pred_region
      %s202 = ssub.s32 %s11, 1
      %p203 = scmp.lt.s32.totalorder %s16, 1
      %s204 = scalar_select %p203, %s16, 1
      %s205 = smul.addr %s204, 8
      %s206 = smul.addr %s205, 8
      %s207 = scalar_lea.vmem %s0, %s206
      %p208 = pneg %p37
      %p209 = pneg %p34
      %p210 = pneg %p58
      %p211 = pneg %p55
      %p212 = pneg %p79
      %p213 = pneg %p76
      %p214 = pneg %p100
      %p215 = pneg %p97
      %p216 = scmp.lt.s32.totalorder %s16, 1
      %s217 = scalar_select %p216, %s16, 1
      %s218 = smul.addr %s217, 8
      %s219 = smul.addr %s218, 8
      %s220 = scalar_lea.vmem %s4, %s219
      %p221 = pneg %p126
      %p222 = pneg %p123
      %p223 = pneg %p152
      %p224 = pneg %p149
      %p225 = scmp.lt.s32.totalorder %s16, 1
      %s226 = scalar_select %p225, %s16, 1
      %s227 = smul.addr %s226, 8
      %s228 = smul.addr %s227, 8
      %s229 = scalar_lea.vmem %s5, %s228
      %p230 = scmp.lt.s32.totalorder %s16, 1
      %s231 = scalar_select %p230, %s16, 1
      %s232 = smul.addr %s231, 8
      %s233 = smul.addr %s232, 8
      %s234 = scalar_lea.vmem %s0, %s233
      %p235 = scmp.lt.s32.totalorder %s16, 1
      %s236 = scalar_select %p235, %s16, 1
      %s237 = smul.addr %s236, 8
      %s238 = smul.addr %s237, 8
      %s239 = scalar_lea.vmem %s4, %s238
      %p240 = scmp.lt.s32.totalorder %s16, 1
      %s241 = scalar_select %p240, %s16, 1
      %s242 = smul.addr %s241, 8
      %s243 = smul.addr %s242, 8
      %s244 = scalar_lea.vmem %s5, %s243
      %vm246 = vcmask 130048
      %247 = vst.msk [vmem:[#allocation2] sm:$0xff] %vm246, 0.0
      %vm248 = vcmask 123904
      %249 = vst.msk [vmem:[#allocation2 + $0x8] sm:$0x3] %vm248, 0.0
      %s250 = scalar_lea.vmem [#allocation2], 144
      %251 = vst.msk [vmem:[%s250] sm:$0xff] %vm246, 0.0
      %252 = vst.msk [vmem:[%s250 + $0x8] sm:$0x3] %vm248, 0.0
      %vm253 = vcmask 122880
      %254 = vst.msk [vmem:[#allocation2] sm:$0x1] %vm253, 0.0
      %255 = vst.msk [vmem:[#allocation2 + $0x10] sm:$0x1] %vm253, 0.0
      %256 = vst.msk [vmem:[#allocation2 + $0x20] sm:$0x1] %vm253, 0.0
      %257 = vst.msk [vmem:[#allocation2 + $0x30] sm:$0x1] %vm253, 0.0
      %258 = vst.msk [vmem:[#allocation2 + $0x40] sm:$0x1] %vm253, 0.0
      %259 = vst.msk [vmem:[#allocation2 + $0x50] sm:$0x1] %vm253, 0.0
      %260 = vst.msk [vmem:[#allocation2 + $0x60] sm:$0x1] %vm253, 0.0
      %261 = vst.msk [vmem:[#allocation2 + $0x70] sm:$0x1] %vm253, 0.0
      %262 = vst.msk [vmem:[#allocation2 + $0x80] sm:$0x1] %vm253, 0.0
      %263 = vst.msk [vmem:[#allocation2 + $0x90] sm:$0x1] %vm253, 0.0
      %264 = vst.msk [vmem:[#allocation2 + $0x9] sm:$0x1] %vm253, 0.0
      %265 = vst.msk [vmem:[#allocation2 + $0x19] sm:$0x1] %vm253, 0.0
      %266 = vst.msk [vmem:[#allocation2 + $0x29] sm:$0x1] %vm253, 0.0
      %267 = vst.msk [vmem:[#allocation2 + $0x39] sm:$0x1] %vm253, 0.0
      %268 = vst.msk [vmem:[#allocation2 + $0x49] sm:$0x1] %vm253, 0.0
      %269 = vst.msk [vmem:[#allocation2 + $0x59] sm:$0x1] %vm253, 0.0
      %270 = vst.msk [vmem:[#allocation2 + $0x69] sm:$0x1] %vm253, 0.0
      %271 = vst.msk [vmem:[#allocation2 + $0x79] sm:$0x1] %vm253, 0.0
      %272 = vst.msk [vmem:[#allocation2 + $0x89] sm:$0x1] %vm253, 0.0
      %273 = vst.msk [vmem:[#allocation2 + $0x99] sm:$0x1] %vm253, 0.0
      %v274 = vld [vmem:[%s234] sm:$0xff]
      %v275 = vld [vmem:[%s234 + $0x8] sm:$0xff]
      %v276 = vld [vmem:[%s234 + $0x10] sm:$0xff]
      %v277 = vld [vmem:[%s234 + $0x18] sm:$0xff]
      %v278 = vld [vmem:[%s234 + $0x20] sm:$0xff]
      %v279 = vld [vmem:[%s234 + $0x28] sm:$0xff]
      %v280 = vld [vmem:[%s234 + $0x30] sm:$0xff]
      %v281 = vld [vmem:[%s234 + $0x38] sm:$0xff]
      %s282 = scalar_lea.vmem [#allocation2], 16
      %283 = vst.msk [vmem:[%s282 + $0x1] sm:$0xff] %vm246, %v274
      %284 = vst.msk [vmem:[%s282 + $0x11] sm:$0xff] %vm246, %v275
      %285 = vst.msk [vmem:[%s282 + $0x21] sm:$0xff] %vm246, %v276
      %286 = vst.msk [vmem:[%s282 + $0x31] sm:$0xff] %vm246, %v277
      %287 = vst.msk [vmem:[%s282 + $0x41] sm:$0xff] %vm246, %v278
      %288 = vst.msk [vmem:[%s282 + $0x51] sm:$0xff] %vm246, %v279
      %289 = vst.msk [vmem:[%s282 + $0x61] sm:$0xff] %vm246, %v280
      %290 = vst.msk [vmem:[%s282 + $0x71] sm:$0xff] %vm246, %v281
      %v291 = vld [vmem:[#allocation2] sm:$0xff]
      %v292 = vld [vmem:[#allocation2 + $0x10] sm:$0xff]
      %v293 = vld [vmem:[#allocation2 + $0x20] sm:$0xff]
      %v294 = vld [vmem:[#allocation2 + $0x30] sm:$0xff]
      %v295 = vld [vmem:[#allocation2 + $0x40] sm:$0xff]
      %v296 = vld [vmem:[#allocation2 + $0x50] sm:$0xff]
      %v297 = vld [vmem:[#allocation2 + $0x60] sm:$0xff]
      %v298 = vld [vmem:[#allocation2 + $0x70] sm:$0xff]
      %v299 = vld [vmem:[#allocation2 + $0x1] sm:$0xff]
      %v300 = vld [vmem:[#allocation2 + $0x11] sm:$0xff]
      %v301 = vld [vmem:[#allocation2 + $0x21] sm:$0xff]
      %v302 = vld [vmem:[#allocation2 + $0x31] sm:$0xff]
      %v303 = vld [vmem:[#allocation2 + $0x41] sm:$0xff]
      %v304 = vld [vmem:[#allocation2 + $0x51] sm:$0xff]
      %v305 = vld [vmem:[#allocation2 + $0x61] sm:$0xff]
      %v306 = vld [vmem:[#allocation2 + $0x71] sm:$0xff]
      %v307 = vadd.f32 %v291, %v299
      %v308 = vadd.f32 %v292, %v300
      %v309 = vadd.f32 %v293, %v301
      %v310 = vadd.f32 %v294, %v302
      %v311 = vadd.f32 %v295, %v303
      %v312 = vadd.f32 %v296, %v304
      %v313 = vadd.f32 %v297, %v305
      %v314 = vadd.f32 %v298, %v306
      %v315 = vld [vmem:[#allocation2 + $0x2] sm:$0xff]
      %v316 = vld [vmem:[#allocation2 + $0x12] sm:$0xff]
      %v317 = vld [vmem:[#allocation2 + $0x22] sm:$0xff]
      %v318 = vld [vmem:[#allocation2 + $0x32] sm:$0xff]
      %v319 = vld [vmem:[#allocation2 + $0x42] sm:$0xff]
      %v320 = vld [vmem:[#allocation2 + $0x52] sm:$0xff]
      %v321 = vld [vmem:[#allocation2 + $0x62] sm:$0xff]
      %v322 = vld [vmem:[#allocation2 + $0x72] sm:$0xff]
      %v323 = vadd.f32 %v307, %v315
      %v324 = vadd.f32 %v308, %v316
      %v325 = vadd.f32 %v309, %v317
      %v326 = vadd.f32 %v310, %v318
      %v327 = vadd.f32 %v311, %v319
      %v328 = vadd.f32 %v312, %v320
      %v329 = vadd.f32 %v313, %v321
      %v330 = vadd.f32 %v314, %v322
      %v331 = vld [vmem:[%s282] sm:$0xff]
      %v332 = vld [vmem:[%s282 + $0x10] sm:$0xff]
      %v333 = vld [vmem:[%s282 + $0x20] sm:$0xff]
      %v334 = vld [vmem:[%s282 + $0x30] sm:$0xff]
      %v335 = vld [vmem:[%s282 + $0x40] sm:$0xff]
      %v336 = vld [vmem:[%s282 + $0x50] sm:$0xff]
      %v337 = vld [vmem:[%s282 + $0x60] sm:$0xff]
      %v338 = vld [vmem:[%s282 + $0x70] sm:$0xff]
      %v339 = vadd.f32 %v323, %v331
      %v340 = vadd.f32 %v324, %v332
      %v341 = vadd.f32 %v325, %v333
      %v342 = vadd.f32 %v326, %v334
      %v343 = vadd.f32 %v327, %v335
      %v344 = vadd.f32 %v328, %v336
      %v345 = vadd.f32 %v329, %v337
      %v346 = vadd.f32 %v330, %v338
      %v347 = vld [vmem:[%s282 + $0x1] sm:$0xff]
      %v348 = vld [vmem:[%s282 + $0x11] sm:$0xff]
      %v349 = vld [vmem:[%s282 + $0x21] sm:$0xff]
      %v350 = vld [vmem:[%s282 + $0x31] sm:$0xff]
      %v351 = vld [vmem:[%s282 + $0x41] sm:$0xff]
      %v352 = vld [vmem:[%s282 + $0x51] sm:$0xff]
      %v353 = vld [vmem:[%s282 + $0x61] sm:$0xff]
      %v354 = vld [vmem:[%s282 + $0x71] sm:$0xff]
      %v355 = vadd.f32 %v339, %v347
      %v356 = vadd.f32 %v340, %v348
      %v357 = vadd.f32 %v341, %v349
      %v358 = vadd.f32 %v342, %v350
      %v359 = vadd.f32 %v343, %v351
      %v360 = vadd.f32 %v344, %v352
      %v361 = vadd.f32 %v345, %v353
      %v362 = vadd.f32 %v346, %v354
      %v363 = vld [vmem:[%s282 + $0x2] sm:$0xff]
      %v364 = vld [vmem:[%s282 + $0x12] sm:$0xff]
      %v365 = vld [vmem:[%s282 + $0x22] sm:$0xff]
      %v366 = vld [vmem:[%s282 + $0x32] sm:$0xff]
      %v367 = vld [vmem:[%s282 + $0x42] sm:$0xff]
      %v368 = vld [vmem:[%s282 + $0x52] sm:$0xff]
      %v369 = vld [vmem:[%s282 + $0x62] sm:$0xff]
      %v370 = vld [vmem:[%s282 + $0x72] sm:$0xff]
      %v371 = vadd.f32 %v355, %v363
      %v372 = vadd.f32 %v356, %v364
      %v373 = vadd.f32 %v357, %v365
      %v374 = vadd.f32 %v358, %v366
      %v375 = vadd.f32 %v359, %v367
      %v376 = vadd.f32 %v360, %v368
      %v377 = vadd.f32 %v361, %v369
      %v378 = vadd.f32 %v362, %v370
      %s379 = scalar_lea.vmem [#allocation2], 32
      %v380 = vld [vmem:[%s379] sm:$0xff]
      %v381 = vld [vmem:[%s379 + $0x10] sm:$0xff]
      %v382 = vld [vmem:[%s379 + $0x20] sm:$0xff]
      %v383 = vld [vmem:[%s379 + $0x30] sm:$0xff]
      %v384 = vld [vmem:[%s379 + $0x40] sm:$0xff]
      %v385 = vld [vmem:[%s379 + $0x50] sm:$0xff]
      %v386 = vld [vmem:[%s379 + $0x60] sm:$0xff]
      %v387 = vld [vmem:[%s379 + $0x70] sm:$0xff]
      %v388 = vadd.f32 %v371, %v380
      %v389 = vadd.f32 %v372, %v381
      %v390 = vadd.f32 %v373, %v382
      %v391 = vadd.f32 %v374, %v383
      %v392 = vadd.f32 %v375, %v384
      %v393 = vadd.f32 %v376, %v385
      %v394 = vadd.f32 %v377, %v386
      %v395 = vadd.f32 %v378, %v387
      %v396 = vld [vmem:[%s379 + $0x1] sm:$0xff]
      %v397 = vld [vmem:[%s379 + $0x11] sm:$0xff]
      %v398 = vld [vmem:[%s379 + $0x21] sm:$0xff]
      %v399 = vld [vmem:[%s379 + $0x31] sm:$0xff]
      %v400 = vld [vmem:[%s379 + $0x41] sm:$0xff]
      %v401 = vld [vmem:[%s379 + $0x51] sm:$0xff]
      %v402 = vld [vmem:[%s379 + $0x61] sm:$0xff]
      %v403 = vld [vmem:[%s379 + $0x71] sm:$0xff]
      %v404 = vadd.f32 %v388, %v396
      %v405 = vadd.f32 %v389, %v397
      %v406 = vadd.f32 %v390, %v398
      %v407 = vadd.f32 %v391, %v399
      %v408 = vadd.f32 %v392, %v400
      %v409 = vadd.f32 %v393, %v401
      %v410 = vadd.f32 %v394, %v402
      %v411 = vadd.f32 %v395, %v403
      %v412 = vld [vmem:[%s379 + $0x2] sm:$0xff]
      %v413 = vld [vmem:[%s379 + $0x12] sm:$0xff]
      %v414 = vld [vmem:[%s379 + $0x22] sm:$0xff]
      %v415 = vld [vmem:[%s379 + $0x32] sm:$0xff]
      %v416 = vld [vmem:[%s379 + $0x42] sm:$0xff]
      %v417 = vld [vmem:[%s379 + $0x52] sm:$0xff]
      %v418 = vld [vmem:[%s379 + $0x62] sm:$0xff]
      %v419 = vld [vmem:[%s379 + $0x72] sm:$0xff]
      %v420 = vadd.f32 %v404, %v412
      %v421 = vadd.f32 %v405, %v413
      %v422 = vadd.f32 %v406, %v414
      %v423 = vadd.f32 %v407, %v415
      %v424 = vadd.f32 %v408, %v416
      %v425 = vadd.f32 %v409, %v417
      %v426 = vadd.f32 %v410, %v418
      %v427 = vadd.f32 %v411, %v419
      %v428 = vld [vmem:[%s3] sm:$0xff]
      %v429 = vld [vmem:[%s3 + $0x8] sm:$0xff]
      %v430 = vld [vmem:[%s3 + $0x10] sm:$0xff]
      %v431 = vld [vmem:[%s3 + $0x18] sm:$0xff]
      %v432 = vld [vmem:[%s3 + $0x20] sm:$0xff]
      %v433 = vld [vmem:[%s3 + $0x28] sm:$0xff]
      %v434 = vld [vmem:[%s3 + $0x30] sm:$0xff]
      %v435 = vld [vmem:[%s3 + $0x38] sm:$0xff]
      %437 = vset.pattern.permute.xlu0 0
      %438 = vperm.xlu0 %437, %v428
      %v439 = vpop.permute.xlu0 %438
      %442 = vset.pattern.permute.xlu0 0
      %443 = vperm.xlu0 %442, %v429
      %v444 = vpop.permute.xlu0 %443
      %447 = vset.pattern.permute.xlu0 0
      %448 = vperm.xlu0 %447, %v430
      %v449 = vpop.permute.xlu0 %448
      %452 = vset.pattern.permute.xlu0 0
      %453 = vperm.xlu0 %452, %v431
      %v454 = vpop.permute.xlu0 %453
      %457 = vset.pattern.permute.xlu0 0
      %458 = vperm.xlu0 %457, %v432
      %v459 = vpop.permute.xlu0 %458
      %462 = vset.pattern.permute.xlu0 0
      %463 = vperm.xlu0 %462, %v433
      %v464 = vpop.permute.xlu0 %463
      %467 = vset.pattern.permute.xlu0 0
      %468 = vperm.xlu0 %467, %v434
      %v469 = vpop.permute.xlu0 %468
      %472 = vset.pattern.permute.xlu0 0
      %473 = vperm.xlu0 %472, %v435
      %v474 = vpop.permute.xlu0 %473
      %v476 = vmul.f32 %v420, %v439
      %v477 = vmul.f32 %v421, %v444
      %v478 = vmul.f32 %v422, %v449
      %v479 = vmul.f32 %v423, %v454
      %v480 = vmul.f32 %v424, %v459
      %v481 = vmul.f32 %v425, %v464
      %v482 = vmul.f32 %v426, %v469
      %v483 = vmul.f32 %v427, %v474
      %v484 = vmax.f32 %v274, 0.0
      %v485 = vmax.f32 %v275, 0.0
      %v486 = vmax.f32 %v276, 0.0
      %v487 = vmax.f32 %v277, 0.0
      %v488 = vmax.f32 %v278, 0.0
      %v489 = vmax.f32 %v279, 0.0
      %v490 = vmax.f32 %v280, 0.0
      %v491 = vmax.f32 %v281, 0.0
      %492 = vst.msk [vmem:[%s282 + $0x1] sm:$0xff] %vm246, %v484
      %493 = vst.msk [vmem:[%s282 + $0x11] sm:$0xff] %vm246, %v485
      %494 = vst.msk [vmem:[%s282 + $0x21] sm:$0xff] %vm246, %v486
      %495 = vst.msk [vmem:[%s282 + $0x31] sm:$0xff] %vm246, %v487
      %496 = vst.msk [vmem:[%s282 + $0x41] sm:$0xff] %vm246, %v488
      %497 = vst.msk [vmem:[%s282 + $0x51] sm:$0xff] %vm246, %v489
      %498 = vst.msk [vmem:[%s282 + $0x61] sm:$0xff] %vm246, %v490
      %499 = vst.msk [vmem:[%s282 + $0x71] sm:$0xff] %vm246, %v491
      %v500 = vld [vmem:[#allocation2] sm:$0xff]
      %v501 = vld [vmem:[#allocation2 + $0x10] sm:$0xff]
      %v502 = vld [vmem:[#allocation2 + $0x20] sm:$0xff]
      %v503 = vld [vmem:[#allocation2 + $0x30] sm:$0xff]
      %v504 = vld [vmem:[#allocation2 + $0x40] sm:$0xff]
      %v505 = vld [vmem:[#allocation2 + $0x50] sm:$0xff]
      %v506 = vld [vmem:[#allocation2 + $0x60] sm:$0xff]
      %v507 = vld [vmem:[#allocation2 + $0x70] sm:$0xff]
      %v508 = vpack.c.bf16 %v501, %v500
      %v509 = vpack.c.bf16 %v503, %v502
      %v510 = vpack.c.bf16 %v505, %v504
      %v511 = vpack.c.bf16 %v507, %v506
      %v512 = vld [vmem:[%s1] sm:$0xf]
      %v513 = vld [vmem:[%s1 + $0x4] sm:$0xf]
      %v514 = vld [vmem:[#allocation2 + $0x1] sm:$0xff]
      %v515 = vld [vmem:[#allocation2 + $0x11] sm:$0xff]
      %v516 = vld [vmem:[#allocation2 + $0x21] sm:$0xff]
      %v517 = vld [vmem:[#allocation2 + $0x31] sm:$0xff]
      %v518 = vld [vmem:[#allocation2 + $0x41] sm:$0xff]
      %v519 = vld [vmem:[#allocation2 + $0x51] sm:$0xff]
      %v520 = vld [vmem:[#allocation2 + $0x61] sm:$0xff]
      %v521 = vld [vmem:[#allocation2 + $0x71] sm:$0xff]
      %v522 = vpack.c.bf16 %v515, %v514
      %v523 = vpack.c.bf16 %v517, %v516
      %v524 = vpack.c.bf16 %v519, %v518
      %v525 = vpack.c.bf16 %v521, %v520
      %s526 = scalar_lea.vmem %s1, 8
      %v527 = vld [vmem:[%s526] sm:$0xf]
      %v528 = vld [vmem:[%s526 + $0x4] sm:$0xf]
      %v531 = vunpack.c.l.b16 %v527
      %v532 = vunpack.c.l.b16 %v528
      %v533 = vpack.c.b16 %v532, %v531
      %v536 = vsel %vm246, %v522, 0
      %v539 = vsel %vm246, %v523, 0
      %v542 = vsel %vm246, %v524, 0
      %v545 = vsel %vm246, %v525, 0
      %547 = vmatprep.subr.bf16.mxu0 0
      %548 = vmatpush1.bf16.msra.mxu0 %v533
      %549 = vmatprep.subr.bf16.mxu0 0
      %550 = vmatpush1.bf16.msra.mxu0 0
      %551 = vmatprep.subr.bf16.mxu0 0
      %552 = vmatpush1.bf16.msra.mxu0 0
      %553 = vmatprep.subr.bf16.mxu0 0
      %554 = vmatpush1.bf16.msra.mxu0 0
      %555 = vmatprep.subr.bf16.mxu0 0
      %556 = vmatpush1.bf16.msra.mxu0 0
      %557 = vmatprep.subr.bf16.mxu0 0
      %558 = vmatpush1.bf16.msra.mxu0 0
      %559 = vmatprep.subr.bf16.mxu0 0
      %560 = vmatpush1.bf16.msra.mxu0 0
      %561 = vmatprep.subr.bf16.mxu0 0
      %562 = vmatpush1.bf16.msra.mxu0 0
      %563 = vmatprep.subr.bf16.mxu0 0
      %564 = vmatpush1.bf16.msra.mxu0 0
      %565 = vmatprep.subr.bf16.mxu0 0
      %566 = vmatpush1.bf16.msra.mxu0 0
      %567 = vmatprep.subr.bf16.mxu0 0
      %568 = vmatpush1.bf16.msra.mxu0 0
      %569 = vmatprep.subr.bf16.mxu0 0
      %570 = vmatpush1.bf16.msra.mxu0 0
      %571 = vmatprep.subr.bf16.mxu0 0
      %572 = vmatpush1.bf16.msra.mxu0 0
      %573 = vmatprep.subr.bf16.mxu0 0
      %574 = vmatpush1.bf16.msra.mxu0 0
      %575 = vmatprep.subr.bf16.mxu0 0
      %576 = vmatpush1.bf16.msra.mxu0 0
      %577 = vmatprep.subr.bf16.mxu0 0
      %578 = vmatpush1.bf16.msra.mxu0 0
      %579 = vmatprep.mubr.bf16.mxu0 0
      %580 = vmatmul.mubr.bf16.gmra.mrb[0].mxu0 %v536
      %v581 = vpop.f32.mrb[0].mxu0
      %v582 = vadd.f32 0.0, %v581
      %v583 = vpop.f32.mrb[0].mxu0
      %v584 = vpop.f32.mrb[0].mxu0
      %v585 = vadd.f32 0.0, %v584
      %v586 = vpop.f32.mrb[0].mxu0
      %587 = vmatprep.mubr.bf16.mxu0 0
      %588 = vmatmul.mubr.bf16.gmra.mrb[0].mxu0 %v539
      %v589 = vpop.f32.mrb[0].mxu0
      %v590 = vadd.f32 0.0, %v589
      %v591 = vpop.f32.mrb[0].mxu0
      %v592 = vpop.f32.mrb[0].mxu0
      %v593 = vadd.f32 0.0, %v592
      %v594 = vpop.f32.mrb[0].mxu0
      %595 = vmatprep.mubr.bf16.mxu0 0
      %596 = vmatmul.mubr.bf16.gmra.mrb[0].mxu0 %v542
      %v597 = vpop.f32.mrb[0].mxu0
      %v598 = vadd.f32 0.0, %v597
      %v599 = vpop.f32.mrb[0].mxu0
      %v600 = vpop.f32.mrb[0].mxu0
      %v601 = vadd.f32 0.0, %v600
      %v602 = vpop.f32.mrb[0].mxu0
      %603 = vmatprep.mubr.bf16.mxu0 0
      %604 = vmatmul.mubr.bf16.gmra.mrb[0].mxu0 %v545
      %v605 = vpop.f32.mrb[0].mxu0
      %v606 = vadd.f32 0.0, %v605
      %v607 = vpop.f32.mrb[0].mxu0
      %v608 = vpop.f32.mrb[0].mxu0
      %v609 = vadd.f32 0.0, %v608
      %v610 = vpop.f32.mrb[0].mxu0
      %611 = vdwg.mxu0
      %v614 = vunpack.c.l.b16 %v512
      %v615 = vunpack.c.l.b16 %v513
      %v616 = vpack.c.b16 %v615, %v614
      %v619 = vsel %vm246, %v508, 0
      %v622 = vsel %vm246, %v509, 0
      %v625 = vsel %vm246, %v510, 0
      %v628 = vsel %vm246, %v511, 0
      %630 = vmatprep.subr.bf16.mxu0 0
      %631 = vmatpush1.bf16.msra.mxu0 %v616
      %632 = vmatprep.subr.bf16.mxu0 0
      %633 = vmatpush1.bf16.msra.mxu0 0
      %634 = vmatprep.subr.bf16.mxu0 0
      %635 = vmatpush1.bf16.msra.mxu0 0
      %636 = vmatprep.subr.bf16.mxu0 0
      %637 = vmatpush1.bf16.msra.mxu0 0
      %638 = vmatprep.subr.bf16.mxu0 0
      %639 = vmatpush1.bf16.msra.mxu0 0
      %640 = vmatprep.subr.bf16.mxu0 0
      %641 = vmatpush1.bf16.msra.mxu0 0
      %642 = vmatprep.subr.bf16.mxu0 0
      %643 = vmatpush1.bf16.msra.mxu0 0
      %644 = vmatprep.subr.bf16.mxu0 0
      %645 = vmatpush1.bf16.msra.mxu0 0
      %646 = vmatprep.subr.bf16.mxu0 0
      %647 = vmatpush1.bf16.msra.mxu0 0
      %648 = vmatprep.subr.bf16.mxu0 0
      %649 = vmatpush1.bf16.msra.mxu0 0
      %650 = vmatprep.subr.bf16.mxu0 0
      %651 = vmatpush1.bf16.msra.mxu0 0
      %652 = vmatprep.subr.bf16.mxu0 0
      %653 = vmatpush1.bf16.msra.mxu0 0
      %654 = vmatprep.subr.bf16.mxu0 0
      %655 = vmatpush1.bf16.msra.mxu0 0
      %656 = vmatprep.subr.bf16.mxu0 0
      %657 = vmatpush1.bf16.msra.mxu0 0
      %658 = vmatprep.subr.bf16.mxu0 0
      %659 = vmatpush1.bf16.msra.mxu0 0
      %660 = vmatprep.subr.bf16.mxu0 0
      %661 = vmatpush1.bf16.msra.mxu0 0
      %662 = vmatprep.mubr.bf16.mxu0 0
      %663 = vmatmul.mubr.bf16.gmra.mrb[0].mxu0 %v619
      %v664 = vpop.f32.mrb[0].mxu0
      %v665 = vadd.f32 %v582, %v664
      %v666 = vpop.f32.mrb[0].mxu0
      %v667 = vpop.f32.mrb[0].mxu0
      %v668 = vadd.f32 %v585, %v667
      %v669 = vpop.f32.mrb[0].mxu0
      %670 = vmatprep.mubr.bf16.mxu0 0
      %671 = vmatmul.mubr.bf16.gmra.mrb[0].mxu0 %v622
      %v672 = vpop.f32.mrb[0].mxu0
      %v673 = vadd.f32 %v590, %v672
      %v674 = vpop.f32.mrb[0].mxu0
      %v675 = vpop.f32.mrb[0].mxu0
      %v676 = vadd.f32 %v593, %v675
      %v677 = vpop.f32.mrb[0].mxu0
      %678 = vmatprep.mubr.bf16.mxu0 0
      %679 = vmatmul.mubr.bf16.gmra.mrb[0].mxu0 %v625
      %v680 = vpop.f32.mrb[0].mxu0
      %v681 = vadd.f32 %v598, %v680
      %v682 = vpop.f32.mrb[0].mxu0
      %v683 = vpop.f32.mrb[0].mxu0
      %v684 = vadd.f32 %v601, %v683
      %v685 = vpop.f32.mrb[0].mxu0
      %686 = vmatprep.mubr.bf16.mxu0 0
      %687 = vmatmul.mubr.bf16.gmra.mrb[0].mxu0 %v628
      %v688 = vpop.f32.mrb[0].mxu0
      %v689 = vadd.f32 %v606, %v688
      %v690 = vpop.f32.mrb[0].mxu0
      %v691 = vpop.f32.mrb[0].mxu0
      %v692 = vadd.f32 %v609, %v691
      %v693 = vpop.f32.mrb[0].mxu0
      %694 = vdwg.mxu0
      %v695 = vld [vmem:[#allocation2 + $0x2] sm:$0xff]
      %v696 = vld [vmem:[#allocation2 + $0x12] sm:$0xff]
      %v697 = vld [vmem:[#allocation2 + $0x22] sm:$0xff]
      %v698 = vld [vmem:[#allocation2 + $0x32] sm:$0xff]
      %v699 = vld [vmem:[#allocation2 + $0x42] sm:$0xff]
      %v700 = vld [vmem:[#allocation2 + $0x52] sm:$0xff]
      %v701 = vld [vmem:[#allocation2 + $0x62] sm:$0xff]
      %v702 = vld [vmem:[#allocation2 + $0x72] sm:$0xff]
      %v703 = vpack.c.bf16 %v696, %v695
      %v704 = vpack.c.bf16 %v698, %v697
      %v705 = vpack.c.bf16 %v700, %v699
      %v706 = vpack.c.bf16 %v702, %v701
      %s707 = scalar_lea.vmem %s1, 16
      %v708 = vld [vmem:[%s707] sm:$0xf]
      %v709 = vld [vmem:[%s707 + $0x4] sm:$0xf]
      %v712 = vunpack.c.l.b16 %v708
      %v713 = vunpack.c.l.b16 %v709
      %v714 = vpack.c.b16 %v713, %v712
      %v717 = vsel %vm246, %v703, 0
      %v720 = vsel %vm246, %v704, 0
      %v723 = vsel %vm246, %v705, 0
      %v726 = vsel %vm246, %v706, 0
      %728 = vmatprep.subr.bf16.mxu0 0
      %729 = vmatpush1.bf16.msra.mxu0 %v714
      %730 = vmatprep.subr.bf16.mxu0 0
      %731 = vmatpush1.bf16.msra.mxu0 0
      %732 = vmatprep.subr.bf16.mxu0 0
      %733 = vmatpush1.bf16.msra.mxu0 0
      %734 = vmatprep.subr.bf16.mxu0 0
      %735 = vmatpush1.bf16.msra.mxu0 0
      %736 = vmatprep.subr.bf16.mxu0 0
      %737 = vmatpush1.bf16.msra.mxu0 0
      %738 = vmatprep.subr.bf16.mxu0 0
      %739 = vmatpush1.bf16.msra.mxu0 0
      %740 = vmatprep.subr.bf16.mxu0 0
      %741 = vmatpush1.bf16.msra.mxu0 0
      %742 = vmatprep.subr.bf16.mxu0 0
      %743 = vmatpush1.bf16.msra.mxu0 0
      %744 = vmatprep.subr.bf16.mxu0 0
      %745 = vmatpush1.bf16.msra.mxu0 0
      %746 = vmatprep.subr.bf16.mxu0 0
      %747 = vmatpush1.bf16.msra.mxu0 0
      %748 = vmatprep.subr.bf16.mxu0 0
      %749 = vmatpush1.bf16.msra.mxu0 0
      %750 = vmatprep.subr.bf16.mxu0 0
      %751 = vmatpush1.bf16.msra.mxu0 0
      %752 = vmatprep.subr.bf16.mxu0 0
      %753 = vmatpush1.bf16.msra.mxu0 0
      %754 = vmatprep.subr.bf16.mxu0 0
      %755 = vmatpush1.bf16.msra.mxu0 0
      %756 = vmatprep.subr.bf16.mxu0 0
      %757 = vmatpush1.bf16.msra.mxu0 0
      %758 = vmatprep.subr.bf16.mxu0 0
      %759 = vmatpush1.bf16.msra.mxu0 0
      %760 = vmatprep.mubr.bf16.mxu0 0
      %761 = vmatmul.mubr.bf16.gmra.mrb[0].mxu0 %v717
      %v762 = vpop.f32.mrb[0].mxu0
      %v763 = vadd.f32 0.0, %v762
      %v764 = vpop.f32.mrb[0].mxu0
      %v765 = vpop.f32.mrb[0].mxu0
      %v766 = vadd.f32 0.0, %v765
      %v767 = vpop.f32.mrb[0].mxu0
      %768 = vmatprep.mubr.bf16.mxu0 0
      %769 = vmatmul.mubr.bf16.gmra.mrb[0].mxu0 %v720
      %v770 = vpop.f32.mrb[0].mxu0
      %v771 = vadd.f32 0.0, %v770
      %v772 = vpop.f32.mrb[0].mxu0
      %v773 = vpop.f32.mrb[0].mxu0
      %v774 = vadd.f32 0.0, %v773
      %v775 = vpop.f32.mrb[0].mxu0
      %776 = vmatprep.mubr.bf16.mxu0 0
      %777 = vmatmul.mubr.bf16.gmra.mrb[0].mxu0 %v723
      %v778 = vpop.f32.mrb[0].mxu0
      %v779 = vadd.f32 0.0, %v778
      %v780 = vpop.f32.mrb[0].mxu0
      %v781 = vpop.f32.mrb[0].mxu0
      %v782 = vadd.f32 0.0, %v781
      %v783 = vpop.f32.mrb[0].mxu0
      %784 = vmatprep.mubr.bf16.mxu0 0
      %785 = vmatmul.mubr.bf16.gmra.mrb[0].mxu0 %v726
      %v786 = vpop.f32.mrb[0].mxu0
      %v787 = vadd.f32 0.0, %v786
      %v788 = vpop.f32.mrb[0].mxu0
      %v789 = vpop.f32.mrb[0].mxu0
      %v790 = vadd.f32 0.0, %v789
      %v791 = vpop.f32.mrb[0].mxu0
      %792 = vdwg.mxu0
      %v793 = vadd.f32 %v665, %v763
      %v794 = vadd.f32 %v668, %v766
      %v795 = vadd.f32 %v673, %v771
      %v796 = vadd.f32 %v676, %v774
      %v797 = vadd.f32 %v681, %v779
      %v798 = vadd.f32 %v684, %v782
      %v799 = vadd.f32 %v689, %v787
      %v800 = vadd.f32 %v692, %v790
      %v801 = vld [vmem:[%s282] sm:$0xff]
      %v802 = vld [vmem:[%s282 + $0x10] sm:$0xff]
      %v803 = vld [vmem:[%s282 + $0x20] sm:$0xff]
      %v804 = vld [vmem:[%s282 + $0x30] sm:$0xff]
      %v805 = vld [vmem:[%s282 + $0x40] sm:$0xff]
      %v806 = vld [vmem:[%s282 + $0x50] sm:$0xff]
      %v807 = vld [vmem:[%s282 + $0x60] sm:$0xff]
      %v808 = vld [vmem:[%s282 + $0x70] sm:$0xff]
      %v809 = vpack.c.bf16 %v802, %v801
      %v810 = vpack.c.bf16 %v804, %v803
      %v811 = vpack.c.bf16 %v806, %v805
      %v812 = vpack.c.bf16 %v808, %v807
      %s813 = scalar_lea.vmem %s1, 24
      %v814 = vld [vmem:[%s813] sm:$0xf]
      %v815 = vld [vmem:[%s813 + $0x4] sm:$0xf]
      %v818 = vunpack.c.l.b16 %v814
      %v819 = vunpack.c.l.b16 %v815
      %v820 = vpack.c.b16 %v819, %v818
      %v823 = vsel %vm246, %v809, 0
      %v826 = vsel %vm246, %v810, 0
      %v829 = vsel %vm246, %v811, 0
      %v832 = vsel %vm246, %v812, 0
      %834 = vmatprep.subr.bf16.mxu0 0
      %835 = vmatpush1.bf16.msra.mxu0 %v820
      %836 = vmatprep.subr.bf16.mxu0 0
      %837 = vmatpush1.bf16.msra.mxu0 0
      %838 = vmatprep.subr.bf16.mxu0 0
      %839 = vmatpush1.bf16.msra.mxu0 0
      %840 = vmatprep.subr.bf16.mxu0 0
      %841 = vmatpush1.bf16.msra.mxu0 0
      %842 = vmatprep.subr.bf16.mxu0 0
      %843 = vmatpush1.bf16.msra.mxu0 0
      %844 = vmatprep.subr.bf16.mxu0 0
      %845 = vmatpush1.bf16.msra.mxu0 0
      %846 = vmatprep.subr.bf16.mxu0 0
      %847 = vmatpush1.bf16.msra.mxu0 0
      %848 = vmatprep.subr.bf16.mxu0 0
      %849 = vmatpush1.bf16.msra.mxu0 0
      %850 = vmatprep.subr.bf16.mxu0 0
      %851 = vmatpush1.bf16.msra.mxu0 0
      %852 = vmatprep.subr.bf16.mxu0 0
      %853 = vmatpush1.bf16.msra.mxu0 0
      %854 = vmatprep.subr.bf16.mxu0 0
      %855 = vmatpush1.bf16.msra.mxu0 0
      %856 = vmatprep.subr.bf16.mxu0 0
      %857 = vmatpush1.bf16.msra.mxu0 0
      %858 = vmatprep.subr.bf16.mxu0 0
      %859 = vmatpush1.bf16.msra.mxu0 0
      %860 = vmatprep.subr.bf16.mxu0 0
      %861 = vmatpush1.bf16.msra.mxu0 0
      %862 = vmatprep.subr.bf16.mxu0 0
      %863 = vmatpush1.bf16.msra.mxu0 0
      %864 = vmatprep.subr.bf16.mxu0 0
      %865 = vmatpush1.bf16.msra.mxu0 0
      %866 = vmatprep.mubr.bf16.mxu0 0
      %867 = vmatmul.mubr.bf16.gmra.mrb[0].mxu0 %v823
      %v868 = vpop.f32.mrb[0].mxu0
      %v869 = vadd.f32 0.0, %v868
      %v870 = vpop.f32.mrb[0].mxu0
      %v871 = vpop.f32.mrb[0].mxu0
      %v872 = vadd.f32 0.0, %v871
      %v873 = vpop.f32.mrb[0].mxu0
      %874 = vmatprep.mubr.bf16.mxu0 0
      %875 = vmatmul.mubr.bf16.gmra.mrb[0].mxu0 %v826
      %v876 = vpop.f32.mrb[0].mxu0
      %v877 = vadd.f32 0.0, %v876
      %v878 = vpop.f32.mrb[0].mxu0
      %v879 = vpop.f32.mrb[0].mxu0
      %v880 = vadd.f32 0.0, %v879
      %v881 = vpop.f32.mrb[0].mxu0
      %882 = vmatprep.mubr.bf16.mxu0 0
      %883 = vmatmul.mubr.bf16.gmra.mrb[0].mxu0 %v829
      %v884 = vpop.f32.mrb[0].mxu0
      %v885 = vadd.f32 0.0, %v884
      %v886 = vpop.f32.mrb[0].mxu0
      %v887 = vpop.f32.mrb[0].mxu0
      %v888 = vadd.f32 0.0, %v887
      %v889 = vpop.f32.mrb[0].mxu0
      %890 = vmatprep.mubr.bf16.mxu0 0
      %891 = vmatmul.mubr.bf16.gmra.mrb[0].mxu0 %v832
      %v892 = vpop.f32.mrb[0].mxu0
      %v893 = vadd.f32 0.0, %v892
      %v894 = vpop.f32.mrb[0].mxu0
      %v895 = vpop.f32.mrb[0].mxu0
      %v896 = vadd.f32 0.0, %v895
      %v897 = vpop.f32.mrb[0].mxu0
      %898 = vdwg.mxu0
      %v899 = vadd.f32 %v793, %v869
      %v900 = vadd.f32 %v794, %v872
      %v901 = vadd.f32 %v795, %v877
      %v902 = vadd.f32 %v796, %v880
      %v903 = vadd.f32 %v797, %v885
      %v904 = vadd.f32 %v798, %v888
      %v905 = vadd.f32 %v799, %v893
      %v906 = vadd.f32 %v800, %v896
      %v907 = vld [vmem:[%s282 + $0x1] sm:$0xff]
      %v908 = vld [vmem:[%s282 + $0x11] sm:$0xff]
      %v909 = vld [vmem:[%s282 + $0x21] sm:$0xff]
      %v910 = vld [vmem:[%s282 + $0x31] sm:$0xff]
      %v911 = vld [vmem:[%s282 + $0x41] sm:$0xff]
      %v912 = vld [vmem:[%s282 + $0x51] sm:$0xff]
      %v913 = vld [vmem:[%s282 + $0x61] sm:$0xff]
      %v914 = vld [vmem:[%s282 + $0x71] sm:$0xff]
      %v915 = vpack.c.bf16 %v908, %v907
      %v916 = vpack.c.bf16 %v910, %v909
      %v917 = vpack.c.bf16 %v912, %v911
      %v918 = vpack.c.bf16 %v914, %v913
      %s919 = scalar_lea.vmem %s1, 32
      %v920 = vld [vmem:[%s919] sm:$0xf]
      %v921 = vld [vmem:[%s919 + $0x4] sm:$0xf]
      %v924 = vunpack.c.l.b16 %v920
      %v925 = vunpack.c.l.b16 %v921
      %v926 = vpack.c.b16 %v925, %v924
      %v929 = vsel %vm246, %v915, 0
      %v932 = vsel %vm246, %v916, 0
      %v935 = vsel %vm246, %v917, 0
      %v938 = vsel %vm246, %v918, 0
      %940 = vmatprep.subr.bf16.mxu0 0
      %941 = vmatpush1.bf16.msra.mxu0 %v926
      %942 = vmatprep.subr.bf16.mxu0 0
      %943 = vmatpush1.bf16.msra.mxu0 0
      %944 = vmatprep.subr.bf16.mxu0 0
      %945 = vmatpush1.bf16.msra.mxu0 0
      %946 = vmatprep.subr.bf16.mxu0 0
      %947 = vmatpush1.bf16.msra.mxu0 0
      %948 = vmatprep.subr.bf16.mxu0 0
      %949 = vmatpush1.bf16.msra.mxu0 0
      %950 = vmatprep.subr.bf16.mxu0 0
      %951 = vmatpush1.bf16.msra.mxu0 0
      %952 = vmatprep.subr.bf16.mxu0 0
      %953 = vmatpush1.bf16.msra.mxu0 0
      %954 = vmatprep.subr.bf16.mxu0 0
      %955 = vmatpush1.bf16.msra.mxu0 0
      %956 = vmatprep.subr.bf16.mxu0 0
      %957 = vmatpush1.bf16.msra.mxu0 0
      %958 = vmatprep.subr.bf16.mxu0 0
      %959 = vmatpush1.bf16.msra.mxu0 0
      %960 = vmatprep.subr.bf16.mxu0 0
      %961 = vmatpush1.bf16.msra.mxu0 0
      %962 = vmatprep.subr.bf16.mxu0 0
      %963 = vmatpush1.bf16.msra.mxu0 0
      %964 = vmatprep.subr.bf16.mxu0 0
      %965 = vmatpush1.bf16.msra.mxu0 0
      %966 = vmatprep.subr.bf16.mxu0 0
      %967 = vmatpush1.bf16.msra.mxu0 0
      %968 = vmatprep.subr.bf16.mxu0 0
      %969 = vmatpush1.bf16.msra.mxu0 0
      %970 = vmatprep.subr.bf16.mxu0 0
      %971 = vmatpush1.bf16.msra.mxu0 0
      %972 = vmatprep.mubr.bf16.mxu0 0
      %973 = vmatmul.mubr.bf16.gmra.mrb[0].mxu0 %v929
      %v974 = vpop.f32.mrb[0].mxu0
      %v975 = vadd.f32 0.0, %v974
      %v976 = vpop.f32.mrb[0].mxu0
      %v977 = vpop.f32.mrb[0].mxu0
      %v978 = vadd.f32 0.0, %v977
      %v979 = vpop.f32.mrb[0].mxu0
      %980 = vmatprep.mubr.bf16.mxu0 0
      %981 = vmatmul.mubr.bf16.gmra.mrb[0].mxu0 %v932
      %v982 = vpop.f32.mrb[0].mxu0
      %v983 = vadd.f32 0.0, %v982
      %v984 = vpop.f32.mrb[0].mxu0
      %v985 = vpop.f32.mrb[0].mxu0
      %v986 = vadd.f32 0.0, %v985
      %v987 = vpop.f32.mrb[0].mxu0
      %988 = vmatprep.mubr.bf16.mxu0 0
      %989 = vmatmul.mubr.bf16.gmra.mrb[0].mxu0 %v935
      %v990 = vpop.f32.mrb[0].mxu0
      %v991 = vadd.f32 0.0, %v990
      %v992 = vpop.f32.mrb[0].mxu0
      %v993 = vpop.f32.mrb[0].mxu0
      %v994 = vadd.f32 0.0, %v993
      %v995 = vpop.f32.mrb[0].mxu0
      %996 = vmatprep.mubr.bf16.mxu0 0
      %997 = vmatmul.mubr.bf16.gmra.mrb[0].mxu0 %v938
      %v998 = vpop.f32.mrb[0].mxu0
      %v999 = vadd.f32 0.0, %v998
      %v1000 = vpop.f32.mrb[0].mxu0
      %v1001 = vpop.f32.mrb[0].mxu0
      %v1002 = vadd.f32 0.0, %v1001
      %v1003 = vpop.f32.mrb[0].mxu0
      %1004 = vdwg.mxu0
      %v1005 = vadd.f32 %v899, %v975
      %v1006 = vadd.f32 %v900, %v978
      %v1007 = vadd.f32 %v901, %v983
      %v1008 = vadd.f32 %v902, %v986
      %v1009 = vadd.f32 %v903, %v991
      %v1010 = vadd.f32 %v904, %v994
      %v1011 = vadd.f32 %v905, %v999
      %v1012 = vadd.f32 %v906, %v1002
      %v1013 = vld [vmem:[%s282 + $0x2] sm:$0xff]
      %v1014 = vld [vmem:[%s282 + $0x12] sm:$0xff]
      %v1015 = vld [vmem:[%s282 + $0x22] sm:$0xff]
      %v1016 = vld [vmem:[%s282 + $0x32] sm:$0xff]
      %v1017 = vld [vmem:[%s282 + $0x42] sm:$0xff]
      %v1018 = vld [vmem:[%s282 + $0x52] sm:$0xff]
      %v1019 = vld [vmem:[%s282 + $0x62] sm:$0xff]
      %v1020 = vld [vmem:[%s282 + $0x72] sm:$0xff]
      %v1021 = vpack.c.bf16 %v1014, %v1013
      %v1022 = vpack.c.bf16 %v1016, %v1015
      %v1023 = vpack.c.bf16 %v1018, %v1017
      %v1024 = vpack.c.bf16 %v1020, %v1019
      %s1025 = scalar_lea.vmem %s1, 40
      %v1026 = vld [vmem:[%s1025] sm:$0xf]
      %v1027 = vld [vmem:[%s1025 + $0x4] sm:$0xf]
      %v1030 = vunpack.c.l.b16 %v1026
      %v1031 = vunpack.c.l.b16 %v1027
      %v1032 = vpack.c.b16 %v1031, %v1030
      %v1035 = vsel %vm246, %v1021, 0
      %v1038 = vsel %vm246, %v1022, 0
      %v1041 = vsel %vm246, %v1023, 0
      %v1044 = vsel %vm246, %v1024, 0
      %1046 = vmatprep.subr.bf16.mxu0 0
      %1047 = vmatpush1.bf16.msra.mxu0 %v1032
      %1048 = vmatprep.subr.bf16.mxu0 0
      %1049 = vmatpush1.bf16.msra.mxu0 0
      %1050 = vmatprep.subr.bf16.mxu0 0
      %1051 = vmatpush1.bf16.msra.mxu0 0
      %1052 = vmatprep.subr.bf16.mxu0 0
      %1053 = vmatpush1.bf16.msra.mxu0 0
      %1054 = vmatprep.subr.bf16.mxu0 0
      %1055 = vmatpush1.bf16.msra.mxu0 0
      %1056 = vmatprep.subr.bf16.mxu0 0
      %1057 = vmatpush1.bf16.msra.mxu0 0
      %1058 = vmatprep.subr.bf16.mxu0 0
      %1059 = vmatpush1.bf16.msra.mxu0 0
      %1060 = vmatprep.subr.bf16.mxu0 0
      %1061 = vmatpush1.bf16.msra.mxu0 0
      %1062 = vmatprep.subr.bf16.mxu0 0
      %1063 = vmatpush1.bf16.msra.mxu0 0
      %1064 = vmatprep.subr.bf16.mxu0 0
      %1065 = vmatpush1.bf16.msra.mxu0 0
      %1066 = vmatprep.subr.bf16.mxu0 0
      %1067 = vmatpush1.bf16.msra.mxu0 0
      %1068 = vmatprep.subr.bf16.mxu0 0
      %1069 = vmatpush1.bf16.msra.mxu0 0
      %1070 = vmatprep.subr.bf16.mxu0 0
      %1071 = vmatpush1.bf16.msra.mxu0 0
      %1072 = vmatprep.subr.bf16.mxu0 0
      %1073 = vmatpush1.bf16.msra.mxu0 0
      %1074 = vmatprep.subr.bf16.mxu0 0
      %1075 = vmatpush1.bf16.msra.mxu0 0
      %1076 = vmatprep.subr.bf16.mxu0 0
      %1077 = vmatpush1.bf16.msra.mxu0 0
      %1078 = vmatprep.mubr.bf16.mxu0 0
      %1079 = vmatmul.mubr.bf16.gmra.mrb[0].mxu0 %v1035
      %v1080 = vpop.f32.mrb[0].mxu0
      %v1081 = vadd.f32 0.0, %v1080
      %v1082 = vpop.f32.mrb[0].mxu0
      %v1083 = vpop.f32.mrb[0].mxu0
      %v1084 = vadd.f32 0.0, %v1083
      %v1085 = vpop.f32.mrb[0].mxu0
      %1086 = vmatprep.mubr.bf16.mxu0 0
      %1087 = vmatmul.mubr.bf16.gmra.mrb[0].mxu0 %v1038
      %v1088 = vpop.f32.mrb[0].mxu0
      %v1089 = vadd.f32 0.0, %v1088
      %v1090 = vpop.f32.mrb[0].mxu0
      %v1091 = vpop.f32.mrb[0].mxu0
      %v1092 = vadd.f32 0.0, %v1091
      %v1093 = vpop.f32.mrb[0].mxu0
      %1094 = vmatprep.mubr.bf16.mxu0 0
      %1095 = vmatmul.mubr.bf16.gmra.mrb[0].mxu0 %v1041
      %v1096 = vpop.f32.mrb[0].mxu0
      %v1097 = vadd.f32 0.0, %v1096
      %v1098 = vpop.f32.mrb[0].mxu0
      %v1099 = vpop.f32.mrb[0].mxu0
      %v1100 = vadd.f32 0.0, %v1099
      %v1101 = vpop.f32.mrb[0].mxu0
      %1102 = vmatprep.mubr.bf16.mxu0 0
      %1103 = vmatmul.mubr.bf16.gmra.mrb[0].mxu0 %v1044
      %v1104 = vpop.f32.mrb[0].mxu0
      %v1105 = vadd.f32 0.0, %v1104
      %v1106 = vpop.f32.mrb[0].mxu0
      %v1107 = vpop.f32.mrb[0].mxu0
      %v1108 = vadd.f32 0.0, %v1107
      %v1109 = vpop.f32.mrb[0].mxu0
      %1110 = vdwg.mxu0
      %v1111 = vadd.f32 %v1005, %v1081
      %v1112 = vadd.f32 %v1006, %v1084
      %v1113 = vadd.f32 %v1007, %v1089
      %v1114 = vadd.f32 %v1008, %v1092
      %v1115 = vadd.f32 %v1009, %v1097
      %v1116 = vadd.f32 %v1010, %v1100
      %v1117 = vadd.f32 %v1011, %v1105
      %v1118 = vadd.f32 %v1012, %v1108
      %v1119 = vld [vmem:[%s379] sm:$0xff]
      %v1120 = vld [vmem:[%s379 + $0x10] sm:$0xff]
      %v1121 = vld [vmem:[%s379 + $0x20] sm:$0xff]
      %v1122 = vld [vmem:[%s379 + $0x30] sm:$0xff]
      %v1123 = vld [vmem:[%s379 + $0x40] sm:$0xff]
      %v1124 = vld [vmem:[%s379 + $0x50] sm:$0xff]
      %v1125 = vld [vmem:[%s379 + $0x60] sm:$0xff]
      %v1126 = vld [vmem:[%s379 + $0x70] sm:$0xff]
      %v1127 = vpack.c.bf16 %v1120, %v1119
      %v1128 = vpack.c.bf16 %v1122, %v1121
      %v1129 = vpack.c.bf16 %v1124, %v1123
      %v1130 = vpack.c.bf16 %v1126, %v1125
      %s1131 = scalar_lea.vmem %s1, 48
      %v1132 = vld [vmem:[%s1131] sm:$0xf]
      %v1133 = vld [vmem:[%s1131 + $0x4] sm:$0xf]
      %v1136 = vunpack.c.l.b16 %v1132
      %v1137 = vunpack.c.l.b16 %v1133
      %v1138 = vpack.c.b16 %v1137, %v1136
      %v1141 = vsel %vm246, %v1127, 0
      %v1144 = vsel %vm246, %v1128, 0
      %v1147 = vsel %vm246, %v1129, 0
      %v1150 = vsel %vm246, %v1130, 0
      %1152 = vmatprep.subr.bf16.mxu0 0
      %1153 = vmatpush1.bf16.msra.mxu0 %v1138
      %1154 = vmatprep.subr.bf16.mxu0 0
      %1155 = vmatpush1.bf16.msra.mxu0 0
      %1156 = vmatprep.subr.bf16.mxu0 0
      %1157 = vmatpush1.bf16.msra.mxu0 0
      %1158 = vmatprep.subr.bf16.mxu0 0
      %1159 = vmatpush1.bf16.msra.mxu0 0
      %1160 = vmatprep.subr.bf16.mxu0 0
      %1161 = vmatpush1.bf16.msra.mxu0 0
      %1162 = vmatprep.subr.bf16.mxu0 0
      %1163 = vmatpush1.bf16.msra.mxu0 0
      %1164 = vmatprep.subr.bf16.mxu0 0
      %1165 = vmatpush1.bf16.msra.mxu0 0
      %1166 = vmatprep.subr.bf16.mxu0 0
      %1167 = vmatpush1.bf16.msra.mxu0 0
      %1168 = vmatprep.subr.bf16.mxu0 0
      %1169 = vmatpush1.bf16.msra.mxu0 0
      %1170 = vmatprep.subr.bf16.mxu0 0
      %1171 = vmatpush1.bf16.msra.mxu0 0
      %1172 = vmatprep.subr.bf16.mxu0 0
      %1173 = vmatpush1.bf16.msra.mxu0 0
      %1174 = vmatprep.subr.bf16.mxu0 0
      %1175 = vmatpush1.bf16.msra.mxu0 0
      %1176 = vmatprep.subr.bf16.mxu0 0
      %1177 = vmatpush1.bf16.msra.mxu0 0
      %1178 = vmatprep.subr.bf16.mxu0 0
      %1179 = vmatpush1.bf16.msra.mxu0 0
      %1180 = vmatprep.subr.bf16.mxu0 0
      %1181 = vmatpush1.bf16.msra.mxu0 0
      %1182 = vmatprep.subr.bf16.mxu0 0
      %1183 = vmatpush1.bf16.msra.mxu0 0
      %1184 = vmatprep.mubr.bf16.mxu0 0
      %1185 = vmatmul.mubr.bf16.gmra.mrb[0].mxu0 %v1141
      %v1186 = vpop.f32.mrb[0].mxu0
      %v1187 = vadd.f32 0.0, %v1186
      %v1188 = vpop.f32.mrb[0].mxu0
      %v1189 = vpop.f32.mrb[0].mxu0
      %v1190 = vadd.f32 0.0, %v1189
      %v1191 = vpop.f32.mrb[0].mxu0
      %1192 = vmatprep.mubr.bf16.mxu0 0
      %1193 = vmatmul.mubr.bf16.gmra.mrb[0].mxu0 %v1144
      %v1194 = vpop.f32.mrb[0].mxu0
      %v1195 = vadd.f32 0.0, %v1194
      %v1196 = vpop.f32.mrb[0].mxu0
      %v1197 = vpop.f32.mrb[0].mxu0
      %v1198 = vadd.f32 0.0, %v1197
      %v1199 = vpop.f32.mrb[0].mxu0
      %1200 = vmatprep.mubr.bf16.mxu0 0
      %1201 = vmatmul.mubr.bf16.gmra.mrb[0].mxu0 %v1147
      %v1202 = vpop.f32.mrb[0].mxu0
      %v1203 = vadd.f32 0.0, %v1202
      %v1204 = vpop.f32.mrb[0].mxu0
      %v1205 = vpop.f32.mrb[0].mxu0
      %v1206 = vadd.f32 0.0, %v1205
      %v1207 = vpop.f32.mrb[0].mxu0
      %1208 = vmatprep.mubr.bf16.mxu0 0
      %1209 = vmatmul.mubr.bf16.gmra.mrb[0].mxu0 %v1150
      %v1210 = vpop.f32.mrb[0].mxu0
      %v1211 = vadd.f32 0.0, %v1210
      %v1212 = vpop.f32.mrb[0].mxu0
      %v1213 = vpop.f32.mrb[0].mxu0
      %v1214 = vadd.f32 0.0, %v1213
      %v1215 = vpop.f32.mrb[0].mxu0
      %1216 = vdwg.mxu0
      %v1217 = vadd.f32 %v1111, %v1187
      %v1218 = vadd.f32 %v1112, %v1190
      %v1219 = vadd.f32 %v1113, %v1195
      %v1220 = vadd.f32 %v1114, %v1198
      %v1221 = vadd.f32 %v1115, %v1203
      %v1222 = vadd.f32 %v1116, %v1206
      %v1223 = vadd.f32 %v1117, %v1211
      %v1224 = vadd.f32 %v1118, %v1214
      %v1225 = vld [vmem:[%s379 + $0x1] sm:$0xff]
      %v1226 = vld [vmem:[%s379 + $0x11] sm:$0xff]
      %v1227 = vld [vmem:[%s379 + $0x21] sm:$0xff]
      %v1228 = vld [vmem:[%s379 + $0x31] sm:$0xff]
      %v1229 = vld [vmem:[%s379 + $0x41] sm:$0xff]
      %v1230 = vld [vmem:[%s379 + $0x51] sm:$0xff]
      %v1231 = vld [vmem:[%s379 + $0x61] sm:$0xff]
      %v1232 = vld [vmem:[%s379 + $0x71] sm:$0xff]
      %v1233 = vpack.c.bf16 %v1226, %v1225
      %v1234 = vpack.c.bf16 %v1228, %v1227
      %v1235 = vpack.c.bf16 %v1230, %v1229
      %v1236 = vpack.c.bf16 %v1232, %v1231
      %s1237 = scalar_lea.vmem %s1, 56
      %v1238 = vld [vmem:[%s1237] sm:$0xf]
      %v1239 = vld [vmem:[%s1237 + $0x4] sm:$0xf]
      %v1242 = vunpack.c.l.b16 %v1238
      %v1243 = vunpack.c.l.b16 %v1239
      %v1244 = vpack.c.b16 %v1243, %v1242
      %v1247 = vsel %vm246, %v1233, 0
      %v1250 = vsel %vm246, %v1234, 0
      %v1253 = vsel %vm246, %v1235, 0
      %v1256 = vsel %vm246, %v1236, 0
      %1258 = vmatprep.subr.bf16.mxu0 0
      %1259 = vmatpush1.bf16.msra.mxu0 %v1244
      %1260 = vmatprep.subr.bf16.mxu0 0
      %1261 = vmatpush1.bf16.msra.mxu0 0
      %1262 = vmatprep.subr.bf16.mxu0 0
      %1263 = vmatpush1.bf16.msra.mxu0 0
      %1264 = vmatprep.subr.bf16.mxu0 0
      %1265 = vmatpush1.bf16.msra.mxu0 0
      %1266 = vmatprep.subr.bf16.mxu0 0
      %1267 = vmatpush1.bf16.msra.mxu0 0
      %1268 = vmatprep.subr.bf16.mxu0 0
      %1269 = vmatpush1.bf16.msra.mxu0 0
      %1270 = vmatprep.subr.bf16.mxu0 0
      %1271 = vmatpush1.bf16.msra.mxu0 0
      %1272 = vmatprep.subr.bf16.mxu0 0
      %1273 = vmatpush1.bf16.msra.mxu0 0
      %1274 = vmatprep.subr.bf16.mxu0 0
      %1275 = vmatpush1.bf16.msra.mxu0 0
      %1276 = vmatprep.subr.bf16.mxu0 0
      %1277 = vmatpush1.bf16.msra.mxu0 0
      %1278 = vmatprep.subr.bf16.mxu0 0
      %1279 = vmatpush1.bf16.msra.mxu0 0
      %1280 = vmatprep.subr.bf16.mxu0 0
      %1281 = vmatpush1.bf16.msra.mxu0 0
      %1282 = vmatprep.subr.bf16.mxu0 0
      %1283 = vmatpush1.bf16.msra.mxu0 0
      %1284 = vmatprep.subr.bf16.mxu0 0
      %1285 = vmatpush1.bf16.msra.mxu0 0
      %1286 = vmatprep.subr.bf16.mxu0 0
      %1287 = vmatpush1.bf16.msra.mxu0 0
      %1288 = vmatprep.subr.bf16.mxu0 0
      %1289 = vmatpush1.bf16.msra.mxu0 0
      %1290 = vmatprep.mubr.bf16.mxu0 0
      %1291 = vmatmul.mubr.bf16.gmra.mrb[0].mxu0 %v1247
      %v1292 = vpop.f32.mrb[0].mxu0
      %v1293 = vadd.f32 0.0, %v1292
      %v1294 = vpop.f32.mrb[0].mxu0
      %v1295 = vpop.f32.mrb[0].mxu0
      %v1296 = vadd.f32 0.0, %v1295
      %v1297 = vpop.f32.mrb[0].mxu0
      %1298 = vmatprep.mubr.bf16.mxu0 0
      %1299 = vmatmul.mubr.bf16.gmra.mrb[0].mxu0 %v1250
      %v1300 = vpop.f32.mrb[0].mxu0
      %v1301 = vadd.f32 0.0, %v1300
      %v1302 = vpop.f32.mrb[0].mxu0
      %v1303 = vpop.f32.mrb[0].mxu0
      %v1304 = vadd.f32 0.0, %v1303
      %v1305 = vpop.f32.mrb[0].mxu0
      %1306 = vmatprep.mubr.bf16.mxu0 0
      %1307 = vmatmul.mubr.bf16.gmra.mrb[0].mxu0 %v1253
      %v1308 = vpop.f32.mrb[0].mxu0
      %v1309 = vadd.f32 0.0, %v1308
      %v1310 = vpop.f32.mrb[0].mxu0
      %v1311 = vpop.f32.mrb[0].mxu0
      %v1312 = vadd.f32 0.0, %v1311
      %v1313 = vpop.f32.mrb[0].mxu0
      %1314 = vmatprep.mubr.bf16.mxu0 0
      %1315 = vmatmul.mubr.bf16.gmra.mrb[0].mxu0 %v1256
      %v1316 = vpop.f32.mrb[0].mxu0
      %v1317 = vadd.f32 0.0, %v1316
      %v1318 = vpop.f32.mrb[0].mxu0
      %v1319 = vpop.f32.mrb[0].mxu0
      %v1320 = vadd.f32 0.0, %v1319
      %v1321 = vpop.f32.mrb[0].mxu0
      %1322 = vdwg.mxu0
      %v1323 = vadd.f32 %v1217, %v1293
      %v1324 = vadd.f32 %v1218, %v1296
      %v1325 = vadd.f32 %v1219, %v1301
      %v1326 = vadd.f32 %v1220, %v1304
      %v1327 = vadd.f32 %v1221, %v1309
      %v1328 = vadd.f32 %v1222, %v1312
      %v1329 = vadd.f32 %v1223, %v1317
      %v1330 = vadd.f32 %v1224, %v1320
      %v1331 = vld [vmem:[%s379 + $0x2] sm:$0xff]
      %v1332 = vld [vmem:[%s379 + $0x12] sm:$0xff]
      %v1333 = vld [vmem:[%s379 + $0x22] sm:$0xff]
      %v1334 = vld [vmem:[%s379 + $0x32] sm:$0xff]
      %v1335 = vld [vmem:[%s379 + $0x42] sm:$0xff]
      %v1336 = vld [vmem:[%s379 + $0x52] sm:$0xff]
      %v1337 = vld [vmem:[%s379 + $0x62] sm:$0xff]
      %v1338 = vld [vmem:[%s379 + $0x72] sm:$0xff]
      %v1339 = vpack.c.bf16 %v1332, %v1331
      %v1340 = vpack.c.bf16 %v1334, %v1333
      %v1341 = vpack.c.bf16 %v1336, %v1335
      %v1342 = vpack.c.bf16 %v1338, %v1337
      %s1343 = scalar_lea.vmem %s1, 64
      %v1344 = vld [vmem:[%s1343] sm:$0xf]
      %v1345 = vld [vmem:[%s1343 + $0x4] sm:$0xf]
      %v1348 = vunpack.c.l.b16 %v1344
      %v1349 = vunpack.c.l.b16 %v1345
      %v1350 = vpack.c.b16 %v1349, %v1348
      %v1353 = vsel %vm246, %v1339, 0
      %v1356 = vsel %vm246, %v1340, 0
      %v1359 = vsel %vm246, %v1341, 0
      %v1362 = vsel %vm246, %v1342, 0
      %1364 = vmatprep.subr.bf16.mxu0 0
      %1365 = vmatpush1.bf16.msra.mxu0 %v1350
      %1366 = vmatprep.subr.bf16.mxu0 0
      %1367 = vmatpush1.bf16.msra.mxu0 0
      %1368 = vmatprep.subr.bf16.mxu0 0
      %1369 = vmatpush1.bf16.msra.mxu0 0
      %1370 = vmatprep.subr.bf16.mxu0 0
      %1371 = vmatpush1.bf16.msra.mxu0 0
      %1372 = vmatprep.subr.bf16.mxu0 0
      %1373 = vmatpush1.bf16.msra.mxu0 0
      %1374 = vmatprep.subr.bf16.mxu0 0
      %1375 = vmatpush1.bf16.msra.mxu0 0
      %1376 = vmatprep.subr.bf16.mxu0 0
      %1377 = vmatpush1.bf16.msra.mxu0 0
      %1378 = vmatprep.subr.bf16.mxu0 0
      %1379 = vmatpush1.bf16.msra.mxu0 0
      %1380 = vmatprep.subr.bf16.mxu0 0
      %1381 = vmatpush1.bf16.msra.mxu0 0
      %1382 = vmatprep.subr.bf16.mxu0 0
      %1383 = vmatpush1.bf16.msra.mxu0 0
      %1384 = vmatprep.subr.bf16.mxu0 0
      %1385 = vmatpush1.bf16.msra.mxu0 0
      %1386 = vmatprep.subr.bf16.mxu0 0
      %1387 = vmatpush1.bf16.msra.mxu0 0
      %1388 = vmatprep.subr.bf16.mxu0 0
      %1389 = vmatpush1.bf16.msra.mxu0 0
      %1390 = vmatprep.subr.bf16.mxu0 0
      %1391 = vmatpush1.bf16.msra.mxu0 0
      %1392 = vmatprep.subr.bf16.mxu0 0
      %1393 = vmatpush1.bf16.msra.mxu0 0
      %1394 = vmatprep.subr.bf16.mxu0 0
      %1395 = vmatpush1.bf16.msra.mxu0 0
      %1396 = vmatprep.mubr.bf16.mxu0 0
      %1397 = vmatmul.mubr.bf16.gmra.mrb[0].mxu0 %v1353
      %v1398 = vpop.f32.mrb[0].mxu0
      %v1399 = vadd.f32 0.0, %v1398
      %v1400 = vpop.f32.mrb[0].mxu0
      %v1401 = vpop.f32.mrb[0].mxu0
      %v1402 = vadd.f32 0.0, %v1401
      %v1403 = vpop.f32.mrb[0].mxu0
      %1404 = vmatprep.mubr.bf16.mxu0 0
      %1405 = vmatmul.mubr.bf16.gmra.mrb[0].mxu0 %v1356
      %v1406 = vpop.f32.mrb[0].mxu0
      %v1407 = vadd.f32 0.0, %v1406
      %v1408 = vpop.f32.mrb[0].mxu0
      %v1409 = vpop.f32.mrb[0].mxu0
      %v1410 = vadd.f32 0.0, %v1409
      %v1411 = vpop.f32.mrb[0].mxu0
      %1412 = vmatprep.mubr.bf16.mxu0 0
      %1413 = vmatmul.mubr.bf16.gmra.mrb[0].mxu0 %v1359
      %v1414 = vpop.f32.mrb[0].mxu0
      %v1415 = vadd.f32 0.0, %v1414
      %v1416 = vpop.f32.mrb[0].mxu0
      %v1417 = vpop.f32.mrb[0].mxu0
      %v1418 = vadd.f32 0.0, %v1417
      %v1419 = vpop.f32.mrb[0].mxu0
      %1420 = vmatprep.mubr.bf16.mxu0 0
      %1421 = vmatmul.mubr.bf16.gmra.mrb[0].mxu0 %v1362
      %v1422 = vpop.f32.mrb[0].mxu0
      %v1423 = vadd.f32 0.0, %v1422
      %v1424 = vpop.f32.mrb[0].mxu0
      %v1425 = vpop.f32.mrb[0].mxu0
      %v1426 = vadd.f32 0.0, %v1425
      %v1427 = vpop.f32.mrb[0].mxu0
      %1428 = vdwg.mxu0
      %v1429 = vadd.f32 %v1323, %v1399
      %v1430 = vadd.f32 %v1324, %v1402
      %v1431 = vadd.f32 %v1325, %v1407
      %v1432 = vadd.f32 %v1326, %v1410
      %v1433 = vadd.f32 %v1327, %v1415
      %v1434 = vadd.f32 %v1328, %v1418
      %v1435 = vadd.f32 %v1329, %v1423
      %v1436 = vadd.f32 %v1330, %v1426
      %v1437 = vld [vmem:[%s2] sm:$0x1]
      %v1438 = vlaneseq
      %v1439 = vshrl.u32 %v1438, 7
      %v1440 = vsub.s32 0, %v1439
      %v1441 = vrot.slane %v1437, %v1440
      %v1442 = vmul.f32 %v1429, %v1441
      %v1443 = vmul.f32 %v1430, %v1441
      %v1444 = vmul.f32 %v1431, %v1441
      %v1445 = vmul.f32 %v1432, %v1441
      %v1446 = vmul.f32 %v1433, %v1441
      %v1447 = vmul.f32 %v1434, %v1441
      %v1448 = vmul.f32 %v1435, %v1441
      %v1449 = vmul.f32 %v1436, %v1441
      %v1450 = vld [vmem:[%s2 + $0x1] sm:$0x1]
      %v1451 = vlaneseq
      %v1452 = vshrl.u32 %v1451, 7
      %v1453 = vsub.s32 0, %v1452
      %v1454 = vrot.slane %v1450, %v1453
      %v1455 = vadd.f32 %v1442, %v1454
      %v1456 = vadd.f32 %v1443, %v1454
      %v1457 = vadd.f32 %v1444, %v1454
      %v1458 = vadd.f32 %v1445, %v1454
      %v1459 = vadd.f32 %v1446, %v1454
      %v1460 = vadd.f32 %v1447, %v1454
      %v1461 = vadd.f32 %v1448, %v1454
      %v1462 = vadd.f32 %v1449, %v1454
      %1471 = vrot.lane.b32.xlu0 %v1455, 112
      %v1472 = vpop.permute.xlu0 %1471
      %1473 = vrot.lane.b32.xlu0 %v1456, 112
      %v1474 = vpop.permute.xlu0 %1473
      %1475 = vrot.lane.b32.xlu0 %v1457, 112
      %v1476 = vpop.permute.xlu0 %1475
      %1477 = vrot.lane.b32.xlu0 %v1458, 112
      %v1478 = vpop.permute.xlu0 %1477
      %1479 = vrot.lane.b32.xlu0 %v1459, 112
      %v1480 = vpop.permute.xlu0 %1479
      %1481 = vrot.lane.b32.xlu0 %v1460, 112
      %v1482 = vpop.permute.xlu0 %1481
      %1483 = vrot.lane.b32.xlu0 %v1461, 112
      %v1484 = vpop.permute.xlu0 %1483
      %1485 = vrot.lane.b32.xlu0 %v1462, 112
      %v1486 = vpop.permute.xlu0 %1485
      %v1495 = vadd.f32 %v1455, %v1472
      %v1496 = vadd.f32 %v1456, %v1474
      %v1497 = vadd.f32 %v1457, %v1476
      %v1498 = vadd.f32 %v1458, %v1478
      %v1499 = vadd.f32 %v1459, %v1480
      %v1500 = vadd.f32 %v1460, %v1482
      %v1501 = vadd.f32 %v1461, %v1484
      %v1502 = vadd.f32 %v1462, %v1486
      %v1503 = vld [vmem:[%s2 + $0x2] sm:$0x1]
      %v1504 = vlaneseq
      %v1505 = vshrl.u32 %v1504, 7
      %v1506 = vsub.s32 0, %v1505
      %v1507 = vrot.slane %v1503, %v1506
      %v1508 = vmul.f32 %v274, %v1507
      %v1509 = vmul.f32 %v275, %v1507
      %v1510 = vmul.f32 %v276, %v1507
      %v1511 = vmul.f32 %v277, %v1507
      %v1512 = vmul.f32 %v278, %v1507
      %v1513 = vmul.f32 %v279, %v1507
      %v1514 = vmul.f32 %v280, %v1507
      %v1515 = vmul.f32 %v281, %v1507
      %v1516 = vadd.f32 %v1495, %v1508
      %v1517 = vadd.f32 %v1496, %v1509
      %v1518 = vadd.f32 %v1497, %v1510
      %v1519 = vadd.f32 %v1498, %v1511
      %v1520 = vadd.f32 %v1499, %v1512
      %v1521 = vadd.f32 %v1500, %v1513
      %v1522 = vadd.f32 %v1501, %v1514
      %v1523 = vadd.f32 %v1502, %v1515
      %v1524 = vld [vmem:[%s2 + $0x3] sm:$0x1]
      %v1525 = vlaneseq
      %v1526 = vshrl.u32 %v1525, 7
      %v1527 = vsub.s32 0, %v1526
      %v1528 = vrot.slane %v1524, %v1527
      %v1529 = vmul.f32 %v476, %v1528
      %v1530 = vmul.f32 %v477, %v1528
      %v1531 = vmul.f32 %v478, %v1528
      %v1532 = vmul.f32 %v479, %v1528
      %v1533 = vmul.f32 %v480, %v1528
      %v1534 = vmul.f32 %v481, %v1528
      %v1535 = vmul.f32 %v482, %v1528
      %v1536 = vmul.f32 %v483, %v1528
      %v1537 = vadd.f32 %v1516, %v1529
      %v1538 = vadd.f32 %v1517, %v1530
      %v1539 = vadd.f32 %v1518, %v1531
      %v1540 = vadd.f32 %v1519, %v1532
      %v1541 = vadd.f32 %v1520, %v1533
      %v1542 = vadd.f32 %v1521, %v1534
      %v1543 = vadd.f32 %v1522, %v1535
      %v1544 = vadd.f32 %v1523, %v1536
      %v1545 = vld [vmem:[%s239] sm:$0xff]
      %v1546 = vld [vmem:[%s239 + $0x8] sm:$0xff]
      %v1547 = vld [vmem:[%s239 + $0x10] sm:$0xff]
      %v1548 = vld [vmem:[%s239 + $0x18] sm:$0xff]
      %v1549 = vld [vmem:[%s239 + $0x20] sm:$0xff]
      %v1550 = vld [vmem:[%s239 + $0x28] sm:$0xff]
      %v1551 = vld [vmem:[%s239 + $0x30] sm:$0xff]
      %v1552 = vld [vmem:[%s239 + $0x38] sm:$0xff]
      %v1553 = vadd.f32 %v1545, %v1537
      %v1554 = vadd.f32 %v1546, %v1538
      %v1555 = vadd.f32 %v1547, %v1539
      %v1556 = vadd.f32 %v1548, %v1540
      %v1557 = vadd.f32 %v1549, %v1541
      %v1558 = vadd.f32 %v1550, %v1542
      %v1559 = vadd.f32 %v1551, %v1543
      %v1560 = vadd.f32 %v1552, %v1544
      %1561 = vst.msk [vmem:[%s244] sm:$0xff] %vm246, %v1553
      %1562 = vst.msk [vmem:[%s244 + $0x8] sm:$0xff] %vm246, %v1554
      %1563 = vst.msk [vmem:[%s244 + $0x10] sm:$0xff] %vm246, %v1555
      %1564 = vst.msk [vmem:[%s244 + $0x18] sm:$0xff] %vm246, %v1556
      %1565 = vst.msk [vmem:[%s244 + $0x20] sm:$0xff] %vm246, %v1557
      %1566 = vst.msk [vmem:[%s244 + $0x28] sm:$0xff] %vm246, %v1558
      %1567 = vst.msk [vmem:[%s244 + $0x30] sm:$0xff] %vm246, %v1559
      %1568 = vst.msk [vmem:[%s244 + $0x38] sm:$0xff] %vm246, %v1560
      %p1569 = scmp.lt.s32.totalorder %s16, 1
      %s1570 = scalar_select %p1569, %s16, 1
      %s1571 = smul.addr %s1570, 8
      %s1572 = smul.addr %s1571, 8
      %s1573 = scalar_lea.vmem %s5, %s1572
      // Predicated region
      $region41: #{search_cell_forward.11} parent=39 // pred_check
        %p1574 = pneg %p149
      $region42: #{search_cell_forward.11} parent=39 // pred_check_branch
        %1576 = sbr.rel (%p1574) target = $region44
      $region43: #{search_cell_forward.11} parent=39 // pred_region
        _
      $region44: #{search_cell_forward.11} parent=39 // pred_fallthru
        _
    $region40: #{search_cell_forward.11} parent=5 // pred_fallthru
      _
    %p1577 = scmp.le.s32.totalorder 2, %s11
    // Predicated region
    $region45: #{search_cell_forward.11} parent=5 // pred_check
      %p1578 = pneg %p1577
    $region46: #{search_cell_forward.11} parent=5 // pred_check_branch
      %1580 = sbr.rel (%p1578) target = $region48
    $region47: #{search_cell_forward.11} parent=5 // pred_region
      %s1581 = ssub.s32 %s11, 2
      // Predicated region
      $region49: #{search_cell_forward.11} parent=47 // pred_check
        %p1582 = pneg %p155
      $region50: #{search_cell_forward.11} parent=47 // pred_check_branch
        %1584 = sbr.rel (%p1582) target = $region52
      $region51: #{search_cell_forward.11} parent=47 // pred_region
        %p1585 = scmp.lt.s32.totalorder %s17, 1
        %s1586 = scalar_select %p1585, %s17, 1
        %s1587 = smul.addr %s1586, 8
        %s1588 = smul.addr %s1587, 8
        %s1589 = scalar_lea.vmem %s5, %s1588
      $region52: #{search_cell_forward.11} parent=47 // pred_fallthru
        _
    $region48: #{search_cell_forward.11} parent=5 // pred_fallthru
      _
  $region6: #{search_cell_forward.11} parent=0 // loop_footer
    %s15 = sadd.s32 1, %s11
  $region7: #{search_cell_forward.11} parent=0 // loop_footer_branch
    %10 = sbr.rel target = $region3
  $region8: #{search_cell_forward.11} parent=0 // loop_exit
    _

// kernel: search_cell_forward.7
$region0: #{search_cell_forward.7}
  #allocation0 [shape = 'u32[]', space=smem, size = 0x4, offset = 0x4, fixed_abs, tag = 'smem constant byte address 0x4 - core index']
  #allocation1 [shape = 'u32[144,128]{1,0:T(1,128)}', space=vmem, size = 0x12000, scoped, tag = 'internal scratch']
  #allocation2 [shape = 'f32[1,10,10,16]{3,2,1,0:T(8,128)}', space=vmem, size = 0x14000, scoped, tag = 'scratch operand']
  %s0 = inlined_call_operand.vmem [shape: f32[2,8,8,16], index: 0, kind: input, shape index: {}]
  %s1 = inlined_call_operand.vmem [shape: bf16[9,16,128], index: 1, kind: input, shape index: {}]
  %s2 = inlined_call_operand.vmem [shape: f32[4,128], index: 2, kind: input, shape index: {}]
  %s3 = inlined_call_operand.vmem [shape: f32[1,8,8,1], index: 3, kind: input, shape index: {}]
  %s4 = inlined_call_operand.vmem [shape: f32[2,8,8,16], index: 4, kind: output, shape index: {0}]
  %s5 = inlined_call_operand.vmem [shape: f32[2,8,8,16], index: 5, kind: output, shape index: {1}]
  %s6 = inlined_call_operand.vmem [shape: f32[2,8,8,16], index: 6, kind: output, shape index: {2}]
  %7 = xla_tuple %s4, %s5, %s6
  %s8 = sld [smem:[#allocation0]]
  $region65: #{search_cell_forward.7} parent=0
    _
  %s10 = ssub.s32 1, %s8
  %s11 = scalar_select 0, %s10, %s8
  loop: start=0, step=1, limit=4
  $region2: #{search_cell_forward.7} parent=0 // loop_pre_header
    _
  $region3: #{search_cell_forward.7} parent=0 // loop_header
    %s13 = sphi 0, %s17
    %p14 = scmp.ge.s32.totalorder %s13, 4
    %s23 = sphi 0, %s25
    %s26 = sphi 0, %s23
    %s27 = sphi 0, %s26
    %s43 = sphi 0, %s27
    %s47 = sphi 0, %s47
    %s49 = sphi 0, %s47
    %s50 = sphi 0, %s49
    %s64 = sphi 0, %s50
    %s68 = sphi 0, %s68
    %s70 = sphi 0, %s68
    %s71 = sphi 0, %s70
    %s85 = sphi 0, %s71
    %s89 = sphi 0, %s89
    %s91 = sphi 0, %s89
    %s92 = sphi 0, %s91
    %s106 = sphi 0, %s92
    %s112 = sphi 0, %s114
    %s115 = sphi 0, %s112
    %s116 = sphi 0, %s115
    %s132 = sphi 0, %s116
    %s138 = sphi 0, %s140
    %s141 = sphi 0, %s138
    %s142 = sphi 0, %s141
    %s158 = sphi 0, %s142
    %s164 = sphi 0, %s166
    %s167 = sphi 0, %s164
    %s168 = sphi 0, %s167
    %s184 = sphi 0, %s168
  $region4: #{search_cell_forward.7} parent=0 // loop_header_branch
    %16 = sbr.rel (%p14) target = $region8
  $region5: #{search_cell_forward.7} parent=0 // loop_body
    %s18 = ssub.s32 %s13, 1
    %s19 = ssub.s32 %s13, 2
    %s20 = sadd.s32 %s13, 1
    %s21 = ssub.s32 %s13, %s20
    %p22 = scmp.eq.s32.totalorder %s21, 0
    %s24 = sadd.s32 %s23, 1
    %s25 = scalar_select %p22, %s23, %s24
    %p28 = pneg %p22
    %p29 = scmp.eq.s32.totalorder %s13, 1
    %p30 = por %p28, %p29
    %p31 = scmp.ne.s32.totalorder %s23, %s26
    %p32 = scmp.eq.s32.totalorder %s13, 0
    %p33 = por %p31, %p32
    %p34 = scmp.ne.s32.totalorder %s23, %s26
    %p35 = scmp.eq.s32.totalorder %s18, 1
    %p36 = por %p34, %p35
    %p37 = scmp.ne.s32.totalorder %s26, %s27
    %p38 = scmp.eq.s32.totalorder %s18, 0
    %p39 = por %p37, %p38
    %p40 = scmp.ne.s32.totalorder %s26, %s27
    %p41 = scmp.eq.s32.totalorder %s19, 1
    %p42 = por %p40, %p41
    %p44 = scmp.ne.s32.totalorder %s27, %s43
    %p45 = scmp.eq.s32.totalorder %s19, 0
    %p46 = por %p44, %p45
    %s48 = sadd.s32 %s47, 1
    %p51 = scmp.eq.s32.totalorder %s13, 1
    %p52 = scmp.ne.s32.totalorder %s47, %s49
    %p53 = scmp.eq.s32.totalorder %s13, 0
    %p54 = por %p52, %p53
    %p55 = scmp.ne.s32.totalorder %s47, %s49
    %p56 = scmp.eq.s32.totalorder %s18, 1
    %p57 = por %p55, %p56
    %p58 = scmp.ne.s32.totalorder %s49, %s50
    %p59 = scmp.eq.s32.totalorder %s18, 0
    %p60 = por %p58, %p59
    %p61 = scmp.ne.s32.totalorder %s49, %s50
    %p62 = scmp.eq.s32.totalorder %s19, 1
    %p63 = por %p61, %p62
    %p65 = scmp.ne.s32.totalorder %s50, %s64
    %p66 = scmp.eq.s32.totalorder %s19, 0
    %p67 = por %p65, %p66
    %s69 = sadd.s32 %s68, 1
    %p72 = scmp.eq.s32.totalorder %s13, 1
    %p73 = scmp.ne.s32.totalorder %s68, %s70
    %p74 = scmp.eq.s32.totalorder %s13, 0
    %p75 = por %p73, %p74
    %p76 = scmp.ne.s32.totalorder %s68, %s70
    %p77 = scmp.eq.s32.totalorder %s18, 1
    %p78 = por %p76, %p77
    %p79 = scmp.ne.s32.totalorder %s70, %s71
    %p80 = scmp.eq.s32.totalorder %s18, 0
    %p81 = por %p79, %p80
    %p82 = scmp.ne.s32.totalorder %s70, %s71
    %p83 = scmp.eq.s32.totalorder %s19, 1
    %p84 = por %p82, %p83
    %p86 = scmp.ne.s32.totalorder %s71, %s85
    %p87 = scmp.eq.s32.totalorder %s19, 0
    %p88 = por %p86, %p87
    %s90 = sadd.s32 %s89, 1
    %p93 = scmp.eq.s32.totalorder %s13, 1
    %p94 = scmp.ne.s32.totalorder %s89, %s91
    %p95 = scmp.eq.s32.totalorder %s13, 0
    %p96 = por %p94, %p95
    %p97 = scmp.ne.s32.totalorder %s89, %s91
    %p98 = scmp.eq.s32.totalorder %s18, 1
    %p99 = por %p97, %p98
    %p100 = scmp.ne.s32.totalorder %s91, %s92
    %p101 = scmp.eq.s32.totalorder %s18, 0
    %p102 = por %p100, %p101
    %p103 = scmp.ne.s32.totalorder %s91, %s92
    %p104 = scmp.eq.s32.totalorder %s19, 1
    %p105 = por %p103, %p104
    %p107 = scmp.ne.s32.totalorder %s92, %s106
    %p108 = scmp.eq.s32.totalorder %s19, 0
    %p109 = por %p107, %p108
    %s110 = ssub.s32 %s13, %s20
    %p111 = scmp.eq.s32.totalorder %s110, 0
    %s113 = sadd.s32 %s112, 1
    %s114 = scalar_select %p111, %s112, %s113
    %p117 = pneg %p111
    %p118 = scmp.eq.s32.totalorder %s13, 1
    %p119 = por %p117, %p118
    %p120 = scmp.ne.s32.totalorder %s112, %s115
    %p121 = scmp.eq.s32.totalorder %s13, 0
    %p122 = por %p120, %p121
    %p123 = scmp.ne.s32.totalorder %s112, %s115
    %p124 = scmp.eq.s32.totalorder %s18, 1
    %p125 = por %p123, %p124
    %p126 = scmp.ne.s32.totalorder %s115, %s116
    %p127 = scmp.eq.s32.totalorder %s18, 0
    %p128 = por %p126, %p127
    %p129 = scmp.ne.s32.totalorder %s115, %s116
    %p130 = scmp.eq.s32.totalorder %s19, 1
    %p131 = por %p129, %p130
    %p133 = scmp.ne.s32.totalorder %s116, %s132
    %p134 = scmp.eq.s32.totalorder %s19, 0
    %p135 = por %p133, %p134
    %s136 = ssub.s32 %s13, %s20
    %p137 = scmp.eq.s32.totalorder %s136, 0
    %s139 = sadd.s32 %s138, 1
    %s140 = scalar_select %p137, %s138, %s139
    %p143 = pneg %p137
    %p144 = scmp.eq.s32.totalorder %s13, 1
    %p145 = por %p143, %p144
    %p146 = scmp.ne.s32.totalorder %s138, %s141
    %p147 = scmp.eq.s32.totalorder %s13, 0
    %p148 = por %p146, %p147
    %p149 = scmp.ne.s32.totalorder %s138, %s141
    %p150 = scmp.eq.s32.totalorder %s18, 1
    %p151 = por %p149, %p150
    %p152 = scmp.ne.s32.totalorder %s141, %s142
    %p153 = scmp.eq.s32.totalorder %s18, 0
    %p154 = por %p152, %p153
    %p155 = scmp.ne.s32.totalorder %s141, %s142
    %p156 = scmp.eq.s32.totalorder %s19, 1
    %p157 = por %p155, %p156
    %p159 = scmp.ne.s32.totalorder %s142, %s158
    %p160 = scmp.eq.s32.totalorder %s19, 0
    %p161 = por %p159, %p160
    %s162 = ssub.s32 %s13, %s20
    %p163 = scmp.eq.s32.totalorder %s162, 0
    %s165 = sadd.s32 %s164, 1
    %s166 = scalar_select %p163, %s164, %s165
    %p169 = pneg %p163
    %p170 = scmp.eq.s32.totalorder %s13, 1
    %p171 = por %p169, %p170
    %p172 = scmp.ne.s32.totalorder %s164, %s167
    %p173 = scmp.eq.s32.totalorder %s13, 0
    %p174 = por %p172, %p173
    %p175 = scmp.ne.s32.totalorder %s164, %s167
    %p176 = scmp.eq.s32.totalorder %s18, 1
    %p177 = por %p175, %p176
    %p178 = scmp.ne.s32.totalorder %s167, %s168
    %p179 = scmp.eq.s32.totalorder %s18, 0
    %p180 = por %p178, %p179
    %p181 = scmp.ne.s32.totalorder %s167, %s168
    %p182 = scmp.eq.s32.totalorder %s19, 1
    %p183 = por %p181, %p182
    %p185 = scmp.ne.s32.totalorder %s168, %s184
    %p186 = scmp.eq.s32.totalorder %s19, 0
    %p187 = por %p185, %p186
    %p188 = scmp.le.s32.totalorder 1, %s13
    %p189 = scmp.lt.s32.totalorder %s13, 3
    %p190 = pnand %p188, %p189
    %p191 = pneg %p190
    // Predicated region
    $region9: #{search_cell_forward.7} parent=5 // pred_check
      _
    $region10: #{search_cell_forward.7} parent=5 // pred_check_branch
      %193 = sbr.rel (%p190) target = $region12
    $region11: #{search_cell_forward.7} parent=5 // pred_region
      %s194 = ssub.s32 %s13, 1
      // Predicated region
      $region13: #{search_cell_forward.7} parent=11 // pred_check
        %p195 = pneg %p60
      $region14: #{search_cell_forward.7} parent=11 // pred_check_branch
        %197 = sbr.rel (%p195) target = $region16
      $region15: #{search_cell_forward.7} parent=11 // pred_region
        _
      $region16: #{search_cell_forward.7} parent=11 // pred_fallthru
        _
      // Predicated region
      $region17: #{search_cell_forward.7} parent=11 // pred_check
        %p198 = pneg %p81
      $region18: #{search_cell_forward.7} parent=11 // pred_check_branch
        %200 = sbr.rel (%p198) target = $region20
      $region19: #{search_cell_forward.7} parent=11 // pred_region
        _
      $region20: #{search_cell_forward.7} parent=11 // pred_fallthru
        _
      // Predicated region
      $region21: #{search_cell_forward.7} parent=11 // pred_check
        %p201 = pneg %p102
      $region22: #{search_cell_forward.7} parent=11 // pred_check_branch
        %203 = sbr.rel (%p201) target = $region24
      $region23: #{search_cell_forward.7} parent=11 // pred_region
        _
      $region24: #{search_cell_forward.7} parent=11 // pred_fallthru
        _
    $region12: #{search_cell_forward.7} parent=5 // pred_fallthru
      _
    %p204 = scmp.lt.s32.totalorder %s13, 2
    // Predicated region
    $region25: #{search_cell_forward.7} parent=5 // pred_check
      %p205 = pneg %p204
    $region26: #{search_cell_forward.7} parent=5 // pred_check_branch
      %207 = sbr.rel (%p205) target = $region28
    $region27: #{search_cell_forward.7} parent=5 // pred_region
      // Predicated region
      $region29: #{search_cell_forward.7} parent=27 // pred_check
        %p208 = pneg %p33
      $region30: #{search_cell_forward.7} parent=27 // pred_check_branch
        %210 = sbr.rel (%p208) target = $region32
      $region31: #{search_cell_forward.7} parent=27 // pred_region
        %p211 = scmp.lt.s32.totalorder %s13, 1
        %s212 = scalar_select %p211, %s13, 1
        %s213 = smul.addr %s212, 8
        %s214 = smul.addr %s213, 8
        %s215 = scalar_lea.vmem %s0, %s214
      $region32: #{search_cell_forward.7} parent=27 // pred_fallthru
        _
    $region28: #{search_cell_forward.7} parent=5 // pred_fallthru
      _
    %p216 = scmp.le.s32.totalorder 1, %s13
    %p217 = scmp.lt.s32.totalorder %s13, 3
    %p218 = pnand %p216, %p217
    %p219 = pneg %p218
    // Predicated region
    $region33: #{search_cell_forward.7} parent=5 // pred_check
      _
    $region34: #{search_cell_forward.7} parent=5 // pred_check_branch
      %221 = sbr.rel (%p218) target = $region36
    $region35: #{search_cell_forward.7} parent=5 // pred_region
      %s222 = ssub.s32 %s13, 1
      %p223 = scmp.lt.s32.totalorder %s18, 1
      %s224 = scalar_select %p223, %s18, 1
      %s225 = smul.addr %s224, 8
      %s226 = smul.addr %s225, 8
      %s227 = scalar_lea.vmem %s0, %s226
      %p228 = pneg %p39
      %p229 = pneg %p36
      %p230 = pneg %p60
      %p231 = pneg %p57
      %p232 = pneg %p81
      %p233 = pneg %p78
      %p234 = pneg %p102
      %p235 = pneg %p99
      %p236 = pneg %p128
      %p237 = pneg %p125
      %p238 = scmp.lt.s32.totalorder %s18, 1
      %s239 = scalar_select %p238, %s18, 1
      %s240 = smul.addr %s239, 8
      %s241 = smul.addr %s240, 8
      %s242 = scalar_lea.vmem %s4, %s241
      %p243 = pneg %p154
      %p244 = pneg %p151
      %p245 = scmp.lt.s32.totalorder %s18, 1
      %s246 = scalar_select %p245, %s18, 1
      %s247 = smul.addr %s246, 8
      %s248 = smul.addr %s247, 8
      %s249 = scalar_lea.vmem %s5, %s248
      %p250 = pneg %p180
      %p251 = pneg %p177
      %p252 = scmp.lt.s32.totalorder %s18, 1
      %s253 = scalar_select %p252, %s18, 1
      %s254 = smul.addr %s253, 8
      %s255 = smul.addr %s254, 8
      %s256 = scalar_lea.vmem %s6, %s255
      %p257 = scmp.lt.s32.totalorder %s18, 1
      %s258 = scalar_select %p257, %s18, 1
      %s259 = smul.addr %s258, 8
      %s260 = smul.addr %s259, 8
      %s261 = scalar_lea.vmem %s0, %s260
      %p262 = scmp.lt.s32.totalorder %s18, 1
      %s263 = scalar_select %p262, %s18, 1
      %s264 = smul.addr %s263, 8
      %s265 = smul.addr %s264, 8
      %s266 = scalar_lea.vmem %s4, %s265
      %p267 = scmp.lt.s32.totalorder %s18, 1
      %s268 = scalar_select %p267, %s18, 1
      %s269 = smul.addr %s268, 8
      %s270 = smul.addr %s269, 8
      %s271 = scalar_lea.vmem %s5, %s270
      %p272 = scmp.lt.s32.totalorder %s18, 1
      %s273 = scalar_select %p272, %s18, 1
      %s274 = smul.addr %s273, 8
      %s275 = smul.addr %s274, 8
      %s276 = scalar_lea.vmem %s6, %s275
      %vm278 = vcmask 130048
      %279 = vst.msk [vmem:[#allocation2] sm:$0xff] %vm278, 0.0
      %vm280 = vcmask 123904
      %281 = vst.msk [vmem:[#allocation2 + $0x8] sm:$0x3] %vm280, 0.0
      %s282 = scalar_lea.vmem [#allocation2], 144
      %283 = vst.msk [vmem:[%s282] sm:$0xff] %vm278, 0.0
      %284 = vst.msk [vmem:[%s282 + $0x8] sm:$0x3] %vm280, 0.0
      %vm285 = vcmask 122880
      %286 = vst.msk [vmem:[#allocation2] sm:$0x1] %vm285, 0.0
      %287 = vst.msk [vmem:[#allocation2 + $0x10] sm:$0x1] %vm285, 0.0
      %288 = vst.msk [vmem:[#allocation2 + $0x20] sm:$0x1] %vm285, 0.0
      %289 = vst.msk [vmem:[#allocation2 + $0x30] sm:$0x1] %vm285, 0.0
      %290 = vst.msk [vmem:[#allocation2 + $0x40] sm:$0x1] %vm285, 0.0
      %291 = vst.msk [vmem:[#allocation2 + $0x50] sm:$0x1] %vm285, 0.0
      %292 = vst.msk [vmem:[#allocation2 + $0x60] sm:$0x1] %vm285, 0.0
      %293 = vst.msk [vmem:[#allocation2 + $0x70] sm:$0x1] %vm285, 0.0
      %294 = vst.msk [vmem:[#allocation2 + $0x80] sm:$0x1] %vm285, 0.0
      %295 = vst.msk [vmem:[#allocation2 + $0x90] sm:$0x1] %vm285, 0.0
      %296 = vst.msk [vmem:[#allocation2 + $0x9] sm:$0x1] %vm285, 0.0
      %297 = vst.msk [vmem:[#allocation2 + $0x19] sm:$0x1] %vm285, 0.0
      %298 = vst.msk [vmem:[#allocation2 + $0x29] sm:$0x1] %vm285, 0.0
      %299 = vst.msk [vmem:[#allocation2 + $0x39] sm:$0x1] %vm285, 0.0
      %300 = vst.msk [vmem:[#allocation2 + $0x49] sm:$0x1] %vm285, 0.0
      %301 = vst.msk [vmem:[#allocation2 + $0x59] sm:$0x1] %vm285, 0.0
      %302 = vst.msk [vmem:[#allocation2 + $0x69] sm:$0x1] %vm285, 0.0
      %303 = vst.msk [vmem:[#allocation2 + $0x79] sm:$0x1] %vm285, 0.0
      %304 = vst.msk [vmem:[#allocation2 + $0x89] sm:$0x1] %vm285, 0.0
      %305 = vst.msk [vmem:[#allocation2 + $0x99] sm:$0x1] %vm285, 0.0
      %v306 = vld [vmem:[%s261] sm:$0xff]
      %v307 = vld [vmem:[%s261 + $0x8] sm:$0xff]
      %v308 = vld [vmem:[%s261 + $0x10] sm:$0xff]
      %v309 = vld [vmem:[%s261 + $0x18] sm:$0xff]
      %v310 = vld [vmem:[%s261 + $0x20] sm:$0xff]
      %v311 = vld [vmem:[%s261 + $0x28] sm:$0xff]
      %v312 = vld [vmem:[%s261 + $0x30] sm:$0xff]
      %v313 = vld [vmem:[%s261 + $0x38] sm:$0xff]
      %s314 = scalar_lea.vmem [#allocation2], 16
      %315 = vst.msk [vmem:[%s314 + $0x1] sm:$0xff] %vm278, %v306
      %316 = vst.msk [vmem:[%s314 + $0x11] sm:$0xff] %vm278, %v307
      %317 = vst.msk [vmem:[%s314 + $0x21] sm:$0xff] %vm278, %v308
      %318 = vst.msk [vmem:[%s314 + $0x31] sm:$0xff] %vm278, %v309
      %319 = vst.msk [vmem:[%s314 + $0x41] sm:$0xff] %vm278, %v310
      %320 = vst.msk [vmem:[%s314 + $0x51] sm:$0xff] %vm278, %v311
      %321 = vst.msk [vmem:[%s314 + $0x61] sm:$0xff] %vm278, %v312
      %322 = vst.msk [vmem:[%s314 + $0x71] sm:$0xff] %vm278, %v313
      %v323 = vld [vmem:[#allocation2] sm:$0xff]
      %v324 = vld [vmem:[#allocation2 + $0x10] sm:$0xff]
      %v325 = vld [vmem:[#allocation2 + $0x20] sm:$0xff]
      %v326 = vld [vmem:[#allocation2 + $0x30] sm:$0xff]
      %v327 = vld [vmem:[#allocation2 + $0x40] sm:$0xff]
      %v328 = vld [vmem:[#allocation2 + $0x50] sm:$0xff]
      %v329 = vld [vmem:[#allocation2 + $0x60] sm:$0xff]
      %v330 = vld [vmem:[#allocation2 + $0x70] sm:$0xff]
      %v331 = vld [vmem:[#allocation2 + $0x1] sm:$0xff]
      %v332 = vld [vmem:[#allocation2 + $0x11] sm:$0xff]
      %v333 = vld [vmem:[#allocation2 + $0x21] sm:$0xff]
      %v334 = vld [vmem:[#allocation2 + $0x31] sm:$0xff]
      %v335 = vld [vmem:[#allocation2 + $0x41] sm:$0xff]
      %v336 = vld [vmem:[#allocation2 + $0x51] sm:$0xff]
      %v337 = vld [vmem:[#allocation2 + $0x61] sm:$0xff]
      %v338 = vld [vmem:[#allocation2 + $0x71] sm:$0xff]
      %v339 = vadd.f32 %v323, %v331
      %v340 = vadd.f32 %v324, %v332
      %v341 = vadd.f32 %v325, %v333
      %v342 = vadd.f32 %v326, %v334
      %v343 = vadd.f32 %v327, %v335
      %v344 = vadd.f32 %v328, %v336
      %v345 = vadd.f32 %v329, %v337
      %v346 = vadd.f32 %v330, %v338
      %v347 = vld [vmem:[#allocation2 + $0x2] sm:$0xff]
      %v348 = vld [vmem:[#allocation2 + $0x12] sm:$0xff]
      %v349 = vld [vmem:[#allocation2 + $0x22] sm:$0xff]
      %v350 = vld [vmem:[#allocation2 + $0x32] sm:$0xff]
      %v351 = vld [vmem:[#allocation2 + $0x42] sm:$0xff]
      %v352 = vld [vmem:[#allocation2 + $0x52] sm:$0xff]
      %v353 = vld [vmem:[#allocation2 + $0x62] sm:$0xff]
      %v354 = vld [vmem:[#allocation2 + $0x72] sm:$0xff]
      %v355 = vadd.f32 %v339, %v347
      %v356 = vadd.f32 %v340, %v348
      %v357 = vadd.f32 %v341, %v349
      %v358 = vadd.f32 %v342, %v350
      %v359 = vadd.f32 %v343, %v351
      %v360 = vadd.f32 %v344, %v352
      %v361 = vadd.f32 %v345, %v353
      %v362 = vadd.f32 %v346, %v354
      %v363 = vld [vmem:[%s314] sm:$0xff]
      %v364 = vld [vmem:[%s314 + $0x10] sm:$0xff]
      %v365 = vld [vmem:[%s314 + $0x20] sm:$0xff]
      %v366 = vld [vmem:[%s314 + $0x30] sm:$0xff]
      %v367 = vld [vmem:[%s314 + $0x40] sm:$0xff]
      %v368 = vld [vmem:[%s314 + $0x50] sm:$0xff]
      %v369 = vld [vmem:[%s314 + $0x60] sm:$0xff]
      %v370 = vld [vmem:[%s314 + $0x70] sm:$0xff]
      %v371 = vadd.f32 %v355, %v363
      %v372 = vadd.f32 %v356, %v364
      %v373 = vadd.f32 %v357, %v365
      %v374 = vadd.f32 %v358, %v366
      %v375 = vadd.f32 %v359, %v367
      %v376 = vadd.f32 %v360, %v368
      %v377 = vadd.f32 %v361, %v369
      %v378 = vadd.f32 %v362, %v370
      %v379 = vld [vmem:[%s314 + $0x1] sm:$0xff]
      %v380 = vld [vmem:[%s314 + $0x11] sm:$0xff]
      %v381 = vld [vmem:[%s314 + $0x21] sm:$0xff]
      %v382 = vld [vmem:[%s314 + $0x31] sm:$0xff]
      %v383 = vld [vmem:[%s314 + $0x41] sm:$0xff]
      %v384 = vld [vmem:[%s314 + $0x51] sm:$0xff]
      %v385 = vld [vmem:[%s314 + $0x61] sm:$0xff]
      %v386 = vld [vmem:[%s314 + $0x71] sm:$0xff]
      %v387 = vadd.f32 %v371, %v379
      %v388 = vadd.f32 %v372, %v380
      %v389 = vadd.f32 %v373, %v381
      %v390 = vadd.f32 %v374, %v382
      %v391 = vadd.f32 %v375, %v383
      %v392 = vadd.f32 %v376, %v384
      %v393 = vadd.f32 %v377, %v385
      %v394 = vadd.f32 %v378, %v386
      %v395 = vld [vmem:[%s314 + $0x2] sm:$0xff]
      %v396 = vld [vmem:[%s314 + $0x12] sm:$0xff]
      %v397 = vld [vmem:[%s314 + $0x22] sm:$0xff]
      %v398 = vld [vmem:[%s314 + $0x32] sm:$0xff]
      %v399 = vld [vmem:[%s314 + $0x42] sm:$0xff]
      %v400 = vld [vmem:[%s314 + $0x52] sm:$0xff]
      %v401 = vld [vmem:[%s314 + $0x62] sm:$0xff]
      %v402 = vld [vmem:[%s314 + $0x72] sm:$0xff]
      %v403 = vadd.f32 %v387, %v395
      %v404 = vadd.f32 %v388, %v396
      %v405 = vadd.f32 %v389, %v397
      %v406 = vadd.f32 %v390, %v398
      %v407 = vadd.f32 %v391, %v399
      %v408 = vadd.f32 %v392, %v400
      %v409 = vadd.f32 %v393, %v401
      %v410 = vadd.f32 %v394, %v402
      %s411 = scalar_lea.vmem [#allocation2], 32
      %v412 = vld [vmem:[%s411] sm:$0xff]
      %v413 = vld [vmem:[%s411 + $0x10] sm:$0xff]
      %v414 = vld [vmem:[%s411 + $0x20] sm:$0xff]
      %v415 = vld [vmem:[%s411 + $0x30] sm:$0xff]
      %v416 = vld [vmem:[%s411 + $0x40] sm:$0xff]
      %v417 = vld [vmem:[%s411 + $0x50] sm:$0xff]
      %v418 = vld [vmem:[%s411 + $0x60] sm:$0xff]
      %v419 = vld [vmem:[%s411 + $0x70] sm:$0xff]
      %v420 = vadd.f32 %v403, %v412
      %v421 = vadd.f32 %v404, %v413
      %v422 = vadd.f32 %v405, %v414
      %v423 = vadd.f32 %v406, %v415
      %v424 = vadd.f32 %v407, %v416
      %v425 = vadd.f32 %v408, %v417
      %v426 = vadd.f32 %v409, %v418
      %v427 = vadd.f32 %v410, %v419
      %v428 = vld [vmem:[%s411 + $0x1] sm:$0xff]
      %v429 = vld [vmem:[%s411 + $0x11] sm:$0xff]
      %v430 = vld [vmem:[%s411 + $0x21] sm:$0xff]
      %v431 = vld [vmem:[%s411 + $0x31] sm:$0xff]
      %v432 = vld [vmem:[%s411 + $0x41] sm:$0xff]
      %v433 = vld [vmem:[%s411 + $0x51] sm:$0xff]
      %v434 = vld [vmem:[%s411 + $0x61] sm:$0xff]
      %v435 = vld [vmem:[%s411 + $0x71] sm:$0xff]
      %v436 = vadd.f32 %v420, %v428
      %v437 = vadd.f32 %v421, %v429
      %v438 = vadd.f32 %v422, %v430
      %v439 = vadd.f32 %v423, %v431
      %v440 = vadd.f32 %v424, %v432
      %v441 = vadd.f32 %v425, %v433
      %v442 = vadd.f32 %v426, %v434
      %v443 = vadd.f32 %v427, %v435
      %v444 = vld [vmem:[%s411 + $0x2] sm:$0xff]
      %v445 = vld [vmem:[%s411 + $0x12] sm:$0xff]
      %v446 = vld [vmem:[%s411 + $0x22] sm:$0xff]
      %v447 = vld [vmem:[%s411 + $0x32] sm:$0xff]
      %v448 = vld [vmem:[%s411 + $0x42] sm:$0xff]
      %v449 = vld [vmem:[%s411 + $0x52] sm:$0xff]
      %v450 = vld [vmem:[%s411 + $0x62] sm:$0xff]
      %v451 = vld [vmem:[%s411 + $0x72] sm:$0xff]
      %v452 = vadd.f32 %v436, %v444
      %v453 = vadd.f32 %v437, %v445
      %v454 = vadd.f32 %v438, %v446
      %v455 = vadd.f32 %v439, %v447
      %v456 = vadd.f32 %v440, %v448
      %v457 = vadd.f32 %v441, %v449
      %v458 = vadd.f32 %v442, %v450
      %v459 = vadd.f32 %v443, %v451
      %v460 = vld [vmem:[%s3] sm:$0xff]
      %v461 = vld [vmem:[%s3 + $0x8] sm:$0xff]
      %v462 = vld [vmem:[%s3 + $0x10] sm:$0xff]
      %v463 = vld [vmem:[%s3 + $0x18] sm:$0xff]
      %v464 = vld [vmem:[%s3 + $0x20] sm:$0xff]
      %v465 = vld [vmem:[%s3 + $0x28] sm:$0xff]
      %v466 = vld [vmem:[%s3 + $0x30] sm:$0xff]
      %v467 = vld [vmem:[%s3 + $0x38] sm:$0xff]
      %469 = vset.pattern.permute.xlu0 0
      %470 = vperm.xlu0 %469, %v460
      %v471 = vpop.permute.xlu0 %470
      %474 = vset.pattern.permute.xlu0 0
      %475 = vperm.xlu0 %474, %v461
      %v476 = vpop.permute.xlu0 %475
      %479 = vset.pattern.permute.xlu0 0
      %480 = vperm.xlu0 %479, %v462
      %v481 = vpop.permute.xlu0 %480
      %484 = vset.pattern.permute.xlu0 0
      %485 = vperm.xlu0 %484, %v463
      %v486 = vpop.permute.xlu0 %485
      %489 = vset.pattern.permute.xlu0 0
      %490 = vperm.xlu0 %489, %v464
      %v491 = vpop.permute.xlu0 %490
      %494 = vset.pattern.permute.xlu0 0
      %495 = vperm.xlu0 %494, %v465
      %v496 = vpop.permute.xlu0 %495
      %499 = vset.pattern.permute.xlu0 0
      %500 = vperm.xlu0 %499, %v466
      %v501 = vpop.permute.xlu0 %500
      %504 = vset.pattern.permute.xlu0 0
      %505 = vperm.xlu0 %504, %v467
      %v506 = vpop.permute.xlu0 %505
      %v508 = vmul.f32 %v452, %v471
      %v509 = vmul.f32 %v453, %v476
      %v510 = vmul.f32 %v454, %v481
      %v511 = vmul.f32 %v455, %v486
      %v512 = vmul.f32 %v456, %v491
      %v513 = vmul.f32 %v457, %v496
      %v514 = vmul.f32 %v458, %v501
      %v515 = vmul.f32 %v459, %v506
      %v516 = vmax.f32 %v306, 0.0
      %v517 = vmax.f32 %v307, 0.0
      %v518 = vmax.f32 %v308, 0.0
      %v519 = vmax.f32 %v309, 0.0
      %v520 = vmax.f32 %v310, 0.0
      %v521 = vmax.f32 %v311, 0.0
      %v522 = vmax.f32 %v312, 0.0
      %v523 = vmax.f32 %v313, 0.0
      %524 = vst.msk [vmem:[%s314 + $0x1] sm:$0xff] %vm278, %v516
      %525 = vst.msk [vmem:[%s314 + $0x11] sm:$0xff] %vm278, %v517
      %526 = vst.msk [vmem:[%s314 + $0x21] sm:$0xff] %vm278, %v518
      %527 = vst.msk [vmem:[%s314 + $0x31] sm:$0xff] %vm278, %v519
      %528 = vst.msk [vmem:[%s314 + $0x41] sm:$0xff] %vm278, %v520
      %529 = vst.msk [vmem:[%s314 + $0x51] sm:$0xff] %vm278, %v521
      %530 = vst.msk [vmem:[%s314 + $0x61] sm:$0xff] %vm278, %v522
      %531 = vst.msk [vmem:[%s314 + $0x71] sm:$0xff] %vm278, %v523
      %v532 = vld [vmem:[#allocation2] sm:$0xff]
      %v533 = vld [vmem:[#allocation2 + $0x10] sm:$0xff]
      %v534 = vld [vmem:[#allocation2 + $0x20] sm:$0xff]
      %v535 = vld [vmem:[#allocation2 + $0x30] sm:$0xff]
      %v536 = vld [vmem:[#allocation2 + $0x40] sm:$0xff]
      %v537 = vld [vmem:[#allocation2 + $0x50] sm:$0xff]
      %v538 = vld [vmem:[#allocation2 + $0x60] sm:$0xff]
      %v539 = vld [vmem:[#allocation2 + $0x70] sm:$0xff]
      %v540 = vpack.c.bf16 %v533, %v532
      %v541 = vpack.c.bf16 %v535, %v534
      %v542 = vpack.c.bf16 %v537, %v536
      %v543 = vpack.c.bf16 %v539, %v538
      %v544 = vld [vmem:[%s1] sm:$0xf]
      %v545 = vld [vmem:[%s1 + $0x4] sm:$0xf]
      %v546 = vld [vmem:[#allocation2 + $0x1] sm:$0xff]
      %v547 = vld [vmem:[#allocation2 + $0x11] sm:$0xff]
      %v548 = vld [vmem:[#allocation2 + $0x21] sm:$0xff]
      %v549 = vld [vmem:[#allocation2 + $0x31] sm:$0xff]
      %v550 = vld [vmem:[#allocation2 + $0x41] sm:$0xff]
      %v551 = vld [vmem:[#allocation2 + $0x51] sm:$0xff]
      %v552 = vld [vmem:[#allocation2 + $0x61] sm:$0xff]
      %v553 = vld [vmem:[#allocation2 + $0x71] sm:$0xff]
      %v554 = vpack.c.bf16 %v547, %v546
      %v555 = vpack.c.bf16 %v549, %v548
      %v556 = vpack.c.bf16 %v551, %v550
      %v557 = vpack.c.bf16 %v553, %v552
      %s558 = scalar_lea.vmem %s1, 8
      %v559 = vld [vmem:[%s558] sm:$0xf]
      %v560 = vld [vmem:[%s558 + $0x4] sm:$0xf]
      %v563 = vunpack.c.l.b16 %v559
      %v564 = vunpack.c.l.b16 %v560
      %v565 = vpack.c.b16 %v564, %v563
      %v568 = vsel %vm278, %v554, 0
      %v571 = vsel %vm278, %v555, 0
      %v574 = vsel %vm278, %v556, 0
      %v577 = vsel %vm278, %v557, 0
      %579 = vmatprep.subr.bf16.mxu0 0
      %580 = vmatpush1.bf16.msra.mxu0 %v565
      %581 = vmatprep.subr.bf16.mxu0 0
      %582 = vmatpush1.bf16.msra.mxu0 0
      %583 = vmatprep.subr.bf16.mxu0 0
      %584 = vmatpush1.bf16.msra.mxu0 0
      %585 = vmatprep.subr.bf16.mxu0 0
      %586 = vmatpush1.bf16.msra.mxu0 0
      %587 = vmatprep.subr.bf16.mxu0 0
      %588 = vmatpush1.bf16.msra.mxu0 0
      %589 = vmatprep.subr.bf16.mxu0 0
      %590 = vmatpush1.bf16.msra.mxu0 0
      %591 = vmatprep.subr.bf16.mxu0 0
      %592 = vmatpush1.bf16.msra.mxu0 0
      %593 = vmatprep.subr.bf16.mxu0 0
      %594 = vmatpush1.bf16.msra.mxu0 0
      %595 = vmatprep.subr.bf16.mxu0 0
      %596 = vmatpush1.bf16.msra.mxu0 0
      %597 = vmatprep.subr.bf16.mxu0 0
      %598 = vmatpush1.bf16.msra.mxu0 0
      %599 = vmatprep.subr.bf16.mxu0 0
      %600 = vmatpush1.bf16.msra.mxu0 0
      %601 = vmatprep.subr.bf16.mxu0 0
      %602 = vmatpush1.bf16.msra.mxu0 0
      %603 = vmatprep.subr.bf16.mxu0 0
      %604 = vmatpush1.bf16.msra.mxu0 0
      %605 = vmatprep.subr.bf16.mxu0 0
      %606 = vmatpush1.bf16.msra.mxu0 0
      %607 = vmatprep.subr.bf16.mxu0 0
      %608 = vmatpush1.bf16.msra.mxu0 0
      %609 = vmatprep.subr.bf16.mxu0 0
      %610 = vmatpush1.bf16.msra.mxu0 0
      %611 = vmatprep.mubr.bf16.mxu0 0
      %612 = vmatmul.mubr.bf16.gmra.mrb[0].mxu0 %v568
      %v613 = vpop.f32.mrb[0].mxu0
      %v614 = vadd.f32 0.0, %v613
      %v615 = vpop.f32.mrb[0].mxu0
      %v616 = vpop.f32.mrb[0].mxu0
      %v617 = vadd.f32 0.0, %v616
      %v618 = vpop.f32.mrb[0].mxu0
      %619 = vmatprep.mubr.bf16.mxu0 0
      %620 = vmatmul.mubr.bf16.gmra.mrb[0].mxu0 %v571
      %v621 = vpop.f32.mrb[0].mxu0
      %v622 = vadd.f32 0.0, %v621
      %v623 = vpop.f32.mrb[0].mxu0
      %v624 = vpop.f32.mrb[0].mxu0
      %v625 = vadd.f32 0.0, %v624
      %v626 = vpop.f32.mrb[0].mxu0
      %627 = vmatprep.mubr.bf16.mxu0 0
      %628 = vmatmul.mubr.bf16.gmra.mrb[0].mxu0 %v574
      %v629 = vpop.f32.mrb[0].mxu0
      %v630 = vadd.f32 0.0, %v629
      %v631 = vpop.f32.mrb[0].mxu0
      %v632 = vpop.f32.mrb[0].mxu0
      %v633 = vadd.f32 0.0, %v632
      %v634 = vpop.f32.mrb[0].mxu0
      %635 = vmatprep.mubr.bf16.mxu0 0
      %636 = vmatmul.mubr.bf16.gmra.mrb[0].mxu0 %v577
      %v637 = vpop.f32.mrb[0].mxu0
      %v638 = vadd.f32 0.0, %v637
      %v639 = vpop.f32.mrb[0].mxu0
      %v640 = vpop.f32.mrb[0].mxu0
      %v641 = vadd.f32 0.0, %v640
      %v642 = vpop.f32.mrb[0].mxu0
      %643 = vdwg.mxu0
      %v646 = vunpack.c.l.b16 %v544
      %v647 = vunpack.c.l.b16 %v545
      %v648 = vpack.c.b16 %v647, %v646
      %v651 = vsel %vm278, %v540, 0
      %v654 = vsel %vm278, %v541, 0
      %v657 = vsel %vm278, %v542, 0
      %v660 = vsel %vm278, %v543, 0
      %662 = vmatprep.subr.bf16.mxu0 0
      %663 = vmatpush1.bf16.msra.mxu0 %v648
      %664 = vmatprep.subr.bf16.mxu0 0
      %665 = vmatpush1.bf16.msra.mxu0 0
      %666 = vmatprep.subr.bf16.mxu0 0
      %667 = vmatpush1.bf16.msra.mxu0 0
      %668 = vmatprep.subr.bf16.mxu0 0
      %669 = vmatpush1.bf16.msra.mxu0 0
      %670 = vmatprep.subr.bf16.mxu0 0
      %671 = vmatpush1.bf16.msra.mxu0 0
      %672 = vmatprep.subr.bf16.mxu0 0
      %673 = vmatpush1.bf16.msra.mxu0 0
      %674 = vmatprep.subr.bf16.mxu0 0
      %675 = vmatpush1.bf16.msra.mxu0 0
      %676 = vmatprep.subr.bf16.mxu0 0
      %677 = vmatpush1.bf16.msra.mxu0 0
      %678 = vmatprep.subr.bf16.mxu0 0
      %679 = vmatpush1.bf16.msra.mxu0 0
      %680 = vmatprep.subr.bf16.mxu0 0
      %681 = vmatpush1.bf16.msra.mxu0 0
      %682 = vmatprep.subr.bf16.mxu0 0
      %683 = vmatpush1.bf16.msra.mxu0 0
      %684 = vmatprep.subr.bf16.mxu0 0
      %685 = vmatpush1.bf16.msra.mxu0 0
      %686 = vmatprep.subr.bf16.mxu0 0
      %687 = vmatpush1.bf16.msra.mxu0 0
      %688 = vmatprep.subr.bf16.mxu0 0
      %689 = vmatpush1.bf16.msra.mxu0 0
      %690 = vmatprep.subr.bf16.mxu0 0
      %691 = vmatpush1.bf16.msra.mxu0 0
      %692 = vmatprep.subr.bf16.mxu0 0
      %693 = vmatpush1.bf16.msra.mxu0 0
      %694 = vmatprep.mubr.bf16.mxu0 0
      %695 = vmatmul.mubr.bf16.gmra.mrb[0].mxu0 %v651
      %v696 = vpop.f32.mrb[0].mxu0
      %v697 = vadd.f32 %v614, %v696
      %v698 = vpop.f32.mrb[0].mxu0
      %v699 = vpop.f32.mrb[0].mxu0
      %v700 = vadd.f32 %v617, %v699
      %v701 = vpop.f32.mrb[0].mxu0
      %702 = vmatprep.mubr.bf16.mxu0 0
      %703 = vmatmul.mubr.bf16.gmra.mrb[0].mxu0 %v654
      %v704 = vpop.f32.mrb[0].mxu0
      %v705 = vadd.f32 %v622, %v704
      %v706 = vpop.f32.mrb[0].mxu0
      %v707 = vpop.f32.mrb[0].mxu0
      %v708 = vadd.f32 %v625, %v707
      %v709 = vpop.f32.mrb[0].mxu0
      %710 = vmatprep.mubr.bf16.mxu0 0
      %711 = vmatmul.mubr.bf16.gmra.mrb[0].mxu0 %v657
      %v712 = vpop.f32.mrb[0].mxu0
      %v713 = vadd.f32 %v630, %v712
      %v714 = vpop.f32.mrb[0].mxu0
      %v715 = vpop.f32.mrb[0].mxu0
      %v716 = vadd.f32 %v633, %v715
      %v717 = vpop.f32.mrb[0].mxu0
      %718 = vmatprep.mubr.bf16.mxu0 0
      %719 = vmatmul.mubr.bf16.gmra.mrb[0].mxu0 %v660
      %v720 = vpop.f32.mrb[0].mxu0
      %v721 = vadd.f32 %v638, %v720
      %v722 = vpop.f32.mrb[0].mxu0
      %v723 = vpop.f32.mrb[0].mxu0
      %v724 = vadd.f32 %v641, %v723
      %v725 = vpop.f32.mrb[0].mxu0
      %726 = vdwg.mxu0
      %v727 = vld [vmem:[#allocation2 + $0x2] sm:$0xff]
      %v728 = vld [vmem:[#allocation2 + $0x12] sm:$0xff]
      %v729 = vld [vmem:[#allocation2 + $0x22] sm:$0xff]
      %v730 = vld [vmem:[#allocation2 + $0x32] sm:$0xff]
      %v731 = vld [vmem:[#allocation2 + $0x42] sm:$0xff]
      %v732 = vld [vmem:[#allocation2 + $0x52] sm:$0xff]
      %v733 = vld [vmem:[#allocation2 + $0x62] sm:$0xff]
      %v734 = vld [vmem:[#allocation2 + $0x72] sm:$0xff]
      %v735 = vpack.c.bf16 %v728, %v727
      %v736 = vpack.c.bf16 %v730, %v729
      %v737 = vpack.c.bf16 %v732, %v731
      %v738 = vpack.c.bf16 %v734, %v733
      %s739 = scalar_lea.vmem %s1, 16
      %v740 = vld [vmem:[%s739] sm:$0xf]
      %v741 = vld [vmem:[%s739 + $0x4] sm:$0xf]
      %v744 = vunpack.c.l.b16 %v740
      %v745 = vunpack.c.l.b16 %v741
      %v746 = vpack.c.b16 %v745, %v744
      %v749 = vsel %vm278, %v735, 0
      %v752 = vsel %vm278, %v736, 0
      %v755 = vsel %vm278, %v737, 0
      %v758 = vsel %vm278, %v738, 0
      %760 = vmatprep.subr.bf16.mxu0 0
      %761 = vmatpush1.bf16.msra.mxu0 %v746
      %762 = vmatprep.subr.bf16.mxu0 0
      %763 = vmatpush1.bf16.msra.mxu0 0
      %764 = vmatprep.subr.bf16.mxu0 0
      %765 = vmatpush1.bf16.msra.mxu0 0
      %766 = vmatprep.subr.bf16.mxu0 0
      %767 = vmatpush1.bf16.msra.mxu0 0
      %768 = vmatprep.subr.bf16.mxu0 0
      %769 = vmatpush1.bf16.msra.mxu0 0
      %770 = vmatprep.subr.bf16.mxu0 0
      %771 = vmatpush1.bf16.msra.mxu0 0
      %772 = vmatprep.subr.bf16.mxu0 0
      %773 = vmatpush1.bf16.msra.mxu0 0
      %774 = vmatprep.subr.bf16.mxu0 0
      %775 = vmatpush1.bf16.msra.mxu0 0
      %776 = vmatprep.subr.bf16.mxu0 0
      %777 = vmatpush1.bf16.msra.mxu0 0
      %778 = vmatprep.subr.bf16.mxu0 0
      %779 = vmatpush1.bf16.msra.mxu0 0
      %780 = vmatprep.subr.bf16.mxu0 0
      %781 = vmatpush1.bf16.msra.mxu0 0
      %782 = vmatprep.subr.bf16.mxu0 0
      %783 = vmatpush1.bf16.msra.mxu0 0
      %784 = vmatprep.subr.bf16.mxu0 0
      %785 = vmatpush1.bf16.msra.mxu0 0
      %786 = vmatprep.subr.bf16.mxu0 0
      %787 = vmatpush1.bf16.msra.mxu0 0
      %788 = vmatprep.subr.bf16.mxu0 0
      %789 = vmatpush1.bf16.msra.mxu0 0
      %790 = vmatprep.subr.bf16.mxu0 0
      %791 = vmatpush1.bf16.msra.mxu0 0
      %792 = vmatprep.mubr.bf16.mxu0 0
      %793 = vmatmul.mubr.bf16.gmra.mrb[0].mxu0 %v749
      %v794 = vpop.f32.mrb[0].mxu0
      %v795 = vadd.f32 0.0, %v794
      %v796 = vpop.f32.mrb[0].mxu0
      %v797 = vpop.f32.mrb[0].mxu0
      %v798 = vadd.f32 0.0, %v797
      %v799 = vpop.f32.mrb[0].mxu0
      %800 = vmatprep.mubr.bf16.mxu0 0
      %801 = vmatmul.mubr.bf16.gmra.mrb[0].mxu0 %v752
      %v802 = vpop.f32.mrb[0].mxu0
      %v803 = vadd.f32 0.0, %v802
      %v804 = vpop.f32.mrb[0].mxu0
      %v805 = vpop.f32.mrb[0].mxu0
      %v806 = vadd.f32 0.0, %v805
      %v807 = vpop.f32.mrb[0].mxu0
      %808 = vmatprep.mubr.bf16.mxu0 0
      %809 = vmatmul.mubr.bf16.gmra.mrb[0].mxu0 %v755
      %v810 = vpop.f32.mrb[0].mxu0
      %v811 = vadd.f32 0.0, %v810
      %v812 = vpop.f32.mrb[0].mxu0
      %v813 = vpop.f32.mrb[0].mxu0
      %v814 = vadd.f32 0.0, %v813
      %v815 = vpop.f32.mrb[0].mxu0
      %816 = vmatprep.mubr.bf16.mxu0 0
      %817 = vmatmul.mubr.bf16.gmra.mrb[0].mxu0 %v758
      %v818 = vpop.f32.mrb[0].mxu0
      %v819 = vadd.f32 0.0, %v818
      %v820 = vpop.f32.mrb[0].mxu0
      %v821 = vpop.f32.mrb[0].mxu0
      %v822 = vadd.f32 0.0, %v821
      %v823 = vpop.f32.mrb[0].mxu0
      %824 = vdwg.mxu0
      %v825 = vadd.f32 %v697, %v795
      %v826 = vadd.f32 %v700, %v798
      %v827 = vadd.f32 %v705, %v803
      %v828 = vadd.f32 %v708, %v806
      %v829 = vadd.f32 %v713, %v811
      %v830 = vadd.f32 %v716, %v814
      %v831 = vadd.f32 %v721, %v819
      %v832 = vadd.f32 %v724, %v822
      %v833 = vld [vmem:[%s314] sm:$0xff]
      %v834 = vld [vmem:[%s314 + $0x10] sm:$0xff]
      %v835 = vld [vmem:[%s314 + $0x20] sm:$0xff]
      %v836 = vld [vmem:[%s314 + $0x30] sm:$0xff]
      %v837 = vld [vmem:[%s314 + $0x40] sm:$0xff]
      %v838 = vld [vmem:[%s314 + $0x50] sm:$0xff]
      %v839 = vld [vmem:[%s314 + $0x60] sm:$0xff]
      %v840 = vld [vmem:[%s314 + $0x70] sm:$0xff]
      %v841 = vpack.c.bf16 %v834, %v833
      %v842 = vpack.c.bf16 %v836, %v835
      %v843 = vpack.c.bf16 %v838, %v837
      %v844 = vpack.c.bf16 %v840, %v839
      %s845 = scalar_lea.vmem %s1, 24
      %v846 = vld [vmem:[%s845] sm:$0xf]
      %v847 = vld [vmem:[%s845 + $0x4] sm:$0xf]
      %v850 = vunpack.c.l.b16 %v846
      %v851 = vunpack.c.l.b16 %v847
      %v852 = vpack.c.b16 %v851, %v850
      %v855 = vsel %vm278, %v841, 0
      %v858 = vsel %vm278, %v842, 0
      %v861 = vsel %vm278, %v843, 0
      %v864 = vsel %vm278, %v844, 0
      %866 = vmatprep.subr.bf16.mxu0 0
      %867 = vmatpush1.bf16.msra.mxu0 %v852
      %868 = vmatprep.subr.bf16.mxu0 0
      %869 = vmatpush1.bf16.msra.mxu0 0
      %870 = vmatprep.subr.bf16.mxu0 0
      %871 = vmatpush1.bf16.msra.mxu0 0
      %872 = vmatprep.subr.bf16.mxu0 0
      %873 = vmatpush1.bf16.msra.mxu0 0
      %874 = vmatprep.subr.bf16.mxu0 0
      %875 = vmatpush1.bf16.msra.mxu0 0
      %876 = vmatprep.subr.bf16.mxu0 0
      %877 = vmatpush1.bf16.msra.mxu0 0
      %878 = vmatprep.subr.bf16.mxu0 0
      %879 = vmatpush1.bf16.msra.mxu0 0
      %880 = vmatprep.subr.bf16.mxu0 0
      %881 = vmatpush1.bf16.msra.mxu0 0
      %882 = vmatprep.subr.bf16.mxu0 0
      %883 = vmatpush1.bf16.msra.mxu0 0
      %884 = vmatprep.subr.bf16.mxu0 0
      %885 = vmatpush1.bf16.msra.mxu0 0
      %886 = vmatprep.subr.bf16.mxu0 0
      %887 = vmatpush1.bf16.msra.mxu0 0
      %888 = vmatprep.subr.bf16.mxu0 0
      %889 = vmatpush1.bf16.msra.mxu0 0
      %890 = vmatprep.subr.bf16.mxu0 0
      %891 = vmatpush1.bf16.msra.mxu0 0
      %892 = vmatprep.subr.bf16.mxu0 0
      %893 = vmatpush1.bf16.msra.mxu0 0
      %894 = vmatprep.subr.bf16.mxu0 0
      %895 = vmatpush1.bf16.msra.mxu0 0
      %896 = vmatprep.subr.bf16.mxu0 0
      %897 = vmatpush1.bf16.msra.mxu0 0
      %898 = vmatprep.mubr.bf16.mxu0 0
      %899 = vmatmul.mubr.bf16.gmra.mrb[0].mxu0 %v855
      %v900 = vpop.f32.mrb[0].mxu0
      %v901 = vadd.f32 0.0, %v900
      %v902 = vpop.f32.mrb[0].mxu0
      %v903 = vpop.f32.mrb[0].mxu0
      %v904 = vadd.f32 0.0, %v903
      %v905 = vpop.f32.mrb[0].mxu0
      %906 = vmatprep.mubr.bf16.mxu0 0
      %907 = vmatmul.mubr.bf16.gmra.mrb[0].mxu0 %v858
      %v908 = vpop.f32.mrb[0].mxu0
      %v909 = vadd.f32 0.0, %v908
      %v910 = vpop.f32.mrb[0].mxu0
      %v911 = vpop.f32.mrb[0].mxu0
      %v912 = vadd.f32 0.0, %v911
      %v913 = vpop.f32.mrb[0].mxu0
      %914 = vmatprep.mubr.bf16.mxu0 0
      %915 = vmatmul.mubr.bf16.gmra.mrb[0].mxu0 %v861
      %v916 = vpop.f32.mrb[0].mxu0
      %v917 = vadd.f32 0.0, %v916
      %v918 = vpop.f32.mrb[0].mxu0
      %v919 = vpop.f32.mrb[0].mxu0
      %v920 = vadd.f32 0.0, %v919
      %v921 = vpop.f32.mrb[0].mxu0
      %922 = vmatprep.mubr.bf16.mxu0 0
      %923 = vmatmul.mubr.bf16.gmra.mrb[0].mxu0 %v864
      %v924 = vpop.f32.mrb[0].mxu0
      %v925 = vadd.f32 0.0, %v924
      %v926 = vpop.f32.mrb[0].mxu0
      %v927 = vpop.f32.mrb[0].mxu0
      %v928 = vadd.f32 0.0, %v927
      %v929 = vpop.f32.mrb[0].mxu0
      %930 = vdwg.mxu0
      %v931 = vadd.f32 %v825, %v901
      %v932 = vadd.f32 %v826, %v904
      %v933 = vadd.f32 %v827, %v909
      %v934 = vadd.f32 %v828, %v912
      %v935 = vadd.f32 %v829, %v917
      %v936 = vadd.f32 %v830, %v920
      %v937 = vadd.f32 %v831, %v925
      %v938 = vadd.f32 %v832, %v928
      %v939 = vld [vmem:[%s314 + $0x1] sm:$0xff]
      %v940 = vld [vmem:[%s314 + $0x11] sm:$0xff]
      %v941 = vld [vmem:[%s314 + $0x21] sm:$0xff]
      %v942 = vld [vmem:[%s314 + $0x31] sm:$0xff]
      %v943 = vld [vmem:[%s314 + $0x41] sm:$0xff]
      %v944 = vld [vmem:[%s314 + $0x51] sm:$0xff]
      %v945 = vld [vmem:[%s314 + $0x61] sm:$0xff]
      %v946 = vld [vmem:[%s314 + $0x71] sm:$0xff]
      %v947 = vpack.c.bf16 %v940, %v939
      %v948 = vpack.c.bf16 %v942, %v941
      %v949 = vpack.c.bf16 %v944, %v943
      %v950 = vpack.c.bf16 %v946, %v945
      %s951 = scalar_lea.vmem %s1, 32
      %v952 = vld [vmem:[%s951] sm:$0xf]
      %v953 = vld [vmem:[%s951 + $0x4] sm:$0xf]
      %v956 = vunpack.c.l.b16 %v952
      %v957 = vunpack.c.l.b16 %v953
      %v958 = vpack.c.b16 %v957, %v956
      %v961 = vsel %vm278, %v947, 0
      %v964 = vsel %vm278, %v948, 0
      %v967 = vsel %vm278, %v949, 0
      %v970 = vsel %vm278, %v950, 0
      %972 = vmatprep.subr.bf16.mxu0 0
      %973 = vmatpush1.bf16.msra.mxu0 %v958
      %974 = vmatprep.subr.bf16.mxu0 0
      %975 = vmatpush1.bf16.msra.mxu0 0
      %976 = vmatprep.subr.bf16.mxu0 0
      %977 = vmatpush1.bf16.msra.mxu0 0
      %978 = vmatprep.subr.bf16.mxu0 0
      %979 = vmatpush1.bf16.msra.mxu0 0
      %980 = vmatprep.subr.bf16.mxu0 0
      %981 = vmatpush1.bf16.msra.mxu0 0
      %982 = vmatprep.subr.bf16.mxu0 0
      %983 = vmatpush1.bf16.msra.mxu0 0
      %984 = vmatprep.subr.bf16.mxu0 0
      %985 = vmatpush1.bf16.msra.mxu0 0
      %986 = vmatprep.subr.bf16.mxu0 0
      %987 = vmatpush1.bf16.msra.mxu0 0
      %988 = vmatprep.subr.bf16.mxu0 0
      %989 = vmatpush1.bf16.msra.mxu0 0
      %990 = vmatprep.subr.bf16.mxu0 0
      %991 = vmatpush1.bf16.msra.mxu0 0
      %992 = vmatprep.subr.bf16.mxu0 0
      %993 = vmatpush1.bf16.msra.mxu0 0
      %994 = vmatprep.subr.bf16.mxu0 0
      %995 = vmatpush1.bf16.msra.mxu0 0
      %996 = vmatprep.subr.bf16.mxu0 0
      %997 = vmatpush1.bf16.msra.mxu0 0
      %998 = vmatprep.subr.bf16.mxu0 0
      %999 = vmatpush1.bf16.msra.mxu0 0
      %1000 = vmatprep.subr.bf16.mxu0 0
      %1001 = vmatpush1.bf16.msra.mxu0 0
      %1002 = vmatprep.subr.bf16.mxu0 0
      %1003 = vmatpush1.bf16.msra.mxu0 0
      %1004 = vmatprep.mubr.bf16.mxu0 0
      %1005 = vmatmul.mubr.bf16.gmra.mrb[0].mxu0 %v961
      %v1006 = vpop.f32.mrb[0].mxu0
      %v1007 = vadd.f32 0.0, %v1006
      %v1008 = vpop.f32.mrb[0].mxu0
      %v1009 = vpop.f32.mrb[0].mxu0
      %v1010 = vadd.f32 0.0, %v1009
      %v1011 = vpop.f32.mrb[0].mxu0
      %1012 = vmatprep.mubr.bf16.mxu0 0
      %1013 = vmatmul.mubr.bf16.gmra.mrb[0].mxu0 %v964
      %v1014 = vpop.f32.mrb[0].mxu0
      %v1015 = vadd.f32 0.0, %v1014
      %v1016 = vpop.f32.mrb[0].mxu0
      %v1017 = vpop.f32.mrb[0].mxu0
      %v1018 = vadd.f32 0.0, %v1017
      %v1019 = vpop.f32.mrb[0].mxu0
      %1020 = vmatprep.mubr.bf16.mxu0 0
      %1021 = vmatmul.mubr.bf16.gmra.mrb[0].mxu0 %v967
      %v1022 = vpop.f32.mrb[0].mxu0
      %v1023 = vadd.f32 0.0, %v1022
      %v1024 = vpop.f32.mrb[0].mxu0
      %v1025 = vpop.f32.mrb[0].mxu0
      %v1026 = vadd.f32 0.0, %v1025
      %v1027 = vpop.f32.mrb[0].mxu0
      %1028 = vmatprep.mubr.bf16.mxu0 0
      %1029 = vmatmul.mubr.bf16.gmra.mrb[0].mxu0 %v970
      %v1030 = vpop.f32.mrb[0].mxu0
      %v1031 = vadd.f32 0.0, %v1030
      %v1032 = vpop.f32.mrb[0].mxu0
      %v1033 = vpop.f32.mrb[0].mxu0
      %v1034 = vadd.f32 0.0, %v1033
      %v1035 = vpop.f32.mrb[0].mxu0
      %1036 = vdwg.mxu0
      %v1037 = vadd.f32 %v931, %v1007
      %v1038 = vadd.f32 %v932, %v1010
      %v1039 = vadd.f32 %v933, %v1015
      %v1040 = vadd.f32 %v934, %v1018
      %v1041 = vadd.f32 %v935, %v1023
      %v1042 = vadd.f32 %v936, %v1026
      %v1043 = vadd.f32 %v937, %v1031
      %v1044 = vadd.f32 %v938, %v1034
      %v1045 = vld [vmem:[%s314 + $0x2] sm:$0xff]
      %v1046 = vld [vmem:[%s314 + $0x12] sm:$0xff]
      %v1047 = vld [vmem:[%s314 + $0x22] sm:$0xff]
      %v1048 = vld [vmem:[%s314 + $0x32] sm:$0xff]
      %v1049 = vld [vmem:[%s314 + $0x42] sm:$0xff]
      %v1050 = vld [vmem:[%s314 + $0x52] sm:$0xff]
      %v1051 = vld [vmem:[%s314 + $0x62] sm:$0xff]
      %v1052 = vld [vmem:[%s314 + $0x72] sm:$0xff]
      %v1053 = vpack.c.bf16 %v1046, %v1045
      %v1054 = vpack.c.bf16 %v1048, %v1047
      %v1055 = vpack.c.bf16 %v1050, %v1049
      %v1056 = vpack.c.bf16 %v1052, %v1051
      %s1057 = scalar_lea.vmem %s1, 40
      %v1058 = vld [vmem:[%s1057] sm:$0xf]
      %v1059 = vld [vmem:[%s1057 + $0x4] sm:$0xf]
      %v1062 = vunpack.c.l.b16 %v1058
      %v1063 = vunpack.c.l.b16 %v1059
      %v1064 = vpack.c.b16 %v1063, %v1062
      %v1067 = vsel %vm278, %v1053, 0
      %v1070 = vsel %vm278, %v1054, 0
      %v1073 = vsel %vm278, %v1055, 0
      %v1076 = vsel %vm278, %v1056, 0
      %1078 = vmatprep.subr.bf16.mxu0 0
      %1079 = vmatpush1.bf16.msra.mxu0 %v1064
      %1080 = vmatprep.subr.bf16.mxu0 0
      %1081 = vmatpush1.bf16.msra.mxu0 0
      %1082 = vmatprep.subr.bf16.mxu0 0
      %1083 = vmatpush1.bf16.msra.mxu0 0
      %1084 = vmatprep.subr.bf16.mxu0 0
      %1085 = vmatpush1.bf16.msra.mxu0 0
      %1086 = vmatprep.subr.bf16.mxu0 0
      %1087 = vmatpush1.bf16.msra.mxu0 0
      %1088 = vmatprep.subr.bf16.mxu0 0
      %1089 = vmatpush1.bf16.msra.mxu0 0
      %1090 = vmatprep.subr.bf16.mxu0 0
      %1091 = vmatpush1.bf16.msra.mxu0 0
      %1092 = vmatprep.subr.bf16.mxu0 0
      %1093 = vmatpush1.bf16.msra.mxu0 0
      %1094 = vmatprep.subr.bf16.mxu0 0
      %1095 = vmatpush1.bf16.msra.mxu0 0
      %1096 = vmatprep.subr.bf16.mxu0 0
      %1097 = vmatpush1.bf16.msra.mxu0 0
      %1098 = vmatprep.subr.bf16.mxu0 0
      %1099 = vmatpush1.bf16.msra.mxu0 0
      %1100 = vmatprep.subr.bf16.mxu0 0
      %1101 = vmatpush1.bf16.msra.mxu0 0
      %1102 = vmatprep.subr.bf16.mxu0 0
      %1103 = vmatpush1.bf16.msra.mxu0 0
      %1104 = vmatprep.subr.bf16.mxu0 0
      %1105 = vmatpush1.bf16.msra.mxu0 0
      %1106 = vmatprep.subr.bf16.mxu0 0
      %1107 = vmatpush1.bf16.msra.mxu0 0
      %1108 = vmatprep.subr.bf16.mxu0 0
      %1109 = vmatpush1.bf16.msra.mxu0 0
      %1110 = vmatprep.mubr.bf16.mxu0 0
      %1111 = vmatmul.mubr.bf16.gmra.mrb[0].mxu0 %v1067
      %v1112 = vpop.f32.mrb[0].mxu0
      %v1113 = vadd.f32 0.0, %v1112
      %v1114 = vpop.f32.mrb[0].mxu0
      %v1115 = vpop.f32.mrb[0].mxu0
      %v1116 = vadd.f32 0.0, %v1115
      %v1117 = vpop.f32.mrb[0].mxu0
      %1118 = vmatprep.mubr.bf16.mxu0 0
      %1119 = vmatmul.mubr.bf16.gmra.mrb[0].mxu0 %v1070
      %v1120 = vpop.f32.mrb[0].mxu0
      %v1121 = vadd.f32 0.0, %v1120
      %v1122 = vpop.f32.mrb[0].mxu0
      %v1123 = vpop.f32.mrb[0].mxu0
      %v1124 = vadd.f32 0.0, %v1123
      %v1125 = vpop.f32.mrb[0].mxu0
      %1126 = vmatprep.mubr.bf16.mxu0 0
      %1127 = vmatmul.mubr.bf16.gmra.mrb[0].mxu0 %v1073
      %v1128 = vpop.f32.mrb[0].mxu0
      %v1129 = vadd.f32 0.0, %v1128
      %v1130 = vpop.f32.mrb[0].mxu0
      %v1131 = vpop.f32.mrb[0].mxu0
      %v1132 = vadd.f32 0.0, %v1131
      %v1133 = vpop.f32.mrb[0].mxu0
      %1134 = vmatprep.mubr.bf16.mxu0 0
      %1135 = vmatmul.mubr.bf16.gmra.mrb[0].mxu0 %v1076
      %v1136 = vpop.f32.mrb[0].mxu0
      %v1137 = vadd.f32 0.0, %v1136
      %v1138 = vpop.f32.mrb[0].mxu0
      %v1139 = vpop.f32.mrb[0].mxu0
      %v1140 = vadd.f32 0.0, %v1139
      %v1141 = vpop.f32.mrb[0].mxu0
      %1142 = vdwg.mxu0
      %v1143 = vadd.f32 %v1037, %v1113
      %v1144 = vadd.f32 %v1038, %v1116
      %v1145 = vadd.f32 %v1039, %v1121
      %v1146 = vadd.f32 %v1040, %v1124
      %v1147 = vadd.f32 %v1041, %v1129
      %v1148 = vadd.f32 %v1042, %v1132
      %v1149 = vadd.f32 %v1043, %v1137
      %v1150 = vadd.f32 %v1044, %v1140
      %v1151 = vld [vmem:[%s411] sm:$0xff]
      %v1152 = vld [vmem:[%s411 + $0x10] sm:$0xff]
      %v1153 = vld [vmem:[%s411 + $0x20] sm:$0xff]
      %v1154 = vld [vmem:[%s411 + $0x30] sm:$0xff]
      %v1155 = vld [vmem:[%s411 + $0x40] sm:$0xff]
      %v1156 = vld [vmem:[%s411 + $0x50] sm:$0xff]
      %v1157 = vld [vmem:[%s411 + $0x60] sm:$0xff]
      %v1158 = vld [vmem:[%s411 + $0x70] sm:$0xff]
      %v1159 = vpack.c.bf16 %v1152, %v1151
      %v1160 = vpack.c.bf16 %v1154, %v1153
      %v1161 = vpack.c.bf16 %v1156, %v1155
      %v1162 = vpack.c.bf16 %v1158, %v1157
      %s1163 = scalar_lea.vmem %s1, 48
      %v1164 = vld [vmem:[%s1163] sm:$0xf]
      %v1165 = vld [vmem:[%s1163 + $0x4] sm:$0xf]
      %v1168 = vunpack.c.l.b16 %v1164
      %v1169 = vunpack.c.l.b16 %v1165
      %v1170 = vpack.c.b16 %v1169, %v1168
      %v1173 = vsel %vm278, %v1159, 0
      %v1176 = vsel %vm278, %v1160, 0
      %v1179 = vsel %vm278, %v1161, 0
      %v1182 = vsel %vm278, %v1162, 0
      %1184 = vmatprep.subr.bf16.mxu0 0
      %1185 = vmatpush1.bf16.msra.mxu0 %v1170
      %1186 = vmatprep.subr.bf16.mxu0 0
      %1187 = vmatpush1.bf16.msra.mxu0 0
      %1188 = vmatprep.subr.bf16.mxu0 0
      %1189 = vmatpush1.bf16.msra.mxu0 0
      %1190 = vmatprep.subr.bf16.mxu0 0
      %1191 = vmatpush1.bf16.msra.mxu0 0
      %1192 = vmatprep.subr.bf16.mxu0 0
      %1193 = vmatpush1.bf16.msra.mxu0 0
      %1194 = vmatprep.subr.bf16.mxu0 0
      %1195 = vmatpush1.bf16.msra.mxu0 0
      %1196 = vmatprep.subr.bf16.mxu0 0
      %1197 = vmatpush1.bf16.msra.mxu0 0
      %1198 = vmatprep.subr.bf16.mxu0 0
      %1199 = vmatpush1.bf16.msra.mxu0 0
      %1200 = vmatprep.subr.bf16.mxu0 0
      %1201 = vmatpush1.bf16.msra.mxu0 0
      %1202 = vmatprep.subr.bf16.mxu0 0
      %1203 = vmatpush1.bf16.msra.mxu0 0
      %1204 = vmatprep.subr.bf16.mxu0 0
      %1205 = vmatpush1.bf16.msra.mxu0 0
      %1206 = vmatprep.subr.bf16.mxu0 0
      %1207 = vmatpush1.bf16.msra.mxu0 0
      %1208 = vmatprep.subr.bf16.mxu0 0
      %1209 = vmatpush1.bf16.msra.mxu0 0
      %1210 = vmatprep.subr.bf16.mxu0 0
      %1211 = vmatpush1.bf16.msra.mxu0 0
      %1212 = vmatprep.subr.bf16.mxu0 0
      %1213 = vmatpush1.bf16.msra.mxu0 0
      %1214 = vmatprep.subr.bf16.mxu0 0
      %1215 = vmatpush1.bf16.msra.mxu0 0
      %1216 = vmatprep.mubr.bf16.mxu0 0
      %1217 = vmatmul.mubr.bf16.gmra.mrb[0].mxu0 %v1173
      %v1218 = vpop.f32.mrb[0].mxu0
      %v1219 = vadd.f32 0.0, %v1218
      %v1220 = vpop.f32.mrb[0].mxu0
      %v1221 = vpop.f32.mrb[0].mxu0
      %v1222 = vadd.f32 0.0, %v1221
      %v1223 = vpop.f32.mrb[0].mxu0
      %1224 = vmatprep.mubr.bf16.mxu0 0
      %1225 = vmatmul.mubr.bf16.gmra.mrb[0].mxu0 %v1176
      %v1226 = vpop.f32.mrb[0].mxu0
      %v1227 = vadd.f32 0.0, %v1226
      %v1228 = vpop.f32.mrb[0].mxu0
      %v1229 = vpop.f32.mrb[0].mxu0
      %v1230 = vadd.f32 0.0, %v1229
      %v1231 = vpop.f32.mrb[0].mxu0
      %1232 = vmatprep.mubr.bf16.mxu0 0
      %1233 = vmatmul.mubr.bf16.gmra.mrb[0].mxu0 %v1179
      %v1234 = vpop.f32.mrb[0].mxu0
      %v1235 = vadd.f32 0.0, %v1234
      %v1236 = vpop.f32.mrb[0].mxu0
      %v1237 = vpop.f32.mrb[0].mxu0
      %v1238 = vadd.f32 0.0, %v1237
      %v1239 = vpop.f32.mrb[0].mxu0
      %1240 = vmatprep.mubr.bf16.mxu0 0
      %1241 = vmatmul.mubr.bf16.gmra.mrb[0].mxu0 %v1182
      %v1242 = vpop.f32.mrb[0].mxu0
      %v1243 = vadd.f32 0.0, %v1242
      %v1244 = vpop.f32.mrb[0].mxu0
      %v1245 = vpop.f32.mrb[0].mxu0
      %v1246 = vadd.f32 0.0, %v1245
      %v1247 = vpop.f32.mrb[0].mxu0
      %1248 = vdwg.mxu0
      %v1249 = vadd.f32 %v1143, %v1219
      %v1250 = vadd.f32 %v1144, %v1222
      %v1251 = vadd.f32 %v1145, %v1227
      %v1252 = vadd.f32 %v1146, %v1230
      %v1253 = vadd.f32 %v1147, %v1235
      %v1254 = vadd.f32 %v1148, %v1238
      %v1255 = vadd.f32 %v1149, %v1243
      %v1256 = vadd.f32 %v1150, %v1246
      %v1257 = vld [vmem:[%s411 + $0x1] sm:$0xff]
      %v1258 = vld [vmem:[%s411 + $0x11] sm:$0xff]
      %v1259 = vld [vmem:[%s411 + $0x21] sm:$0xff]
      %v1260 = vld [vmem:[%s411 + $0x31] sm:$0xff]
      %v1261 = vld [vmem:[%s411 + $0x41] sm:$0xff]
      %v1262 = vld [vmem:[%s411 + $0x51] sm:$0xff]
      %v1263 = vld [vmem:[%s411 + $0x61] sm:$0xff]
      %v1264 = vld [vmem:[%s411 + $0x71] sm:$0xff]
      %v1265 = vpack.c.bf16 %v1258, %v1257
      %v1266 = vpack.c.bf16 %v1260, %v1259
      %v1267 = vpack.c.bf16 %v1262, %v1261
      %v1268 = vpack.c.bf16 %v1264, %v1263
      %s1269 = scalar_lea.vmem %s1, 56
      %v1270 = vld [vmem:[%s1269] sm:$0xf]
      %v1271 = vld [vmem:[%s1269 + $0x4] sm:$0xf]
      %v1274 = vunpack.c.l.b16 %v1270
      %v1275 = vunpack.c.l.b16 %v1271
      %v1276 = vpack.c.b16 %v1275, %v1274
      %v1279 = vsel %vm278, %v1265, 0
      %v1282 = vsel %vm278, %v1266, 0
      %v1285 = vsel %vm278, %v1267, 0
      %v1288 = vsel %vm278, %v1268, 0
      %1290 = vmatprep.subr.bf16.mxu0 0
      %1291 = vmatpush1.bf16.msra.mxu0 %v1276
      %1292 = vmatprep.subr.bf16.mxu0 0
      %1293 = vmatpush1.bf16.msra.mxu0 0
      %1294 = vmatprep.subr.bf16.mxu0 0
      %1295 = vmatpush1.bf16.msra.mxu0 0
      %1296 = vmatprep.subr.bf16.mxu0 0
      %1297 = vmatpush1.bf16.msra.mxu0 0
      %1298 = vmatprep.subr.bf16.mxu0 0
      %1299 = vmatpush1.bf16.msra.mxu0 0
      %1300 = vmatprep.subr.bf16.mxu0 0
      %1301 = vmatpush1.bf16.msra.mxu0 0
      %1302 = vmatprep.subr.bf16.mxu0 0
      %1303 = vmatpush1.bf16.msra.mxu0 0
      %1304 = vmatprep.subr.bf16.mxu0 0
      %1305 = vmatpush1.bf16.msra.mxu0 0
      %1306 = vmatprep.subr.bf16.mxu0 0
      %1307 = vmatpush1.bf16.msra.mxu0 0
      %1308 = vmatprep.subr.bf16.mxu0 0
      %1309 = vmatpush1.bf16.msra.mxu0 0
      %1310 = vmatprep.subr.bf16.mxu0 0
      %1311 = vmatpush1.bf16.msra.mxu0 0
      %1312 = vmatprep.subr.bf16.mxu0 0
      %1313 = vmatpush1.bf16.msra.mxu0 0
      %1314 = vmatprep.subr.bf16.mxu0 0
      %1315 = vmatpush1.bf16.msra.mxu0 0
      %1316 = vmatprep.subr.bf16.mxu0 0
      %1317 = vmatpush1.bf16.msra.mxu0 0
      %1318 = vmatprep.subr.bf16.mxu0 0
      %1319 = vmatpush1.bf16.msra.mxu0 0
      %1320 = vmatprep.subr.bf16.mxu0 0
      %1321 = vmatpush1.bf16.msra.mxu0 0
      %1322 = vmatprep.mubr.bf16.mxu0 0
      %1323 = vmatmul.mubr.bf16.gmra.mrb[0].mxu0 %v1279
      %v1324 = vpop.f32.mrb[0].mxu0
      %v1325 = vadd.f32 0.0, %v1324
      %v1326 = vpop.f32.mrb[0].mxu0
      %v1327 = vpop.f32.mrb[0].mxu0
      %v1328 = vadd.f32 0.0, %v1327
      %v1329 = vpop.f32.mrb[0].mxu0
      %1330 = vmatprep.mubr.bf16.mxu0 0
      %1331 = vmatmul.mubr.bf16.gmra.mrb[0].mxu0 %v1282
      %v1332 = vpop.f32.mrb[0].mxu0
      %v1333 = vadd.f32 0.0, %v1332
      %v1334 = vpop.f32.mrb[0].mxu0
      %v1335 = vpop.f32.mrb[0].mxu0
      %v1336 = vadd.f32 0.0, %v1335
      %v1337 = vpop.f32.mrb[0].mxu0
      %1338 = vmatprep.mubr.bf16.mxu0 0
      %1339 = vmatmul.mubr.bf16.gmra.mrb[0].mxu0 %v1285
      %v1340 = vpop.f32.mrb[0].mxu0
      %v1341 = vadd.f32 0.0, %v1340
      %v1342 = vpop.f32.mrb[0].mxu0
      %v1343 = vpop.f32.mrb[0].mxu0
      %v1344 = vadd.f32 0.0, %v1343
      %v1345 = vpop.f32.mrb[0].mxu0
      %1346 = vmatprep.mubr.bf16.mxu0 0
      %1347 = vmatmul.mubr.bf16.gmra.mrb[0].mxu0 %v1288
      %v1348 = vpop.f32.mrb[0].mxu0
      %v1349 = vadd.f32 0.0, %v1348
      %v1350 = vpop.f32.mrb[0].mxu0
      %v1351 = vpop.f32.mrb[0].mxu0
      %v1352 = vadd.f32 0.0, %v1351
      %v1353 = vpop.f32.mrb[0].mxu0
      %1354 = vdwg.mxu0
      %v1355 = vadd.f32 %v1249, %v1325
      %v1356 = vadd.f32 %v1250, %v1328
      %v1357 = vadd.f32 %v1251, %v1333
      %v1358 = vadd.f32 %v1252, %v1336
      %v1359 = vadd.f32 %v1253, %v1341
      %v1360 = vadd.f32 %v1254, %v1344
      %v1361 = vadd.f32 %v1255, %v1349
      %v1362 = vadd.f32 %v1256, %v1352
      %v1363 = vld [vmem:[%s411 + $0x2] sm:$0xff]
      %v1364 = vld [vmem:[%s411 + $0x12] sm:$0xff]
      %v1365 = vld [vmem:[%s411 + $0x22] sm:$0xff]
      %v1366 = vld [vmem:[%s411 + $0x32] sm:$0xff]
      %v1367 = vld [vmem:[%s411 + $0x42] sm:$0xff]
      %v1368 = vld [vmem:[%s411 + $0x52] sm:$0xff]
      %v1369 = vld [vmem:[%s411 + $0x62] sm:$0xff]
      %v1370 = vld [vmem:[%s411 + $0x72] sm:$0xff]
      %v1371 = vpack.c.bf16 %v1364, %v1363
      %v1372 = vpack.c.bf16 %v1366, %v1365
      %v1373 = vpack.c.bf16 %v1368, %v1367
      %v1374 = vpack.c.bf16 %v1370, %v1369
      %s1375 = scalar_lea.vmem %s1, 64
      %v1376 = vld [vmem:[%s1375] sm:$0xf]
      %v1377 = vld [vmem:[%s1375 + $0x4] sm:$0xf]
      %v1380 = vunpack.c.l.b16 %v1376
      %v1381 = vunpack.c.l.b16 %v1377
      %v1382 = vpack.c.b16 %v1381, %v1380
      %v1385 = vsel %vm278, %v1371, 0
      %v1388 = vsel %vm278, %v1372, 0
      %v1391 = vsel %vm278, %v1373, 0
      %v1394 = vsel %vm278, %v1374, 0
      %1396 = vmatprep.subr.bf16.mxu0 0
      %1397 = vmatpush1.bf16.msra.mxu0 %v1382
      %1398 = vmatprep.subr.bf16.mxu0 0
      %1399 = vmatpush1.bf16.msra.mxu0 0
      %1400 = vmatprep.subr.bf16.mxu0 0
      %1401 = vmatpush1.bf16.msra.mxu0 0
      %1402 = vmatprep.subr.bf16.mxu0 0
      %1403 = vmatpush1.bf16.msra.mxu0 0
      %1404 = vmatprep.subr.bf16.mxu0 0
      %1405 = vmatpush1.bf16.msra.mxu0 0
      %1406 = vmatprep.subr.bf16.mxu0 0
      %1407 = vmatpush1.bf16.msra.mxu0 0
      %1408 = vmatprep.subr.bf16.mxu0 0
      %1409 = vmatpush1.bf16.msra.mxu0 0
      %1410 = vmatprep.subr.bf16.mxu0 0
      %1411 = vmatpush1.bf16.msra.mxu0 0
      %1412 = vmatprep.subr.bf16.mxu0 0
      %1413 = vmatpush1.bf16.msra.mxu0 0
      %1414 = vmatprep.subr.bf16.mxu0 0
      %1415 = vmatpush1.bf16.msra.mxu0 0
      %1416 = vmatprep.subr.bf16.mxu0 0
      %1417 = vmatpush1.bf16.msra.mxu0 0
      %1418 = vmatprep.subr.bf16.mxu0 0
      %1419 = vmatpush1.bf16.msra.mxu0 0
      %1420 = vmatprep.subr.bf16.mxu0 0
      %1421 = vmatpush1.bf16.msra.mxu0 0
      %1422 = vmatprep.subr.bf16.mxu0 0
      %1423 = vmatpush1.bf16.msra.mxu0 0
      %1424 = vmatprep.subr.bf16.mxu0 0
      %1425 = vmatpush1.bf16.msra.mxu0 0
      %1426 = vmatprep.subr.bf16.mxu0 0
      %1427 = vmatpush1.bf16.msra.mxu0 0
      %1428 = vmatprep.mubr.bf16.mxu0 0
      %1429 = vmatmul.mubr.bf16.gmra.mrb[0].mxu0 %v1385
      %v1430 = vpop.f32.mrb[0].mxu0
      %v1431 = vadd.f32 0.0, %v1430
      %v1432 = vpop.f32.mrb[0].mxu0
      %v1433 = vpop.f32.mrb[0].mxu0
      %v1434 = vadd.f32 0.0, %v1433
      %v1435 = vpop.f32.mrb[0].mxu0
      %1436 = vmatprep.mubr.bf16.mxu0 0
      %1437 = vmatmul.mubr.bf16.gmra.mrb[0].mxu0 %v1388
      %v1438 = vpop.f32.mrb[0].mxu0
      %v1439 = vadd.f32 0.0, %v1438
      %v1440 = vpop.f32.mrb[0].mxu0
      %v1441 = vpop.f32.mrb[0].mxu0
      %v1442 = vadd.f32 0.0, %v1441
      %v1443 = vpop.f32.mrb[0].mxu0
      %1444 = vmatprep.mubr.bf16.mxu0 0
      %1445 = vmatmul.mubr.bf16.gmra.mrb[0].mxu0 %v1391
      %v1446 = vpop.f32.mrb[0].mxu0
      %v1447 = vadd.f32 0.0, %v1446
      %v1448 = vpop.f32.mrb[0].mxu0
      %v1449 = vpop.f32.mrb[0].mxu0
      %v1450 = vadd.f32 0.0, %v1449
      %v1451 = vpop.f32.mrb[0].mxu0
      %1452 = vmatprep.mubr.bf16.mxu0 0
      %1453 = vmatmul.mubr.bf16.gmra.mrb[0].mxu0 %v1394
      %v1454 = vpop.f32.mrb[0].mxu0
      %v1455 = vadd.f32 0.0, %v1454
      %v1456 = vpop.f32.mrb[0].mxu0
      %v1457 = vpop.f32.mrb[0].mxu0
      %v1458 = vadd.f32 0.0, %v1457
      %v1459 = vpop.f32.mrb[0].mxu0
      %1460 = vdwg.mxu0
      %v1461 = vadd.f32 %v1355, %v1431
      %v1462 = vadd.f32 %v1356, %v1434
      %v1463 = vadd.f32 %v1357, %v1439
      %v1464 = vadd.f32 %v1358, %v1442
      %v1465 = vadd.f32 %v1359, %v1447
      %v1466 = vadd.f32 %v1360, %v1450
      %v1467 = vadd.f32 %v1361, %v1455
      %v1468 = vadd.f32 %v1362, %v1458
      %v1469 = vld [vmem:[%s2] sm:$0x1]
      %v1470 = vlaneseq
      %v1471 = vshrl.u32 %v1470, 7
      %v1472 = vsub.s32 0, %v1471
      %v1473 = vrot.slane %v1469, %v1472
      %v1474 = vmul.f32 %v1461, %v1473
      %v1475 = vmul.f32 %v1462, %v1473
      %v1476 = vmul.f32 %v1463, %v1473
      %v1477 = vmul.f32 %v1464, %v1473
      %v1478 = vmul.f32 %v1465, %v1473
      %v1479 = vmul.f32 %v1466, %v1473
      %v1480 = vmul.f32 %v1467, %v1473
      %v1481 = vmul.f32 %v1468, %v1473
      %v1482 = vld [vmem:[%s2 + $0x1] sm:$0x1]
      %v1483 = vlaneseq
      %v1484 = vshrl.u32 %v1483, 7
      %v1485 = vsub.s32 0, %v1484
      %v1486 = vrot.slane %v1482, %v1485
      %v1487 = vadd.f32 %v1474, %v1486
      %v1488 = vadd.f32 %v1475, %v1486
      %v1489 = vadd.f32 %v1476, %v1486
      %v1490 = vadd.f32 %v1477, %v1486
      %v1491 = vadd.f32 %v1478, %v1486
      %v1492 = vadd.f32 %v1479, %v1486
      %v1493 = vadd.f32 %v1480, %v1486
      %v1494 = vadd.f32 %v1481, %v1486
      %1503 = vrot.lane.b32.xlu0 %v1487, 80
      %v1504 = vpop.permute.xlu0 %1503
      %1505 = vrot.lane.b32.xlu0 %v1488, 80
      %v1506 = vpop.permute.xlu0 %1505
      %1507 = vrot.lane.b32.xlu0 %v1489, 80
      %v1508 = vpop.permute.xlu0 %1507
      %1509 = vrot.lane.b32.xlu0 %v1490, 80
      %v1510 = vpop.permute.xlu0 %1509
      %1511 = vrot.lane.b32.xlu0 %v1491, 80
      %v1512 = vpop.permute.xlu0 %1511
      %1513 = vrot.lane.b32.xlu0 %v1492, 80
      %v1514 = vpop.permute.xlu0 %1513
      %1515 = vrot.lane.b32.xlu0 %v1493, 80
      %v1516 = vpop.permute.xlu0 %1515
      %1517 = vrot.lane.b32.xlu0 %v1494, 80
      %v1518 = vpop.permute.xlu0 %1517
      %v1527 = vadd.f32 %v1487, %v1504
      %v1528 = vadd.f32 %v1488, %v1506
      %v1529 = vadd.f32 %v1489, %v1508
      %v1530 = vadd.f32 %v1490, %v1510
      %v1531 = vadd.f32 %v1491, %v1512
      %v1532 = vadd.f32 %v1492, %v1514
      %v1533 = vadd.f32 %v1493, %v1516
      %v1534 = vadd.f32 %v1494, %v1518
      %v1535 = vld [vmem:[%s2 + $0x2] sm:$0x1]
      %v1536 = vlaneseq
      %v1537 = vshrl.u32 %v1536, 7
      %v1538 = vsub.s32 0, %v1537
      %v1539 = vrot.slane %v1535, %v1538
      %v1540 = vmul.f32 %v306, %v1539
      %v1541 = vmul.f32 %v307, %v1539
      %v1542 = vmul.f32 %v308, %v1539
      %v1543 = vmul.f32 %v309, %v1539
      %v1544 = vmul.f32 %v310, %v1539
      %v1545 = vmul.f32 %v311, %v1539
      %v1546 = vmul.f32 %v312, %v1539
      %v1547 = vmul.f32 %v313, %v1539
      %v1548 = vadd.f32 %v1527, %v1540
      %v1549 = vadd.f32 %v1528, %v1541
      %v1550 = vadd.f32 %v1529, %v1542
      %v1551 = vadd.f32 %v1530, %v1543
      %v1552 = vadd.f32 %v1531, %v1544
      %v1553 = vadd.f32 %v1532, %v1545
      %v1554 = vadd.f32 %v1533, %v1546
      %v1555 = vadd.f32 %v1534, %v1547
      %v1556 = vld [vmem:[%s2 + $0x3] sm:$0x1]
      %v1557 = vlaneseq
      %v1558 = vshrl.u32 %v1557, 7
      %v1559 = vsub.s32 0, %v1558
      %v1560 = vrot.slane %v1556, %v1559
      %v1561 = vmul.f32 %v508, %v1560
      %v1562 = vmul.f32 %v509, %v1560
      %v1563 = vmul.f32 %v510, %v1560
      %v1564 = vmul.f32 %v511, %v1560
      %v1565 = vmul.f32 %v512, %v1560
      %v1566 = vmul.f32 %v513, %v1560
      %v1567 = vmul.f32 %v514, %v1560
      %v1568 = vmul.f32 %v515, %v1560
      %v1569 = vadd.f32 %v1548, %v1561
      %v1570 = vadd.f32 %v1549, %v1562
      %v1571 = vadd.f32 %v1550, %v1563
      %v1572 = vadd.f32 %v1551, %v1564
      %v1573 = vadd.f32 %v1552, %v1565
      %v1574 = vadd.f32 %v1553, %v1566
      %v1575 = vadd.f32 %v1554, %v1567
      %v1576 = vadd.f32 %v1555, %v1568
      %1577 = vst.msk [vmem:[%s266] sm:$0xff] %vm278, %v1569
      %1578 = vst.msk [vmem:[%s266 + $0x8] sm:$0xff] %vm278, %v1570
      %1579 = vst.msk [vmem:[%s266 + $0x10] sm:$0xff] %vm278, %v1571
      %1580 = vst.msk [vmem:[%s266 + $0x18] sm:$0xff] %vm278, %v1572
      %1581 = vst.msk [vmem:[%s266 + $0x20] sm:$0xff] %vm278, %v1573
      %1582 = vst.msk [vmem:[%s266 + $0x28] sm:$0xff] %vm278, %v1574
      %1583 = vst.msk [vmem:[%s266 + $0x30] sm:$0xff] %vm278, %v1575
      %1584 = vst.msk [vmem:[%s266 + $0x38] sm:$0xff] %vm278, %v1576
      %v1585 = vld [vmem:[%s2 + $0x2] sm:$0x1]
      %v1586 = vlaneseq
      %v1587 = vshrl.u32 %v1586, 7
      %v1588 = vsub.s32 0, %v1587
      %v1589 = vrot.slane %v1585, %v1588
      %1591 = vrot.lane.b32.xlu0 %v1589, 112
      %v1592 = vpop.permute.xlu0 %1591
      %v1594 = vmul.f32 %v306, %v1592
      %v1595 = vmul.f32 %v307, %v1592
      %v1596 = vmul.f32 %v308, %v1592
      %v1597 = vmul.f32 %v309, %v1592
      %v1598 = vmul.f32 %v310, %v1592
      %v1599 = vmul.f32 %v311, %v1592
      %v1600 = vmul.f32 %v312, %v1592
      %v1601 = vmul.f32 %v313, %v1592
      %1610 = vrot.lane.b32.xlu0 %v1594, 16
      %v1611 = vpop.permute.xlu0 %1610
      %1612 = vrot.lane.b32.xlu0 %v1595, 16
      %v1613 = vpop.permute.xlu0 %1612
      %1614 = vrot.lane.b32.xlu0 %v1596, 16
      %v1615 = vpop.permute.xlu0 %1614
      %1616 = vrot.lane.b32.xlu0 %v1597, 16
      %v1617 = vpop.permute.xlu0 %1616
      %1618 = vrot.lane.b32.xlu0 %v1598, 16
      %v1619 = vpop.permute.xlu0 %1618
      %1620 = vrot.lane.b32.xlu0 %v1599, 16
      %v1621 = vpop.permute.xlu0 %1620
      %1622 = vrot.lane.b32.xlu0 %v1600, 16
      %v1623 = vpop.permute.xlu0 %1622
      %1624 = vrot.lane.b32.xlu0 %v1601, 16
      %v1625 = vpop.permute.xlu0 %1624
      %v1634 = vadd.f32 %v1527, %v1611
      %v1635 = vadd.f32 %v1528, %v1613
      %v1636 = vadd.f32 %v1529, %v1615
      %v1637 = vadd.f32 %v1530, %v1617
      %v1638 = vadd.f32 %v1531, %v1619
      %v1639 = vadd.f32 %v1532, %v1621
      %v1640 = vadd.f32 %v1533, %v1623
      %v1641 = vadd.f32 %v1534, %v1625
      %v1642 = vld [vmem:[%s2 + $0x3] sm:$0x1]
      %v1643 = vlaneseq
      %v1644 = vshrl.u32 %v1643, 7
      %v1645 = vsub.s32 0, %v1644
      %v1646 = vrot.slane %v1642, %v1645
      %1648 = vrot.lane.b32.xlu0 %v1646, 112
      %v1649 = vpop.permute.xlu0 %1648
      %v1651 = vmul.f32 %v508, %v1649
      %v1652 = vmul.f32 %v509, %v1649
      %v1653 = vmul.f32 %v510, %v1649
      %v1654 = vmul.f32 %v511, %v1649
      %v1655 = vmul.f32 %v512, %v1649
      %v1656 = vmul.f32 %v513, %v1649
      %v1657 = vmul.f32 %v514, %v1649
      %v1658 = vmul.f32 %v515, %v1649
      %1667 = vrot.lane.b32.xlu0 %v1651, 16
      %v1668 = vpop.permute.xlu0 %1667
      %1669 = vrot.lane.b32.xlu0 %v1652, 16
      %v1670 = vpop.permute.xlu0 %1669
      %1671 = vrot.lane.b32.xlu0 %v1653, 16
      %v1672 = vpop.permute.xlu0 %1671
      %1673 = vrot.lane.b32.xlu0 %v1654, 16
      %v1674 = vpop.permute.xlu0 %1673
      %1675 = vrot.lane.b32.xlu0 %v1655, 16
      %v1676 = vpop.permute.xlu0 %1675
      %1677 = vrot.lane.b32.xlu0 %v1656, 16
      %v1678 = vpop.permute.xlu0 %1677
      %1679 = vrot.lane.b32.xlu0 %v1657, 16
      %v1680 = vpop.permute.xlu0 %1679
      %1681 = vrot.lane.b32.xlu0 %v1658, 16
      %v1682 = vpop.permute.xlu0 %1681
      %v1691 = vadd.f32 %v1634, %v1668
      %v1692 = vadd.f32 %v1635, %v1670
      %v1693 = vadd.f32 %v1636, %v1672
      %v1694 = vadd.f32 %v1637, %v1674
      %v1695 = vadd.f32 %v1638, %v1676
      %v1696 = vadd.f32 %v1639, %v1678
      %v1697 = vadd.f32 %v1640, %v1680
      %v1698 = vadd.f32 %v1641, %v1682
      %1707 = vrot.lane.b32.xlu0 %v1691, 112
      %v1708 = vpop.permute.xlu0 %1707
      %1709 = vrot.lane.b32.xlu0 %v1692, 112
      %v1710 = vpop.permute.xlu0 %1709
      %1711 = vrot.lane.b32.xlu0 %v1693, 112
      %v1712 = vpop.permute.xlu0 %1711
      %1713 = vrot.lane.b32.xlu0 %v1694, 112
      %v1714 = vpop.permute.xlu0 %1713
      %1715 = vrot.lane.b32.xlu0 %v1695, 112
      %v1716 = vpop.permute.xlu0 %1715
      %1717 = vrot.lane.b32.xlu0 %v1696, 112
      %v1718 = vpop.permute.xlu0 %1717
      %1719 = vrot.lane.b32.xlu0 %v1697, 112
      %v1720 = vpop.permute.xlu0 %1719
      %1721 = vrot.lane.b32.xlu0 %v1698, 112
      %v1722 = vpop.permute.xlu0 %1721
      %1731 = vst.msk [vmem:[%s271] sm:$0xff] %vm278, %v1708
      %1732 = vst.msk [vmem:[%s271 + $0x8] sm:$0xff] %vm278, %v1710
      %1733 = vst.msk [vmem:[%s271 + $0x10] sm:$0xff] %vm278, %v1712
      %1734 = vst.msk [vmem:[%s271 + $0x18] sm:$0xff] %vm278, %v1714
      %1735 = vst.msk [vmem:[%s271 + $0x20] sm:$0xff] %vm278, %v1716
      %1736 = vst.msk [vmem:[%s271 + $0x28] sm:$0xff] %vm278, %v1718
      %1737 = vst.msk [vmem:[%s271 + $0x30] sm:$0xff] %vm278, %v1720
      %1738 = vst.msk [vmem:[%s271 + $0x38] sm:$0xff] %vm278, %v1722
      %v1739 = vld [vmem:[%s2 + $0x2] sm:$0x1]
      %v1740 = vlaneseq
      %v1741 = vshrl.u32 %v1740, 7
      %v1742 = vsub.s32 0, %v1741
      %v1743 = vrot.slane %v1739, %v1742
      %1745 = vrot.lane.b32.xlu0 %v1743, 96
      %v1746 = vpop.permute.xlu0 %1745
      %v1748 = vmul.f32 %v306, %v1746
      %v1749 = vmul.f32 %v307, %v1746
      %v1750 = vmul.f32 %v308, %v1746
      %v1751 = vmul.f32 %v309, %v1746
      %v1752 = vmul.f32 %v310, %v1746
      %v1753 = vmul.f32 %v311, %v1746
      %v1754 = vmul.f32 %v312, %v1746
      %v1755 = vmul.f32 %v313, %v1746
      %1764 = vrot.lane.b32.xlu0 %v1748, 32
      %v1765 = vpop.permute.xlu0 %1764
      %1766 = vrot.lane.b32.xlu0 %v1749, 32
      %v1767 = vpop.permute.xlu0 %1766
      %1768 = vrot.lane.b32.xlu0 %v1750, 32
      %v1769 = vpop.permute.xlu0 %1768
      %1770 = vrot.lane.b32.xlu0 %v1751, 32
      %v1771 = vpop.permute.xlu0 %1770
      %1772 = vrot.lane.b32.xlu0 %v1752, 32
      %v1773 = vpop.permute.xlu0 %1772
      %1774 = vrot.lane.b32.xlu0 %v1753, 32
      %v1775 = vpop.permute.xlu0 %1774
      %1776 = vrot.lane.b32.xlu0 %v1754, 32
      %v1777 = vpop.permute.xlu0 %1776
      %1778 = vrot.lane.b32.xlu0 %v1755, 32
      %v1779 = vpop.permute.xlu0 %1778
      %v1788 = vadd.f32 %v1527, %v1765
      %v1789 = vadd.f32 %v1528, %v1767
      %v1790 = vadd.f32 %v1529, %v1769
      %v1791 = vadd.f32 %v1530, %v1771
      %v1792 = vadd.f32 %v1531, %v1773
      %v1793 = vadd.f32 %v1532, %v1775
      %v1794 = vadd.f32 %v1533, %v1777
      %v1795 = vadd.f32 %v1534, %v1779
      %v1796 = vld [vmem:[%s2 + $0x3] sm:$0x1]
      %v1797 = vlaneseq
      %v1798 = vshrl.u32 %v1797, 7
      %v1799 = vsub.s32 0, %v1798
      %v1800 = vrot.slane %v1796, %v1799
      %1802 = vrot.lane.b32.xlu0 %v1800, 96
      %v1803 = vpop.permute.xlu0 %1802
      %v1805 = vmul.f32 %v508, %v1803
      %v1806 = vmul.f32 %v509, %v1803
      %v1807 = vmul.f32 %v510, %v1803
      %v1808 = vmul.f32 %v511, %v1803
      %v1809 = vmul.f32 %v512, %v1803
      %v1810 = vmul.f32 %v513, %v1803
      %v1811 = vmul.f32 %v514, %v1803
      %v1812 = vmul.f32 %v515, %v1803
      %1821 = vrot.lane.b32.xlu0 %v1805, 32
      %v1822 = vpop.permute.xlu0 %1821
      %1823 = vrot.lane.b32.xlu0 %v1806, 32
      %v1824 = vpop.permute.xlu0 %1823
      %1825 = vrot.lane.b32.xlu0 %v1807, 32
      %v1826 = vpop.permute.xlu0 %1825
      %1827 = vrot.lane.b32.xlu0 %v1808, 32
      %v1828 = vpop.permute.xlu0 %1827
      %1829 = vrot.lane.b32.xlu0 %v1809, 32
      %v1830 = vpop.permute.xlu0 %1829
      %1831 = vrot.lane.b32.xlu0 %v1810, 32
      %v1832 = vpop.permute.xlu0 %1831
      %1833 = vrot.lane.b32.xlu0 %v1811, 32
      %v1834 = vpop.permute.xlu0 %1833
      %1835 = vrot.lane.b32.xlu0 %v1812, 32
      %v1836 = vpop.permute.xlu0 %1835
      %v1845 = vadd.f32 %v1788, %v1822
      %v1846 = vadd.f32 %v1789, %v1824
      %v1847 = vadd.f32 %v1790, %v1826
      %v1848 = vadd.f32 %v1791, %v1828
      %v1849 = vadd.f32 %v1792, %v1830
      %v1850 = vadd.f32 %v1793, %v1832
      %v1851 = vadd.f32 %v1794, %v1834
      %v1852 = vadd.f32 %v1795, %v1836
      %1861 = vrot.lane.b32.xlu0 %v1845, 96
      %v1862 = vpop.permute.xlu0 %1861
      %1863 = vrot.lane.b32.xlu0 %v1846, 96
      %v1864 = vpop.permute.xlu0 %1863
      %1865 = vrot.lane.b32.xlu0 %v1847, 96
      %v1866 = vpop.permute.xlu0 %1865
      %1867 = vrot.lane.b32.xlu0 %v1848, 96
      %v1868 = vpop.permute.xlu0 %1867
      %1869 = vrot.lane.b32.xlu0 %v1849, 96
      %v1870 = vpop.permute.xlu0 %1869
      %1871 = vrot.lane.b32.xlu0 %v1850, 96
      %v1872 = vpop.permute.xlu0 %1871
      %1873 = vrot.lane.b32.xlu0 %v1851, 96
      %v1874 = vpop.permute.xlu0 %1873
      %1875 = vrot.lane.b32.xlu0 %v1852, 96
      %v1876 = vpop.permute.xlu0 %1875
      %1885 = vst.msk [vmem:[%s276] sm:$0xff] %vm278, %v1862
      %1886 = vst.msk [vmem:[%s276 + $0x8] sm:$0xff] %vm278, %v1864
      %1887 = vst.msk [vmem:[%s276 + $0x10] sm:$0xff] %vm278, %v1866
      %1888 = vst.msk [vmem:[%s276 + $0x18] sm:$0xff] %vm278, %v1868
      %1889 = vst.msk [vmem:[%s276 + $0x20] sm:$0xff] %vm278, %v1870
      %1890 = vst.msk [vmem:[%s276 + $0x28] sm:$0xff] %vm278, %v1872
      %1891 = vst.msk [vmem:[%s276 + $0x30] sm:$0xff] %vm278, %v1874
      %1892 = vst.msk [vmem:[%s276 + $0x38] sm:$0xff] %vm278, %v1876
      %p1893 = scmp.lt.s32.totalorder %s18, 1
      %s1894 = scalar_select %p1893, %s18, 1
      %s1895 = smul.addr %s1894, 8
      %s1896 = smul.addr %s1895, 8
      %s1897 = scalar_lea.vmem %s4, %s1896
      %p1898 = scmp.lt.s32.totalorder %s18, 1
      %s1899 = scalar_select %p1898, %s18, 1
      %s1900 = smul.addr %s1899, 8
      %s1901 = smul.addr %s1900, 8
      %s1902 = scalar_lea.vmem %s5, %s1901
      %p1903 = scmp.lt.s32.totalorder %s18, 1
      %s1904 = scalar_select %p1903, %s18, 1
      %s1905 = smul.addr %s1904, 8
      %s1906 = smul.addr %s1905, 8
      %s1907 = scalar_lea.vmem %s6, %s1906
      // Predicated region
      $region37: #{search_cell_forward.7} parent=35 // pred_check
        %p1908 = pneg %p125
      $region38: #{search_cell_forward.7} parent=35 // pred_check_branch
        %1910 = sbr.rel (%p1908) target = $region40
      $region39: #{search_cell_forward.7} parent=35 // pred_region
        _
      $region40: #{search_cell_forward.7} parent=35 // pred_fallthru
        _
      // Predicated region
      $region41: #{search_cell_forward.7} parent=35 // pred_check
        %p1911 = pneg %p151
      $region42: #{search_cell_forward.7} parent=35 // pred_check_branch
        %1913 = sbr.rel (%p1911) target = $region44
      $region43: #{search_cell_forward.7} parent=35 // pred_region
        _
      $region44: #{search_cell_forward.7} parent=35 // pred_fallthru
        _
      // Predicated region
      $region45: #{search_cell_forward.7} parent=35 // pred_check
        %p1914 = pneg %p177
      $region46: #{search_cell_forward.7} parent=35 // pred_check_branch
        %1916 = sbr.rel (%p1914) target = $region48
      $region47: #{search_cell_forward.7} parent=35 // pred_region
        _
      $region48: #{search_cell_forward.7} parent=35 // pred_fallthru
        _
    $region36: #{search_cell_forward.7} parent=5 // pred_fallthru
      _
    %p1917 = scmp.le.s32.totalorder 2, %s13
    // Predicated region
    $region49: #{search_cell_forward.7} parent=5 // pred_check
      %p1918 = pneg %p1917
    $region50: #{search_cell_forward.7} parent=5 // pred_check_branch
      %1920 = sbr.rel (%p1918) target = $region52
    $region51: #{search_cell_forward.7} parent=5 // pred_region
      %s1921 = ssub.s32 %s13, 2
      // Predicated region
      $region53: #{search_cell_forward.7} parent=51 // pred_check
        %p1922 = pneg %p131
      $region54: #{search_cell_forward.7} parent=51 // pred_check_branch
        %1924 = sbr.rel (%p1922) target = $region56
      $region55: #{search_cell_forward.7} parent=51 // pred_region
        %p1925 = scmp.lt.s32.totalorder %s19, 1
        %s1926 = scalar_select %p1925, %s19, 1
        %s1927 = smul.addr %s1926, 8
        %s1928 = smul.addr %s1927, 8
        %s1929 = scalar_lea.vmem %s4, %s1928
      $region56: #{search_cell_forward.7} parent=51 // pred_fallthru
        _
      // Predicated region
      $region57: #{search_cell_forward.7} parent=51 // pred_check
        %p1930 = pneg %p157
      $region58: #{search_cell_forward.7} parent=51 // pred_check_branch
        %1932 = sbr.rel (%p1930) target = $region60
      $region59: #{search_cell_forward.7} parent=51 // pred_region
        %p1933 = scmp.lt.s32.totalorder %s19, 1
        %s1934 = scalar_select %p1933, %s19, 1
        %s1935 = smul.addr %s1934, 8
        %s1936 = smul.addr %s1935, 8
        %s1937 = scalar_lea.vmem %s5, %s1936
      $region60: #{search_cell_forward.7} parent=51 // pred_fallthru
        _
      // Predicated region
      $region61: #{search_cell_forward.7} parent=51 // pred_check
        %p1938 = pneg %p183
      $region62: #{search_cell_forward.7} parent=51 // pred_check_branch
        %1940 = sbr.rel (%p1938) target = $region64
      $region63: #{search_cell_forward.7} parent=51 // pred_region
        %p1941 = scmp.lt.s32.totalorder %s19, 1
        %s1942 = scalar_select %p1941, %s19, 1
        %s1943 = smul.addr %s1942, 8
        %s1944 = smul.addr %s1943, 8
        %s1945 = scalar_lea.vmem %s6, %s1944
      $region64: #{search_cell_forward.7} parent=51 // pred_fallthru
        _
    $region52: #{search_cell_forward.7} parent=5 // pred_fallthru
      _
  $region6: #{search_cell_forward.7} parent=0 // loop_footer
    %s17 = sadd.s32 1, %s13
  $region7: #{search_cell_forward.7} parent=0 // loop_footer_branch
    %12 = sbr.rel target = $region3
  $region8: #{search_cell_forward.7} parent=0 // loop_exit
    _

// kernel: search_cell_forward.9
$region0: #{search_cell_forward.9}
  #allocation0 [shape = 'u32[]', space=smem, size = 0x4, offset = 0x4, fixed_abs, tag = 'smem constant byte address 0x4 - core index']
  #allocation1 [shape = 'u32[144,128]{1,0:T(1,128)}', space=vmem, size = 0x12000, scoped, tag = 'internal scratch']
  #allocation2 [shape = 'f32[1,10,10,16]{3,2,1,0:T(8,128)}', space=vmem, size = 0x14000, scoped, tag = 'scratch operand']
  %s0 = inlined_call_operand.vmem [shape: f32[2,8,8,16], index: 0, kind: input, shape index: {}]
  %s1 = inlined_call_operand.vmem [shape: bf16[9,16,128], index: 1, kind: input, shape index: {}]
  %s2 = inlined_call_operand.vmem [shape: f32[4,128], index: 2, kind: input, shape index: {}]
  %s3 = inlined_call_operand.vmem [shape: f32[1,8,8,1], index: 3, kind: input, shape index: {}]
  %s4 = inlined_call_operand.vmem [shape: f32[2,8,8,16], index: 4, kind: input, shape index: {}, may-alias: {4,6}]
  %s5 = inlined_call_operand.vmem [shape: f32[2,8,8,16], index: 5, kind: input, shape index: {}, may-alias: {5,7}]
  %s6 = inlined_call_operand.vmem [shape: f32[2,8,8,16], index: 6, kind: output, shape index: {0}, may-alias: {4,6}]
  %s7 = inlined_call_operand.vmem [shape: f32[2,8,8,16], index: 7, kind: output, shape index: {1}, may-alias: {5,7}]
  %8 = xla_tuple %s6, %s7
  %s9 = sld [smem:[#allocation0]]
  $region65: #{search_cell_forward.9} parent=0
    _
  %s11 = ssub.s32 1, %s9
  %s12 = scalar_select 0, %s11, %s9
  loop: start=0, step=1, limit=4
  $region2: #{search_cell_forward.9} parent=0 // loop_pre_header
    _
  $region3: #{search_cell_forward.9} parent=0 // loop_header
    %s14 = sphi 0, %s18
    %p15 = scmp.ge.s32.totalorder %s14, 4
    %s24 = sphi 0, %s26
    %s27 = sphi 0, %s24
    %s28 = sphi 0, %s27
    %s44 = sphi 0, %s28
    %s48 = sphi 0, %s48
    %s50 = sphi 0, %s48
    %s51 = sphi 0, %s50
    %s65 = sphi 0, %s51
    %s69 = sphi 0, %s69
    %s71 = sphi 0, %s69
    %s72 = sphi 0, %s71
    %s86 = sphi 0, %s72
    %s90 = sphi 0, %s90
    %s92 = sphi 0, %s90
    %s93 = sphi 0, %s92
    %s107 = sphi 0, %s93
    %s113 = sphi 0, %s115
    %s116 = sphi 0, %s113
    %s117 = sphi 0, %s116
    %s133 = sphi 0, %s117
    %s139 = sphi 0, %s141
    %s142 = sphi 0, %s139
    %s143 = sphi 0, %s142
    %s159 = sphi 0, %s143
    %s165 = sphi 0, %s167
    %s168 = sphi 0, %s165
    %s169 = sphi 0, %s168
    %s185 = sphi 0, %s169
    %s191 = sphi 0, %s193
    %s194 = sphi 0, %s191
    %s195 = sphi 0, %s194
    %s211 = sphi 0, %s195
  $region4: #{search_cell_forward.9} parent=0 // loop_header_branch
    %17 = sbr.rel (%p15) target = $region8
  $region5: #{search_cell_forward.9} parent=0 // loop_body
    %s19 = ssub.s32 %s14, 1
    %s20 = ssub.s32 %s14, 2
    %s21 = sadd.s32 %s14, 1
    %s22 = ssub.s32 %s14, %s21
    %p23 = scmp.eq.s32.totalorder %s22, 0
    %s25 = sadd.s32 %s24, 1
    %s26 = scalar_select %p23, %s24, %s25
    %p29 = pneg %p23
    %p30 = scmp.eq.s32.totalorder %s14, 1
    %p31 = por %p29, %p30
    %p32 = scmp.ne.s32.totalorder %s24, %s27
    %p33 = scmp.eq.s32.totalorder %s14, 0
    %p34 = por %p32, %p33
    %p35 = scmp.ne.s32.totalorder %s24, %s27
    %p36 = scmp.eq.s32.totalorder %s19, 1
    %p37 = por %p35, %p36
    %p38 = scmp.ne.s32.totalorder %s27, %s28
    %p39 = scmp.eq.s32.totalorder %s19, 0
    %p40 = por %p38, %p39
    %p41 = scmp.ne.s32.totalorder %s27, %s28
    %p42 = scmp.eq.s32.totalorder %s20, 1
    %p43 = por %p41, %p42
    %p45 = scmp.ne.s32.totalorder %s28, %s44
    %p46 = scmp.eq.s32.totalorder %s20, 0
    %p47 = por %p45, %p46
    %s49 = sadd.s32 %s48, 1
    %p52 = scmp.eq.s32.totalorder %s14, 1
    %p53 = scmp.ne.s32.totalorder %s48, %s50
    %p54 = scmp.eq.s32.totalorder %s14, 0
    %p55 = por %p53, %p54
    %p56 = scmp.ne.s32.totalorder %s48, %s50
    %p57 = scmp.eq.s32.totalorder %s19, 1
    %p58 = por %p56, %p57
    %p59 = scmp.ne.s32.totalorder %s50, %s51
    %p60 = scmp.eq.s32.totalorder %s19, 0
    %p61 = por %p59, %p60
    %p62 = scmp.ne.s32.totalorder %s50, %s51
    %p63 = scmp.eq.s32.totalorder %s20, 1
    %p64 = por %p62, %p63
    %p66 = scmp.ne.s32.totalorder %s51, %s65
    %p67 = scmp.eq.s32.totalorder %s20, 0
    %p68 = por %p66, %p67
    %s70 = sadd.s32 %s69, 1
    %p73 = scmp.eq.s32.totalorder %s14, 1
    %p74 = scmp.ne.s32.totalorder %s69, %s71
    %p75 = scmp.eq.s32.totalorder %s14, 0
    %p76 = por %p74, %p75
    %p77 = scmp.ne.s32.totalorder %s69, %s71
    %p78 = scmp.eq.s32.totalorder %s19, 1
    %p79 = por %p77, %p78
    %p80 = scmp.ne.s32.totalorder %s71, %s72
    %p81 = scmp.eq.s32.totalorder %s19, 0
    %p82 = por %p80, %p81
    %p83 = scmp.ne.s32.totalorder %s71, %s72
    %p84 = scmp.eq.s32.totalorder %s20, 1
    %p85 = por %p83, %p84
    %p87 = scmp.ne.s32.totalorder %s72, %s86
    %p88 = scmp.eq.s32.totalorder %s20, 0
    %p89 = por %p87, %p88
    %s91 = sadd.s32 %s90, 1
    %p94 = scmp.eq.s32.totalorder %s14, 1
    %p95 = scmp.ne.s32.totalorder %s90, %s92
    %p96 = scmp.eq.s32.totalorder %s14, 0
    %p97 = por %p95, %p96
    %p98 = scmp.ne.s32.totalorder %s90, %s92
    %p99 = scmp.eq.s32.totalorder %s19, 1
    %p100 = por %p98, %p99
    %p101 = scmp.ne.s32.totalorder %s92, %s93
    %p102 = scmp.eq.s32.totalorder %s19, 0
    %p103 = por %p101, %p102
    %p104 = scmp.ne.s32.totalorder %s92, %s93
    %p105 = scmp.eq.s32.totalorder %s20, 1
    %p106 = por %p104, %p105
    %p108 = scmp.ne.s32.totalorder %s93, %s107
    %p109 = scmp.eq.s32.totalorder %s20, 0
    %p110 = por %p108, %p109
    %s111 = ssub.s32 %s14, %s21
    %p112 = scmp.eq.s32.totalorder %s111, 0
    %s114 = sadd.s32 %s113, 1
    %s115 = scalar_select %p112, %s113, %s114
    %p118 = pneg %p112
    %p119 = scmp.eq.s32.totalorder %s14, 1
    %p120 = por %p118, %p119
    %p121 = scmp.ne.s32.totalorder %s113, %s116
    %p122 = scmp.eq.s32.totalorder %s14, 0
    %p123 = por %p121, %p122
    %p124 = scmp.ne.s32.totalorder %s113, %s116
    %p125 = scmp.eq.s32.totalorder %s19, 1
    %p126 = por %p124, %p125
    %p127 = scmp.ne.s32.totalorder %s116, %s117
    %p128 = scmp.eq.s32.totalorder %s19, 0
    %p129 = por %p127, %p128
    %p130 = scmp.ne.s32.totalorder %s116, %s117
    %p131 = scmp.eq.s32.totalorder %s20, 1
    %p132 = por %p130, %p131
    %p134 = scmp.ne.s32.totalorder %s117, %s133
    %p135 = scmp.eq.s32.totalorder %s20, 0
    %p136 = por %p134, %p135
    %s137 = ssub.s32 %s14, %s21
    %p138 = scmp.eq.s32.totalorder %s137, 0
    %s140 = sadd.s32 %s139, 1
    %s141 = scalar_select %p138, %s139, %s140
    %p144 = pneg %p138
    %p145 = scmp.eq.s32.totalorder %s14, 1
    %p146 = por %p144, %p145
    %p147 = scmp.ne.s32.totalorder %s139, %s142
    %p148 = scmp.eq.s32.totalorder %s14, 0
    %p149 = por %p147, %p148
    %p150 = scmp.ne.s32.totalorder %s139, %s142
    %p151 = scmp.eq.s32.totalorder %s19, 1
    %p152 = por %p150, %p151
    %p153 = scmp.ne.s32.totalorder %s142, %s143
    %p154 = scmp.eq.s32.totalorder %s19, 0
    %p155 = por %p153, %p154
    %p156 = scmp.ne.s32.totalorder %s142, %s143
    %p157 = scmp.eq.s32.totalorder %s20, 1
    %p158 = por %p156, %p157
    %p160 = scmp.ne.s32.totalorder %s143, %s159
    %p161 = scmp.eq.s32.totalorder %s20, 0
    %p162 = por %p160, %p161
    %s163 = ssub.s32 %s14, %s21
    %p164 = scmp.eq.s32.totalorder %s163, 0
    %s166 = sadd.s32 %s165, 1
    %s167 = scalar_select %p164, %s165, %s166
    %p170 = pneg %p164
    %p171 = scmp.eq.s32.totalorder %s14, 1
    %p172 = por %p170, %p171
    %p173 = scmp.ne.s32.totalorder %s165, %s168
    %p174 = scmp.eq.s32.totalorder %s14, 0
    %p175 = por %p173, %p174
    %p176 = scmp.ne.s32.totalorder %s165, %s168
    %p177 = scmp.eq.s32.totalorder %s19, 1
    %p178 = por %p176, %p177
    %p179 = scmp.ne.s32.totalorder %s168, %s169
    %p180 = scmp.eq.s32.totalorder %s19, 0
    %p181 = por %p179, %p180
    %p182 = scmp.ne.s32.totalorder %s168, %s169
    %p183 = scmp.eq.s32.totalorder %s20, 1
    %p184 = por %p182, %p183
    %p186 = scmp.ne.s32.totalorder %s169, %s185
    %p187 = scmp.eq.s32.totalorder %s20, 0
    %p188 = por %p186, %p187
    %s189 = ssub.s32 %s14, %s21
    %p190 = scmp.eq.s32.totalorder %s189, 0
    %s192 = sadd.s32 %s191, 1
    %s193 = scalar_select %p190, %s191, %s192
    %p196 = pneg %p190
    %p197 = scmp.eq.s32.totalorder %s14, 1
    %p198 = por %p196, %p197
    %p199 = scmp.ne.s32.totalorder %s191, %s194
    %p200 = scmp.eq.s32.totalorder %s14, 0
    %p201 = por %p199, %p200
    %p202 = scmp.ne.s32.totalorder %s191, %s194
    %p203 = scmp.eq.s32.totalorder %s19, 1
    %p204 = por %p202, %p203
    %p205 = scmp.ne.s32.totalorder %s194, %s195
    %p206 = scmp.eq.s32.totalorder %s19, 0
    %p207 = por %p205, %p206
    %p208 = scmp.ne.s32.totalorder %s194, %s195
    %p209 = scmp.eq.s32.totalorder %s20, 1
    %p210 = por %p208, %p209
    %p212 = scmp.ne.s32.totalorder %s195, %s211
    %p213 = scmp.eq.s32.totalorder %s20, 0
    %p214 = por %p212, %p213
    %p215 = scmp.le.s32.totalorder 1, %s14
    %p216 = scmp.lt.s32.totalorder %s14, 3
    %p217 = pnand %p215, %p216
    %p218 = pneg %p217
    // Predicated region
    $region9: #{search_cell_forward.9} parent=5 // pred_check
      _
    $region10: #{search_cell_forward.9} parent=5 // pred_check_branch
      %220 = sbr.rel (%p217) target = $region12
    $region11: #{search_cell_forward.9} parent=5 // pred_region
      %s221 = ssub.s32 %s14, 1
      // Predicated region
      $region13: #{search_cell_forward.9} parent=11 // pred_check
        %p222 = pneg %p61
      $region14: #{search_cell_forward.9} parent=11 // pred_check_branch
        %224 = sbr.rel (%p222) target = $region16
      $region15: #{search_cell_forward.9} parent=11 // pred_region
        _
      $region16: #{search_cell_forward.9} parent=11 // pred_fallthru
        _
      // Predicated region
      $region17: #{search_cell_forward.9} parent=11 // pred_check
        %p225 = pneg %p82
      $region18: #{search_cell_forward.9} parent=11 // pred_check_branch
        %227 = sbr.rel (%p225) target = $region20
      $region19: #{search_cell_forward.9} parent=11 // pred_region
        _
      $region20: #{search_cell_forward.9} parent=11 // pred_fallthru
        _
      // Predicated region
      $region21: #{search_cell_forward.9} parent=11 // pred_check
        %p228 = pneg %p103
      $region22: #{search_cell_forward.9} parent=11 // pred_check_branch
        %230 = sbr.rel (%p228) target = $region24
      $region23: #{search_cell_forward.9} parent=11 // pred_region
        _
      $region24: #{search_cell_forward.9} parent=11 // pred_fallthru
        _
    $region12: #{search_cell_forward.9} parent=5 // pred_fallthru
      _
    %p231 = scmp.lt.s32.totalorder %s14, 2
    // Predicated region
    $region25: #{search_cell_forward.9} parent=5 // pred_check
      %p232 = pneg %p231
    $region26: #{search_cell_forward.9} parent=5 // pred_check_branch
      %234 = sbr.rel (%p232) target = $region28
    $region27: #{search_cell_forward.9} parent=5 // pred_region
      // Predicated region
      $region29: #{search_cell_forward.9} parent=27 // pred_check
        %p235 = pneg %p34
      $region30: #{search_cell_forward.9} parent=27 // pred_check_branch
        %237 = sbr.rel (%p235) target = $region32
      $region31: #{search_cell_forward.9} parent=27 // pred_region
        %p238 = scmp.lt.s32.totalorder %s14, 1
        %s239 = scalar_select %p238, %s14, 1
        %s240 = smul.addr %s239, 8
        %s241 = smul.addr %s240, 8
        %s242 = scalar_lea.vmem %s0, %s241
      $region32: #{search_cell_forward.9} parent=27 // pred_fallthru
        _
      // Predicated region
      $region33: #{search_cell_forward.9} parent=27 // pred_check
        %p243 = pneg %p123
      $region34: #{search_cell_forward.9} parent=27 // pred_check_branch
        %245 = sbr.rel (%p243) target = $region36
      $region35: #{search_cell_forward.9} parent=27 // pred_region
        %p246 = scmp.lt.s32.totalorder %s14, 1
        %s247 = scalar_select %p246, %s14, 1
        %s248 = smul.addr %s247, 8
        %s249 = smul.addr %s248, 8
        %s250 = scalar_lea.vmem %s4, %s249
      $region36: #{search_cell_forward.9} parent=27 // pred_fallthru
        _
      // Predicated region
      $region37: #{search_cell_forward.9} parent=27 // pred_check
        %p251 = pneg %p149
      $region38: #{search_cell_forward.9} parent=27 // pred_check_branch
        %253 = sbr.rel (%p251) target = $region40
      $region39: #{search_cell_forward.9} parent=27 // pred_region
        %p254 = scmp.lt.s32.totalorder %s14, 1
        %s255 = scalar_select %p254, %s14, 1
        %s256 = smul.addr %s255, 8
        %s257 = smul.addr %s256, 8
        %s258 = scalar_lea.vmem %s5, %s257
      $region40: #{search_cell_forward.9} parent=27 // pred_fallthru
        _
    $region28: #{search_cell_forward.9} parent=5 // pred_fallthru
      _
    %p259 = scmp.le.s32.totalorder 1, %s14
    %p260 = scmp.lt.s32.totalorder %s14, 3
    %p261 = pnand %p259, %p260
    %p262 = pneg %p261
    // Predicated region
    $region41: #{search_cell_forward.9} parent=5 // pred_check
      _
    $region42: #{search_cell_forward.9} parent=5 // pred_check_branch
      %264 = sbr.rel (%p261) target = $region44
    $region43: #{search_cell_forward.9} parent=5 // pred_region
      %s265 = ssub.s32 %s14, 1
      %p266 = scmp.lt.s32.totalorder %s19, 1
      %s267 = scalar_select %p266, %s19, 1
      %s268 = smul.addr %s267, 8
      %s269 = smul.addr %s268, 8
      %s270 = scalar_lea.vmem %s0, %s269
      %p271 = pneg %p40
      %p272 = pneg %p37
      %p273 = pneg %p61
      %p274 = pneg %p58
      %p275 = pneg %p82
      %p276 = pneg %p79
      %p277 = pneg %p103
      %p278 = pneg %p100
      %p279 = scmp.lt.s32.totalorder %s19, 1
      %s280 = scalar_select %p279, %s19, 1
      %s281 = smul.addr %s280, 8
      %s282 = smul.addr %s281, 8
      %s283 = scalar_lea.vmem %s4, %s282
      %p284 = pneg %p129
      %p285 = pneg %p126
      %p286 = scmp.lt.s32.totalorder %s19, 1
      %s287 = scalar_select %p286, %s19, 1
      %s288 = smul.addr %s287, 8
      %s289 = smul.addr %s288, 8
      %s290 = scalar_lea.vmem %s5, %s289
      %p291 = pneg %p155
      %p292 = pneg %p152
      %p293 = pneg %p181
      %p294 = pneg %p178
      %p295 = scmp.lt.s32.totalorder %s19, 1
      %s296 = scalar_select %p295, %s19, 1
      %s297 = smul.addr %s296, 8
      %s298 = smul.addr %s297, 8
      %s299 = scalar_lea.vmem %s6, %s298
      %p300 = pneg %p207
      %p301 = pneg %p204
      %p302 = scmp.lt.s32.totalorder %s19, 1
      %s303 = scalar_select %p302, %s19, 1
      %s304 = smul.addr %s303, 8
      %s305 = smul.addr %s304, 8
      %s306 = scalar_lea.vmem %s7, %s305
      %p307 = scmp.lt.s32.totalorder %s19, 1
      %s308 = scalar_select %p307, %s19, 1
      %s309 = smul.addr %s308, 8
      %s310 = smul.addr %s309, 8
      %s311 = scalar_lea.vmem %s0, %s310
      %p312 = scmp.lt.s32.totalorder %s19, 1
      %s313 = scalar_select %p312, %s19, 1
      %s314 = smul.addr %s313, 8
      %s315 = smul.addr %s314, 8
      %s316 = scalar_lea.vmem %s4, %s315
      %p317 = scmp.lt.s32.totalorder %s19, 1
      %s318 = scalar_select %p317, %s19, 1
      %s319 = smul.addr %s318, 8
      %s320 = smul.addr %s319, 8
      %s321 = scalar_lea.vmem %s5, %s320
      %p322 = scmp.lt.s32.totalorder %s19, 1
      %s323 = scalar_select %p322, %s19, 1
      %s324 = smul.addr %s323, 8
      %s325 = smul.addr %s324, 8
      %s326 = scalar_lea.vmem %s6, %s325
      %p327 = scmp.lt.s32.totalorder %s19, 1
      %s328 = scalar_select %p327, %s19, 1
      %s329 = smul.addr %s328, 8
      %s330 = smul.addr %s329, 8
      %s331 = scalar_lea.vmem %s7, %s330
      %vm333 = vcmask 130048
      %334 = vst.msk [vmem:[#allocation2] sm:$0xff] %vm333, 0.0
      %vm335 = vcmask 123904
      %336 = vst.msk [vmem:[#allocation2 + $0x8] sm:$0x3] %vm335, 0.0
      %s337 = scalar_lea.vmem [#allocation2], 144
      %338 = vst.msk [vmem:[%s337] sm:$0xff] %vm333, 0.0
      %339 = vst.msk [vmem:[%s337 + $0x8] sm:$0x3] %vm335, 0.0
      %vm340 = vcmask 122880
      %341 = vst.msk [vmem:[#allocation2] sm:$0x1] %vm340, 0.0
      %342 = vst.msk [vmem:[#allocation2 + $0x10] sm:$0x1] %vm340, 0.0
      %343 = vst.msk [vmem:[#allocation2 + $0x20] sm:$0x1] %vm340, 0.0
      %344 = vst.msk [vmem:[#allocation2 + $0x30] sm:$0x1] %vm340, 0.0
      %345 = vst.msk [vmem:[#allocation2 + $0x40] sm:$0x1] %vm340, 0.0
      %346 = vst.msk [vmem:[#allocation2 + $0x50] sm:$0x1] %vm340, 0.0
      %347 = vst.msk [vmem:[#allocation2 + $0x60] sm:$0x1] %vm340, 0.0
      %348 = vst.msk [vmem:[#allocation2 + $0x70] sm:$0x1] %vm340, 0.0
      %349 = vst.msk [vmem:[#allocation2 + $0x80] sm:$0x1] %vm340, 0.0
      %350 = vst.msk [vmem:[#allocation2 + $0x90] sm:$0x1] %vm340, 0.0
      %351 = vst.msk [vmem:[#allocation2 + $0x9] sm:$0x1] %vm340, 0.0
      %352 = vst.msk [vmem:[#allocation2 + $0x19] sm:$0x1] %vm340, 0.0
      %353 = vst.msk [vmem:[#allocation2 + $0x29] sm:$0x1] %vm340, 0.0
      %354 = vst.msk [vmem:[#allocation2 + $0x39] sm:$0x1] %vm340, 0.0
      %355 = vst.msk [vmem:[#allocation2 + $0x49] sm:$0x1] %vm340, 0.0
      %356 = vst.msk [vmem:[#allocation2 + $0x59] sm:$0x1] %vm340, 0.0
      %357 = vst.msk [vmem:[#allocation2 + $0x69] sm:$0x1] %vm340, 0.0
      %358 = vst.msk [vmem:[#allocation2 + $0x79] sm:$0x1] %vm340, 0.0
      %359 = vst.msk [vmem:[#allocation2 + $0x89] sm:$0x1] %vm340, 0.0
      %360 = vst.msk [vmem:[#allocation2 + $0x99] sm:$0x1] %vm340, 0.0
      %v361 = vld [vmem:[%s311] sm:$0xff]
      %v362 = vld [vmem:[%s311 + $0x8] sm:$0xff]
      %v363 = vld [vmem:[%s311 + $0x10] sm:$0xff]
      %v364 = vld [vmem:[%s311 + $0x18] sm:$0xff]
      %v365 = vld [vmem:[%s311 + $0x20] sm:$0xff]
      %v366 = vld [vmem:[%s311 + $0x28] sm:$0xff]
      %v367 = vld [vmem:[%s311 + $0x30] sm:$0xff]
      %v368 = vld [vmem:[%s311 + $0x38] sm:$0xff]
      %s369 = scalar_lea.vmem [#allocation2], 16
      %370 = vst.msk [vmem:[%s369 + $0x1] sm:$0xff] %vm333, %v361
      %371 = vst.msk [vmem:[%s369 + $0x11] sm:$0xff] %vm333, %v362
      %372 = vst.msk [vmem:[%s369 + $0x21] sm:$0xff] %vm333, %v363
      %373 = vst.msk [vmem:[%s369 + $0x31] sm:$0xff] %vm333, %v364
      %374 = vst.msk [vmem:[%s369 + $0x41] sm:$0xff] %vm333, %v365
      %375 = vst.msk [vmem:[%s369 + $0x51] sm:$0xff] %vm333, %v366
      %376 = vst.msk [vmem:[%s369 + $0x61] sm:$0xff] %vm333, %v367
      %377 = vst.msk [vmem:[%s369 + $0x71] sm:$0xff] %vm333, %v368
      %v378 = vld [vmem:[#allocation2] sm:$0xff]
      %v379 = vld [vmem:[#allocation2 + $0x10] sm:$0xff]
      %v380 = vld [vmem:[#allocation2 + $0x20] sm:$0xff]
      %v381 = vld [vmem:[#allocation2 + $0x30] sm:$0xff]
      %v382 = vld [vmem:[#allocation2 + $0x40] sm:$0xff]
      %v383 = vld [vmem:[#allocation2 + $0x50] sm:$0xff]
      %v384 = vld [vmem:[#allocation2 + $0x60] sm:$0xff]
      %v385 = vld [vmem:[#allocation2 + $0x70] sm:$0xff]
      %v386 = vld [vmem:[#allocation2 + $0x1] sm:$0xff]
      %v387 = vld [vmem:[#allocation2 + $0x11] sm:$0xff]
      %v388 = vld [vmem:[#allocation2 + $0x21] sm:$0xff]
      %v389 = vld [vmem:[#allocation2 + $0x31] sm:$0xff]
      %v390 = vld [vmem:[#allocation2 + $0x41] sm:$0xff]
      %v391 = vld [vmem:[#allocation2 + $0x51] sm:$0xff]
      %v392 = vld [vmem:[#allocation2 + $0x61] sm:$0xff]
      %v393 = vld [vmem:[#allocation2 + $0x71] sm:$0xff]
      %v394 = vadd.f32 %v378, %v386
      %v395 = vadd.f32 %v379, %v387
      %v396 = vadd.f32 %v380, %v388
      %v397 = vadd.f32 %v381, %v389
      %v398 = vadd.f32 %v382, %v390
      %v399 = vadd.f32 %v383, %v391
      %v400 = vadd.f32 %v384, %v392
      %v401 = vadd.f32 %v385, %v393
      %v402 = vld [vmem:[#allocation2 + $0x2] sm:$0xff]
      %v403 = vld [vmem:[#allocation2 + $0x12] sm:$0xff]
      %v404 = vld [vmem:[#allocation2 + $0x22] sm:$0xff]
      %v405 = vld [vmem:[#allocation2 + $0x32] sm:$0xff]
      %v406 = vld [vmem:[#allocation2 + $0x42] sm:$0xff]
      %v407 = vld [vmem:[#allocation2 + $0x52] sm:$0xff]
      %v408 = vld [vmem:[#allocation2 + $0x62] sm:$0xff]
      %v409 = vld [vmem:[#allocation2 + $0x72] sm:$0xff]
      %v410 = vadd.f32 %v394, %v402
      %v411 = vadd.f32 %v395, %v403
      %v412 = vadd.f32 %v396, %v404
      %v413 = vadd.f32 %v397, %v405
      %v414 = vadd.f32 %v398, %v406
      %v415 = vadd.f32 %v399, %v407
      %v416 = vadd.f32 %v400, %v408
      %v417 = vadd.f32 %v401, %v409
      %v418 = vld [vmem:[%s369] sm:$0xff]
      %v419 = vld [vmem:[%s369 + $0x10] sm:$0xff]
      %v420 = vld [vmem:[%s369 + $0x20] sm:$0xff]
      %v421 = vld [vmem:[%s369 + $0x30] sm:$0xff]
      %v422 = vld [vmem:[%s369 + $0x40] sm:$0xff]
      %v423 = vld [vmem:[%s369 + $0x50] sm:$0xff]
      %v424 = vld [vmem:[%s369 + $0x60] sm:$0xff]
      %v425 = vld [vmem:[%s369 + $0x70] sm:$0xff]
      %v426 = vadd.f32 %v410, %v418
      %v427 = vadd.f32 %v411, %v419
      %v428 = vadd.f32 %v412, %v420
      %v429 = vadd.f32 %v413, %v421
      %v430 = vadd.f32 %v414, %v422
      %v431 = vadd.f32 %v415, %v423
      %v432 = vadd.f32 %v416, %v424
      %v433 = vadd.f32 %v417, %v425
      %v434 = vld [vmem:[%s369 + $0x1] sm:$0xff]
      %v435 = vld [vmem:[%s369 + $0x11] sm:$0xff]
      %v436 = vld [vmem:[%s369 + $0x21] sm:$0xff]
      %v437 = vld [vmem:[%s369 + $0x31] sm:$0xff]
      %v438 = vld [vmem:[%s369 + $0x41] sm:$0xff]
      %v439 = vld [vmem:[%s369 + $0x51] sm:$0xff]
      %v440 = vld [vmem:[%s369 + $0x61] sm:$0xff]
      %v441 = vld [vmem:[%s369 + $0x71] sm:$0xff]
      %v442 = vadd.f32 %v426, %v434
      %v443 = vadd.f32 %v427, %v435
      %v444 = vadd.f32 %v428, %v436
      %v445 = vadd.f32 %v429, %v437
      %v446 = vadd.f32 %v430, %v438
      %v447 = vadd.f32 %v431, %v439
      %v448 = vadd.f32 %v432, %v440
      %v449 = vadd.f32 %v433, %v441
      %v450 = vld [vmem:[%s369 + $0x2] sm:$0xff]
      %v451 = vld [vmem:[%s369 + $0x12] sm:$0xff]
      %v452 = vld [vmem:[%s369 + $0x22] sm:$0xff]
      %v453 = vld [vmem:[%s369 + $0x32] sm:$0xff]
      %v454 = vld [vmem:[%s369 + $0x42] sm:$0xff]
      %v455 = vld [vmem:[%s369 + $0x52] sm:$0xff]
      %v456 = vld [vmem:[%s369 + $0x62] sm:$0xff]
      %v457 = vld [vmem:[%s369 + $0x72] sm:$0xff]
      %v458 = vadd.f32 %v442, %v450
      %v459 = vadd.f32 %v443, %v451
      %v460 = vadd.f32 %v444, %v452
      %v461 = vadd.f32 %v445, %v453
      %v462 = vadd.f32 %v446, %v454
      %v463 = vadd.f32 %v447, %v455
      %v464 = vadd.f32 %v448, %v456
      %v465 = vadd.f32 %v449, %v457
      %s466 = scalar_lea.vmem [#allocation2], 32
      %v467 = vld [vmem:[%s466] sm:$0xff]
      %v468 = vld [vmem:[%s466 + $0x10] sm:$0xff]
      %v469 = vld [vmem:[%s466 + $0x20] sm:$0xff]
      %v470 = vld [vmem:[%s466 + $0x30] sm:$0xff]
      %v471 = vld [vmem:[%s466 + $0x40] sm:$0xff]
      %v472 = vld [vmem:[%s466 + $0x50] sm:$0xff]
      %v473 = vld [vmem:[%s466 + $0x60] sm:$0xff]
      %v474 = vld [vmem:[%s466 + $0x70] sm:$0xff]
      %v475 = vadd.f32 %v458, %v467
      %v476 = vadd.f32 %v459, %v468
      %v477 = vadd.f32 %v460, %v469
      %v478 = vadd.f32 %v461, %v470
      %v479 = vadd.f32 %v462, %v471
      %v480 = vadd.f32 %v463, %v472
      %v481 = vadd.f32 %v464, %v473
      %v482 = vadd.f32 %v465, %v474
      %v483 = vld [vmem:[%s466 + $0x1] sm:$0xff]
      %v484 = vld [vmem:[%s466 + $0x11] sm:$0xff]
      %v485 = vld [vmem:[%s466 + $0x21] sm:$0xff]
      %v486 = vld [vmem:[%s466 + $0x31] sm:$0xff]
      %v487 = vld [vmem:[%s466 + $0x41] sm:$0xff]
      %v488 = vld [vmem:[%s466 + $0x51] sm:$0xff]
      %v489 = vld [vmem:[%s466 + $0x61] sm:$0xff]
      %v490 = vld [vmem:[%s466 + $0x71] sm:$0xff]
      %v491 = vadd.f32 %v475, %v483
      %v492 = vadd.f32 %v476, %v484
      %v493 = vadd.f32 %v477, %v485
      %v494 = vadd.f32 %v478, %v486
      %v495 = vadd.f32 %v479, %v487
      %v496 = vadd.f32 %v480, %v488
      %v497 = vadd.f32 %v481, %v489
      %v498 = vadd.f32 %v482, %v490
      %v499 = vld [vmem:[%s466 + $0x2] sm:$0xff]
      %v500 = vld [vmem:[%s466 + $0x12] sm:$0xff]
      %v501 = vld [vmem:[%s466 + $0x22] sm:$0xff]
      %v502 = vld [vmem:[%s466 + $0x32] sm:$0xff]
      %v503 = vld [vmem:[%s466 + $0x42] sm:$0xff]
      %v504 = vld [vmem:[%s466 + $0x52] sm:$0xff]
      %v505 = vld [vmem:[%s466 + $0x62] sm:$0xff]
      %v506 = vld [vmem:[%s466 + $0x72] sm:$0xff]
      %v507 = vadd.f32 %v491, %v499
      %v508 = vadd.f32 %v492, %v500
      %v509 = vadd.f32 %v493, %v501
      %v510 = vadd.f32 %v494, %v502
      %v511 = vadd.f32 %v495, %v503
      %v512 = vadd.f32 %v496, %v504
      %v513 = vadd.f32 %v497, %v505
      %v514 = vadd.f32 %v498, %v506
      %v515 = vld [vmem:[%s3] sm:$0xff]
      %v516 = vld [vmem:[%s3 + $0x8] sm:$0xff]
      %v517 = vld [vmem:[%s3 + $0x10] sm:$0xff]
      %v518 = vld [vmem:[%s3 + $0x18] sm:$0xff]
      %v519 = vld [vmem:[%s3 + $0x20] sm:$0xff]
      %v520 = vld [vmem:[%s3 + $0x28] sm:$0xff]
      %v521 = vld [vmem:[%s3 + $0x30] sm:$0xff]
      %v522 = vld [vmem:[%s3 + $0x38] sm:$0xff]
      %524 = vset.pattern.permute.xlu0 0
      %525 = vperm.xlu0 %524, %v515
      %v526 = vpop.permute.xlu0 %525
      %529 = vset.pattern.permute.xlu0 0
      %530 = vperm.xlu0 %529, %v516
      %v531 = vpop.permute.xlu0 %530
      %534 = vset.pattern.permute.xlu0 0
      %535 = vperm.xlu0 %534, %v517
      %v536 = vpop.permute.xlu0 %535
      %539 = vset.pattern.permute.xlu0 0
      %540 = vperm.xlu0 %539, %v518
      %v541 = vpop.permute.xlu0 %540
      %544 = vset.pattern.permute.xlu0 0
      %545 = vperm.xlu0 %544, %v519
      %v546 = vpop.permute.xlu0 %545
      %549 = vset.pattern.permute.xlu0 0
      %550 = vperm.xlu0 %549, %v520
      %v551 = vpop.permute.xlu0 %550
      %554 = vset.pattern.permute.xlu0 0
      %555 = vperm.xlu0 %554, %v521
      %v556 = vpop.permute.xlu0 %555
      %559 = vset.pattern.permute.xlu0 0
      %560 = vperm.xlu0 %559, %v522
      %v561 = vpop.permute.xlu0 %560
      %v563 = vmul.f32 %v507, %v526
      %v564 = vmul.f32 %v508, %v531
      %v565 = vmul.f32 %v509, %v536
      %v566 = vmul.f32 %v510, %v541
      %v567 = vmul.f32 %v511, %v546
      %v568 = vmul.f32 %v512, %v551
      %v569 = vmul.f32 %v513, %v556
      %v570 = vmul.f32 %v514, %v561
      %v571 = vmax.f32 %v361, 0.0
      %v572 = vmax.f32 %v362, 0.0
      %v573 = vmax.f32 %v363, 0.0
      %v574 = vmax.f32 %v364, 0.0
      %v575 = vmax.f32 %v365, 0.0
      %v576 = vmax.f32 %v366, 0.0
      %v577 = vmax.f32 %v367, 0.0
      %v578 = vmax.f32 %v368, 0.0
      %579 = vst.msk [vmem:[%s369 + $0x1] sm:$0xff] %vm333, %v571
      %580 = vst.msk [vmem:[%s369 + $0x11] sm:$0xff] %vm333, %v572
      %581 = vst.msk [vmem:[%s369 + $0x21] sm:$0xff] %vm333, %v573
      %582 = vst.msk [vmem:[%s369 + $0x31] sm:$0xff] %vm333, %v574
      %583 = vst.msk [vmem:[%s369 + $0x41] sm:$0xff] %vm333, %v575
      %584 = vst.msk [vmem:[%s369 + $0x51] sm:$0xff] %vm333, %v576
      %585 = vst.msk [vmem:[%s369 + $0x61] sm:$0xff] %vm333, %v577
      %586 = vst.msk [vmem:[%s369 + $0x71] sm:$0xff] %vm333, %v578
      %v587 = vld [vmem:[#allocation2] sm:$0xff]
      %v588 = vld [vmem:[#allocation2 + $0x10] sm:$0xff]
      %v589 = vld [vmem:[#allocation2 + $0x20] sm:$0xff]
      %v590 = vld [vmem:[#allocation2 + $0x30] sm:$0xff]
      %v591 = vld [vmem:[#allocation2 + $0x40] sm:$0xff]
      %v592 = vld [vmem:[#allocation2 + $0x50] sm:$0xff]
      %v593 = vld [vmem:[#allocation2 + $0x60] sm:$0xff]
      %v594 = vld [vmem:[#allocation2 + $0x70] sm:$0xff]
      %v595 = vpack.c.bf16 %v588, %v587
      %v596 = vpack.c.bf16 %v590, %v589
      %v597 = vpack.c.bf16 %v592, %v591
      %v598 = vpack.c.bf16 %v594, %v593
      %v599 = vld [vmem:[%s1] sm:$0xf]
      %v600 = vld [vmem:[%s1 + $0x4] sm:$0xf]
      %v601 = vld [vmem:[#allocation2 + $0x1] sm:$0xff]
      %v602 = vld [vmem:[#allocation2 + $0x11] sm:$0xff]
      %v603 = vld [vmem:[#allocation2 + $0x21] sm:$0xff]
      %v604 = vld [vmem:[#allocation2 + $0x31] sm:$0xff]
      %v605 = vld [vmem:[#allocation2 + $0x41] sm:$0xff]
      %v606 = vld [vmem:[#allocation2 + $0x51] sm:$0xff]
      %v607 = vld [vmem:[#allocation2 + $0x61] sm:$0xff]
      %v608 = vld [vmem:[#allocation2 + $0x71] sm:$0xff]
      %v609 = vpack.c.bf16 %v602, %v601
      %v610 = vpack.c.bf16 %v604, %v603
      %v611 = vpack.c.bf16 %v606, %v605
      %v612 = vpack.c.bf16 %v608, %v607
      %s613 = scalar_lea.vmem %s1, 8
      %v614 = vld [vmem:[%s613] sm:$0xf]
      %v615 = vld [vmem:[%s613 + $0x4] sm:$0xf]
      %v618 = vunpack.c.l.b16 %v614
      %v619 = vunpack.c.l.b16 %v615
      %v620 = vpack.c.b16 %v619, %v618
      %v623 = vsel %vm333, %v609, 0
      %v626 = vsel %vm333, %v610, 0
      %v629 = vsel %vm333, %v611, 0
      %v632 = vsel %vm333, %v612, 0
      %634 = vmatprep.subr.bf16.mxu0 0
      %635 = vmatpush1.bf16.msra.mxu0 %v620
      %636 = vmatprep.subr.bf16.mxu0 0
      %637 = vmatpush1.bf16.msra.mxu0 0
      %638 = vmatprep.subr.bf16.mxu0 0
      %639 = vmatpush1.bf16.msra.mxu0 0
      %640 = vmatprep.subr.bf16.mxu0 0
      %641 = vmatpush1.bf16.msra.mxu0 0
      %642 = vmatprep.subr.bf16.mxu0 0
      %643 = vmatpush1.bf16.msra.mxu0 0
      %644 = vmatprep.subr.bf16.mxu0 0
      %645 = vmatpush1.bf16.msra.mxu0 0
      %646 = vmatprep.subr.bf16.mxu0 0
      %647 = vmatpush1.bf16.msra.mxu0 0
      %648 = vmatprep.subr.bf16.mxu0 0
      %649 = vmatpush1.bf16.msra.mxu0 0
      %650 = vmatprep.subr.bf16.mxu0 0
      %651 = vmatpush1.bf16.msra.mxu0 0
      %652 = vmatprep.subr.bf16.mxu0 0
      %653 = vmatpush1.bf16.msra.mxu0 0
      %654 = vmatprep.subr.bf16.mxu0 0
      %655 = vmatpush1.bf16.msra.mxu0 0
      %656 = vmatprep.subr.bf16.mxu0 0
      %657 = vmatpush1.bf16.msra.mxu0 0
      %658 = vmatprep.subr.bf16.mxu0 0
      %659 = vmatpush1.bf16.msra.mxu0 0
      %660 = vmatprep.subr.bf16.mxu0 0
      %661 = vmatpush1.bf16.msra.mxu0 0
      %662 = vmatprep.subr.bf16.mxu0 0
      %663 = vmatpush1.bf16.msra.mxu0 0
      %664 = vmatprep.subr.bf16.mxu0 0
      %665 = vmatpush1.bf16.msra.mxu0 0
      %666 = vmatprep.mubr.bf16.mxu0 0
      %667 = vmatmul.mubr.bf16.gmra.mrb[0].mxu0 %v623
      %v668 = vpop.f32.mrb[0].mxu0
      %v669 = vadd.f32 0.0, %v668
      %v670 = vpop.f32.mrb[0].mxu0
      %v671 = vpop.f32.mrb[0].mxu0
      %v672 = vadd.f32 0.0, %v671
      %v673 = vpop.f32.mrb[0].mxu0
      %674 = vmatprep.mubr.bf16.mxu0 0
      %675 = vmatmul.mubr.bf16.gmra.mrb[0].mxu0 %v626
      %v676 = vpop.f32.mrb[0].mxu0
      %v677 = vadd.f32 0.0, %v676
      %v678 = vpop.f32.mrb[0].mxu0
      %v679 = vpop.f32.mrb[0].mxu0
      %v680 = vadd.f32 0.0, %v679
      %v681 = vpop.f32.mrb[0].mxu0
      %682 = vmatprep.mubr.bf16.mxu0 0
      %683 = vmatmul.mubr.bf16.gmra.mrb[0].mxu0 %v629
      %v684 = vpop.f32.mrb[0].mxu0
      %v685 = vadd.f32 0.0, %v684
      %v686 = vpop.f32.mrb[0].mxu0
      %v687 = vpop.f32.mrb[0].mxu0
      %v688 = vadd.f32 0.0, %v687
      %v689 = vpop.f32.mrb[0].mxu0
      %690 = vmatprep.mubr.bf16.mxu0 0
      %691 = vmatmul.mubr.bf16.gmra.mrb[0].mxu0 %v632
      %v692 = vpop.f32.mrb[0].mxu0
      %v693 = vadd.f32 0.0, %v692
      %v694 = vpop.f32.mrb[0].mxu0
      %v695 = vpop.f32.mrb[0].mxu0
      %v696 = vadd.f32 0.0, %v695
      %v697 = vpop.f32.mrb[0].mxu0
      %698 = vdwg.mxu0
      %v701 = vunpack.c.l.b16 %v599
      %v702 = vunpack.c.l.b16 %v600
      %v703 = vpack.c.b16 %v702, %v701
      %v706 = vsel %vm333, %v595, 0
      %v709 = vsel %vm333, %v596, 0
      %v712 = vsel %vm333, %v597, 0
      %v715 = vsel %vm333, %v598, 0
      %717 = vmatprep.subr.bf16.mxu0 0
      %718 = vmatpush1.bf16.msra.mxu0 %v703
      %719 = vmatprep.subr.bf16.mxu0 0
      %720 = vmatpush1.bf16.msra.mxu0 0
      %721 = vmatprep.subr.bf16.mxu0 0
      %722 = vmatpush1.bf16.msra.mxu0 0
      %723 = vmatprep.subr.bf16.mxu0 0
      %724 = vmatpush1.bf16.msra.mxu0 0
      %725 = vmatprep.subr.bf16.mxu0 0
      %726 = vmatpush1.bf16.msra.mxu0 0
      %727 = vmatprep.subr.bf16.mxu0 0
      %728 = vmatpush1.bf16.msra.mxu0 0
      %729 = vmatprep.subr.bf16.mxu0 0
      %730 = vmatpush1.bf16.msra.mxu0 0
      %731 = vmatprep.subr.bf16.mxu0 0
      %732 = vmatpush1.bf16.msra.mxu0 0
      %733 = vmatprep.subr.bf16.mxu0 0
      %734 = vmatpush1.bf16.msra.mxu0 0
      %735 = vmatprep.subr.bf16.mxu0 0
      %736 = vmatpush1.bf16.msra.mxu0 0
      %737 = vmatprep.subr.bf16.mxu0 0
      %738 = vmatpush1.bf16.msra.mxu0 0
      %739 = vmatprep.subr.bf16.mxu0 0
      %740 = vmatpush1.bf16.msra.mxu0 0
      %741 = vmatprep.subr.bf16.mxu0 0
      %742 = vmatpush1.bf16.msra.mxu0 0
      %743 = vmatprep.subr.bf16.mxu0 0
      %744 = vmatpush1.bf16.msra.mxu0 0
      %745 = vmatprep.subr.bf16.mxu0 0
      %746 = vmatpush1.bf16.msra.mxu0 0
      %747 = vmatprep.subr.bf16.mxu0 0
      %748 = vmatpush1.bf16.msra.mxu0 0
      %749 = vmatprep.mubr.bf16.mxu0 0
      %750 = vmatmul.mubr.bf16.gmra.mrb[0].mxu0 %v706
      %v751 = vpop.f32.mrb[0].mxu0
      %v752 = vadd.f32 %v669, %v751
      %v753 = vpop.f32.mrb[0].mxu0
      %v754 = vpop.f32.mrb[0].mxu0
      %v755 = vadd.f32 %v672, %v754
      %v756 = vpop.f32.mrb[0].mxu0
      %757 = vmatprep.mubr.bf16.mxu0 0
      %758 = vmatmul.mubr.bf16.gmra.mrb[0].mxu0 %v709
      %v759 = vpop.f32.mrb[0].mxu0
      %v760 = vadd.f32 %v677, %v759
      %v761 = vpop.f32.mrb[0].mxu0
      %v762 = vpop.f32.mrb[0].mxu0
      %v763 = vadd.f32 %v680, %v762
      %v764 = vpop.f32.mrb[0].mxu0
      %765 = vmatprep.mubr.bf16.mxu0 0
      %766 = vmatmul.mubr.bf16.gmra.mrb[0].mxu0 %v712
      %v767 = vpop.f32.mrb[0].mxu0
      %v768 = vadd.f32 %v685, %v767
      %v769 = vpop.f32.mrb[0].mxu0
      %v770 = vpop.f32.mrb[0].mxu0
      %v771 = vadd.f32 %v688, %v770
      %v772 = vpop.f32.mrb[0].mxu0
      %773 = vmatprep.mubr.bf16.mxu0 0
      %774 = vmatmul.mubr.bf16.gmra.mrb[0].mxu0 %v715
      %v775 = vpop.f32.mrb[0].mxu0
      %v776 = vadd.f32 %v693, %v775
      %v777 = vpop.f32.mrb[0].mxu0
      %v778 = vpop.f32.mrb[0].mxu0
      %v779 = vadd.f32 %v696, %v778
      %v780 = vpop.f32.mrb[0].mxu0
      %781 = vdwg.mxu0
      %v782 = vld [vmem:[#allocation2 + $0x2] sm:$0xff]
      %v783 = vld [vmem:[#allocation2 + $0x12] sm:$0xff]
      %v784 = vld [vmem:[#allocation2 + $0x22] sm:$0xff]
      %v785 = vld [vmem:[#allocation2 + $0x32] sm:$0xff]
      %v786 = vld [vmem:[#allocation2 + $0x42] sm:$0xff]
      %v787 = vld [vmem:[#allocation2 + $0x52] sm:$0xff]
      %v788 = vld [vmem:[#allocation2 + $0x62] sm:$0xff]
      %v789 = vld [vmem:[#allocation2 + $0x72] sm:$0xff]
      %v790 = vpack.c.bf16 %v783, %v782
      %v791 = vpack.c.bf16 %v785, %v784
      %v792 = vpack.c.bf16 %v787, %v786
      %v793 = vpack.c.bf16 %v789, %v788
      %s794 = scalar_lea.vmem %s1, 16
      %v795 = vld [vmem:[%s794] sm:$0xf]
      %v796 = vld [vmem:[%s794 + $0x4] sm:$0xf]
      %v799 = vunpack.c.l.b16 %v795
      %v800 = vunpack.c.l.b16 %v796
      %v801 = vpack.c.b16 %v800, %v799
      %v804 = vsel %vm333, %v790, 0
      %v807 = vsel %vm333, %v791, 0
      %v810 = vsel %vm333, %v792, 0
      %v813 = vsel %vm333, %v793, 0
      %815 = vmatprep.subr.bf16.mxu0 0
      %816 = vmatpush1.bf16.msra.mxu0 %v801
      %817 = vmatprep.subr.bf16.mxu0 0
      %818 = vmatpush1.bf16.msra.mxu0 0
      %819 = vmatprep.subr.bf16.mxu0 0
      %820 = vmatpush1.bf16.msra.mxu0 0
      %821 = vmatprep.subr.bf16.mxu0 0
      %822 = vmatpush1.bf16.msra.mxu0 0
      %823 = vmatprep.subr.bf16.mxu0 0
      %824 = vmatpush1.bf16.msra.mxu0 0
      %825 = vmatprep.subr.bf16.mxu0 0
      %826 = vmatpush1.bf16.msra.mxu0 0
      %827 = vmatprep.subr.bf16.mxu0 0
      %828 = vmatpush1.bf16.msra.mxu0 0
      %829 = vmatprep.subr.bf16.mxu0 0
      %830 = vmatpush1.bf16.msra.mxu0 0
      %831 = vmatprep.subr.bf16.mxu0 0
      %832 = vmatpush1.bf16.msra.mxu0 0
      %833 = vmatprep.subr.bf16.mxu0 0
      %834 = vmatpush1.bf16.msra.mxu0 0
      %835 = vmatprep.subr.bf16.mxu0 0
      %836 = vmatpush1.bf16.msra.mxu0 0
      %837 = vmatprep.subr.bf16.mxu0 0
      %838 = vmatpush1.bf16.msra.mxu0 0
      %839 = vmatprep.subr.bf16.mxu0 0
      %840 = vmatpush1.bf16.msra.mxu0 0
      %841 = vmatprep.subr.bf16.mxu0 0
      %842 = vmatpush1.bf16.msra.mxu0 0
      %843 = vmatprep.subr.bf16.mxu0 0
      %844 = vmatpush1.bf16.msra.mxu0 0
      %845 = vmatprep.subr.bf16.mxu0 0
      %846 = vmatpush1.bf16.msra.mxu0 0
      %847 = vmatprep.mubr.bf16.mxu0 0
      %848 = vmatmul.mubr.bf16.gmra.mrb[0].mxu0 %v804
      %v849 = vpop.f32.mrb[0].mxu0
      %v850 = vadd.f32 0.0, %v849
      %v851 = vpop.f32.mrb[0].mxu0
      %v852 = vpop.f32.mrb[0].mxu0
      %v853 = vadd.f32 0.0, %v852
      %v854 = vpop.f32.mrb[0].mxu0
      %855 = vmatprep.mubr.bf16.mxu0 0
      %856 = vmatmul.mubr.bf16.gmra.mrb[0].mxu0 %v807
      %v857 = vpop.f32.mrb[0].mxu0
      %v858 = vadd.f32 0.0, %v857
      %v859 = vpop.f32.mrb[0].mxu0
      %v860 = vpop.f32.mrb[0].mxu0
      %v861 = vadd.f32 0.0, %v860
      %v862 = vpop.f32.mrb[0].mxu0
      %863 = vmatprep.mubr.bf16.mxu0 0
      %864 = vmatmul.mubr.bf16.gmra.mrb[0].mxu0 %v810
      %v865 = vpop.f32.mrb[0].mxu0
      %v866 = vadd.f32 0.0, %v865
      %v867 = vpop.f32.mrb[0].mxu0
      %v868 = vpop.f32.mrb[0].mxu0
      %v869 = vadd.f32 0.0, %v868
      %v870 = vpop.f32.mrb[0].mxu0
      %871 = vmatprep.mubr.bf16.mxu0 0
      %872 = vmatmul.mubr.bf16.gmra.mrb[0].mxu0 %v813
      %v873 = vpop.f32.mrb[0].mxu0
      %v874 = vadd.f32 0.0, %v873
      %v875 = vpop.f32.mrb[0].mxu0
      %v876 = vpop.f32.mrb[0].mxu0
      %v877 = vadd.f32 0.0, %v876
      %v878 = vpop.f32.mrb[0].mxu0
      %879 = vdwg.mxu0
      %v880 = vadd.f32 %v752, %v850
      %v881 = vadd.f32 %v755, %v853
      %v882 = vadd.f32 %v760, %v858
      %v883 = vadd.f32 %v763, %v861
      %v884 = vadd.f32 %v768, %v866
      %v885 = vadd.f32 %v771, %v869
      %v886 = vadd.f32 %v776, %v874
      %v887 = vadd.f32 %v779, %v877
      %v888 = vld [vmem:[%s369] sm:$0xff]
      %v889 = vld [vmem:[%s369 + $0x10] sm:$0xff]
      %v890 = vld [vmem:[%s369 + $0x20] sm:$0xff]
      %v891 = vld [vmem:[%s369 + $0x30] sm:$0xff]
      %v892 = vld [vmem:[%s369 + $0x40] sm:$0xff]
      %v893 = vld [vmem:[%s369 + $0x50] sm:$0xff]
      %v894 = vld [vmem:[%s369 + $0x60] sm:$0xff]
      %v895 = vld [vmem:[%s369 + $0x70] sm:$0xff]
      %v896 = vpack.c.bf16 %v889, %v888
      %v897 = vpack.c.bf16 %v891, %v890
      %v898 = vpack.c.bf16 %v893, %v892
      %v899 = vpack.c.bf16 %v895, %v894
      %s900 = scalar_lea.vmem %s1, 24
      %v901 = vld [vmem:[%s900] sm:$0xf]
      %v902 = vld [vmem:[%s900 + $0x4] sm:$0xf]
      %v905 = vunpack.c.l.b16 %v901
      %v906 = vunpack.c.l.b16 %v902
      %v907 = vpack.c.b16 %v906, %v905
      %v910 = vsel %vm333, %v896, 0
      %v913 = vsel %vm333, %v897, 0
      %v916 = vsel %vm333, %v898, 0
      %v919 = vsel %vm333, %v899, 0
      %921 = vmatprep.subr.bf16.mxu0 0
      %922 = vmatpush1.bf16.msra.mxu0 %v907
      %923 = vmatprep.subr.bf16.mxu0 0
      %924 = vmatpush1.bf16.msra.mxu0 0
      %925 = vmatprep.subr.bf16.mxu0 0
      %926 = vmatpush1.bf16.msra.mxu0 0
      %927 = vmatprep.subr.bf16.mxu0 0
      %928 = vmatpush1.bf16.msra.mxu0 0
      %929 = vmatprep.subr.bf16.mxu0 0
      %930 = vmatpush1.bf16.msra.mxu0 0
      %931 = vmatprep.subr.bf16.mxu0 0
      %932 = vmatpush1.bf16.msra.mxu0 0
      %933 = vmatprep.subr.bf16.mxu0 0
      %934 = vmatpush1.bf16.msra.mxu0 0
      %935 = vmatprep.subr.bf16.mxu0 0
      %936 = vmatpush1.bf16.msra.mxu0 0
      %937 = vmatprep.subr.bf16.mxu0 0
      %938 = vmatpush1.bf16.msra.mxu0 0
      %939 = vmatprep.subr.bf16.mxu0 0
      %940 = vmatpush1.bf16.msra.mxu0 0
      %941 = vmatprep.subr.bf16.mxu0 0
      %942 = vmatpush1.bf16.msra.mxu0 0
      %943 = vmatprep.subr.bf16.mxu0 0
      %944 = vmatpush1.bf16.msra.mxu0 0
      %945 = vmatprep.subr.bf16.mxu0 0
      %946 = vmatpush1.bf16.msra.mxu0 0
      %947 = vmatprep.subr.bf16.mxu0 0
      %948 = vmatpush1.bf16.msra.mxu0 0
      %949 = vmatprep.subr.bf16.mxu0 0
      %950 = vmatpush1.bf16.msra.mxu0 0
      %951 = vmatprep.subr.bf16.mxu0 0
      %952 = vmatpush1.bf16.msra.mxu0 0
      %953 = vmatprep.mubr.bf16.mxu0 0
      %954 = vmatmul.mubr.bf16.gmra.mrb[0].mxu0 %v910
      %v955 = vpop.f32.mrb[0].mxu0
      %v956 = vadd.f32 0.0, %v955
      %v957 = vpop.f32.mrb[0].mxu0
      %v958 = vpop.f32.mrb[0].mxu0
      %v959 = vadd.f32 0.0, %v958
      %v960 = vpop.f32.mrb[0].mxu0
      %961 = vmatprep.mubr.bf16.mxu0 0
      %962 = vmatmul.mubr.bf16.gmra.mrb[0].mxu0 %v913
      %v963 = vpop.f32.mrb[0].mxu0
      %v964 = vadd.f32 0.0, %v963
      %v965 = vpop.f32.mrb[0].mxu0
      %v966 = vpop.f32.mrb[0].mxu0
      %v967 = vadd.f32 0.0, %v966
      %v968 = vpop.f32.mrb[0].mxu0
      %969 = vmatprep.mubr.bf16.mxu0 0
      %970 = vmatmul.mubr.bf16.gmra.mrb[0].mxu0 %v916
      %v971 = vpop.f32.mrb[0].mxu0
      %v972 = vadd.f32 0.0, %v971
      %v973 = vpop.f32.mrb[0].mxu0
      %v974 = vpop.f32.mrb[0].mxu0
      %v975 = vadd.f32 0.0, %v974
      %v976 = vpop.f32.mrb[0].mxu0
      %977 = vmatprep.mubr.bf16.mxu0 0
      %978 = vmatmul.mubr.bf16.gmra.mrb[0].mxu0 %v919
      %v979 = vpop.f32.mrb[0].mxu0
      %v980 = vadd.f32 0.0, %v979
      %v981 = vpop.f32.mrb[0].mxu0
      %v982 = vpop.f32.mrb[0].mxu0
      %v983 = vadd.f32 0.0, %v982
      %v984 = vpop.f32.mrb[0].mxu0
      %985 = vdwg.mxu0
      %v986 = vadd.f32 %v880, %v956
      %v987 = vadd.f32 %v881, %v959
      %v988 = vadd.f32 %v882, %v964
      %v989 = vadd.f32 %v883, %v967
      %v990 = vadd.f32 %v884, %v972
      %v991 = vadd.f32 %v885, %v975
      %v992 = vadd.f32 %v886, %v980
      %v993 = vadd.f32 %v887, %v983
      %v994 = vld [vmem:[%s369 + $0x1] sm:$0xff]
      %v995 = vld [vmem:[%s369 + $0x11] sm:$0xff]
      %v996 = vld [vmem:[%s369 + $0x21] sm:$0xff]
      %v997 = vld [vmem:[%s369 + $0x31] sm:$0xff]
      %v998 = vld [vmem:[%s369 + $0x41] sm:$0xff]
      %v999 = vld [vmem:[%s369 + $0x51] sm:$0xff]
      %v1000 = vld [vmem:[%s369 + $0x61] sm:$0xff]
      %v1001 = vld [vmem:[%s369 + $0x71] sm:$0xff]
      %v1002 = vpack.c.bf16 %v995, %v994
      %v1003 = vpack.c.bf16 %v997, %v996
      %v1004 = vpack.c.bf16 %v999, %v998
      %v1005 = vpack.c.bf16 %v1001, %v1000
      %s1006 = scalar_lea.vmem %s1, 32
      %v1007 = vld [vmem:[%s1006] sm:$0xf]
      %v1008 = vld [vmem:[%s1006 + $0x4] sm:$0xf]
      %v1011 = vunpack.c.l.b16 %v1007
      %v1012 = vunpack.c.l.b16 %v1008
      %v1013 = vpack.c.b16 %v1012, %v1011
      %v1016 = vsel %vm333, %v1002, 0
      %v1019 = vsel %vm333, %v1003, 0
      %v1022 = vsel %vm333, %v1004, 0
      %v1025 = vsel %vm333, %v1005, 0
      %1027 = vmatprep.subr.bf16.mxu0 0
      %1028 = vmatpush1.bf16.msra.mxu0 %v1013
      %1029 = vmatprep.subr.bf16.mxu0 0
      %1030 = vmatpush1.bf16.msra.mxu0 0
      %1031 = vmatprep.subr.bf16.mxu0 0
      %1032 = vmatpush1.bf16.msra.mxu0 0
      %1033 = vmatprep.subr.bf16.mxu0 0
      %1034 = vmatpush1.bf16.msra.mxu0 0
      %1035 = vmatprep.subr.bf16.mxu0 0
      %1036 = vmatpush1.bf16.msra.mxu0 0
      %1037 = vmatprep.subr.bf16.mxu0 0
      %1038 = vmatpush1.bf16.msra.mxu0 0
      %1039 = vmatprep.subr.bf16.mxu0 0
      %1040 = vmatpush1.bf16.msra.mxu0 0
      %1041 = vmatprep.subr.bf16.mxu0 0
      %1042 = vmatpush1.bf16.msra.mxu0 0
      %1043 = vmatprep.subr.bf16.mxu0 0
      %1044 = vmatpush1.bf16.msra.mxu0 0
      %1045 = vmatprep.subr.bf16.mxu0 0
      %1046 = vmatpush1.bf16.msra.mxu0 0
      %1047 = vmatprep.subr.bf16.mxu0 0
      %1048 = vmatpush1.bf16.msra.mxu0 0
      %1049 = vmatprep.subr.bf16.mxu0 0
      %1050 = vmatpush1.bf16.msra.mxu0 0
      %1051 = vmatprep.subr.bf16.mxu0 0
      %1052 = vmatpush1.bf16.msra.mxu0 0
      %1053 = vmatprep.subr.bf16.mxu0 0
      %1054 = vmatpush1.bf16.msra.mxu0 0
      %1055 = vmatprep.subr.bf16.mxu0 0
      %1056 = vmatpush1.bf16.msra.mxu0 0
      %1057 = vmatprep.subr.bf16.mxu0 0
      %1058 = vmatpush1.bf16.msra.mxu0 0
      %1059 = vmatprep.mubr.bf16.mxu0 0
      %1060 = vmatmul.mubr.bf16.gmra.mrb[0].mxu0 %v1016
      %v1061 = vpop.f32.mrb[0].mxu0
      %v1062 = vadd.f32 0.0, %v1061
      %v1063 = vpop.f32.mrb[0].mxu0
      %v1064 = vpop.f32.mrb[0].mxu0
      %v1065 = vadd.f32 0.0, %v1064
      %v1066 = vpop.f32.mrb[0].mxu0
      %1067 = vmatprep.mubr.bf16.mxu0 0
      %1068 = vmatmul.mubr.bf16.gmra.mrb[0].mxu0 %v1019
      %v1069 = vpop.f32.mrb[0].mxu0
      %v1070 = vadd.f32 0.0, %v1069
      %v1071 = vpop.f32.mrb[0].mxu0
      %v1072 = vpop.f32.mrb[0].mxu0
      %v1073 = vadd.f32 0.0, %v1072
      %v1074 = vpop.f32.mrb[0].mxu0
      %1075 = vmatprep.mubr.bf16.mxu0 0
      %1076 = vmatmul.mubr.bf16.gmra.mrb[0].mxu0 %v1022
      %v1077 = vpop.f32.mrb[0].mxu0
      %v1078 = vadd.f32 0.0, %v1077
      %v1079 = vpop.f32.mrb[0].mxu0
      %v1080 = vpop.f32.mrb[0].mxu0
      %v1081 = vadd.f32 0.0, %v1080
      %v1082 = vpop.f32.mrb[0].mxu0
      %1083 = vmatprep.mubr.bf16.mxu0 0
      %1084 = vmatmul.mubr.bf16.gmra.mrb[0].mxu0 %v1025
      %v1085 = vpop.f32.mrb[0].mxu0
      %v1086 = vadd.f32 0.0, %v1085
      %v1087 = vpop.f32.mrb[0].mxu0
      %v1088 = vpop.f32.mrb[0].mxu0
      %v1089 = vadd.f32 0.0, %v1088
      %v1090 = vpop.f32.mrb[0].mxu0
      %1091 = vdwg.mxu0
      %v1092 = vadd.f32 %v986, %v1062
      %v1093 = vadd.f32 %v987, %v1065
      %v1094 = vadd.f32 %v988, %v1070
      %v1095 = vadd.f32 %v989, %v1073
      %v1096 = vadd.f32 %v990, %v1078
      %v1097 = vadd.f32 %v991, %v1081
      %v1098 = vadd.f32 %v992, %v1086
      %v1099 = vadd.f32 %v993, %v1089
      %v1100 = vld [vmem:[%s369 + $0x2] sm:$0xff]
      %v1101 = vld [vmem:[%s369 + $0x12] sm:$0xff]
      %v1102 = vld [vmem:[%s369 + $0x22] sm:$0xff]
      %v1103 = vld [vmem:[%s369 + $0x32] sm:$0xff]
      %v1104 = vld [vmem:[%s369 + $0x42] sm:$0xff]
      %v1105 = vld [vmem:[%s369 + $0x52] sm:$0xff]
      %v1106 = vld [vmem:[%s369 + $0x62] sm:$0xff]
      %v1107 = vld [vmem:[%s369 + $0x72] sm:$0xff]
      %v1108 = vpack.c.bf16 %v1101, %v1100
      %v1109 = vpack.c.bf16 %v1103, %v1102
      %v1110 = vpack.c.bf16 %v1105, %v1104
      %v1111 = vpack.c.bf16 %v1107, %v1106
      %s1112 = scalar_lea.vmem %s1, 40
      %v1113 = vld [vmem:[%s1112] sm:$0xf]
      %v1114 = vld [vmem:[%s1112 + $0x4] sm:$0xf]
      %v1117 = vunpack.c.l.b16 %v1113
      %v1118 = vunpack.c.l.b16 %v1114
      %v1119 = vpack.c.b16 %v1118, %v1117
      %v1122 = vsel %vm333, %v1108, 0
      %v1125 = vsel %vm333, %v1109, 0
      %v1128 = vsel %vm333, %v1110, 0
      %v1131 = vsel %vm333, %v1111, 0
      %1133 = vmatprep.subr.bf16.mxu0 0
      %1134 = vmatpush1.bf16.msra.mxu0 %v1119
      %1135 = vmatprep.subr.bf16.mxu0 0
      %1136 = vmatpush1.bf16.msra.mxu0 0
      %1137 = vmatprep.subr.bf16.mxu0 0
      %1138 = vmatpush1.bf16.msra.mxu0 0
      %1139 = vmatprep.subr.bf16.mxu0 0
      %1140 = vmatpush1.bf16.msra.mxu0 0
      %1141 = vmatprep.subr.bf16.mxu0 0
      %1142 = vmatpush1.bf16.msra.mxu0 0
      %1143 = vmatprep.subr.bf16.mxu0 0
      %1144 = vmatpush1.bf16.msra.mxu0 0
      %1145 = vmatprep.subr.bf16.mxu0 0
      %1146 = vmatpush1.bf16.msra.mxu0 0
      %1147 = vmatprep.subr.bf16.mxu0 0
      %1148 = vmatpush1.bf16.msra.mxu0 0
      %1149 = vmatprep.subr.bf16.mxu0 0
      %1150 = vmatpush1.bf16.msra.mxu0 0
      %1151 = vmatprep.subr.bf16.mxu0 0
      %1152 = vmatpush1.bf16.msra.mxu0 0
      %1153 = vmatprep.subr.bf16.mxu0 0
      %1154 = vmatpush1.bf16.msra.mxu0 0
      %1155 = vmatprep.subr.bf16.mxu0 0
      %1156 = vmatpush1.bf16.msra.mxu0 0
      %1157 = vmatprep.subr.bf16.mxu0 0
      %1158 = vmatpush1.bf16.msra.mxu0 0
      %1159 = vmatprep.subr.bf16.mxu0 0
      %1160 = vmatpush1.bf16.msra.mxu0 0
      %1161 = vmatprep.subr.bf16.mxu0 0
      %1162 = vmatpush1.bf16.msra.mxu0 0
      %1163 = vmatprep.subr.bf16.mxu0 0
      %1164 = vmatpush1.bf16.msra.mxu0 0
      %1165 = vmatprep.mubr.bf16.mxu0 0
      %1166 = vmatmul.mubr.bf16.gmra.mrb[0].mxu0 %v1122
      %v1167 = vpop.f32.mrb[0].mxu0
      %v1168 = vadd.f32 0.0, %v1167
      %v1169 = vpop.f32.mrb[0].mxu0
      %v1170 = vpop.f32.mrb[0].mxu0
      %v1171 = vadd.f32 0.0, %v1170
      %v1172 = vpop.f32.mrb[0].mxu0
      %1173 = vmatprep.mubr.bf16.mxu0 0
      %1174 = vmatmul.mubr.bf16.gmra.mrb[0].mxu0 %v1125
      %v1175 = vpop.f32.mrb[0].mxu0
      %v1176 = vadd.f32 0.0, %v1175
      %v1177 = vpop.f32.mrb[0].mxu0
      %v1178 = vpop.f32.mrb[0].mxu0
      %v1179 = vadd.f32 0.0, %v1178
      %v1180 = vpop.f32.mrb[0].mxu0
      %1181 = vmatprep.mubr.bf16.mxu0 0
      %1182 = vmatmul.mubr.bf16.gmra.mrb[0].mxu0 %v1128
      %v1183 = vpop.f32.mrb[0].mxu0
      %v1184 = vadd.f32 0.0, %v1183
      %v1185 = vpop.f32.mrb[0].mxu0
      %v1186 = vpop.f32.mrb[0].mxu0
      %v1187 = vadd.f32 0.0, %v1186
      %v1188 = vpop.f32.mrb[0].mxu0
      %1189 = vmatprep.mubr.bf16.mxu0 0
      %1190 = vmatmul.mubr.bf16.gmra.mrb[0].mxu0 %v1131
      %v1191 = vpop.f32.mrb[0].mxu0
      %v1192 = vadd.f32 0.0, %v1191
      %v1193 = vpop.f32.mrb[0].mxu0
      %v1194 = vpop.f32.mrb[0].mxu0
      %v1195 = vadd.f32 0.0, %v1194
      %v1196 = vpop.f32.mrb[0].mxu0
      %1197 = vdwg.mxu0
      %v1198 = vadd.f32 %v1092, %v1168
      %v1199 = vadd.f32 %v1093, %v1171
      %v1200 = vadd.f32 %v1094, %v1176
      %v1201 = vadd.f32 %v1095, %v1179
      %v1202 = vadd.f32 %v1096, %v1184
      %v1203 = vadd.f32 %v1097, %v1187
      %v1204 = vadd.f32 %v1098, %v1192
      %v1205 = vadd.f32 %v1099, %v1195
      %v1206 = vld [vmem:[%s466] sm:$0xff]
      %v1207 = vld [vmem:[%s466 + $0x10] sm:$0xff]
      %v1208 = vld [vmem:[%s466 + $0x20] sm:$0xff]
      %v1209 = vld [vmem:[%s466 + $0x30] sm:$0xff]
      %v1210 = vld [vmem:[%s466 + $0x40] sm:$0xff]
      %v1211 = vld [vmem:[%s466 + $0x50] sm:$0xff]
      %v1212 = vld [vmem:[%s466 + $0x60] sm:$0xff]
      %v1213 = vld [vmem:[%s466 + $0x70] sm:$0xff]
      %v1214 = vpack.c.bf16 %v1207, %v1206
      %v1215 = vpack.c.bf16 %v1209, %v1208
      %v1216 = vpack.c.bf16 %v1211, %v1210
      %v1217 = vpack.c.bf16 %v1213, %v1212
      %s1218 = scalar_lea.vmem %s1, 48
      %v1219 = vld [vmem:[%s1218] sm:$0xf]
      %v1220 = vld [vmem:[%s1218 + $0x4] sm:$0xf]
      %v1223 = vunpack.c.l.b16 %v1219
      %v1224 = vunpack.c.l.b16 %v1220
      %v1225 = vpack.c.b16 %v1224, %v1223
      %v1228 = vsel %vm333, %v1214, 0
      %v1231 = vsel %vm333, %v1215, 0
      %v1234 = vsel %vm333, %v1216, 0
      %v1237 = vsel %vm333, %v1217, 0
      %1239 = vmatprep.subr.bf16.mxu0 0
      %1240 = vmatpush1.bf16.msra.mxu0 %v1225
      %1241 = vmatprep.subr.bf16.mxu0 0
      %1242 = vmatpush1.bf16.msra.mxu0 0
      %1243 = vmatprep.subr.bf16.mxu0 0
      %1244 = vmatpush1.bf16.msra.mxu0 0
      %1245 = vmatprep.subr.bf16.mxu0 0
      %1246 = vmatpush1.bf16.msra.mxu0 0
      %1247 = vmatprep.subr.bf16.mxu0 0
      %1248 = vmatpush1.bf16.msra.mxu0 0
      %1249 = vmatprep.subr.bf16.mxu0 0
      %1250 = vmatpush1.bf16.msra.mxu0 0
      %1251 = vmatprep.subr.bf16.mxu0 0
      %1252 = vmatpush1.bf16.msra.mxu0 0
      %1253 = vmatprep.subr.bf16.mxu0 0
      %1254 = vmatpush1.bf16.msra.mxu0 0
      %1255 = vmatprep.subr.bf16.mxu0 0
      %1256 = vmatpush1.bf16.msra.mxu0 0
      %1257 = vmatprep.subr.bf16.mxu0 0
      %1258 = vmatpush1.bf16.msra.mxu0 0
      %1259 = vmatprep.subr.bf16.mxu0 0
      %1260 = vmatpush1.bf16.msra.mxu0 0
      %1261 = vmatprep.subr.bf16.mxu0 0
      %1262 = vmatpush1.bf16.msra.mxu0 0
      %1263 = vmatprep.subr.bf16.mxu0 0
      %1264 = vmatpush1.bf16.msra.mxu0 0
      %1265 = vmatprep.subr.bf16.mxu0 0
      %1266 = vmatpush1.bf16.msra.mxu0 0
      %1267 = vmatprep.subr.bf16.mxu0 0
      %1268 = vmatpush1.bf16.msra.mxu0 0
      %1269 = vmatprep.subr.bf16.mxu0 0
      %1270 = vmatpush1.bf16.msra.mxu0 0
      %1271 = vmatprep.mubr.bf16.mxu0 0
      %1272 = vmatmul.mubr.bf16.gmra.mrb[0].mxu0 %v1228
      %v1273 = vpop.f32.mrb[0].mxu0
      %v1274 = vadd.f32 0.0, %v1273
      %v1275 = vpop.f32.mrb[0].mxu0
      %v1276 = vpop.f32.mrb[0].mxu0
      %v1277 = vadd.f32 0.0, %v1276
      %v1278 = vpop.f32.mrb[0].mxu0
      %1279 = vmatprep.mubr.bf16.mxu0 0
      %1280 = vmatmul.mubr.bf16.gmra.mrb[0].mxu0 %v1231
      %v1281 = vpop.f32.mrb[0].mxu0
      %v1282 = vadd.f32 0.0, %v1281
      %v1283 = vpop.f32.mrb[0].mxu0
      %v1284 = vpop.f32.mrb[0].mxu0
      %v1285 = vadd.f32 0.0, %v1284
      %v1286 = vpop.f32.mrb[0].mxu0
      %1287 = vmatprep.mubr.bf16.mxu0 0
      %1288 = vmatmul.mubr.bf16.gmra.mrb[0].mxu0 %v1234
      %v1289 = vpop.f32.mrb[0].mxu0
      %v1290 = vadd.f32 0.0, %v1289
      %v1291 = vpop.f32.mrb[0].mxu0
      %v1292 = vpop.f32.mrb[0].mxu0
      %v1293 = vadd.f32 0.0, %v1292
      %v1294 = vpop.f32.mrb[0].mxu0
      %1295 = vmatprep.mubr.bf16.mxu0 0
      %1296 = vmatmul.mubr.bf16.gmra.mrb[0].mxu0 %v1237
      %v1297 = vpop.f32.mrb[0].mxu0
      %v1298 = vadd.f32 0.0, %v1297
      %v1299 = vpop.f32.mrb[0].mxu0
      %v1300 = vpop.f32.mrb[0].mxu0
      %v1301 = vadd.f32 0.0, %v1300
      %v1302 = vpop.f32.mrb[0].mxu0
      %1303 = vdwg.mxu0
      %v1304 = vadd.f32 %v1198, %v1274
      %v1305 = vadd.f32 %v1199, %v1277
      %v1306 = vadd.f32 %v1200, %v1282
      %v1307 = vadd.f32 %v1201, %v1285
      %v1308 = vadd.f32 %v1202, %v1290
      %v1309 = vadd.f32 %v1203, %v1293
      %v1310 = vadd.f32 %v1204, %v1298
      %v1311 = vadd.f32 %v1205, %v1301
      %v1312 = vld [vmem:[%s466 + $0x1] sm:$0xff]
      %v1313 = vld [vmem:[%s466 + $0x11] sm:$0xff]
      %v1314 = vld [vmem:[%s466 + $0x21] sm:$0xff]
      %v1315 = vld [vmem:[%s466 + $0x31] sm:$0xff]
      %v1316 = vld [vmem:[%s466 + $0x41] sm:$0xff]
      %v1317 = vld [vmem:[%s466 + $0x51] sm:$0xff]
      %v1318 = vld [vmem:[%s466 + $0x61] sm:$0xff]
      %v1319 = vld [vmem:[%s466 + $0x71] sm:$0xff]
      %v1320 = vpack.c.bf16 %v1313, %v1312
      %v1321 = vpack.c.bf16 %v1315, %v1314
      %v1322 = vpack.c.bf16 %v1317, %v1316
      %v1323 = vpack.c.bf16 %v1319, %v1318
      %s1324 = scalar_lea.vmem %s1, 56
      %v1325 = vld [vmem:[%s1324] sm:$0xf]
      %v1326 = vld [vmem:[%s1324 + $0x4] sm:$0xf]
      %v1329 = vunpack.c.l.b16 %v1325
      %v1330 = vunpack.c.l.b16 %v1326
      %v1331 = vpack.c.b16 %v1330, %v1329
      %v1334 = vsel %vm333, %v1320, 0
      %v1337 = vsel %vm333, %v1321, 0
      %v1340 = vsel %vm333, %v1322, 0
      %v1343 = vsel %vm333, %v1323, 0
      %1345 = vmatprep.subr.bf16.mxu0 0
      %1346 = vmatpush1.bf16.msra.mxu0 %v1331
      %1347 = vmatprep.subr.bf16.mxu0 0
      %1348 = vmatpush1.bf16.msra.mxu0 0
      %1349 = vmatprep.subr.bf16.mxu0 0
      %1350 = vmatpush1.bf16.msra.mxu0 0
      %1351 = vmatprep.subr.bf16.mxu0 0
      %1352 = vmatpush1.bf16.msra.mxu0 0
      %1353 = vmatprep.subr.bf16.mxu0 0
      %1354 = vmatpush1.bf16.msra.mxu0 0
      %1355 = vmatprep.subr.bf16.mxu0 0
      %1356 = vmatpush1.bf16.msra.mxu0 0
      %1357 = vmatprep.subr.bf16.mxu0 0
      %1358 = vmatpush1.bf16.msra.mxu0 0
      %1359 = vmatprep.subr.bf16.mxu0 0
      %1360 = vmatpush1.bf16.msra.mxu0 0
      %1361 = vmatprep.subr.bf16.mxu0 0
      %1362 = vmatpush1.bf16.msra.mxu0 0
      %1363 = vmatprep.subr.bf16.mxu0 0
      %1364 = vmatpush1.bf16.msra.mxu0 0
      %1365 = vmatprep.subr.bf16.mxu0 0
      %1366 = vmatpush1.bf16.msra.mxu0 0
      %1367 = vmatprep.subr.bf16.mxu0 0
      %1368 = vmatpush1.bf16.msra.mxu0 0
      %1369 = vmatprep.subr.bf16.mxu0 0
      %1370 = vmatpush1.bf16.msra.mxu0 0
      %1371 = vmatprep.subr.bf16.mxu0 0
      %1372 = vmatpush1.bf16.msra.mxu0 0
      %1373 = vmatprep.subr.bf16.mxu0 0
      %1374 = vmatpush1.bf16.msra.mxu0 0
      %1375 = vmatprep.subr.bf16.mxu0 0
      %1376 = vmatpush1.bf16.msra.mxu0 0
      %1377 = vmatprep.mubr.bf16.mxu0 0
      %1378 = vmatmul.mubr.bf16.gmra.mrb[0].mxu0 %v1334
      %v1379 = vpop.f32.mrb[0].mxu0
      %v1380 = vadd.f32 0.0, %v1379
      %v1381 = vpop.f32.mrb[0].mxu0
      %v1382 = vpop.f32.mrb[0].mxu0
      %v1383 = vadd.f32 0.0, %v1382
      %v1384 = vpop.f32.mrb[0].mxu0
      %1385 = vmatprep.mubr.bf16.mxu0 0
      %1386 = vmatmul.mubr.bf16.gmra.mrb[0].mxu0 %v1337
      %v1387 = vpop.f32.mrb[0].mxu0
      %v1388 = vadd.f32 0.0, %v1387
      %v1389 = vpop.f32.mrb[0].mxu0
      %v1390 = vpop.f32.mrb[0].mxu0
      %v1391 = vadd.f32 0.0, %v1390
      %v1392 = vpop.f32.mrb[0].mxu0
      %1393 = vmatprep.mubr.bf16.mxu0 0
      %1394 = vmatmul.mubr.bf16.gmra.mrb[0].mxu0 %v1340
      %v1395 = vpop.f32.mrb[0].mxu0
      %v1396 = vadd.f32 0.0, %v1395
      %v1397 = vpop.f32.mrb[0].mxu0
      %v1398 = vpop.f32.mrb[0].mxu0
      %v1399 = vadd.f32 0.0, %v1398
      %v1400 = vpop.f32.mrb[0].mxu0
      %1401 = vmatprep.mubr.bf16.mxu0 0
      %1402 = vmatmul.mubr.bf16.gmra.mrb[0].mxu0 %v1343
      %v1403 = vpop.f32.mrb[0].mxu0
      %v1404 = vadd.f32 0.0, %v1403
      %v1405 = vpop.f32.mrb[0].mxu0
      %v1406 = vpop.f32.mrb[0].mxu0
      %v1407 = vadd.f32 0.0, %v1406
      %v1408 = vpop.f32.mrb[0].mxu0
      %1409 = vdwg.mxu0
      %v1410 = vadd.f32 %v1304, %v1380
      %v1411 = vadd.f32 %v1305, %v1383
      %v1412 = vadd.f32 %v1306, %v1388
      %v1413 = vadd.f32 %v1307, %v1391
      %v1414 = vadd.f32 %v1308, %v1396
      %v1415 = vadd.f32 %v1309, %v1399
      %v1416 = vadd.f32 %v1310, %v1404
      %v1417 = vadd.f32 %v1311, %v1407
      %v1418 = vld [vmem:[%s466 + $0x2] sm:$0xff]
      %v1419 = vld [vmem:[%s466 + $0x12] sm:$0xff]
      %v1420 = vld [vmem:[%s466 + $0x22] sm:$0xff]
      %v1421 = vld [vmem:[%s466 + $0x32] sm:$0xff]
      %v1422 = vld [vmem:[%s466 + $0x42] sm:$0xff]
      %v1423 = vld [vmem:[%s466 + $0x52] sm:$0xff]
      %v1424 = vld [vmem:[%s466 + $0x62] sm:$0xff]
      %v1425 = vld [vmem:[%s466 + $0x72] sm:$0xff]
      %v1426 = vpack.c.bf16 %v1419, %v1418
      %v1427 = vpack.c.bf16 %v1421, %v1420
      %v1428 = vpack.c.bf16 %v1423, %v1422
      %v1429 = vpack.c.bf16 %v1425, %v1424
      %s1430 = scalar_lea.vmem %s1, 64
      %v1431 = vld [vmem:[%s1430] sm:$0xf]
      %v1432 = vld [vmem:[%s1430 + $0x4] sm:$0xf]
      %v1435 = vunpack.c.l.b16 %v1431
      %v1436 = vunpack.c.l.b16 %v1432
      %v1437 = vpack.c.b16 %v1436, %v1435
      %v1440 = vsel %vm333, %v1426, 0
      %v1443 = vsel %vm333, %v1427, 0
      %v1446 = vsel %vm333, %v1428, 0
      %v1449 = vsel %vm333, %v1429, 0
      %1451 = vmatprep.subr.bf16.mxu0 0
      %1452 = vmatpush1.bf16.msra.mxu0 %v1437
      %1453 = vmatprep.subr.bf16.mxu0 0
      %1454 = vmatpush1.bf16.msra.mxu0 0
      %1455 = vmatprep.subr.bf16.mxu0 0
      %1456 = vmatpush1.bf16.msra.mxu0 0
      %1457 = vmatprep.subr.bf16.mxu0 0
      %1458 = vmatpush1.bf16.msra.mxu0 0
      %1459 = vmatprep.subr.bf16.mxu0 0
      %1460 = vmatpush1.bf16.msra.mxu0 0
      %1461 = vmatprep.subr.bf16.mxu0 0
      %1462 = vmatpush1.bf16.msra.mxu0 0
      %1463 = vmatprep.subr.bf16.mxu0 0
      %1464 = vmatpush1.bf16.msra.mxu0 0
      %1465 = vmatprep.subr.bf16.mxu0 0
      %1466 = vmatpush1.bf16.msra.mxu0 0
      %1467 = vmatprep.subr.bf16.mxu0 0
      %1468 = vmatpush1.bf16.msra.mxu0 0
      %1469 = vmatprep.subr.bf16.mxu0 0
      %1470 = vmatpush1.bf16.msra.mxu0 0
      %1471 = vmatprep.subr.bf16.mxu0 0
      %1472 = vmatpush1.bf16.msra.mxu0 0
      %1473 = vmatprep.subr.bf16.mxu0 0
      %1474 = vmatpush1.bf16.msra.mxu0 0
      %1475 = vmatprep.subr.bf16.mxu0 0
      %1476 = vmatpush1.bf16.msra.mxu0 0
      %1477 = vmatprep.subr.bf16.mxu0 0
      %1478 = vmatpush1.bf16.msra.mxu0 0
      %1479 = vmatprep.subr.bf16.mxu0 0
      %1480 = vmatpush1.bf16.msra.mxu0 0
      %1481 = vmatprep.subr.bf16.mxu0 0
      %1482 = vmatpush1.bf16.msra.mxu0 0
      %1483 = vmatprep.mubr.bf16.mxu0 0
      %1484 = vmatmul.mubr.bf16.gmra.mrb[0].mxu0 %v1440
      %v1485 = vpop.f32.mrb[0].mxu0
      %v1486 = vadd.f32 0.0, %v1485
      %v1487 = vpop.f32.mrb[0].mxu0
      %v1488 = vpop.f32.mrb[0].mxu0
      %v1489 = vadd.f32 0.0, %v1488
      %v1490 = vpop.f32.mrb[0].mxu0
      %1491 = vmatprep.mubr.bf16.mxu0 0
      %1492 = vmatmul.mubr.bf16.gmra.mrb[0].mxu0 %v1443
      %v1493 = vpop.f32.mrb[0].mxu0
      %v1494 = vadd.f32 0.0, %v1493
      %v1495 = vpop.f32.mrb[0].mxu0
      %v1496 = vpop.f32.mrb[0].mxu0
      %v1497 = vadd.f32 0.0, %v1496
      %v1498 = vpop.f32.mrb[0].mxu0
      %1499 = vmatprep.mubr.bf16.mxu0 0
      %1500 = vmatmul.mubr.bf16.gmra.mrb[0].mxu0 %v1446
      %v1501 = vpop.f32.mrb[0].mxu0
      %v1502 = vadd.f32 0.0, %v1501
      %v1503 = vpop.f32.mrb[0].mxu0
      %v1504 = vpop.f32.mrb[0].mxu0
      %v1505 = vadd.f32 0.0, %v1504
      %v1506 = vpop.f32.mrb[0].mxu0
      %1507 = vmatprep.mubr.bf16.mxu0 0
      %1508 = vmatmul.mubr.bf16.gmra.mrb[0].mxu0 %v1449
      %v1509 = vpop.f32.mrb[0].mxu0
      %v1510 = vadd.f32 0.0, %v1509
      %v1511 = vpop.f32.mrb[0].mxu0
      %v1512 = vpop.f32.mrb[0].mxu0
      %v1513 = vadd.f32 0.0, %v1512
      %v1514 = vpop.f32.mrb[0].mxu0
      %1515 = vdwg.mxu0
      %v1516 = vadd.f32 %v1410, %v1486
      %v1517 = vadd.f32 %v1411, %v1489
      %v1518 = vadd.f32 %v1412, %v1494
      %v1519 = vadd.f32 %v1413, %v1497
      %v1520 = vadd.f32 %v1414, %v1502
      %v1521 = vadd.f32 %v1415, %v1505
      %v1522 = vadd.f32 %v1416, %v1510
      %v1523 = vadd.f32 %v1417, %v1513
      %v1524 = vld [vmem:[%s2] sm:$0x1]
      %v1525 = vlaneseq
      %v1526 = vshrl.u32 %v1525, 7
      %v1527 = vsub.s32 0, %v1526
      %v1528 = vrot.slane %v1524, %v1527
      %v1529 = vmul.f32 %v1516, %v1528
      %v1530 = vmul.f32 %v1517, %v1528
      %v1531 = vmul.f32 %v1518, %v1528
      %v1532 = vmul.f32 %v1519, %v1528
      %v1533 = vmul.f32 %v1520, %v1528
      %v1534 = vmul.f32 %v1521, %v1528
      %v1535 = vmul.f32 %v1522, %v1528
      %v1536 = vmul.f32 %v1523, %v1528
      %v1537 = vld [vmem:[%s2 + $0x1] sm:$0x1]
      %v1538 = vlaneseq
      %v1539 = vshrl.u32 %v1538, 7
      %v1540 = vsub.s32 0, %v1539
      %v1541 = vrot.slane %v1537, %v1540
      %v1542 = vadd.f32 %v1529, %v1541
      %v1543 = vadd.f32 %v1530, %v1541
      %v1544 = vadd.f32 %v1531, %v1541
      %v1545 = vadd.f32 %v1532, %v1541
      %v1546 = vadd.f32 %v1533, %v1541
      %v1547 = vadd.f32 %v1534, %v1541
      %v1548 = vadd.f32 %v1535, %v1541
      %v1549 = vadd.f32 %v1536, %v1541
      %1558 = vrot.lane.b32.xlu0 %v1542, 96
      %v1559 = vpop.permute.xlu0 %1558
      %1560 = vrot.lane.b32.xlu0 %v1543, 96
      %v1561 = vpop.permute.xlu0 %1560
      %1562 = vrot.lane.b32.xlu0 %v1544, 96
      %v1563 = vpop.permute.xlu0 %1562
      %1564 = vrot.lane.b32.xlu0 %v1545, 96
      %v1565 = vpop.permute.xlu0 %1564
      %1566 = vrot.lane.b32.xlu0 %v1546, 96
      %v1567 = vpop.permute.xlu0 %1566
      %1568 = vrot.lane.b32.xlu0 %v1547, 96
      %v1569 = vpop.permute.xlu0 %1568
      %1570 = vrot.lane.b32.xlu0 %v1548, 96
      %v1571 = vpop.permute.xlu0 %1570
      %1572 = vrot.lane.b32.xlu0 %v1549, 96
      %v1573 = vpop.permute.xlu0 %1572
      %v1582 = vadd.f32 %v1542, %v1559
      %v1583 = vadd.f32 %v1543, %v1561
      %v1584 = vadd.f32 %v1544, %v1563
      %v1585 = vadd.f32 %v1545, %v1565
      %v1586 = vadd.f32 %v1546, %v1567
      %v1587 = vadd.f32 %v1547, %v1569
      %v1588 = vadd.f32 %v1548, %v1571
      %v1589 = vadd.f32 %v1549, %v1573
      %v1590 = vld [vmem:[%s2 + $0x2] sm:$0x1]
      %v1591 = vlaneseq
      %v1592 = vshrl.u32 %v1591, 7
      %v1593 = vsub.s32 0, %v1592
      %v1594 = vrot.slane %v1590, %v1593
      %v1595 = vmul.f32 %v361, %v1594
      %v1596 = vmul.f32 %v362, %v1594
      %v1597 = vmul.f32 %v363, %v1594
      %v1598 = vmul.f32 %v364, %v1594
      %v1599 = vmul.f32 %v365, %v1594
      %v1600 = vmul.f32 %v366, %v1594
      %v1601 = vmul.f32 %v367, %v1594
      %v1602 = vmul.f32 %v368, %v1594
      %v1603 = vadd.f32 %v1582, %v1595
      %v1604 = vadd.f32 %v1583, %v1596
      %v1605 = vadd.f32 %v1584, %v1597
      %v1606 = vadd.f32 %v1585, %v1598
      %v1607 = vadd.f32 %v1586, %v1599
      %v1608 = vadd.f32 %v1587, %v1600
      %v1609 = vadd.f32 %v1588, %v1601
      %v1610 = vadd.f32 %v1589, %v1602
      %v1611 = vld [vmem:[%s2 + $0x3] sm:$0x1]
      %v1612 = vlaneseq
      %v1613 = vshrl.u32 %v1612, 7
      %v1614 = vsub.s32 0, %v1613
      %v1615 = vrot.slane %v1611, %v1614
      %v1616 = vmul.f32 %v563, %v1615
      %v1617 = vmul.f32 %v564, %v1615
      %v1618 = vmul.f32 %v565, %v1615
      %v1619 = vmul.f32 %v566, %v1615
      %v1620 = vmul.f32 %v567, %v1615
      %v1621 = vmul.f32 %v568, %v1615
      %v1622 = vmul.f32 %v569, %v1615
      %v1623 = vmul.f32 %v570, %v1615
      %v1624 = vadd.f32 %v1603, %v1616
      %v1625 = vadd.f32 %v1604, %v1617
      %v1626 = vadd.f32 %v1605, %v1618
      %v1627 = vadd.f32 %v1606, %v1619
      %v1628 = vadd.f32 %v1607, %v1620
      %v1629 = vadd.f32 %v1608, %v1621
      %v1630 = vadd.f32 %v1609, %v1622
      %v1631 = vadd.f32 %v1610, %v1623
      %v1632 = vld [vmem:[%s316] sm:$0xff]
      %v1633 = vld [vmem:[%s316 + $0x8] sm:$0xff]
      %v1634 = vld [vmem:[%s316 + $0x10] sm:$0xff]
      %v1635 = vld [vmem:[%s316 + $0x18] sm:$0xff]
      %v1636 = vld [vmem:[%s316 + $0x20] sm:$0xff]
      %v1637 = vld [vmem:[%s316 + $0x28] sm:$0xff]
      %v1638 = vld [vmem:[%s316 + $0x30] sm:$0xff]
      %v1639 = vld [vmem:[%s316 + $0x38] sm:$0xff]
      %v1640 = vadd.f32 %v1632, %v1624
      %v1641 = vadd.f32 %v1633, %v1625
      %v1642 = vadd.f32 %v1634, %v1626
      %v1643 = vadd.f32 %v1635, %v1627
      %v1644 = vadd.f32 %v1636, %v1628
      %v1645 = vadd.f32 %v1637, %v1629
      %v1646 = vadd.f32 %v1638, %v1630
      %v1647 = vadd.f32 %v1639, %v1631
      %1648 = vst.msk [vmem:[%s326] sm:$0xff] %vm333, %v1640
      %1649 = vst.msk [vmem:[%s326 + $0x8] sm:$0xff] %vm333, %v1641
      %1650 = vst.msk [vmem:[%s326 + $0x10] sm:$0xff] %vm333, %v1642
      %1651 = vst.msk [vmem:[%s326 + $0x18] sm:$0xff] %vm333, %v1643
      %1652 = vst.msk [vmem:[%s326 + $0x20] sm:$0xff] %vm333, %v1644
      %1653 = vst.msk [vmem:[%s326 + $0x28] sm:$0xff] %vm333, %v1645
      %1654 = vst.msk [vmem:[%s326 + $0x30] sm:$0xff] %vm333, %v1646
      %1655 = vst.msk [vmem:[%s326 + $0x38] sm:$0xff] %vm333, %v1647
      %v1656 = vld [vmem:[%s2 + $0x2] sm:$0x1]
      %v1657 = vlaneseq
      %v1658 = vshrl.u32 %v1657, 7
      %v1659 = vsub.s32 0, %v1658
      %v1660 = vrot.slane %v1656, %v1659
      %1662 = vrot.lane.b32.xlu0 %v1660, 112
      %v1663 = vpop.permute.xlu0 %1662
      %v1665 = vmul.f32 %v361, %v1663
      %v1666 = vmul.f32 %v362, %v1663
      %v1667 = vmul.f32 %v363, %v1663
      %v1668 = vmul.f32 %v364, %v1663
      %v1669 = vmul.f32 %v365, %v1663
      %v1670 = vmul.f32 %v366, %v1663
      %v1671 = vmul.f32 %v367, %v1663
      %v1672 = vmul.f32 %v368, %v1663
      %1681 = vrot.lane.b32.xlu0 %v1665, 16
      %v1682 = vpop.permute.xlu0 %1681
      %1683 = vrot.lane.b32.xlu0 %v1666, 16
      %v1684 = vpop.permute.xlu0 %1683
      %1685 = vrot.lane.b32.xlu0 %v1667, 16
      %v1686 = vpop.permute.xlu0 %1685
      %1687 = vrot.lane.b32.xlu0 %v1668, 16
      %v1688 = vpop.permute.xlu0 %1687
      %1689 = vrot.lane.b32.xlu0 %v1669, 16
      %v1690 = vpop.permute.xlu0 %1689
      %1691 = vrot.lane.b32.xlu0 %v1670, 16
      %v1692 = vpop.permute.xlu0 %1691
      %1693 = vrot.lane.b32.xlu0 %v1671, 16
      %v1694 = vpop.permute.xlu0 %1693
      %1695 = vrot.lane.b32.xlu0 %v1672, 16
      %v1696 = vpop.permute.xlu0 %1695
      %v1705 = vadd.f32 %v1582, %v1682
      %v1706 = vadd.f32 %v1583, %v1684
      %v1707 = vadd.f32 %v1584, %v1686
      %v1708 = vadd.f32 %v1585, %v1688
      %v1709 = vadd.f32 %v1586, %v1690
      %v1710 = vadd.f32 %v1587, %v1692
      %v1711 = vadd.f32 %v1588, %v1694
      %v1712 = vadd.f32 %v1589, %v1696
      %v1713 = vld [vmem:[%s2 + $0x3] sm:$0x1]
      %v1714 = vlaneseq
      %v1715 = vshrl.u32 %v1714, 7
      %v1716 = vsub.s32 0, %v1715
      %v1717 = vrot.slane %v1713, %v1716
      %1719 = vrot.lane.b32.xlu0 %v1717, 112
      %v1720 = vpop.permute.xlu0 %1719
      %v1722 = vmul.f32 %v563, %v1720
      %v1723 = vmul.f32 %v564, %v1720
      %v1724 = vmul.f32 %v565, %v1720
      %v1725 = vmul.f32 %v566, %v1720
      %v1726 = vmul.f32 %v567, %v1720
      %v1727 = vmul.f32 %v568, %v1720
      %v1728 = vmul.f32 %v569, %v1720
      %v1729 = vmul.f32 %v570, %v1720
      %1738 = vrot.lane.b32.xlu0 %v1722, 16
      %v1739 = vpop.permute.xlu0 %1738
      %1740 = vrot.lane.b32.xlu0 %v1723, 16
      %v1741 = vpop.permute.xlu0 %1740
      %1742 = vrot.lane.b32.xlu0 %v1724, 16
      %v1743 = vpop.permute.xlu0 %1742
      %1744 = vrot.lane.b32.xlu0 %v1725, 16
      %v1745 = vpop.permute.xlu0 %1744
      %1746 = vrot.lane.b32.xlu0 %v1726, 16
      %v1747 = vpop.permute.xlu0 %1746
      %1748 = vrot.lane.b32.xlu0 %v1727, 16
      %v1749 = vpop.permute.xlu0 %1748
      %1750 = vrot.lane.b32.xlu0 %v1728, 16
      %v1751 = vpop.permute.xlu0 %1750
      %1752 = vrot.lane.b32.xlu0 %v1729, 16
      %v1753 = vpop.permute.xlu0 %1752
      %v1762 = vadd.f32 %v1705, %v1739
      %v1763 = vadd.f32 %v1706, %v1741
      %v1764 = vadd.f32 %v1707, %v1743
      %v1765 = vadd.f32 %v1708, %v1745
      %v1766 = vadd.f32 %v1709, %v1747
      %v1767 = vadd.f32 %v1710, %v1749
      %v1768 = vadd.f32 %v1711, %v1751
      %v1769 = vadd.f32 %v1712, %v1753
      %v1770 = vld [vmem:[%s321] sm:$0xff]
      %v1771 = vld [vmem:[%s321 + $0x8] sm:$0xff]
      %v1772 = vld [vmem:[%s321 + $0x10] sm:$0xff]
      %v1773 = vld [vmem:[%s321 + $0x18] sm:$0xff]
      %v1774 = vld [vmem:[%s321 + $0x20] sm:$0xff]
      %v1775 = vld [vmem:[%s321 + $0x28] sm:$0xff]
      %v1776 = vld [vmem:[%s321 + $0x30] sm:$0xff]
      %v1777 = vld [vmem:[%s321 + $0x38] sm:$0xff]
      %1786 = vrot.lane.b32.xlu0 %v1762, 112
      %v1787 = vpop.permute.xlu0 %1786
      %1788 = vrot.lane.b32.xlu0 %v1763, 112
      %v1789 = vpop.permute.xlu0 %1788
      %1790 = vrot.lane.b32.xlu0 %v1764, 112
      %v1791 = vpop.permute.xlu0 %1790
      %1792 = vrot.lane.b32.xlu0 %v1765, 112
      %v1793 = vpop.permute.xlu0 %1792
      %1794 = vrot.lane.b32.xlu0 %v1766, 112
      %v1795 = vpop.permute.xlu0 %1794
      %1796 = vrot.lane.b32.xlu0 %v1767, 112
      %v1797 = vpop.permute.xlu0 %1796
      %1798 = vrot.lane.b32.xlu0 %v1768, 112
      %v1799 = vpop.permute.xlu0 %1798
      %1800 = vrot.lane.b32.xlu0 %v1769, 112
      %v1801 = vpop.permute.xlu0 %1800
      %v1810 = vadd.f32 %v1770, %v1787
      %v1811 = vadd.f32 %v1771, %v1789
      %v1812 = vadd.f32 %v1772, %v1791
      %v1813 = vadd.f32 %v1773, %v1793
      %v1814 = vadd.f32 %v1774, %v1795
      %v1815 = vadd.f32 %v1775, %v1797
      %v1816 = vadd.f32 %v1776, %v1799
      %v1817 = vadd.f32 %v1777, %v1801
      %1818 = vst.msk [vmem:[%s331] sm:$0xff] %vm333, %v1810
      %1819 = vst.msk [vmem:[%s331 + $0x8] sm:$0xff] %vm333, %v1811
      %1820 = vst.msk [vmem:[%s331 + $0x10] sm:$0xff] %vm333, %v1812
      %1821 = vst.msk [vmem:[%s331 + $0x18] sm:$0xff] %vm333, %v1813
      %1822 = vst.msk [vmem:[%s331 + $0x20] sm:$0xff] %vm333, %v1814
      %1823 = vst.msk [vmem:[%s331 + $0x28] sm:$0xff] %vm333, %v1815
      %1824 = vst.msk [vmem:[%s331 + $0x30] sm:$0xff] %vm333, %v1816
      %1825 = vst.msk [vmem:[%s331 + $0x38] sm:$0xff] %vm333, %v1817
      %p1826 = scmp.lt.s32.totalorder %s19, 1
      %s1827 = scalar_select %p1826, %s19, 1
      %s1828 = smul.addr %s1827, 8
      %s1829 = smul.addr %s1828, 8
      %s1830 = scalar_lea.vmem %s6, %s1829
      %p1831 = scmp.lt.s32.totalorder %s19, 1
      %s1832 = scalar_select %p1831, %s19, 1
      %s1833 = smul.addr %s1832, 8
      %s1834 = smul.addr %s1833, 8
      %s1835 = scalar_lea.vmem %s7, %s1834
      // Predicated region
      $region45: #{search_cell_forward.9} parent=43 // pred_check
        %p1836 = pneg %p178
      $region46: #{search_cell_forward.9} parent=43 // pred_check_branch
        %1838 = sbr.rel (%p1836) target = $region48
      $region47: #{search_cell_forward.9} parent=43 // pred_region
        _
      $region48: #{search_cell_forward.9} parent=43 // pred_fallthru
        _
      // Predicated region
      $region49: #{search_cell_forward.9} parent=43 // pred_check
        %p1839 = pneg %p204
      $region50: #{search_cell_forward.9} parent=43 // pred_check_branch
        %1841 = sbr.rel (%p1839) target = $region52
      $region51: #{search_cell_forward.9} parent=43 // pred_region
        _
      $region52: #{search_cell_forward.9} parent=43 // pred_fallthru
        _
    $region44: #{search_cell_forward.9} parent=5 // pred_fallthru
      _
    %p1842 = scmp.le.s32.totalorder 2, %s14
    // Predicated region
    $region53: #{search_cell_forward.9} parent=5 // pred_check
      %p1843 = pneg %p1842
    $region54: #{search_cell_forward.9} parent=5 // pred_check_branch
      %1845 = sbr.rel (%p1843) target = $region56
    $region55: #{search_cell_forward.9} parent=5 // pred_region
      %s1846 = ssub.s32 %s14, 2
      // Predicated region
      $region57: #{search_cell_forward.9} parent=55 // pred_check
        %p1847 = pneg %p184
      $region58: #{search_cell_forward.9} parent=55 // pred_check_branch
        %1849 = sbr.rel (%p1847) target = $region60
      $region59: #{search_cell_forward.9} parent=55 // pred_region
        %p1850 = scmp.lt.s32.totalorder %s20, 1
        %s1851 = scalar_select %p1850, %s20, 1
        %s1852 = smul.addr %s1851, 8
        %s1853 = smul.addr %s1852, 8
        %s1854 = scalar_lea.vmem %s6, %s1853
      $region60: #{search_cell_forward.9} parent=55 // pred_fallthru
        _
      // Predicated region
      $region61: #{search_cell_forward.9} parent=55 // pred_check
        %p1855 = pneg %p210
      $region62: #{search_cell_forward.9} parent=55 // pred_check_branch
        %1857 = sbr.rel (%p1855) target = $region64
      $region63: #{search_cell_forward.9} parent=55 // pred_region
        %p1858 = scmp.lt.s32.totalorder %s20, 1
        %s1859 = scalar_select %p1858, %s20, 1
        %s1860 = smul.addr %s1859, 8
        %s1861 = smul.addr %s1860, 8
        %s1862 = scalar_lea.vmem %s7, %s1861
      $region64: #{search_cell_forward.9} parent=55 // pred_fallthru
        _
    $region56: #{search_cell_forward.9} parent=5 // pred_fallthru
      _
  $region6: #{search_cell_forward.9} parent=0 // loop_footer
    %s18 = sadd.s32 1, %s14
  $region7: #{search_cell_forward.9} parent=0 // loop_footer_branch
    %13 = sbr.rel target = $region3
  $region8: #{search_cell_forward.9} parent=0 // loop_exit
    _

</llo_original>
